<compile_context>
chip_gen: v6e
topology: v6e:2x2x1
jax: 0.10.0
libtpu: 0.0.40
codegen_flags: <defaults>
</compile_context>

<pallas_src>
import jax
import jax.numpy as jnp
from jax import lax
from jax.experimental import pallas as pl
from jax.experimental.pallas import tpu as pltpu

_BN_EPS = 1e-5


# ----------------------------------------------------------------------------
# In-kernel helpers (trace-time Python; every shape/offset is static)
# ----------------------------------------------------------------------------
def _conv3x3_bn_tanh(in_buf_ref, w_ref, b_ref, H, W, Cin, Cout):
    """3x3 / stride 1 / pad 1 conv (BN scale folded into w) + bias + tanh.

    in_buf_ref : f32 VMEM ref (Lbuf, Cin) in "haloed padded-flat" layout:
                 rows [OFF, OFF + L) hold the zero-padded (H+2, W+2) image
                 row-major; the OFF-row margins on each side are zero.
    Returns an f32 value (L, Cout) in padded-flat layout (border rows are
    garbage -- callers only consume interior rows).
    """
    Hp, Wp = H + 2, W + 2
    L = Hp * Wp
    OFF = Wp + 1
    acc = jnp.zeros((L, Cout), jnp.float32)
    for ky in range(3):
        for kx in range(3):
            t = ky * 3 + kx
            o = (ky - 1) * Wp + (kx - 1)
            xs = in_buf_ref[pl.ds(OFF + o, L), :].astype(jnp.bfloat16)
            wt = w_ref[pl.ds(t * Cin, Cin), :]                 # (Cin, Cout) bf16
            acc = acc + jnp.dot(xs, wt, preferred_element_type=jnp.float32)
    return jnp.tanh(acc + b_ref[...])


def _copy_valid_to_buf(y_pad, dst_ref, H, W):
    """Write interior rows of padded-flat y into a same-resolution haloed
    buffer (its borders / margins stay zero)."""
    Wp = W + 2
    OFF = Wp + 1
    for h in range(H):
        p0 = (h + 1) * Wp + 1
        dst_ref[pl.ds(OFF + p0, W), :] = y_pad[p0:p0 + W, :]


def _copy_valid_to_out(y_pad, out_ref, H, W):
    """Write interior rows of padded-flat y to a (H*W, C) output block."""
    Wp = W + 2
    for h in range(H):
        p0 = (h + 1) * Wp + 1
        out_ref[pl.ds(h * W, W), :] = y_pad[p0:p0 + W, :].astype(out_ref.dtype)


def _pool_selectors(W):
    """(W//2, W) 0/1 matrices selecting even / odd columns (for compaction)."""
    W2 = W // 2
    r = lax.broadcasted_iota(jnp.int32, (W2, W), 0)
    c = lax.broadcasted_iota(jnp.int32, (W2, W), 1)
    s_even = (c == 2 * r).astype(jnp.float32)
    s_odd = (c == 2 * r + 1).astype(jnp.float32)
    return s_even, s_odd


def _maxpool_into_buf(y, dst_ref, H, W, padded_src):
    """2x2 / stride 2 max-pool of y, written into the next stage's haloed
    buffer (interior positions only; borders stay zero)."""
    H2, W2 = H // 2, W // 2
    Wp_src = W + 2
    Wp_dst = W2 + 2
    OFF_dst = Wp_dst + 1
    s_even, s_odd = _pool_selectors(W)
    for h2 in range(H2):
        if padded_src:
            b0 = (2 * h2 + 1) * Wp_src + 1
            b1 = (2 * h2 + 2) * Wp_src + 1
        else:  # valid (H*W, C) layout
            b0 = (2 * h2) * W
            b1 = (2 * h2 + 1) * W
        m = jnp.maximum(y[b0:b0 + W, :], y[b1:b1 + W, :])          # (W, C)
        pooled = jnp.maximum(
            jnp.dot(s_even, m, preferred_element_type=jnp.float32),
            jnp.dot(s_odd, m, preferred_element_type=jnp.float32))  # (W2, C)
        dst_ref[pl.ds(OFF_dst + (h2 + 1) * Wp_dst + 1, W2), :] = pooled


def _make_encoder_kernel(H, W):
    H1, W1 = H // 2, W // 2
    H2, W2 = H1 // 2, W1 // 2
    H3, W3 = H2 // 2, W2 // 2

    def kernel(x0c_ref, w0_ref, b0_ref,
               w1a_ref, b1a_ref, w1b_ref, b1b_ref,
               w2a_ref, b2a_ref, w2b_ref, b2b_ref,
               w3_ref, b3_ref,
               out0_ref, out1_ref, out2_ref, out3_ref,
               buf1a, buf1b, buf2a, buf2b, buf3a):
        # Scratch persists across grid steps -> re-zero halo buffers so that
        # padding borders / margins are exactly zero for every batch element.
        for buf in (buf1a, buf1b, buf2a, buf2b, buf3a):
            buf[...] = jnp.zeros_like(buf)

        # ---- d0: Conv_block(1, 64) at full resolution ----------------------
        y0 = jnp.tanh(jnp.dot(x0c_ref[...], w0_ref[...],
                              preferred_element_type=jnp.float32) + b0_ref[...])
        out0_ref[...] = y0.astype(out0_ref.dtype)                # (H*W, 64)
        _maxpool_into_buf(y0, buf1a, H, W, padded_src=False)

        # ---- d1: MaxPool -> Conv_block(64, 64) -> Conv_block(64, 128) ------
        y = _conv3x3_bn_tanh(buf1a, w1a_ref, b1a_ref, H1, W1, 64, 64)
        _copy_valid_to_buf(y, buf1b, H1, W1)
        y = _conv3x3_bn_tanh(buf1b, w1b_ref, b1b_ref, H1, W1, 64, 128)
        _copy_valid_to_out(y, out1_ref, H1, W1)
        _maxpool_into_buf(y, buf2a, H1, W1, padded_src=True)

        # ---- d2: MaxPool -> Conv_block(128, 128) -> Conv_block(128, 128) ---
        y = _conv3x3_bn_tanh(buf2a, w2a_ref, b2a_ref, H2, W2, 128, 128)
        _copy_valid_to_buf(y, buf2b, H2, W2)
        y = _conv3x3_bn_tanh(buf2b, w2b_ref, b2b_ref, H2, W2, 128, 128)
        _copy_valid_to_out(y, out2_ref, H2, W2)
        _maxpool_into_buf(y, buf3a, H2, W2, padded_src=True)

        # ---- d3: MaxPool -> Conv_block(128, 256) ----------------------------
        y = _conv3x3_bn_tanh(buf3a, w3_ref, b3_ref, H3, W3, 128, 256)
        _copy_valid_to_out(y, out3_ref, H3, W3)

    return kernel


# ----------------------------------------------------------------------------
# Host-side wrapper
# ----------------------------------------------------------------------------
def _im2col_1ch(x_nhw):
    """(N, H, W) 1-channel im2col -> (N, H*W, 16) f32 (9 taps, zero-padded)."""
    N, H, W = x_nhw.shape
    xp = jnp.pad(x_nhw, ((0, 0), (1, 1), (1, 1)))
    cols = [xp[:, ky:ky + H, kx:kx + W] for ky in range(3) for kx in range(3)]
    c = jnp.stack(cols, axis=-1).reshape(N, H * W, 9)
    return jnp.pad(c, ((0, 0), (0, 0), (0, 7))).astype(jnp.float32)


def _halo_len(h, w):
    # padded-flat length (h+2)*(w+2) plus a (w+3)-row zero margin on each side
    return (h + 2) * (w + 2) + 2 * (w + 3)


def encoder_forward(x_nchw, kp):
    """Forward pass matching encoder.forward (eval-mode BatchNorm)."""
    N, Cin, H, W = x_nchw.shape
    assert Cin == 1
    H1, W1 = H // 2, W // 2
    H2, W2 = H1 // 2, W1 // 2
    H3, W3 = H2 // 2, W2 // 2

    x0c = _im2col_1ch(x_nchw[:, 0, :, :])

    def wspec(r, c):
        return pl.BlockSpec((r, c), lambda i: (0, 0))

    grid_spec = pltpu.PrefetchScalarGridSpec(
        num_scalar_prefetch=0,
        grid=(N,),
        in_specs=[
            pl.BlockSpec((None, H * W, 16), lambda i: (i, 0, 0)),
            wspec(16, 64), wspec(1, 64),
            wspec(9 * 64, 64), wspec(1, 64),
            wspec(9 * 64, 128), wspec(1, 128),
            wspec(9 * 128, 128), wspec(1, 128),
            wspec(9 * 128, 128), wspec(1, 128),
            wspec(9 * 128, 256), wspec(1, 256),
        ],
        out_specs=[
            pl.BlockSpec((None, H * W, 64), lambda i: (i, 0, 0)),
            pl.BlockSpec((None, H1 * W1, 128), lambda i: (i, 0, 0)),
            pl.BlockSpec((None, H2 * W2, 128), lambda i: (i, 0, 0)),
            pl.BlockSpec((None, H3 * W3, 256), lambda i: (i, 0, 0)),
        ],
        scratch_shapes=[
            pltpu.VMEM((_halo_len(H1, W1), 64), jnp.float32),
            pltpu.VMEM((_halo_len(H1, W1), 64), jnp.float32),
            pltpu.VMEM((_halo_len(H2, W2), 128), jnp.float32),
            pltpu.VMEM((_halo_len(H2, W2), 128), jnp.float32),
            pltpu.VMEM((_halo_len(H3, W3), 128), jnp.float32),
        ],
    )

    out0, out1, out2, out3 = pl.pallas_call(
        _make_encoder_kernel(H, W),
        out_shape=(
            jax.ShapeDtypeStruct((N, H * W, 64), jnp.float32),
            jax.ShapeDtypeStruct((N, H1 * W1, 128), jnp.float32),
            jax.ShapeDtypeStruct((N, H2 * W2, 128), jnp.float32),
            jax.ShapeDtypeStruct((N, H3 * W3, 256), jnp.float32),
        ),
        grid_spec=grid_spec,
        compiler_params=pltpu.CompilerParams(
            dimension_semantics=("parallel",)),
    )(x0c, kp['w0'], kp['b0'], kp['w1a'], kp['b1a'], kp['w1b'], kp['b1b'],
      kp['w2a'], kp['b2a'], kp['w2b'], kp['b2b'], kp['w3'], kp['b3'])

    def to_nchw(o, h, w, c):
        return jnp.transpose(o.reshape(N, h, w, c), (0, 3, 1, 2))

    x0 = to_nchw(out0, H, W, 64)
    x1 = to_nchw(out1, H1, W1, 128)
    x2 = to_nchw(out2, H2, W2, 128)
    x3 = to_nchw(out3, H3, W3, 256)
    l1 = x3.shape[1]
    return {
        'encode_bg': x3[:, :l1 // 8, :, :],
        'encode_ds': x3[:, :l1 // 2, :, :],
        'encode_ns': x3[:, l1 // 2:, :, :],
        '0': x0, '1': x1, '2': x2,
    }


# ----------------------------------------------------------------------------
# Deterministic parameters (shapes from the module's __init__) + folding
# ----------------------------------------------------------------------------
def init_conv_block_raw(key, cin, cout):
    k1, k2, k3, k4, k5, k6 = jax.random.split(key, 6)
    bound = 1.0 / ((cin * 9) ** 0.5)
    return dict(
        w=jax.random.uniform(k1, (cout, cin, 3, 3), jnp.float32, -bound, bound),
        b=jax.random.uniform(k2, (cout,), jnp.float32, -bound, bound),
        gamma=1.0 + 0.1 * jax.random.normal(k3, (cout,), jnp.float32),
        beta=0.1 * jax.random.normal(k4, (cout,), jnp.float32),
        mean=0.1 * jax.random.normal(k5, (cout,), jnp.float32),
        var=jnp.abs(1.0 + 0.1 * jax.random.normal(k6, (cout,), jnp.float32)),
    )


def init_encoder_raw(key):
    ks = jax.random.split(key, 6)
    return dict(
        d0=init_conv_block_raw(ks[0], 1, 64),
        d1a=init_conv_block_raw(ks[1], 64, 64),
        d1b=init_conv_block_raw(ks[2], 64, 128),
        d2a=init_conv_block_raw(ks[3], 128, 128),
        d2b=init_conv_block_raw(ks[4], 128, 128),
        d3=init_conv_block_raw(ks[5], 128, 256),
    )


def _fold_block(p, dtype):
    """Fold conv bias + eval-mode BN into (w2d * scale, bias)."""
    scale = p['gamma'] / jnp.sqrt(p['var'] + _BN_EPS)
    bias = (p['b'] - p['mean']) * scale + p['beta']
    cout, cin = p['w'].shape[0], p['w'].shape[1]
    # OIHW -> (ky, kx, ci, co) -> (9*Cin, Cout); rows ordered (ky, kx, ci)
    w2d = jnp.transpose(p['w'], (2, 3, 1, 0)).reshape(9 * cin, cout)
    w2d = (w2d * scale[None, :]).astype(dtype)
    return w2d, bias.reshape(1, cout).astype(jnp.float32)


def prepare_kernel_params(raw):
    w0, b0 = _fold_block(raw['d0'], jnp.float32)
    w0 = jnp.pad(w0, ((0, 7), (0, 0)))          # pad K: 9 -> 16
    w1a, b1a = _fold_block(raw['d1a'], jnp.bfloat16)
    w1b, b1b = _fold_block(raw['d1b'], jnp.bfloat16)
    w2a, b2a = _fold_block(raw['d2a'], jnp.bfloat16)
    w2b, b2b = _fold_block(raw['d2b'], jnp.bfloat16)
    w3, b3 = _fold_block(raw['d3'], jnp.bfloat16)
    return dict(w0=w0, b0=b0, w1a=w1a, b1a=b1a, w1b=w1b, b1b=b1b,
                w2a=w2a, b2a=b2a, w2b=w2b, b2b=b2b, w3=w3, b3=b3)


# ----------------------------------------------------------------------------
# Pure-JAX f32 reference (for numerical validation)
# ----------------------------------------------------------------------------
def _conv_block_ref(x, p):
    y = lax.conv_general_dilated(
        x, p['w'], (1, 1), ((1, 1), (1, 1)),
        dimension_numbers=('NCHW', 'OIHW', 'NCHW'),
        precision=lax.Precision.HIGHEST)
    y = y + p['b'][None, :, None, None]
    inv = (1.0 / jnp.sqrt(p['var'] + _BN_EPS))[None, :, None, None]
    y = (y - p['mean'][None, :, None, None]) * inv
    y = y * p['gamma'][None, :, None, None] + p['beta'][None, :, None, None]
    return jnp.tanh(y)


def _maxpool_ref(x):
    N, C, H, W = x.shape
    return x.reshape(N, C, H // 2, 2, W // 2, 2).max(axis=(3, 5))


def encoder_reference(x, raw):
    x0 = _conv_block_ref(x, raw['d0'])
    h = _maxpool_ref(x0)
    h = _conv_block_ref(h, raw['d1a'])
    x1 = _conv_block_ref(h, raw['d1b'])
    h = _maxpool_ref(x1)
    h = _conv_block_ref(h, raw['d2a'])
    x2 = _conv_block_ref(h, raw['d2b'])
    h = _maxpool_ref(x2)
    x3 = _conv_block_ref(h, raw['d3'])
    l1 = x3.shape[1]
    return {'encode_bg': x3[:, :l1 // 8], 'encode_ds': x3[:, :l1 // 2],
            'encode_ns': x3[:, l1 // 2:], '0': x0, '1': x1, '2': x2}


if __name__ == "__main__":
    key = jax.random.PRNGKey(0)
    k_x, k_p = jax.random.split(key)
    # MNIST-like single-channel input, spatial size divisible by 8 so the
    # three 2x2 max-pools are exact: (N=2, C=1, H=16, W=16), NCHW.
    x = jax.random.normal(k_x, (2, 1, 16, 16), dtype=jnp.float32)
    raw = init_encoder_raw(k_p)
    kparams = prepare_kernel_params(raw)

    fwd = jax.jit(encoder_forward)
    out = jax.block_until_ready(fwd(x, kparams))

    # shape checks implied by the module
    assert out['0'].shape == (2, 64, 16, 16)
    assert out['1'].shape == (2, 128, 8, 8)
    assert out['2'].shape == (2, 128, 4, 4)
    assert out['encode_bg'].shape == (2, 32, 2, 2)
    assert out['encode_ds'].shape == (2, 128, 2, 2)
    assert out['encode_ns'].shape == (2, 128, 2, 2)

    # numerical check vs pure-JAX f32 reference (kernel uses bf16 matmuls
    # with f32 accumulation -> loose tolerance)
    ref = jax.jit(encoder_reference)(x, raw)
    for name in ('0', '1', '2', 'encode_bg', 'encode_ds', 'encode_ns'):
        err = float(jnp.max(jnp.abs(out[name] - ref[name])))
        assert err < 5e-2, (name, err)

    print("KERNEL_OK")
</pallas_src>

<mosaic_0001>
module attributes {stable_mosaic.version = 11 : i64} {
  func.func @kernel(%arg0: i32, %arg1: memref<1x256x16xf32, #tpu.memory_space<vmem>>, %arg2: memref<16x64xf32, #tpu.memory_space<vmem>>, %arg3: memref<1x64xf32, #tpu.memory_space<vmem>>, %arg4: memref<576x64xbf16, #tpu.memory_space<vmem>>, %arg5: memref<1x64xf32, #tpu.memory_space<vmem>>, %arg6: memref<576x128xbf16, #tpu.memory_space<vmem>>, %arg7: memref<1x128xf32, #tpu.memory_space<vmem>>, %arg8: memref<1152x128xbf16, #tpu.memory_space<vmem>>, %arg9: memref<1x128xf32, #tpu.memory_space<vmem>>, %arg10: memref<1152x128xbf16, #tpu.memory_space<vmem>>, %arg11: memref<1x128xf32, #tpu.memory_space<vmem>>, %arg12: memref<1152x256xbf16, #tpu.memory_space<vmem>>, %arg13: memref<1x256xf32, #tpu.memory_space<vmem>>, %arg14: memref<1x256x64xf32, #tpu.memory_space<vmem>>, %arg15: memref<1x64x128xf32, #tpu.memory_space<vmem>>, %arg16: memref<1x16x128xf32, #tpu.memory_space<vmem>>, %arg17: memref<1x4x256xf32, #tpu.memory_space<vmem>>, %arg18: memref<122x64xf32, #tpu.memory_space<vmem>>, %arg19: memref<122x64xf32, #tpu.memory_space<vmem>>, %arg20: memref<50x128xf32, #tpu.memory_space<vmem>>, %arg21: memref<50x128xf32, #tpu.memory_space<vmem>>, %arg22: memref<26x128xf32, #tpu.memory_space<vmem>>) attributes {dimension_semantics = [#tpu.dimension_semantics<parallel>], iteration_bounds = array<i64: 2>, scalar_prefetch = 0 : i64, scratch_operands = 5 : i64, tpu.core_type = #tpu.core_type<tc>, window_params = [{transform_indices = @transform_0, window_bounds = array<i64: 1, 256, 16>}, {pipeline_mode = #tpu.pipeline_mode<synchronous>, transform_indices = @transform_1, window_bounds = array<i64: 16, 64>}, {pipeline_mode = #tpu.pipeline_mode<synchronous>, transform_indices = @transform_2, window_bounds = array<i64: 1, 64>}, {pipeline_mode = #tpu.pipeline_mode<synchronous>, transform_indices = @transform_3, window_bounds = array<i64: 576, 64>}, {pipeline_mode = #tpu.pipeline_mode<synchronous>, transform_indices = @transform_4, window_bounds = array<i64: 1, 64>}, {pipeline_mode = #tpu.pipeline_mode<synchronous>, transform_indices = @transform_5, window_bounds = array<i64: 576, 128>}, {pipeline_mode = #tpu.pipeline_mode<synchronous>, transform_indices = @transform_6, window_bounds = array<i64: 1, 128>}, {pipeline_mode = #tpu.pipeline_mode<synchronous>, transform_indices = @transform_7, window_bounds = array<i64: 1152, 128>}, {pipeline_mode = #tpu.pipeline_mode<synchronous>, transform_indices = @transform_8, window_bounds = array<i64: 1, 128>}, {pipeline_mode = #tpu.pipeline_mode<synchronous>, transform_indices = @transform_9, window_bounds = array<i64: 1152, 128>}, {pipeline_mode = #tpu.pipeline_mode<synchronous>, transform_indices = @transform_10, window_bounds = array<i64: 1, 128>}, {pipeline_mode = #tpu.pipeline_mode<synchronous>, transform_indices = @transform_11, window_bounds = array<i64: 1152, 256>}, {pipeline_mode = #tpu.pipeline_mode<synchronous>, transform_indices = @transform_12, window_bounds = array<i64: 1, 256>}, {transform_indices = @transform_13, window_bounds = array<i64: 1, 256, 64>}, {transform_indices = @transform_14, window_bounds = array<i64: 1, 64, 128>}, {transform_indices = @transform_15, window_bounds = array<i64: 1, 16, 128>}, {transform_indices = @transform_16, window_bounds = array<i64: 1, 4, 256>}]} {
    %cst = arith.constant 0.000000e+00 : f32
    %0 = vector.broadcast %cst : f32 to vector<122x64xf32>
    %c0 = arith.constant 0 : index
    %c0_0 = arith.constant 0 : index
    %1 = vector.load %arg18[%c0, %c0_0] : memref<122x64xf32, #tpu.memory_space<vmem>>, vector<122x64xf32>
    tpu.vector_store %arg18[%c0, %c0_0], %0 {strides = array<i32>} : memref<122x64xf32, #tpu.memory_space<vmem>>, vector<122x64xf32>,
    %cst_1 = arith.constant 0.000000e+00 : f32
    %2 = vector.broadcast %cst_1 : f32 to vector<122x64xf32>
    %c0_2 = arith.constant 0 : index
    %c0_3 = arith.constant 0 : index
    %3 = vector.load %arg19[%c0_2, %c0_3] : memref<122x64xf32, #tpu.memory_space<vmem>>, vector<122x64xf32>
    tpu.vector_store %arg19[%c0_2, %c0_3], %2 {strides = array<i32>} : memref<122x64xf32, #tpu.memory_space<vmem>>, vector<122x64xf32>,
    %cst_4 = arith.constant 0.000000e+00 : f32
    %4 = vector.broadcast %cst_4 : f32 to vector<50x128xf32>
    %c0_5 = arith.constant 0 : index
    %c0_6 = arith.constant 0 : index
    %5 = vector.load %arg20[%c0_5, %c0_6] : memref<50x128xf32, #tpu.memory_space<vmem>>, vector<50x128xf32>
    tpu.vector_store %arg20[%c0_5, %c0_6], %4 {strides = array<i32>} : memref<50x128xf32, #tpu.memory_space<vmem>>, vector<50x128xf32>,
    %cst_7 = arith.constant 0.000000e+00 : f32
    %6 = vector.broadcast %cst_7 : f32 to vector<50x128xf32>
    %c0_8 = arith.constant 0 : index
    %c0_9 = arith.constant 0 : index
    %7 = vector.load %arg21[%c0_8, %c0_9] : memref<50x128xf32, #tpu.memory_space<vmem>>, vector<50x128xf32>
    tpu.vector_store %arg21[%c0_8, %c0_9], %6 {strides = array<i32>} : memref<50x128xf32, #tpu.memory_space<vmem>>, vector<50x128xf32>,
    %cst_10 = arith.constant 0.000000e+00 : f32
    %8 = vector.broadcast %cst_10 : f32 to vector<26x128xf32>
    %c0_11 = arith.constant 0 : index
    %c0_12 = arith.constant 0 : index
    %9 = vector.load %arg22[%c0_11, %c0_12] : memref<26x128xf32, #tpu.memory_space<vmem>>, vector<26x128xf32>
    tpu.vector_store %arg22[%c0_11, %c0_12], %8 {strides = array<i32>} : memref<26x128xf32, #tpu.memory_space<vmem>>, vector<26x128xf32>,
    %c0_13 = arith.constant 0 : index
    %c0_14 = arith.constant 0 : index
    %c0_15 = arith.constant 0 : index
    %10 = vector.load %arg1[%c0_13, %c0_14, %c0_15] : memref<1x256x16xf32, #tpu.memory_space<vmem>>, vector<1x256x16xf32>
    %11 = vector.shape_cast %10 : vector<1x256x16xf32> to vector<256x16xf32>
    %c0_16 = arith.constant 0 : index
    %c0_17 = arith.constant 0 : index
    %12 = vector.load %arg2[%c0_16, %c0_17] : memref<16x64xf32, #tpu.memory_space<vmem>>, vector<16x64xf32>
    %cst_18 = arith.constant dense<0.000000e+00> : vector<256x64xf32>
    %13 = tpu.matmul %11, %12, %cst_18 {dimension_numbers = #tpu.dot_dimension_numbers<[1], [0], [0], [1], [0, 0, 1, 1], [], []>} : vector<256x16xf32>, vector<16x64xf32>, vector<256x64xf32> -> vector<256x64xf32>
    %c0_19 = arith.constant 0 : index
    %c0_20 = arith.constant 0 : index
    %14 = vector.load %arg3[%c0_19, %c0_20] : memref<1x64xf32, #tpu.memory_space<vmem>>, vector<1x64xf32>
    %15 = vector.broadcast %14 : vector<1x64xf32> to vector<256x64xf32>
    %16 = arith.addf %13, %15 : vector<256x64xf32>
    %17 = math.tanh %16 : vector<256x64xf32>
    %c0_21 = arith.constant 0 : index
    %c0_22 = arith.constant 0 : index
    %c0_23 = arith.constant 0 : index
    %18 = vector.load %arg14[%c0_21, %c0_22, %c0_23] : memref<1x256x64xf32, #tpu.memory_space<vmem>>, vector<1x256x64xf32>
    %19 = vector.shape_cast %18 : vector<1x256x64xf32> to vector<256x64xf32>
    %20 = vector.shape_cast %17 : vector<256x64xf32> to vector<1x256x64xf32>
    tpu.vector_store %arg14[%c0_21, %c0_22, %c0_23], %20 {strides = array<i32>} : memref<1x256x64xf32, #tpu.memory_space<vmem>>, vector<1x256x64xf32>,
    %21 = tpu.iota {dimensions = array<i32: 0>} : vector<8x16xi32>
    %22 = tpu.iota {dimensions = array<i32: 1>} : vector<8x16xi32>
    %c2_i32 = arith.constant 2 : i32
    %23 = vector.broadcast %c2_i32 : i32 to vector<8x16xi32>
    %24 = arith.muli %23, %21 : vector<8x16xi32>
    %25 = arith.cmpi eq, %22, %24 : vector<8x16xi32>
    %26 = arith.extui %25 : vector<8x16xi1> to vector<8x16xi32>
    %27 = arith.sitofp %26 : vector<8x16xi32> to vector<8x16xf32>
    %c2_i32_24 = arith.constant 2 : i32
    %28 = vector.broadcast %c2_i32_24 : i32 to vector<8x16xi32>
    %29 = arith.muli %28, %21 : vector<8x16xi32>
    %c1_i32 = arith.constant 1 : i32
    %30 = vector.broadcast %c1_i32 : i32 to vector<8x16xi32>
    %31 = arith.addi %29, %30 : vector<8x16xi32>
    %32 = arith.cmpi eq, %22, %31 : vector<8x16xi32>
    %33 = arith.extui %32 : vector<8x16xi1> to vector<8x16xi32>
    %34 = arith.sitofp %33 : vector<8x16xi32> to vector<8x16xf32>
    %35 = vector.extract_strided_slice %17 {offsets = [0, 0], sizes = [16, 64], strides = [1, 1]} : vector<256x64xf32> to vector<16x64xf32>
    %36 = vector.extract_strided_slice %17 {offsets = [16, 0], sizes = [16, 64], strides = [1, 1]} : vector<256x64xf32> to vector<16x64xf32>
    %37 = arith.maximumf %35, %36 : vector<16x64xf32>
    %cst_25 = arith.constant dense<0.000000e+00> : vector<8x64xf32>
    %38 = tpu.matmul %27, %37, %cst_25 {dimension_numbers = #tpu.dot_dimension_numbers<[1], [0], [0], [1], [0, 0, 1, 1], [], []>} : vector<8x16xf32>, vector<16x64xf32>, vector<8x64xf32> -> vector<8x64xf32>
    %cst_26 = arith.constant dense<0.000000e+00> : vector<8x64xf32>
    %39 = tpu.matmul %34, %37, %cst_26 {dimension_numbers = #tpu.dot_dimension_numbers<[1], [0], [0], [1], [0, 0, 1, 1], [], []>} : vector<8x16xf32>, vector<16x64xf32>, vector<8x64xf32> -> vector<8x64xf32>
    %40 = arith.maximumf %38, %39 : vector<8x64xf32>
    %c22 = arith.constant 22 : index
    %c0_27 = arith.constant 0 : index
    %41 = vector.load %arg18[%c22, %c0_27] : memref<122x64xf32, #tpu.memory_space<vmem>>, vector<8x64xf32>
    tpu.vector_store %arg18[%c22, %c0_27], %40 {strides = array<i32>} : memref<122x64xf32, #tpu.memory_space<vmem>>, vector<8x64xf32>,
    %42 = vector.extract_strided_slice %17 {offsets = [32, 0], sizes = [16, 64], strides = [1, 1]} : vector<256x64xf32> to vector<16x64xf32>
    %43 = vector.extract_strided_slice %17 {offsets = [48, 0], sizes = [16, 64], strides = [1, 1]} : vector<256x64xf32> to vector<16x64xf32>
    %44 = arith.maximumf %42, %43 : vector<16x64xf32>
    %cst_28 = arith.constant dense<0.000000e+00> : vector<8x64xf32>
    %45 = tpu.matmul %27, %44, %cst_28 {dimension_numbers = #tpu.dot_dimension_numbers<[1], [0], [0], [1], [0, 0, 1, 1], [], []>} : vector<8x16xf32>, vector<16x64xf32>, vector<8x64xf32> -> vector<8x64xf32>
    %cst_29 = arith.constant dense<0.000000e+00> : vector<8x64xf32>
    %46 = tpu.matmul %34, %44, %cst_29 {dimension_numbers = #tpu.dot_dimension_numbers<[1], [0], [0], [1], [0, 0, 1, 1], [], []>} : vector<8x16xf32>, vector<16x64xf32>, vector<8x64xf32> -> vector<8x64xf32>
    %47 = arith.maximumf %45, %46 : vector<8x64xf32>
    %c32 = arith.constant 32 : index
    %c0_30 = arith.constant 0 : index
    %48 = vector.load %arg18[%c32, %c0_30] : memref<122x64xf32, #tpu.memory_space<vmem>>, vector<8x64xf32>
    tpu.vector_store %arg18[%c32, %c0_30], %47 {strides = array<i32>} : memref<122x64xf32, #tpu.memory_space<vmem>>, vector<8x64xf32>,
    %49 = vector.extract_strided_slice %17 {offsets = [64, 0], sizes = [16, 64], strides = [1, 1]} : vector<256x64xf32> to vector<16x64xf32>
    %50 = vector.extract_strided_slice %17 {offsets = [80, 0], sizes = [16, 64], strides = [1, 1]} : vector<256x64xf32> to vector<16x64xf32>
    %51 = arith.maximumf %49, %50 : vector<16x64xf32>
    %cst_31 = arith.constant dense<0.000000e+00> : vector<8x64xf32>
    %52 = tpu.matmul %27, %51, %cst_31 {dimension_numbers = #tpu.dot_dimension_numbers<[1], [0], [0], [1], [0, 0, 1, 1], [], []>} : vector<8x16xf32>, vector<16x64xf32>, vector<8x64xf32> -> vector<8x64xf32>
    %cst_32 = arith.constant dense<0.000000e+00> : vector<8x64xf32>
    %53 = tpu.matmul %34, %51, %cst_32 {dimension_numbers = #tpu.dot_dimension_numbers<[1], [0], [0], [1], [0, 0, 1, 1], [], []>} : vector<8x16xf32>, vector<16x64xf32>, vector<8x64xf32> -> vector<8x64xf32>
    %54 = arith.maximumf %52, %53 : vector<8x64xf32>
    %c42 = arith.constant 42 : index
    %c0_33 = arith.constant 0 : index
    %55 = vector.load %arg18[%c42, %c0_33] : memref<122x64xf32, #tpu.memory_space<vmem>>, vector<8x64xf32>
    tpu.vector_store %arg18[%c42, %c0_33], %54 {strides = array<i32>} : memref<122x64xf32, #tpu.memory_space<vmem>>, vector<8x64xf32>,
    %56 = vector.extract_strided_slice %17 {offsets = [96, 0], sizes = [16, 64], strides = [1, 1]} : vector<256x64xf32> to vector<16x64xf32>
    %57 = vector.extract_strided_slice %17 {offsets = [112, 0], sizes = [16, 64], strides = [1, 1]} : vector<256x64xf32> to vector<16x64xf32>
    %58 = arith.maximumf %56, %57 : vector<16x64xf32>
    %cst_34 = arith.constant dense<0.000000e+00> : vector<8x64xf32>
    %59 = tpu.matmul %27, %58, %cst_34 {dimension_numbers = #tpu.dot_dimension_numbers<[1], [0], [0], [1], [0, 0, 1, 1], [], []>} : vector<8x16xf32>, vector<16x64xf32>, vector<8x64xf32> -> vector<8x64xf32>
    %cst_35 = arith.constant dense<0.000000e+00> : vector<8x64xf32>
    %60 = tpu.matmul %34, %58, %cst_35 {dimension_numbers = #tpu.dot_dimension_numbers<[1], [0], [0], [1], [0, 0, 1, 1], [], []>} : vector<8x16xf32>, vector<16x64xf32>, vector<8x64xf32> -> vector<8x64xf32>
    %61 = arith.maximumf %59, %60 : vector<8x64xf32>
    %c52 = arith.constant 52 : index
    %c0_36 = arith.constant 0 : index
    %62 = vector.load %arg18[%c52, %c0_36] : memref<122x64xf32, #tpu.memory_space<vmem>>, vector<8x64xf32>
    tpu.vector_store %arg18[%c52, %c0_36], %61 {strides = array<i32>} : memref<122x64xf32, #tpu.memory_space<vmem>>, vector<8x64xf32>,
    %63 = vector.extract_strided_slice %17 {offsets = [128, 0], sizes = [16, 64], strides = [1, 1]} : vector<256x64xf32> to vector<16x64xf32>
    %64 = vector.extract_strided_slice %17 {offsets = [144, 0], sizes = [16, 64], strides = [1, 1]} : vector<256x64xf32> to vector<16x64xf32>
    %65 = arith.maximumf %63, %64 : vector<16x64xf32>
    %cst_37 = arith.constant dense<0.000000e+00> : vector<8x64xf32>
    %66 = tpu.matmul %27, %65, %cst_37 {dimension_numbers = #tpu.dot_dimension_numbers<[1], [0], [0], [1], [0, 0, 1, 1], [], []>} : vector<8x16xf32>, vector<16x64xf32>, vector<8x64xf32> -> vector<8x64xf32>
    %cst_38 = arith.constant dense<0.000000e+00> : vector<8x64xf32>
    %67 = tpu.matmul %34, %65, %cst_38 {dimension_numbers = #tpu.dot_dimension_numbers<[1], [0], [0], [1], [0, 0, 1, 1], [], []>} : vector<8x16xf32>, vector<16x64xf32>, vector<8x64xf32> -> vector<8x64xf32>
    %68 = arith.maximumf %66, %67 : vector<8x64xf32>
    %c62 = arith.constant 62 : index
    %c0_39 = arith.constant 0 : index
    %69 = vector.load %arg18[%c62, %c0_39] : memref<122x64xf32, #tpu.memory_space<vmem>>, vector<8x64xf32>
    tpu.vector_store %arg18[%c62, %c0_39], %68 {strides = array<i32>} : memref<122x64xf32, #tpu.memory_space<vmem>>, vector<8x64xf32>,
    %70 = vector.extract_strided_slice %17 {offsets = [160, 0], sizes = [16, 64], strides = [1, 1]} : vector<256x64xf32> to vector<16x64xf32>
    %71 = vector.extract_strided_slice %17 {offsets = [176, 0], sizes = [16, 64], strides = [1, 1]} : vector<256x64xf32> to vector<16x64xf32>
    %72 = arith.maximumf %70, %71 : vector<16x64xf32>
    %cst_40 = arith.constant dense<0.000000e+00> : vector<8x64xf32>
    %73 = tpu.matmul %27, %72, %cst_40 {dimension_numbers = #tpu.dot_dimension_numbers<[1], [0], [0], [1], [0, 0, 1, 1], [], []>} : vector<8x16xf32>, vector<16x64xf32>, vector<8x64xf32> -> vector<8x64xf32>
    %cst_41 = arith.constant dense<0.000000e+00> : vector<8x64xf32>
    %74 = tpu.matmul %34, %72, %cst_41 {dimension_numbers = #tpu.dot_dimension_numbers<[1], [0], [0], [1], [0, 0, 1, 1], [], []>} : vector<8x16xf32>, vector<16x64xf32>, vector<8x64xf32> -> vector<8x64xf32>
    %75 = arith.maximumf %73, %74 : vector<8x64xf32>
    %c72 = arith.constant 72 : index
    %c0_42 = arith.constant 0 : index
    %76 = vector.load %arg18[%c72, %c0_42] : memref<122x64xf32, #tpu.memory_space<vmem>>, vector<8x64xf32>
    tpu.vector_store %arg18[%c72, %c0_42], %75 {strides = array<i32>} : memref<122x64xf32, #tpu.memory_space<vmem>>, vector<8x64xf32>,
    %77 = vector.extract_strided_slice %17 {offsets = [192, 0], sizes = [16, 64], strides = [1, 1]} : vector<256x64xf32> to vector<16x64xf32>
    %78 = vector.extract_strided_slice %17 {offsets = [208, 0], sizes = [16, 64], strides = [1, 1]} : vector<256x64xf32> to vector<16x64xf32>
    %79 = arith.maximumf %77, %78 : vector<16x64xf32>
    %cst_43 = arith.constant dense<0.000000e+00> : vector<8x64xf32>
    %80 = tpu.matmul %27, %79, %cst_43 {dimension_numbers = #tpu.dot_dimension_numbers<[1], [0], [0], [1], [0, 0, 1, 1], [], []>} : vector<8x16xf32>, vector<16x64xf32>, vector<8x64xf32> -> vector<8x64xf32>
    %cst_44 = arith.constant dense<0.000000e+00> : vector<8x64xf32>
    %81 = tpu.matmul %34, %79, %cst_44 {dimension_numbers = #tpu.dot_dimension_numbers<[1], [0], [0], [1], [0, 0, 1, 1], [], []>} : vector<8x16xf32>, vector<16x64xf32>, vector<8x64xf32> -> vector<8x64xf32>
    %82 = arith.maximumf %80, %81 : vector<8x64xf32>
    %c82 = arith.constant 82 : index
    %c0_45 = arith.constant 0 : index
    %83 = vector.load %arg18[%c82, %c0_45] : memref<122x64xf32, #tpu.memory_space<vmem>>, vector<8x64xf32>
    tpu.vector_store %arg18[%c82, %c0_45], %82 {strides = array<i32>} : memref<122x64xf32, #tpu.memory_space<vmem>>, vector<8x64xf32>,
    %84 = vector.extract_strided_slice %17 {offsets = [224, 0], sizes = [16, 64], strides = [1, 1]} : vector<256x64xf32> to vector<16x64xf32>
    %85 = vector.extract_strided_slice %17 {offsets = [240, 0], sizes = [16, 64], strides = [1, 1]} : vector<256x64xf32> to vector<16x64xf32>
    %86 = arith.maximumf %84, %85 : vector<16x64xf32>
    %cst_46 = arith.constant dense<0.000000e+00> : vector<8x64xf32>
    %87 = tpu.matmul %27, %86, %cst_46 {dimension_numbers = #tpu.dot_dimension_numbers<[1], [0], [0], [1], [0, 0, 1, 1], [], []>} : vector<8x16xf32>, vector<16x64xf32>, vector<8x64xf32> -> vector<8x64xf32>
    %cst_47 = arith.constant dense<0.000000e+00> : vector<8x64xf32>
    %88 = tpu.matmul %34, %86, %cst_47 {dimension_numbers = #tpu.dot_dimension_numbers<[1], [0], [0], [1], [0, 0, 1, 1], [], []>} : vector<8x16xf32>, vector<16x64xf32>, vector<8x64xf32> -> vector<8x64xf32>
    %89 = arith.maximumf %87, %88 : vector<8x64xf32>
    %c92 = arith.constant 92 : index
    %c0_48 = arith.constant 0 : index
    %90 = vector.load %arg18[%c92, %c0_48] : memref<122x64xf32, #tpu.memory_space<vmem>>, vector<8x64xf32>
    tpu.vector_store %arg18[%c92, %c0_48], %89 {strides = array<i32>} : memref<122x64xf32, #tpu.memory_space<vmem>>, vector<8x64xf32>,
    %cst_49 = arith.constant 0.000000e+00 : f32
    %91 = vector.broadcast %cst_49 : f32 to vector<100x64xf32>
    %c0_50 = arith.constant 0 : index
    %c0_51 = arith.constant 0 : index
    %92 = vector.load %arg18[%c0_50, %c0_51] : memref<122x64xf32, #tpu.memory_space<vmem>>, vector<100x64xf32>
    %93 = arith.truncf %92 : vector<100x64xf32> to vector<100x64xbf16>
    %c0_52 = arith.constant 0 : index
    %c0_53 = arith.constant 0 : index
    %94 = vector.load %arg4[%c0_52, %c0_53] : memref<576x64xbf16, #tpu.memory_space<vmem>>, vector<64x64xbf16>
    %cst_54 = arith.constant dense<0.000000e+00> : vector<100x64xf32>
    %95 = tpu.matmul %93, %94, %cst_54 {dimension_numbers = #tpu.dot_dimension_numbers<[1], [0], [0], [1], [0, 0, 1, 1], [], []>} : vector<100x64xbf16>, vector<64x64xbf16>, vector<100x64xf32> -> vector<100x64xf32>
    %96 = arith.addf %91, %95 : vector<100x64xf32>
    %c1 = arith.constant 1 : index
    %c0_55 = arith.constant 0 : index
    %97 = vector.load %arg18[%c1, %c0_55] : memref<122x64xf32, #tpu.memory_space<vmem>>, vector<100x64xf32>
    %98 = arith.truncf %97 : vector<100x64xf32> to vector<100x64xbf16>
    %c64 = arith.constant 64 : index
    %c0_56 = arith.constant 0 : index
    %99 = vector.load %arg4[%c64, %c0_56] : memref<576x64xbf16, #tpu.memory_space<vmem>>, vector<64x64xbf16>
    %cst_57 = arith.constant dense<0.000000e+00> : vector<100x64xf32>
    %100 = tpu.matmul %98, %99, %cst_57 {dimension_numbers = #tpu.dot_dimension_numbers<[1], [0], [0], [1], [0, 0, 1, 1], [], []>} : vector<100x64xbf16>, vector<64x64xbf16>, vector<100x64xf32> -> vector<100x64xf32>
    %101 = arith.addf %96, %100 : vector<100x64xf32>
    %c2 = arith.constant 2 : index
    %c0_58 = arith.constant 0 : index
    %102 = vector.load %arg18[%c2, %c0_58] : memref<122x64xf32, #tpu.memory_space<vmem>>, vector<100x64xf32>
    %103 = arith.truncf %102 : vector<100x64xf32> to vector<100x64xbf16>
    %c128 = arith.constant 128 : index
    %c0_59 = arith.constant 0 : index
    %104 = vector.load %arg4[%c128, %c0_59] : memref<576x64xbf16, #tpu.memory_space<vmem>>, vector<64x64xbf16>
    %cst_60 = arith.constant dense<0.000000e+00> : vector<100x64xf32>
    %105 = tpu.matmul %103, %104, %cst_60 {dimension_numbers = #tpu.dot_dimension_numbers<[1], [0], [0], [1], [0, 0, 1, 1], [], []>} : vector<100x64xbf16>, vector<64x64xbf16>, vector<100x64xf32> -> vector<100x64xf32>
    %106 = arith.addf %101, %105 : vector<100x64xf32>
    %c10 = arith.constant 10 : index
    %c0_61 = arith.constant 0 : index
    %107 = vector.load %arg18[%c10, %c0_61] : memref<122x64xf32, #tpu.memory_space<vmem>>, vector<100x64xf32>
    %108 = arith.truncf %107 : vector<100x64xf32> to vector<100x64xbf16>
    %c192 = arith.constant 192 : index
    %c0_62 = arith.constant 0 : index
    %109 = vector.load %arg4[%c192, %c0_62] : memref<576x64xbf16, #tpu.memory_space<vmem>>, vector<64x64xbf16>
    %cst_63 = arith.constant dense<0.000000e+00> : vector<100x64xf32>
    %110 = tpu.matmul %108, %109, %cst_63 {dimension_numbers = #tpu.dot_dimension_numbers<[1], [0], [0], [1], [0, 0, 1, 1], [], []>} : vector<100x64xbf16>, vector<64x64xbf16>, vector<100x64xf32> -> vector<100x64xf32>
    %111 = arith.addf %106, %110 : vector<100x64xf32>
    %c11 = arith.constant 11 : index
    %c0_64 = arith.constant 0 : index
    %112 = vector.load %arg18[%c11, %c0_64] : memref<122x64xf32, #tpu.memory_space<vmem>>, vector<100x64xf32>
    %113 = arith.truncf %112 : vector<100x64xf32> to vector<100x64xbf16>
    %c256 = arith.constant 256 : index
    %c0_65 = arith.constant 0 : index
    %114 = vector.load %arg4[%c256, %c0_65] : memref<576x64xbf16, #tpu.memory_space<vmem>>, vector<64x64xbf16>
    %cst_66 = arith.constant dense<0.000000e+00> : vector<100x64xf32>
    %115 = tpu.matmul %113, %114, %cst_66 {dimension_numbers = #tpu.dot_dimension_numbers<[1], [0], [0], [1], [0, 0, 1, 1], [], []>} : vector<100x64xbf16>, vector<64x64xbf16>, vector<100x64xf32> -> vector<100x64xf32>
    %116 = arith.addf %111, %115 : vector<100x64xf32>
    %c12 = arith.constant 12 : index
    %c0_67 = arith.constant 0 : index
    %117 = vector.load %arg18[%c12, %c0_67] : memref<122x64xf32, #tpu.memory_space<vmem>>, vector<100x64xf32>
    %118 = arith.truncf %117 : vector<100x64xf32> to vector<100x64xbf16>
    %c320 = arith.constant 320 : index
    %c0_68 = arith.constant 0 : index
    %119 = vector.load %arg4[%c320, %c0_68] : memref<576x64xbf16, #tpu.memory_space<vmem>>, vector<64x64xbf16>
    %cst_69 = arith.constant dense<0.000000e+00> : vector<100x64xf32>
    %120 = tpu.matmul %118, %119, %cst_69 {dimension_numbers = #tpu.dot_dimension_numbers<[1], [0], [0], [1], [0, 0, 1, 1], [], []>} : vector<100x64xbf16>, vector<64x64xbf16>, vector<100x64xf32> -> vector<100x64xf32>
    %121 = arith.addf %116, %120 : vector<100x64xf32>
    %c20 = arith.constant 20 : index
    %c0_70 = arith.constant 0 : index
    %122 = vector.load %arg18[%c20, %c0_70] : memref<122x64xf32, #tpu.memory_space<vmem>>, vector<100x64xf32>
    %123 = arith.truncf %122 : vector<100x64xf32> to vector<100x64xbf16>
    %c384 = arith.constant 384 : index
    %c0_71 = arith.constant 0 : index
    %124 = vector.load %arg4[%c384, %c0_71] : memref<576x64xbf16, #tpu.memory_space<vmem>>, vector<64x64xbf16>
    %cst_72 = arith.constant dense<0.000000e+00> : vector<100x64xf32>
    %125 = tpu.matmul %123, %124, %cst_72 {dimension_numbers = #tpu.dot_dimension_numbers<[1], [0], [0], [1], [0, 0, 1, 1], [], []>} : vector<100x64xbf16>, vector<64x64xbf16>, vector<100x64xf32> -> vector<100x64xf32>
    %126 = arith.addf %121, %125 : vector<100x64xf32>
    %c21 = arith.constant 21 : index
    %c0_73 = arith.constant 0 : index
    %127 = vector.load %arg18[%c21, %c0_73] : memref<122x64xf32, #tpu.memory_space<vmem>>, vector<100x64xf32>
    %128 = arith.truncf %127 : vector<100x64xf32> to vector<100x64xbf16>
    %c448 = arith.constant 448 : index
    %c0_74 = arith.constant 0 : index
    %129 = vector.load %arg4[%c448, %c0_74] : memref<576x64xbf16, #tpu.memory_space<vmem>>, vector<64x64xbf16>
    %cst_75 = arith.constant dense<0.000000e+00> : vector<100x64xf32>
    %130 = tpu.matmul %128, %129, %cst_75 {dimension_numbers = #tpu.dot_dimension_numbers<[1], [0], [0], [1], [0, 0, 1, 1], [], []>} : vector<100x64xbf16>, vector<64x64xbf16>, vector<100x64xf32> -> vector<100x64xf32>
    %131 = arith.addf %126, %130 : vector<100x64xf32>
    %c22_76 = arith.constant 22 : index
    %c0_77 = arith.constant 0 : index
    %132 = vector.load %arg18[%c22_76, %c0_77] : memref<122x64xf32, #tpu.memory_space<vmem>>, vector<100x64xf32>
    %133 = arith.truncf %132 : vector<100x64xf32> to vector<100x64xbf16>
    %c512 = arith.constant 512 : index
    %c0_78 = arith.constant 0 : index
    %134 = vector.load %arg4[%c512, %c0_78] : memref<576x64xbf16, #tpu.memory_space<vmem>>, vector<64x64xbf16>
    %cst_79 = arith.constant dense<0.000000e+00> : vector<100x64xf32>
    %135 = tpu.matmul %133, %134, %cst_79 {dimension_numbers = #tpu.dot_dimension_numbers<[1], [0], [0], [1], [0, 0, 1, 1], [], []>} : vector<100x64xbf16>, vector<64x64xbf16>, vector<100x64xf32> -> vector<100x64xf32>
    %136 = arith.addf %131, %135 : vector<100x64xf32>
    %c0_80 = arith.constant 0 : index
    %c0_81 = arith.constant 0 : index
    %137 = vector.load %arg5[%c0_80, %c0_81] : memref<1x64xf32, #tpu.memory_space<vmem>>, vector<1x64xf32>
    %138 = vector.broadcast %137 : vector<1x64xf32> to vector<100x64xf32>
    %139 = arith.addf %136, %138 : vector<100x64xf32>
    %140 = math.tanh %139 : vector<100x64xf32>
    %141 = vector.extract_strided_slice %140 {offsets = [11, 0], sizes = [8, 64], strides = [1, 1]} : vector<100x64xf32> to vector<8x64xf32>
    %c22_82 = arith.constant 22 : index
    %c0_83 = arith.constant 0 : index
    %142 = vector.load %arg19[%c22_82, %c0_83] : memref<122x64xf32, #tpu.memory_space<vmem>>, vector<8x64xf32>
    tpu.vector_store %arg19[%c22_82, %c0_83], %141 {strides = array<i32>} : memref<122x64xf32, #tpu.memory_space<vmem>>, vector<8x64xf32>,
    %143 = vector.extract_strided_slice %140 {offsets = [21, 0], sizes = [8, 64], strides = [1, 1]} : vector<100x64xf32> to vector<8x64xf32>
    %c32_84 = arith.constant 32 : index
    %c0_85 = arith.constant 0 : index
    %144 = vector.load %arg19[%c32_84, %c0_85] : memref<122x64xf32, #tpu.memory_space<vmem>>, vector<8x64xf32>
    tpu.vector_store %arg19[%c32_84, %c0_85], %143 {strides = array<i32>} : memref<122x64xf32, #tpu.memory_space<vmem>>, vector<8x64xf32>,
    %145 = vector.extract_strided_slice %140 {offsets = [31, 0], sizes = [8, 64], strides = [1, 1]} : vector<100x64xf32> to vector<8x64xf32>
    %c42_86 = arith.constant 42 : index
    %c0_87 = arith.constant 0 : index
    %146 = vector.load %arg19[%c42_86, %c0_87] : memref<122x64xf32, #tpu.memory_space<vmem>>, vector<8x64xf32>
    tpu.vector_store %arg19[%c42_86, %c0_87], %145 {strides = array<i32>} : memref<122x64xf32, #tpu.memory_space<vmem>>, vector<8x64xf32>,
    %147 = vector.extract_strided_slice %140 {offsets = [41, 0], sizes = [8, 64], strides = [1, 1]} : vector<100x64xf32> to vector<8x64xf32>
    %c52_88 = arith.constant 52 : index
    %c0_89 = arith.constant 0 : index
    %148 = vector.load %arg19[%c52_88, %c0_89] : memref<122x64xf32, #tpu.memory_space<vmem>>, vector<8x64xf32>
    tpu.vector_store %arg19[%c52_88, %c0_89], %147 {strides = array<i32>} : memref<122x64xf32, #tpu.memory_space<vmem>>, vector<8x64xf32>,
    %149 = vector.extract_strided_slice %140 {offsets = [51, 0], sizes = [8, 64], strides = [1, 1]} : vector<100x64xf32> to vector<8x64xf32>
    %c62_90 = arith.constant 62 : index
    %c0_91 = arith.constant 0 : index
    %150 = vector.load %arg19[%c62_90, %c0_91] : memref<122x64xf32, #tpu.memory_space<vmem>>, vector<8x64xf32>
    tpu.vector_store %arg19[%c62_90, %c0_91], %149 {strides = array<i32>} : memref<122x64xf32, #tpu.memory_space<vmem>>, vector<8x64xf32>,
    %151 = vector.extract_strided_slice %140 {offsets = [61, 0], sizes = [8, 64], strides = [1, 1]} : vector<100x64xf32> to vector<8x64xf32>
    %c72_92 = arith.constant 72 : index
    %c0_93 = arith.constant 0 : index
    %152 = vector.load %arg19[%c72_92, %c0_93] : memref<122x64xf32, #tpu.memory_space<vmem>>, vector<8x64xf32>
    tpu.vector_store %arg19[%c72_92, %c0_93], %151 {strides = array<i32>} : memref<122x64xf32, #tpu.memory_space<vmem>>, vector<8x64xf32>,
    %153 = vector.extract_strided_slice %140 {offsets = [71, 0], sizes = [8, 64], strides = [1, 1]} : vector<100x64xf32> to vector<8x64xf32>
    %c82_94 = arith.constant 82 : index
    %c0_95 = arith.constant 0 : index
    %154 = vector.load %arg19[%c82_94, %c0_95] : memref<122x64xf32, #tpu.memory_space<vmem>>, vector<8x64xf32>
    tpu.vector_store %arg19[%c82_94, %c0_95], %153 {strides = array<i32>} : memref<122x64xf32, #tpu.memory_space<vmem>>, vector<8x64xf32>,
    %155 = vector.extract_strided_slice %140 {offsets = [81, 0], sizes = [8, 64], strides = [1, 1]} : vector<100x64xf32> to vector<8x64xf32>
    %c92_96 = arith.constant 92 : index
    %c0_97 = arith.constant 0 : index
    %156 = vector.load %arg19[%c92_96, %c0_97] : memref<122x64xf32, #tpu.memory_space<vmem>>, vector<8x64xf32>
    tpu.vector_store %arg19[%c92_96, %c0_97], %155 {strides = array<i32>} : memref<122x64xf32, #tpu.memory_space<vmem>>, vector<8x64xf32>,
    %cst_98 = arith.constant 0.000000e+00 : f32
    %157 = vector.broadcast %cst_98 : f32 to vector<100x128xf32>
    %c0_99 = arith.constant 0 : index
    %c0_100 = arith.constant 0 : index
    %158 = vector.load %arg19[%c0_99, %c0_100] : memref<122x64xf32, #tpu.memory_space<vmem>>, vector<100x64xf32>
    %159 = arith.truncf %158 : vector<100x64xf32> to vector<100x64xbf16>
    %c0_101 = arith.constant 0 : index
    %c0_102 = arith.constant 0 : index
    %160 = vector.load %arg6[%c0_101, %c0_102] : memref<576x128xbf16, #tpu.memory_space<vmem>>, vector<64x128xbf16>
    %cst_103 = arith.constant dense<0.000000e+00> : vector<100x128xf32>
    %161 = tpu.matmul %159, %160, %cst_103 {dimension_numbers = #tpu.dot_dimension_numbers<[1], [0], [0], [1], [0, 0, 1, 1], [], []>} : vector<100x64xbf16>, vector<64x128xbf16>, vector<100x128xf32> -> vector<100x128xf32>
    %162 = arith.addf %157, %161 : vector<100x128xf32>
    %c1_104 = arith.constant 1 : index
    %c0_105 = arith.constant 0 : index
    %163 = vector.load %arg19[%c1_104, %c0_105] : memref<122x64xf32, #tpu.memory_space<vmem>>, vector<100x64xf32>
    %164 = arith.truncf %163 : vector<100x64xf32> to vector<100x64xbf16>
    %c64_106 = arith.constant 64 : index
    %c0_107 = arith.constant 0 : index
    %165 = vector.load %arg6[%c64_106, %c0_107] : memref<576x128xbf16, #tpu.memory_space<vmem>>, vector<64x128xbf16>
    %cst_108 = arith.constant dense<0.000000e+00> : vector<100x128xf32>
    %166 = tpu.matmul %164, %165, %cst_108 {dimension_numbers = #tpu.dot_dimension_numbers<[1], [0], [0], [1], [0, 0, 1, 1], [], []>} : vector<100x64xbf16>, vector<64x128xbf16>, vector<100x128xf32> -> vector<100x128xf32>
    %167 = arith.addf %162, %166 : vector<100x128xf32>
    %c2_109 = arith.constant 2 : index
    %c0_110 = arith.constant 0 : index
    %168 = vector.load %arg19[%c2_109, %c0_110] : memref<122x64xf32, #tpu.memory_space<vmem>>, vector<100x64xf32>
    %169 = arith.truncf %168 : vector<100x64xf32> to vector<100x64xbf16>
    %c128_111 = arith.constant 128 : index
    %c0_112 = arith.constant 0 : index
    %170 = vector.load %arg6[%c128_111, %c0_112] : memref<576x128xbf16, #tpu.memory_space<vmem>>, vector<64x128xbf16>
    %cst_113 = arith.constant dense<0.000000e+00> : vector<100x128xf32>
    %171 = tpu.matmul %169, %170, %cst_113 {dimension_numbers = #tpu.dot_dimension_numbers<[1], [0], [0], [1], [0, 0, 1, 1], [], []>} : vector<100x64xbf16>, vector<64x128xbf16>, vector<100x128xf32> -> vector<100x128xf32>
    %172 = arith.addf %167, %171 : vector<100x128xf32>
    %c10_114 = arith.constant 10 : index
    %c0_115 = arith.constant 0 : index
    %173 = vector.load %arg19[%c10_114, %c0_115] : memref<122x64xf32, #tpu.memory_space<vmem>>, vector<100x64xf32>
    %174 = arith.truncf %173 : vector<100x64xf32> to vector<100x64xbf16>
    %c192_116 = arith.constant 192 : index
    %c0_117 = arith.constant 0 : index
    %175 = vector.load %arg6[%c192_116, %c0_117] : memref<576x128xbf16, #tpu.memory_space<vmem>>, vector<64x128xbf16>
    %cst_118 = arith.constant dense<0.000000e+00> : vector<100x128xf32>
    %176 = tpu.matmul %174, %175, %cst_118 {dimension_numbers = #tpu.dot_dimension_numbers<[1], [0], [0], [1], [0, 0, 1, 1], [], []>} : vector<100x64xbf16>, vector<64x128xbf16>, vector<100x128xf32> -> vector<100x128xf32>
    %177 = arith.addf %172, %176 : vector<100x128xf32>
    %c11_119 = arith.constant 11 : index
    %c0_120 = arith.constant 0 : index
    %178 = vector.load %arg19[%c11_119, %c0_120] : memref<122x64xf32, #tpu.memory_space<vmem>>, vector<100x64xf32>
    %179 = arith.truncf %178 : vector<100x64xf32> to vector<100x64xbf16>
    %c256_121 = arith.constant 256 : index
    %c0_122 = arith.constant 0 : index
    %180 = vector.load %arg6[%c256_121, %c0_122] : memref<576x128xbf16, #tpu.memory_space<vmem>>, vector<64x128xbf16>
    %cst_123 = arith.constant dense<0.000000e+00> : vector<100x128xf32>
    %181 = tpu.matmul %179, %180, %cst_123 {dimension_numbers = #tpu.dot_dimension_numbers<[1], [0], [0], [1], [0, 0, 1, 1], [], []>} : vector<100x64xbf16>, vector<64x128xbf16>, vector<100x128xf32> -> vector<100x128xf32>
    %182 = arith.addf %177, %181 : vector<100x128xf32>
    %c12_124 = arith.constant 12 : index
    %c0_125 = arith.constant 0 : index
    %183 = vector.load %arg19[%c12_124, %c0_125] : memref<122x64xf32, #tpu.memory_space<vmem>>, vector<100x64xf32>
    %184 = arith.truncf %183 : vector<100x64xf32> to vector<100x64xbf16>
    %c320_126 = arith.constant 320 : index
    %c0_127 = arith.constant 0 : index
    %185 = vector.load %arg6[%c320_126, %c0_127] : memref<576x128xbf16, #tpu.memory_space<vmem>>, vector<64x128xbf16>
    %cst_128 = arith.constant dense<0.000000e+00> : vector<100x128xf32>
    %186 = tpu.matmul %184, %185, %cst_128 {dimension_numbers = #tpu.dot_dimension_numbers<[1], [0], [0], [1], [0, 0, 1, 1], [], []>} : vector<100x64xbf16>, vector<64x128xbf16>, vector<100x128xf32> -> vector<100x128xf32>
    %187 = arith.addf %182, %186 : vector<100x128xf32>
    %c20_129 = arith.constant 20 : index
    %c0_130 = arith.constant 0 : index
    %188 = vector.load %arg19[%c20_129, %c0_130] : memref<122x64xf32, #tpu.memory_space<vmem>>, vector<100x64xf32>
    %189 = arith.truncf %188 : vector<100x64xf32> to vector<100x64xbf16>
    %c384_131 = arith.constant 384 : index
    %c0_132 = arith.constant 0 : index
    %190 = vector.load %arg6[%c384_131, %c0_132] : memref<576x128xbf16, #tpu.memory_space<vmem>>, vector<64x128xbf16>
    %cst_133 = arith.constant dense<0.000000e+00> : vector<100x128xf32>
    %191 = tpu.matmul %189, %190, %cst_133 {dimension_numbers = #tpu.dot_dimension_numbers<[1], [0], [0], [1], [0, 0, 1, 1], [], []>} : vector<100x64xbf16>, vector<64x128xbf16>, vector<100x128xf32> -> vector<100x128xf32>
    %192 = arith.addf %187, %191 : vector<100x128xf32>
    %c21_134 = arith.constant 21 : index
    %c0_135 = arith.constant 0 : index
    %193 = vector.load %arg19[%c21_134, %c0_135] : memref<122x64xf32, #tpu.memory_space<vmem>>, vector<100x64xf32>
    %194 = arith.truncf %193 : vector<100x64xf32> to vector<100x64xbf16>
    %c448_136 = arith.constant 448 : index
    %c0_137 = arith.constant 0 : index
    %195 = vector.load %arg6[%c448_136, %c0_137] : memref<576x128xbf16, #tpu.memory_space<vmem>>, vector<64x128xbf16>
    %cst_138 = arith.constant dense<0.000000e+00> : vector<100x128xf32>
    %196 = tpu.matmul %194, %195, %cst_138 {dimension_numbers = #tpu.dot_dimension_numbers<[1], [0], [0], [1], [0, 0, 1, 1], [], []>} : vector<100x64xbf16>, vector<64x128xbf16>, vector<100x128xf32> -> vector<100x128xf32>
    %197 = arith.addf %192, %196 : vector<100x128xf32>
    %c22_139 = arith.constant 22 : index
    %c0_140 = arith.constant 0 : index
    %198 = vector.load %arg19[%c22_139, %c0_140] : memref<122x64xf32, #tpu.memory_space<vmem>>, vector<100x64xf32>
    %199 = arith.truncf %198 : vector<100x64xf32> to vector<100x64xbf16>
    %c512_141 = arith.constant 512 : index
    %c0_142 = arith.constant 0 : index
    %200 = vector.load %arg6[%c512_141, %c0_142] : memref<576x128xbf16, #tpu.memory_space<vmem>>, vector<64x128xbf16>
    %cst_143 = arith.constant dense<0.000000e+00> : vector<100x128xf32>
    %201 = tpu.matmul %199, %200, %cst_143 {dimension_numbers = #tpu.dot_dimension_numbers<[1], [0], [0], [1], [0, 0, 1, 1], [], []>} : vector<100x64xbf16>, vector<64x128xbf16>, vector<100x128xf32> -> vector<100x128xf32>
    %202 = arith.addf %197, %201 : vector<100x128xf32>
    %c0_144 = arith.constant 0 : index
    %c0_145 = arith.constant 0 : index
    %203 = vector.load %arg7[%c0_144, %c0_145] : memref<1x128xf32, #tpu.memory_space<vmem>>, vector<1x128xf32>
    %204 = vector.broadcast %203 : vector<1x128xf32> to vector<100x128xf32>
    %205 = arith.addf %202, %204 : vector<100x128xf32>
    %206 = math.tanh %205 : vector<100x128xf32>
    %207 = vector.extract_strided_slice %206 {offsets = [11, 0], sizes = [8, 128], strides = [1, 1]} : vector<100x128xf32> to vector<8x128xf32>
    %c0_146 = arith.constant 0 : index
    %c0_147 = arith.constant 0 : index
    %c0_148 = arith.constant 0 : index
    %208 = vector.load %arg15[%c0_146, %c0_147, %c0_148] : memref<1x64x128xf32, #tpu.memory_space<vmem>>, vector<1x8x128xf32>
    %209 = vector.shape_cast %208 : vector<1x8x128xf32> to vector<8x128xf32>
    %210 = vector.shape_cast %207 : vector<8x128xf32> to vector<1x8x128xf32>
    tpu.vector_store %arg15[%c0_146, %c0_147, %c0_148], %210 {strides = array<i32>} : memref<1x64x128xf32, #tpu.memory_space<vmem>>, vector<1x8x128xf32>,
    %211 = vector.extract_strided_slice %206 {offsets = [21, 0], sizes = [8, 128], strides = [1, 1]} : vector<100x128xf32> to vector<8x128xf32>
    %c0_149 = arith.constant 0 : index
    %c8 = arith.constant 8 : index
    %c0_150 = arith.constant 0 : index
    %212 = vector.load %arg15[%c0_149, %c8, %c0_150] : memref<1x64x128xf32, #tpu.memory_space<vmem>>, vector<1x8x128xf32>
    %213 = vector.shape_cast %212 : vector<1x8x128xf32> to vector<8x128xf32>
    %214 = vector.shape_cast %211 : vector<8x128xf32> to vector<1x8x128xf32>
    tpu.vector_store %arg15[%c0_149, %c8, %c0_150], %214 {strides = array<i32>} : memref<1x64x128xf32, #tpu.memory_space<vmem>>, vector<1x8x128xf32>,
    %215 = vector.extract_strided_slice %206 {offsets = [31, 0], sizes = [8, 128], strides = [1, 1]} : vector<100x128xf32> to vector<8x128xf32>
    %c0_151 = arith.constant 0 : index
    %c16 = arith.constant 16 : index
    %c0_152 = arith.constant 0 : index
    %216 = vector.load %arg15[%c0_151, %c16, %c0_152] : memref<1x64x128xf32, #tpu.memory_space<vmem>>, vector<1x8x128xf32>
    %217 = vector.shape_cast %216 : vector<1x8x128xf32> to vector<8x128xf32>
    %218 = vector.shape_cast %215 : vector<8x128xf32> to vector<1x8x128xf32>
    tpu.vector_store %arg15[%c0_151, %c16, %c0_152], %218 {strides = array<i32>} : memref<1x64x128xf32, #tpu.memory_space<vmem>>, vector<1x8x128xf32>,
    %219 = vector.extract_strided_slice %206 {offsets = [41, 0], sizes = [8, 128], strides = [1, 1]} : vector<100x128xf32> to vector<8x128xf32>
    %c0_153 = arith.constant 0 : index
    %c24 = arith.constant 24 : index
    %c0_154 = arith.constant 0 : index
    %220 = vector.load %arg15[%c0_153, %c24, %c0_154] : memref<1x64x128xf32, #tpu.memory_space<vmem>>, vector<1x8x128xf32>
    %221 = vector.shape_cast %220 : vector<1x8x128xf32> to vector<8x128xf32>
    %222 = vector.shape_cast %219 : vector<8x128xf32> to vector<1x8x128xf32>
    tpu.vector_store %arg15[%c0_153, %c24, %c0_154], %222 {strides = array<i32>} : memref<1x64x128xf32, #tpu.memory_space<vmem>>, vector<1x8x128xf32>,
    %223 = vector.extract_strided_slice %206 {offsets = [51, 0], sizes = [8, 128], strides = [1, 1]} : vector<100x128xf32> to vector<8x128xf32>
    %c0_155 = arith.constant 0 : index
    %c32_156 = arith.constant 32 : index
    %c0_157 = arith.constant 0 : index
    %224 = vector.load %arg15[%c0_155, %c32_156, %c0_157] : memref<1x64x128xf32, #tpu.memory_space<vmem>>, vector<1x8x128xf32>
    %225 = vector.shape_cast %224 : vector<1x8x128xf32> to vector<8x128xf32>
    %226 = vector.shape_cast %223 : vector<8x128xf32> to vector<1x8x128xf32>
    tpu.vector_store %arg15[%c0_155, %c32_156, %c0_157], %226 {strides = array<i32>} : memref<1x64x128xf32, #tpu.memory_space<vmem>>, vector<1x8x128xf32>,
    %227 = vector.extract_strided_slice %206 {offsets = [61, 0], sizes = [8, 128], strides = [1, 1]} : vector<100x128xf32> to vector<8x128xf32>
    %c0_158 = arith.constant 0 : index
    %c40 = arith.constant 40 : index
    %c0_159 = arith.constant 0 : index
    %228 = vector.load %arg15[%c0_158, %c40, %c0_159] : memref<1x64x128xf32, #tpu.memory_space<vmem>>, vector<1x8x128xf32>
    %229 = vector.shape_cast %228 : vector<1x8x128xf32> to vector<8x128xf32>
    %230 = vector.shape_cast %227 : vector<8x128xf32> to vector<1x8x128xf32>
    tpu.vector_store %arg15[%c0_158, %c40, %c0_159], %230 {strides = array<i32>} : memref<1x64x128xf32, #tpu.memory_space<vmem>>, vector<1x8x128xf32>,
    %231 = vector.extract_strided_slice %206 {offsets = [71, 0], sizes = [8, 128], strides = [1, 1]} : vector<100x128xf32> to vector<8x128xf32>
    %c0_160 = arith.constant 0 : index
    %c48 = arith.constant 48 : index
    %c0_161 = arith.constant 0 : index
    %232 = vector.load %arg15[%c0_160, %c48, %c0_161] : memref<1x64x128xf32, #tpu.memory_space<vmem>>, vector<1x8x128xf32>
    %233 = vector.shape_cast %232 : vector<1x8x128xf32> to vector<8x128xf32>
    %234 = vector.shape_cast %231 : vector<8x128xf32> to vector<1x8x128xf32>
    tpu.vector_store %arg15[%c0_160, %c48, %c0_161], %234 {strides = array<i32>} : memref<1x64x128xf32, #tpu.memory_space<vmem>>, vector<1x8x128xf32>,
    %235 = vector.extract_strided_slice %206 {offsets = [81, 0], sizes = [8, 128], strides = [1, 1]} : vector<100x128xf32> to vector<8x128xf32>
    %c0_162 = arith.constant 0 : index
    %c56 = arith.constant 56 : index
    %c0_163 = arith.constant 0 : index
    %236 = vector.load %arg15[%c0_162, %c56, %c0_163] : memref<1x64x128xf32, #tpu.memory_space<vmem>>, vector<1x8x128xf32>
    %237 = vector.shape_cast %236 : vector<1x8x128xf32> to vector<8x128xf32>
    %238 = vector.shape_cast %235 : vector<8x128xf32> to vector<1x8x128xf32>
    tpu.vector_store %arg15[%c0_162, %c56, %c0_163], %238 {strides = array<i32>} : memref<1x64x128xf32, #tpu.memory_space<vmem>>, vector<1x8x128xf32>,
    %239 = tpu.iota {dimensions = array<i32: 0>} : vector<4x8xi32>
    %240 = tpu.iota {dimensions = array<i32: 1>} : vector<4x8xi32>
    %c2_i32_164 = arith.constant 2 : i32
    %241 = vector.broadcast %c2_i32_164 : i32 to vector<4x8xi32>
    %242 = arith.muli %241, %239 : vector<4x8xi32>
    %243 = arith.cmpi eq, %240, %242 : vector<4x8xi32>
    %244 = arith.extui %243 : vector<4x8xi1> to vector<4x8xi32>
    %245 = arith.sitofp %244 : vector<4x8xi32> to vector<4x8xf32>
    %c2_i32_165 = arith.constant 2 : i32
    %246 = vector.broadcast %c2_i32_165 : i32 to vector<4x8xi32>
    %247 = arith.muli %246, %239 : vector<4x8xi32>
    %c1_i32_166 = arith.constant 1 : i32
    %248 = vector.broadcast %c1_i32_166 : i32 to vector<4x8xi32>
    %249 = arith.addi %247, %248 : vector<4x8xi32>
    %250 = arith.cmpi eq, %240, %249 : vector<4x8xi32>
    %251 = arith.extui %250 : vector<4x8xi1> to vector<4x8xi32>
    %252 = arith.sitofp %251 : vector<4x8xi32> to vector<4x8xf32>
    %253 = vector.extract_strided_slice %206 {offsets = [11, 0], sizes = [8, 128], strides = [1, 1]} : vector<100x128xf32> to vector<8x128xf32>
    %254 = vector.extract_strided_slice %206 {offsets = [21, 0], sizes = [8, 128], strides = [1, 1]} : vector<100x128xf32> to vector<8x128xf32>
    %255 = arith.maximumf %253, %254 : vector<8x128xf32>
    %cst_167 = arith.constant dense<0.000000e+00> : vector<4x128xf32>
    %256 = tpu.matmul %245, %255, %cst_167 {dimension_numbers = #tpu.dot_dimension_numbers<[1], [0], [0], [1], [0, 0, 1, 1], [], []>} : vector<4x8xf32>, vector<8x128xf32>, vector<4x128xf32> -> vector<4x128xf32>
    %cst_168 = arith.constant dense<0.000000e+00> : vector<4x128xf32>
    %257 = tpu.matmul %252, %255, %cst_168 {dimension_numbers = #tpu.dot_dimension_numbers<[1], [0], [0], [1], [0, 0, 1, 1], [], []>} : vector<4x8xf32>, vector<8x128xf32>, vector<4x128xf32> -> vector<4x128xf32>
    %258 = arith.maximumf %256, %257 : vector<4x128xf32>
    %c14 = arith.constant 14 : index
    %c0_169 = arith.constant 0 : index
    %259 = vector.load %arg20[%c14, %c0_169] : memref<50x128xf32, #tpu.memory_space<vmem>>, vector<4x128xf32>
    tpu.vector_store %arg20[%c14, %c0_169], %258 {strides = array<i32>} : memref<50x128xf32, #tpu.memory_space<vmem>>, vector<4x128xf32>,
    %260 = vector.extract_strided_slice %206 {offsets = [31, 0], sizes = [8, 128], strides = [1, 1]} : vector<100x128xf32> to vector<8x128xf32>
    %261 = vector.extract_strided_slice %206 {offsets = [41, 0], sizes = [8, 128], strides = [1, 1]} : vector<100x128xf32> to vector<8x128xf32>
    %262 = arith.maximumf %260, %261 : vector<8x128xf32>
    %cst_170 = arith.constant dense<0.000000e+00> : vector<4x128xf32>
    %263 = tpu.matmul %245, %262, %cst_170 {dimension_numbers = #tpu.dot_dimension_numbers<[1], [0], [0], [1], [0, 0, 1, 1], [], []>} : vector<4x8xf32>, vector<8x128xf32>, vector<4x128xf32> -> vector<4x128xf32>
    %cst_171 = arith.constant dense<0.000000e+00> : vector<4x128xf32>
    %264 = tpu.matmul %252, %262, %cst_171 {dimension_numbers = #tpu.dot_dimension_numbers<[1], [0], [0], [1], [0, 0, 1, 1], [], []>} : vector<4x8xf32>, vector<8x128xf32>, vector<4x128xf32> -> vector<4x128xf32>
    %265 = arith.maximumf %263, %264 : vector<4x128xf32>
    %c20_172 = arith.constant 20 : index
    %c0_173 = arith.constant 0 : index
    %266 = vector.load %arg20[%c20_172, %c0_173] : memref<50x128xf32, #tpu.memory_space<vmem>>, vector<4x128xf32>
    tpu.vector_store %arg20[%c20_172, %c0_173], %265 {strides = array<i32>} : memref<50x128xf32, #tpu.memory_space<vmem>>, vector<4x128xf32>,
    %267 = vector.extract_strided_slice %206 {offsets = [51, 0], sizes = [8, 128], strides = [1, 1]} : vector<100x128xf32> to vector<8x128xf32>
    %268 = vector.extract_strided_slice %206 {offsets = [61, 0], sizes = [8, 128], strides = [1, 1]} : vector<100x128xf32> to vector<8x128xf32>
    %269 = arith.maximumf %267, %268 : vector<8x128xf32>
    %cst_174 = arith.constant dense<0.000000e+00> : vector<4x128xf32>
    %270 = tpu.matmul %245, %269, %cst_174 {dimension_numbers = #tpu.dot_dimension_numbers<[1], [0], [0], [1], [0, 0, 1, 1], [], []>} : vector<4x8xf32>, vector<8x128xf32>, vector<4x128xf32> -> vector<4x128xf32>
    %cst_175 = arith.constant dense<0.000000e+00> : vector<4x128xf32>
    %271 = tpu.matmul %252, %269, %cst_175 {dimension_numbers = #tpu.dot_dimension_numbers<[1], [0], [0], [1], [0, 0, 1, 1], [], []>} : vector<4x8xf32>, vector<8x128xf32>, vector<4x128xf32> -> vector<4x128xf32>
    %272 = arith.maximumf %270, %271 : vector<4x128xf32>
    %c26 = arith.constant 26 : index
    %c0_176 = arith.constant 0 : index
    %273 = vector.load %arg20[%c26, %c0_176] : memref<50x128xf32, #tpu.memory_space<vmem>>, vector<4x128xf32>
    tpu.vector_store %arg20[%c26, %c0_176], %272 {strides = array<i32>} : memref<50x128xf32, #tpu.memory_space<vmem>>, vector<4x128xf32>,
    %274 = vector.extract_strided_slice %206 {offsets = [71, 0], sizes = [8, 128], strides = [1, 1]} : vector<100x128xf32> to vector<8x128xf32>
    %275 = vector.extract_strided_slice %206 {offsets = [81, 0], sizes = [8, 128], strides = [1, 1]} : vector<100x128xf32> to vector<8x128xf32>
    %276 = arith.maximumf %274, %275 : vector<8x128xf32>
    %cst_177 = arith.constant dense<0.000000e+00> : vector<4x128xf32>
    %277 = tpu.matmul %245, %276, %cst_177 {dimension_numbers = #tpu.dot_dimension_numbers<[1], [0], [0], [1], [0, 0, 1, 1], [], []>} : vector<4x8xf32>, vector<8x128xf32>, vector<4x128xf32> -> vector<4x128xf32>
    %cst_178 = arith.constant dense<0.000000e+00> : vector<4x128xf32>
    %278 = tpu.matmul %252, %276, %cst_178 {dimension_numbers = #tpu.dot_dimension_numbers<[1], [0], [0], [1], [0, 0, 1, 1], [], []>} : vector<4x8xf32>, vector<8x128xf32>, vector<4x128xf32> -> vector<4x128xf32>
    %279 = arith.maximumf %277, %278 : vector<4x128xf32>
    %c32_179 = arith.constant 32 : index
    %c0_180 = arith.constant 0 : index
    %280 = vector.load %arg20[%c32_179, %c0_180] : memref<50x128xf32, #tpu.memory_space<vmem>>, vector<4x128xf32>
    tpu.vector_store %arg20[%c32_179, %c0_180], %279 {strides = array<i32>} : memref<50x128xf32, #tpu.memory_space<vmem>>, vector<4x128xf32>,
    %cst_181 = arith.constant 0.000000e+00 : f32
    %281 = vector.broadcast %cst_181 : f32 to vector<36x128xf32>
    %c0_182 = arith.constant 0 : index
    %c0_183 = arith.constant 0 : index
    %282 = vector.load %arg20[%c0_182, %c0_183] : memref<50x128xf32, #tpu.memory_space<vmem>>, vector<36x128xf32>
    %283 = arith.truncf %282 : vector<36x128xf32> to vector<36x128xbf16>
    %c0_184 = arith.constant 0 : index
    %c0_185 = arith.constant 0 : index
    %284 = vector.load %arg8[%c0_184, %c0_185] : memref<1152x128xbf16, #tpu.memory_space<vmem>>, vector<128x128xbf16>
    %cst_186 = arith.constant dense<0.000000e+00> : vector<36x128xf32>
    %285 = tpu.matmul %283, %284, %cst_186 {dimension_numbers = #tpu.dot_dimension_numbers<[1], [0], [0], [1], [0, 0, 1, 1], [], []>} : vector<36x128xbf16>, vector<128x128xbf16>, vector<36x128xf32> -> vector<36x128xf32>
    %286 = arith.addf %281, %285 : vector<36x128xf32>
    %c1_187 = arith.constant 1 : index
    %c0_188 = arith.constant 0 : index
    %287 = vector.load %arg20[%c1_187, %c0_188] : memref<50x128xf32, #tpu.memory_space<vmem>>, vector<36x128xf32>
    %288 = arith.truncf %287 : vector<36x128xf32> to vector<36x128xbf16>
    %c128_189 = arith.constant 128 : index
    %c0_190 = arith.constant 0 : index
    %289 = vector.load %arg8[%c128_189, %c0_190] : memref<1152x128xbf16, #tpu.memory_space<vmem>>, vector<128x128xbf16>
    %cst_191 = arith.constant dense<0.000000e+00> : vector<36x128xf32>
    %290 = tpu.matmul %288, %289, %cst_191 {dimension_numbers = #tpu.dot_dimension_numbers<[1], [0], [0], [1], [0, 0, 1, 1], [], []>} : vector<36x128xbf16>, vector<128x128xbf16>, vector<36x128xf32> -> vector<36x128xf32>
    %291 = arith.addf %286, %290 : vector<36x128xf32>
    %c2_192 = arith.constant 2 : index
    %c0_193 = arith.constant 0 : index
    %292 = vector.load %arg20[%c2_192, %c0_193] : memref<50x128xf32, #tpu.memory_space<vmem>>, vector<36x128xf32>
    %293 = arith.truncf %292 : vector<36x128xf32> to vector<36x128xbf16>
    %c256_194 = arith.constant 256 : index
    %c0_195 = arith.constant 0 : index
    %294 = vector.load %arg8[%c256_194, %c0_195] : memref<1152x128xbf16, #tpu.memory_space<vmem>>, vector<128x128xbf16>
    %cst_196 = arith.constant dense<0.000000e+00> : vector<36x128xf32>
    %295 = tpu.matmul %293, %294, %cst_196 {dimension_numbers = #tpu.dot_dimension_numbers<[1], [0], [0], [1], [0, 0, 1, 1], [], []>} : vector<36x128xbf16>, vector<128x128xbf16>, vector<36x128xf32> -> vector<36x128xf32>
    %296 = arith.addf %291, %295 : vector<36x128xf32>
    %c6 = arith.constant 6 : index
    %c0_197 = arith.constant 0 : index
    %297 = vector.load %arg20[%c6, %c0_197] : memref<50x128xf32, #tpu.memory_space<vmem>>, vector<36x128xf32>
    %298 = arith.truncf %297 : vector<36x128xf32> to vector<36x128xbf16>
    %c384_198 = arith.constant 384 : index
    %c0_199 = arith.constant 0 : index
    %299 = vector.load %arg8[%c384_198, %c0_199] : memref<1152x128xbf16, #tpu.memory_space<vmem>>, vector<128x128xbf16>
    %cst_200 = arith.constant dense<0.000000e+00> : vector<36x128xf32>
    %300 = tpu.matmul %298, %299, %cst_200 {dimension_numbers = #tpu.dot_dimension_numbers<[1], [0], [0], [1], [0, 0, 1, 1], [], []>} : vector<36x128xbf16>, vector<128x128xbf16>, vector<36x128xf32> -> vector<36x128xf32>
    %301 = arith.addf %296, %300 : vector<36x128xf32>
    %c7 = arith.constant 7 : index
    %c0_201 = arith.constant 0 : index
    %302 = vector.load %arg20[%c7, %c0_201] : memref<50x128xf32, #tpu.memory_space<vmem>>, vector<36x128xf32>
    %303 = arith.truncf %302 : vector<36x128xf32> to vector<36x128xbf16>
    %c512_202 = arith.constant 512 : index
    %c0_203 = arith.constant 0 : index
    %304 = vector.load %arg8[%c512_202, %c0_203] : memref<1152x128xbf16, #tpu.memory_space<vmem>>, vector<128x128xbf16>
    %cst_204 = arith.constant dense<0.000000e+00> : vector<36x128xf32>
    %305 = tpu.matmul %303, %304, %cst_204 {dimension_numbers = #tpu.dot_dimension_numbers<[1], [0], [0], [1], [0, 0, 1, 1], [], []>} : vector<36x128xbf16>, vector<128x128xbf16>, vector<36x128xf32> -> vector<36x128xf32>
    %306 = arith.addf %301, %305 : vector<36x128xf32>
    %c8_205 = arith.constant 8 : index
    %c0_206 = arith.constant 0 : index
    %307 = vector.load %arg20[%c8_205, %c0_206] : memref<50x128xf32, #tpu.memory_space<vmem>>, vector<36x128xf32>
    %308 = arith.truncf %307 : vector<36x128xf32> to vector<36x128xbf16>
    %c640 = arith.constant 640 : index
    %c0_207 = arith.constant 0 : index
    %309 = vector.load %arg8[%c640, %c0_207] : memref<1152x128xbf16, #tpu.memory_space<vmem>>, vector<128x128xbf16>
    %cst_208 = arith.constant dense<0.000000e+00> : vector<36x128xf32>
    %310 = tpu.matmul %308, %309, %cst_208 {dimension_numbers = #tpu.dot_dimension_numbers<[1], [0], [0], [1], [0, 0, 1, 1], [], []>} : vector<36x128xbf16>, vector<128x128xbf16>, vector<36x128xf32> -> vector<36x128xf32>
    %311 = arith.addf %306, %310 : vector<36x128xf32>
    %c12_209 = arith.constant 12 : index
    %c0_210 = arith.constant 0 : index
    %312 = vector.load %arg20[%c12_209, %c0_210] : memref<50x128xf32, #tpu.memory_space<vmem>>, vector<36x128xf32>
    %313 = arith.truncf %312 : vector<36x128xf32> to vector<36x128xbf16>
    %c768 = arith.constant 768 : index
    %c0_211 = arith.constant 0 : index
    %314 = vector.load %arg8[%c768, %c0_211] : memref<1152x128xbf16, #tpu.memory_space<vmem>>, vector<128x128xbf16>
    %cst_212 = arith.constant dense<0.000000e+00> : vector<36x128xf32>
    %315 = tpu.matmul %313, %314, %cst_212 {dimension_numbers = #tpu.dot_dimension_numbers<[1], [0], [0], [1], [0, 0, 1, 1], [], []>} : vector<36x128xbf16>, vector<128x128xbf16>, vector<36x128xf32> -> vector<36x128xf32>
    %316 = arith.addf %311, %315 : vector<36x128xf32>
    %c13 = arith.constant 13 : index
    %c0_213 = arith.constant 0 : index
    %317 = vector.load %arg20[%c13, %c0_213] : memref<50x128xf32, #tpu.memory_space<vmem>>, vector<36x128xf32>
    %318 = arith.truncf %317 : vector<36x128xf32> to vector<36x128xbf16>
    %c896 = arith.constant 896 : index
    %c0_214 = arith.constant 0 : index
    %319 = vector.load %arg8[%c896, %c0_214] : memref<1152x128xbf16, #tpu.memory_space<vmem>>, vector<128x128xbf16>
    %cst_215 = arith.constant dense<0.000000e+00> : vector<36x128xf32>
    %320 = tpu.matmul %318, %319, %cst_215 {dimension_numbers = #tpu.dot_dimension_numbers<[1], [0], [0], [1], [0, 0, 1, 1], [], []>} : vector<36x128xbf16>, vector<128x128xbf16>, vector<36x128xf32> -> vector<36x128xf32>
    %321 = arith.addf %316, %320 : vector<36x128xf32>
    %c14_216 = arith.constant 14 : index
    %c0_217 = arith.constant 0 : index
    %322 = vector.load %arg20[%c14_216, %c0_217] : memref<50x128xf32, #tpu.memory_space<vmem>>, vector<36x128xf32>
    %323 = arith.truncf %322 : vector<36x128xf32> to vector<36x128xbf16>
    %c1024 = arith.constant 1024 : index
    %c0_218 = arith.constant 0 : index
    %324 = vector.load %arg8[%c1024, %c0_218] : memref<1152x128xbf16, #tpu.memory_space<vmem>>, vector<128x128xbf16>
    %cst_219 = arith.constant dense<0.000000e+00> : vector<36x128xf32>
    %325 = tpu.matmul %323, %324, %cst_219 {dimension_numbers = #tpu.dot_dimension_numbers<[1], [0], [0], [1], [0, 0, 1, 1], [], []>} : vector<36x128xbf16>, vector<128x128xbf16>, vector<36x128xf32> -> vector<36x128xf32>
    %326 = arith.addf %321, %325 : vector<36x128xf32>
    %c0_220 = arith.constant 0 : index
    %c0_221 = arith.constant 0 : index
    %327 = vector.load %arg9[%c0_220, %c0_221] : memref<1x128xf32, #tpu.memory_space<vmem>>, vector<1x128xf32>
    %328 = vector.broadcast %327 : vector<1x128xf32> to vector<36x128xf32>
    %329 = arith.addf %326, %328 : vector<36x128xf32>
    %330 = math.tanh %329 : vector<36x128xf32>
    %331 = vector.extract_strided_slice %330 {offsets = [7, 0], sizes = [4, 128], strides = [1, 1]} : vector<36x128xf32> to vector<4x128xf32>
    %c14_222 = arith.constant 14 : index
    %c0_223 = arith.constant 0 : index
    %332 = vector.load %arg21[%c14_222, %c0_223] : memref<50x128xf32, #tpu.memory_space<vmem>>, vector<4x128xf32>
    tpu.vector_store %arg21[%c14_222, %c0_223], %331 {strides = array<i32>} : memref<50x128xf32, #tpu.memory_space<vmem>>, vector<4x128xf32>,
    %333 = vector.extract_strided_slice %330 {offsets = [13, 0], sizes = [4, 128], strides = [1, 1]} : vector<36x128xf32> to vector<4x128xf32>
    %c20_224 = arith.constant 20 : index
    %c0_225 = arith.constant 0 : index
    %334 = vector.load %arg21[%c20_224, %c0_225] : memref<50x128xf32, #tpu.memory_space<vmem>>, vector<4x128xf32>
    tpu.vector_store %arg21[%c20_224, %c0_225], %333 {strides = array<i32>} : memref<50x128xf32, #tpu.memory_space<vmem>>, vector<4x128xf32>,
    %335 = vector.extract_strided_slice %330 {offsets = [19, 0], sizes = [4, 128], strides = [1, 1]} : vector<36x128xf32> to vector<4x128xf32>
    %c26_226 = arith.constant 26 : index
    %c0_227 = arith.constant 0 : index
    %336 = vector.load %arg21[%c26_226, %c0_227] : memref<50x128xf32, #tpu.memory_space<vmem>>, vector<4x128xf32>
    tpu.vector_store %arg21[%c26_226, %c0_227], %335 {strides = array<i32>} : memref<50x128xf32, #tpu.memory_space<vmem>>, vector<4x128xf32>,
    %337 = vector.extract_strided_slice %330 {offsets = [25, 0], sizes = [4, 128], strides = [1, 1]} : vector<36x128xf32> to vector<4x128xf32>
    %c32_228 = arith.constant 32 : index
    %c0_229 = arith.constant 0 : index
    %338 = vector.load %arg21[%c32_228, %c0_229] : memref<50x128xf32, #tpu.memory_space<vmem>>, vector<4x128xf32>
    tpu.vector_store %arg21[%c32_228, %c0_229], %337 {strides = array<i32>} : memref<50x128xf32, #tpu.memory_space<vmem>>, vector<4x128xf32>,
    %cst_230 = arith.constant 0.000000e+00 : f32
    %339 = vector.broadcast %cst_230 : f32 to vector<36x128xf32>
    %c0_231 = arith.constant 0 : index
    %c0_232 = arith.constant 0 : index
    %340 = vector.load %arg21[%c0_231, %c0_232] : memref<50x128xf32, #tpu.memory_space<vmem>>, vector<36x128xf32>
    %341 = arith.truncf %340 : vector<36x128xf32> to vector<36x128xbf16>
    %c0_233 = arith.constant 0 : index
    %c0_234 = arith.constant 0 : index
    %342 = vector.load %arg10[%c0_233, %c0_234] : memref<1152x128xbf16, #tpu.memory_space<vmem>>, vector<128x128xbf16>
    %cst_235 = arith.constant dense<0.000000e+00> : vector<36x128xf32>
    %343 = tpu.matmul %341, %342, %cst_235 {dimension_numbers = #tpu.dot_dimension_numbers<[1], [0], [0], [1], [0, 0, 1, 1], [], []>} : vector<36x128xbf16>, vector<128x128xbf16>, vector<36x128xf32> -> vector<36x128xf32>
    %344 = arith.addf %339, %343 : vector<36x128xf32>
    %c1_236 = arith.constant 1 : index
    %c0_237 = arith.constant 0 : index
    %345 = vector.load %arg21[%c1_236, %c0_237] : memref<50x128xf32, #tpu.memory_space<vmem>>, vector<36x128xf32>
    %346 = arith.truncf %345 : vector<36x128xf32> to vector<36x128xbf16>
    %c128_238 = arith.constant 128 : index
    %c0_239 = arith.constant 0 : index
    %347 = vector.load %arg10[%c128_238, %c0_239] : memref<1152x128xbf16, #tpu.memory_space<vmem>>, vector<128x128xbf16>
    %cst_240 = arith.constant dense<0.000000e+00> : vector<36x128xf32>
    %348 = tpu.matmul %346, %347, %cst_240 {dimension_numbers = #tpu.dot_dimension_numbers<[1], [0], [0], [1], [0, 0, 1, 1], [], []>} : vector<36x128xbf16>, vector<128x128xbf16>, vector<36x128xf32> -> vector<36x128xf32>
    %349 = arith.addf %344, %348 : vector<36x128xf32>
    %c2_241 = arith.constant 2 : index
    %c0_242 = arith.constant 0 : index
    %350 = vector.load %arg21[%c2_241, %c0_242] : memref<50x128xf32, #tpu.memory_space<vmem>>, vector<36x128xf32>
    %351 = arith.truncf %350 : vector<36x128xf32> to vector<36x128xbf16>
    %c256_243 = arith.constant 256 : index
    %c0_244 = arith.constant 0 : index
    %352 = vector.load %arg10[%c256_243, %c0_244] : memref<1152x128xbf16, #tpu.memory_space<vmem>>, vector<128x128xbf16>
    %cst_245 = arith.constant dense<0.000000e+00> : vector<36x128xf32>
    %353 = tpu.matmul %351, %352, %cst_245 {dimension_numbers = #tpu.dot_dimension_numbers<[1], [0], [0], [1], [0, 0, 1, 1], [], []>} : vector<36x128xbf16>, vector<128x128xbf16>, vector<36x128xf32> -> vector<36x128xf32>
    %354 = arith.addf %349, %353 : vector<36x128xf32>
    %c6_246 = arith.constant 6 : index
    %c0_247 = arith.constant 0 : index
    %355 = vector.load %arg21[%c6_246, %c0_247] : memref<50x128xf32, #tpu.memory_space<vmem>>, vector<36x128xf32>
    %356 = arith.truncf %355 : vector<36x128xf32> to vector<36x128xbf16>
    %c384_248 = arith.constant 384 : index
    %c0_249 = arith.constant 0 : index
    %357 = vector.load %arg10[%c384_248, %c0_249] : memref<1152x128xbf16, #tpu.memory_space<vmem>>, vector<128x128xbf16>
    %cst_250 = arith.constant dense<0.000000e+00> : vector<36x128xf32>
    %358 = tpu.matmul %356, %357, %cst_250 {dimension_numbers = #tpu.dot_dimension_numbers<[1], [0], [0], [1], [0, 0, 1, 1], [], []>} : vector<36x128xbf16>, vector<128x128xbf16>, vector<36x128xf32> -> vector<36x128xf32>
    %359 = arith.addf %354, %358 : vector<36x128xf32>
    %c7_251 = arith.constant 7 : index
    %c0_252 = arith.constant 0 : index
    %360 = vector.load %arg21[%c7_251, %c0_252] : memref<50x128xf32, #tpu.memory_space<vmem>>, vector<36x128xf32>
    %361 = arith.truncf %360 : vector<36x128xf32> to vector<36x128xbf16>
    %c512_253 = arith.constant 512 : index
    %c0_254 = arith.constant 0 : index
    %362 = vector.load %arg10[%c512_253, %c0_254] : memref<1152x128xbf16, #tpu.memory_space<vmem>>, vector<128x128xbf16>
    %cst_255 = arith.constant dense<0.000000e+00> : vector<36x128xf32>
    %363 = tpu.matmul %361, %362, %cst_255 {dimension_numbers = #tpu.dot_dimension_numbers<[1], [0], [0], [1], [0, 0, 1, 1], [], []>} : vector<36x128xbf16>, vector<128x128xbf16>, vector<36x128xf32> -> vector<36x128xf32>
    %364 = arith.addf %359, %363 : vector<36x128xf32>
    %c8_256 = arith.constant 8 : index
    %c0_257 = arith.constant 0 : index
    %365 = vector.load %arg21[%c8_256, %c0_257] : memref<50x128xf32, #tpu.memory_space<vmem>>, vector<36x128xf32>
    %366 = arith.truncf %365 : vector<36x128xf32> to vector<36x128xbf16>
    %c640_258 = arith.constant 640 : index
    %c0_259 = arith.constant 0 : index
    %367 = vector.load %arg10[%c640_258, %c0_259] : memref<1152x128xbf16, #tpu.memory_space<vmem>>, vector<128x128xbf16>
    %cst_260 = arith.constant dense<0.000000e+00> : vector<36x128xf32>
    %368 = tpu.matmul %366, %367, %cst_260 {dimension_numbers = #tpu.dot_dimension_numbers<[1], [0], [0], [1], [0, 0, 1, 1], [], []>} : vector<36x128xbf16>, vector<128x128xbf16>, vector<36x128xf32> -> vector<36x128xf32>
    %369 = arith.addf %364, %368 : vector<36x128xf32>
    %c12_261 = arith.constant 12 : index
    %c0_262 = arith.constant 0 : index
    %370 = vector.load %arg21[%c12_261, %c0_262] : memref<50x128xf32, #tpu.memory_space<vmem>>, vector<36x128xf32>
    %371 = arith.truncf %370 : vector<36x128xf32> to vector<36x128xbf16>
    %c768_263 = arith.constant 768 : index
    %c0_264 = arith.constant 0 : index
    %372 = vector.load %arg10[%c768_263, %c0_264] : memref<1152x128xbf16, #tpu.memory_space<vmem>>, vector<128x128xbf16>
    %cst_265 = arith.constant dense<0.000000e+00> : vector<36x128xf32>
    %373 = tpu.matmul %371, %372, %cst_265 {dimension_numbers = #tpu.dot_dimension_numbers<[1], [0], [0], [1], [0, 0, 1, 1], [], []>} : vector<36x128xbf16>, vector<128x128xbf16>, vector<36x128xf32> -> vector<36x128xf32>
    %374 = arith.addf %369, %373 : vector<36x128xf32>
    %c13_266 = arith.constant 13 : index
    %c0_267 = arith.constant 0 : index
    %375 = vector.load %arg21[%c13_266, %c0_267] : memref<50x128xf32, #tpu.memory_space<vmem>>, vector<36x128xf32>
    %376 = arith.truncf %375 : vector<36x128xf32> to vector<36x128xbf16>
    %c896_268 = arith.constant 896 : index
    %c0_269 = arith.constant 0 : index
    %377 = vector.load %arg10[%c896_268, %c0_269] : memref<1152x128xbf16, #tpu.memory_space<vmem>>, vector<128x128xbf16>
    %cst_270 = arith.constant dense<0.000000e+00> : vector<36x128xf32>
    %378 = tpu.matmul %376, %377, %cst_270 {dimension_numbers = #tpu.dot_dimension_numbers<[1], [0], [0], [1], [0, 0, 1, 1], [], []>} : vector<36x128xbf16>, vector<128x128xbf16>, vector<36x128xf32> -> vector<36x128xf32>
    %379 = arith.addf %374, %378 : vector<36x128xf32>
    %c14_271 = arith.constant 14 : index
    %c0_272 = arith.constant 0 : index
    %380 = vector.load %arg21[%c14_271, %c0_272] : memref<50x128xf32, #tpu.memory_space<vmem>>, vector<36x128xf32>
    %381 = arith.truncf %380 : vector<36x128xf32> to vector<36x128xbf16>
    %c1024_273 = arith.constant 1024 : index
    %c0_274 = arith.constant 0 : index
    %382 = vector.load %arg10[%c1024_273, %c0_274] : memref<1152x128xbf16, #tpu.memory_space<vmem>>, vector<128x128xbf16>
    %cst_275 = arith.constant dense<0.000000e+00> : vector<36x128xf32>
    %383 = tpu.matmul %381, %382, %cst_275 {dimension_numbers = #tpu.dot_dimension_numbers<[1], [0], [0], [1], [0, 0, 1, 1], [], []>} : vector<36x128xbf16>, vector<128x128xbf16>, vector<36x128xf32> -> vector<36x128xf32>
    %384 = arith.addf %379, %383 : vector<36x128xf32>
    %c0_276 = arith.constant 0 : index
    %c0_277 = arith.constant 0 : index
    %385 = vector.load %arg11[%c0_276, %c0_277] : memref<1x128xf32, #tpu.memory_space<vmem>>, vector<1x128xf32>
    %386 = vector.broadcast %385 : vector<1x128xf32> to vector<36x128xf32>
    %387 = arith.addf %384, %386 : vector<36x128xf32>
    %388 = math.tanh %387 : vector<36x128xf32>
    %389 = vector.extract_strided_slice %388 {offsets = [7, 0], sizes = [4, 128], strides = [1, 1]} : vector<36x128xf32> to vector<4x128xf32>
    %c0_278 = arith.constant 0 : index
    %c0_279 = arith.constant 0 : index
    %c0_280 = arith.constant 0 : index
    %390 = vector.load %arg16[%c0_278, %c0_279, %c0_280] : memref<1x16x128xf32, #tpu.memory_space<vmem>>, vector<1x4x128xf32>
    %391 = vector.shape_cast %390 : vector<1x4x128xf32> to vector<4x128xf32>
    %392 = vector.shape_cast %389 : vector<4x128xf32> to vector<1x4x128xf32>
    tpu.vector_store %arg16[%c0_278, %c0_279, %c0_280], %392 {strides = array<i32>} : memref<1x16x128xf32, #tpu.memory_space<vmem>>, vector<1x4x128xf32>,
    %393 = vector.extract_strided_slice %388 {offsets = [13, 0], sizes = [4, 128], strides = [1, 1]} : vector<36x128xf32> to vector<4x128xf32>
    %c0_281 = arith.constant 0 : index
    %c4 = arith.constant 4 : index
    %c0_282 = arith.constant 0 : index
    %394 = vector.load %arg16[%c0_281, %c4, %c0_282] : memref<1x16x128xf32, #tpu.memory_space<vmem>>, vector<1x4x128xf32>
    %395 = vector.shape_cast %394 : vector<1x4x128xf32> to vector<4x128xf32>
    %396 = vector.shape_cast %393 : vector<4x128xf32> to vector<1x4x128xf32>
    tpu.vector_store %arg16[%c0_281, %c4, %c0_282], %396 {strides = array<i32>} : memref<1x16x128xf32, #tpu.memory_space<vmem>>, vector<1x4x128xf32>,
    %397 = vector.extract_strided_slice %388 {offsets = [19, 0], sizes = [4, 128], strides = [1, 1]} : vector<36x128xf32> to vector<4x128xf32>
    %c0_283 = arith.constant 0 : index
    %c8_284 = arith.constant 8 : index
    %c0_285 = arith.constant 0 : index
    %398 = vector.load %arg16[%c0_283, %c8_284, %c0_285] : memref<1x16x128xf32, #tpu.memory_space<vmem>>, vector<1x4x128xf32>
    %399 = vector.shape_cast %398 : vector<1x4x128xf32> to vector<4x128xf32>
    %400 = vector.shape_cast %397 : vector<4x128xf32> to vector<1x4x128xf32>
    tpu.vector_store %arg16[%c0_283, %c8_284, %c0_285], %400 {strides = array<i32>} : memref<1x16x128xf32, #tpu.memory_space<vmem>>, vector<1x4x128xf32>,
    %401 = vector.extract_strided_slice %388 {offsets = [25, 0], sizes = [4, 128], strides = [1, 1]} : vector<36x128xf32> to vector<4x128xf32>
    %c0_286 = arith.constant 0 : index
    %c12_287 = arith.constant 12 : index
    %c0_288 = arith.constant 0 : index
    %402 = vector.load %arg16[%c0_286, %c12_287, %c0_288] : memref<1x16x128xf32, #tpu.memory_space<vmem>>, vector<1x4x128xf32>
    %403 = vector.shape_cast %402 : vector<1x4x128xf32> to vector<4x128xf32>
    %404 = vector.shape_cast %401 : vector<4x128xf32> to vector<1x4x128xf32>
    tpu.vector_store %arg16[%c0_286, %c12_287, %c0_288], %404 {strides = array<i32>} : memref<1x16x128xf32, #tpu.memory_space<vmem>>, vector<1x4x128xf32>,
    %405 = tpu.iota {dimensions = array<i32: 0>} : vector<2x4xi32>
    %406 = tpu.iota {dimensions = array<i32: 1>} : vector<2x4xi32>
    %c2_i32_289 = arith.constant 2 : i32
    %407 = vector.broadcast %c2_i32_289 : i32 to vector<2x4xi32>
    %408 = arith.muli %407, %405 : vector<2x4xi32>
    %409 = arith.cmpi eq, %406, %408 : vector<2x4xi32>
    %410 = arith.extui %409 : vector<2x4xi1> to vector<2x4xi32>
    %411 = arith.sitofp %410 : vector<2x4xi32> to vector<2x4xf32>
    %c2_i32_290 = arith.constant 2 : i32
    %412 = vector.broadcast %c2_i32_290 : i32 to vector<2x4xi32>
    %413 = arith.muli %412, %405 : vector<2x4xi32>
    %c1_i32_291 = arith.constant 1 : i32
    %414 = vector.broadcast %c1_i32_291 : i32 to vector<2x4xi32>
    %415 = arith.addi %413, %414 : vector<2x4xi32>
    %416 = arith.cmpi eq, %406, %415 : vector<2x4xi32>
    %417 = arith.extui %416 : vector<2x4xi1> to vector<2x4xi32>
    %418 = arith.sitofp %417 : vector<2x4xi32> to vector<2x4xf32>
    %419 = vector.extract_strided_slice %388 {offsets = [7, 0], sizes = [4, 128], strides = [1, 1]} : vector<36x128xf32> to vector<4x128xf32>
    %420 = vector.extract_strided_slice %388 {offsets = [13, 0], sizes = [4, 128], strides = [1, 1]} : vector<36x128xf32> to vector<4x128xf32>
    %421 = arith.maximumf %419, %420 : vector<4x128xf32>
    %cst_292 = arith.constant dense<0.000000e+00> : vector<2x128xf32>
    %422 = tpu.matmul %411, %421, %cst_292 {dimension_numbers = #tpu.dot_dimension_numbers<[1], [0], [0], [1], [0, 0, 1, 1], [], []>} : vector<2x4xf32>, vector<4x128xf32>, vector<2x128xf32> -> vector<2x128xf32>
    %cst_293 = arith.constant dense<0.000000e+00> : vector<2x128xf32>
    %423 = tpu.matmul %418, %421, %cst_293 {dimension_numbers = #tpu.dot_dimension_numbers<[1], [0], [0], [1], [0, 0, 1, 1], [], []>} : vector<2x4xf32>, vector<4x128xf32>, vector<2x128xf32> -> vector<2x128xf32>
    %424 = arith.maximumf %422, %423 : vector<2x128xf32>
    %c10_294 = arith.constant 10 : index
    %c0_295 = arith.constant 0 : index
    %425 = vector.load %arg22[%c10_294, %c0_295] : memref<26x128xf32, #tpu.memory_space<vmem>>, vector<2x128xf32>
    tpu.vector_store %arg22[%c10_294, %c0_295], %424 {strides = array<i32>} : memref<26x128xf32, #tpu.memory_space<vmem>>, vector<2x128xf32>,
    %426 = vector.extract_strided_slice %388 {offsets = [19, 0], sizes = [4, 128], strides = [1, 1]} : vector<36x128xf32> to vector<4x128xf32>
    %427 = vector.extract_strided_slice %388 {offsets = [25, 0], sizes = [4, 128], strides = [1, 1]} : vector<36x128xf32> to vector<4x128xf32>
    %428 = arith.maximumf %426, %427 : vector<4x128xf32>
    %cst_296 = arith.constant dense<0.000000e+00> : vector<2x128xf32>
    %429 = tpu.matmul %411, %428, %cst_296 {dimension_numbers = #tpu.dot_dimension_numbers<[1], [0], [0], [1], [0, 0, 1, 1], [], []>} : vector<2x4xf32>, vector<4x128xf32>, vector<2x128xf32> -> vector<2x128xf32>
    %cst_297 = arith.constant dense<0.000000e+00> : vector<2x128xf32>
    %430 = tpu.matmul %418, %428, %cst_297 {dimension_numbers = #tpu.dot_dimension_numbers<[1], [0], [0], [1], [0, 0, 1, 1], [], []>} : vector<2x4xf32>, vector<4x128xf32>, vector<2x128xf32> -> vector<2x128xf32>
    %431 = arith.maximumf %429, %430 : vector<2x128xf32>
    %c14_298 = arith.constant 14 : index
    %c0_299 = arith.constant 0 : index
    %432 = vector.load %arg22[%c14_298, %c0_299] : memref<26x128xf32, #tpu.memory_space<vmem>>, vector<2x128xf32>
    tpu.vector_store %arg22[%c14_298, %c0_299], %431 {strides = array<i32>} : memref<26x128xf32, #tpu.memory_space<vmem>>, vector<2x128xf32>,
    %cst_300 = arith.constant 0.000000e+00 : f32
    %433 = vector.broadcast %cst_300 : f32 to vector<16x256xf32>
    %c0_301 = arith.constant 0 : index
    %c0_302 = arith.constant 0 : index
    %434 = vector.load %arg22[%c0_301, %c0_302] : memref<26x128xf32, #tpu.memory_space<vmem>>, vector<16x128xf32>
    %435 = arith.truncf %434 : vector<16x128xf32> to vector<16x128xbf16>
    %c0_303 = arith.constant 0 : index
    %c0_304 = arith.constant 0 : index
    %436 = vector.load %arg12[%c0_303, %c0_304] : memref<1152x256xbf16, #tpu.memory_space<vmem>>, vector<128x256xbf16>
    %cst_305 = arith.constant dense<0.000000e+00> : vector<16x256xf32>
    %437 = tpu.matmul %435, %436, %cst_305 {dimension_numbers = #tpu.dot_dimension_numbers<[1], [0], [0], [1], [0, 0, 1, 1], [], []>} : vector<16x128xbf16>, vector<128x256xbf16>, vector<16x256xf32> -> vector<16x256xf32>
    %438 = arith.addf %433, %437 : vector<16x256xf32>
    %c1_306 = arith.constant 1 : index
    %c0_307 = arith.constant 0 : index
    %439 = vector.load %arg22[%c1_306, %c0_307] : memref<26x128xf32, #tpu.memory_space<vmem>>, vector<16x128xf32>
    %440 = arith.truncf %439 : vector<16x128xf32> to vector<16x128xbf16>
    %c128_308 = arith.constant 128 : index
    %c0_309 = arith.constant 0 : index
    %441 = vector.load %arg12[%c128_308, %c0_309] : memref<1152x256xbf16, #tpu.memory_space<vmem>>, vector<128x256xbf16>
    %cst_310 = arith.constant dense<0.000000e+00> : vector<16x256xf32>
    %442 = tpu.matmul %440, %441, %cst_310 {dimension_numbers = #tpu.dot_dimension_numbers<[1], [0], [0], [1], [0, 0, 1, 1], [], []>} : vector<16x128xbf16>, vector<128x256xbf16>, vector<16x256xf32> -> vector<16x256xf32>
    %443 = arith.addf %438, %442 : vector<16x256xf32>
    %c2_311 = arith.constant 2 : index
    %c0_312 = arith.constant 0 : index
    %444 = vector.load %arg22[%c2_311, %c0_312] : memref<26x128xf32, #tpu.memory_space<vmem>>, vector<16x128xf32>
    %445 = arith.truncf %444 : vector<16x128xf32> to vector<16x128xbf16>
    %c256_313 = arith.constant 256 : index
    %c0_314 = arith.constant 0 : index
    %446 = vector.load %arg12[%c256_313, %c0_314] : memref<1152x256xbf16, #tpu.memory_space<vmem>>, vector<128x256xbf16>
    %cst_315 = arith.constant dense<0.000000e+00> : vector<16x256xf32>
    %447 = tpu.matmul %445, %446, %cst_315 {dimension_numbers = #tpu.dot_dimension_numbers<[1], [0], [0], [1], [0, 0, 1, 1], [], []>} : vector<16x128xbf16>, vector<128x256xbf16>, vector<16x256xf32> -> vector<16x256xf32>
    %448 = arith.addf %443, %447 : vector<16x256xf32>
    %c4_316 = arith.constant 4 : index
    %c0_317 = arith.constant 0 : index
    %449 = vector.load %arg22[%c4_316, %c0_317] : memref<26x128xf32, #tpu.memory_space<vmem>>, vector<16x128xf32>
    %450 = arith.truncf %449 : vector<16x128xf32> to vector<16x128xbf16>
    %c384_318 = arith.constant 384 : index
    %c0_319 = arith.constant 0 : index
    %451 = vector.load %arg12[%c384_318, %c0_319] : memref<1152x256xbf16, #tpu.memory_space<vmem>>, vector<128x256xbf16>
    %cst_320 = arith.constant dense<0.000000e+00> : vector<16x256xf32>
    %452 = tpu.matmul %450, %451, %cst_320 {dimension_numbers = #tpu.dot_dimension_numbers<[1], [0], [0], [1], [0, 0, 1, 1], [], []>} : vector<16x128xbf16>, vector<128x256xbf16>, vector<16x256xf32> -> vector<16x256xf32>
    %453 = arith.addf %448, %452 : vector<16x256xf32>
    %c5 = arith.constant 5 : index
    %c0_321 = arith.constant 0 : index
    %454 = vector.load %arg22[%c5, %c0_321] : memref<26x128xf32, #tpu.memory_space<vmem>>, vector<16x128xf32>
    %455 = arith.truncf %454 : vector<16x128xf32> to vector<16x128xbf16>
    %c512_322 = arith.constant 512 : index
    %c0_323 = arith.constant 0 : index
    %456 = vector.load %arg12[%c512_322, %c0_323] : memref<1152x256xbf16, #tpu.memory_space<vmem>>, vector<128x256xbf16>
    %cst_324 = arith.constant dense<0.000000e+00> : vector<16x256xf32>
    %457 = tpu.matmul %455, %456, %cst_324 {dimension_numbers = #tpu.dot_dimension_numbers<[1], [0], [0], [1], [0, 0, 1, 1], [], []>} : vector<16x128xbf16>, vector<128x256xbf16>, vector<16x256xf32> -> vector<16x256xf32>
    %458 = arith.addf %453, %457 : vector<16x256xf32>
    %c6_325 = arith.constant 6 : index
    %c0_326 = arith.constant 0 : index
    %459 = vector.load %arg22[%c6_325, %c0_326] : memref<26x128xf32, #tpu.memory_space<vmem>>, vector<16x128xf32>
    %460 = arith.truncf %459 : vector<16x128xf32> to vector<16x128xbf16>
    %c640_327 = arith.constant 640 : index
    %c0_328 = arith.constant 0 : index
    %461 = vector.load %arg12[%c640_327, %c0_328] : memref<1152x256xbf16, #tpu.memory_space<vmem>>, vector<128x256xbf16>
    %cst_329 = arith.constant dense<0.000000e+00> : vector<16x256xf32>
    %462 = tpu.matmul %460, %461, %cst_329 {dimension_numbers = #tpu.dot_dimension_numbers<[1], [0], [0], [1], [0, 0, 1, 1], [], []>} : vector<16x128xbf16>, vector<128x256xbf16>, vector<16x256xf32> -> vector<16x256xf32>
    %463 = arith.addf %458, %462 : vector<16x256xf32>
    %c8_330 = arith.constant 8 : index
    %c0_331 = arith.constant 0 : index
    %464 = vector.load %arg22[%c8_330, %c0_331] : memref<26x128xf32, #tpu.memory_space<vmem>>, vector<16x128xf32>
    %465 = arith.truncf %464 : vector<16x128xf32> to vector<16x128xbf16>
    %c768_332 = arith.constant 768 : index
    %c0_333 = arith.constant 0 : index
    %466 = vector.load %arg12[%c768_332, %c0_333] : memref<1152x256xbf16, #tpu.memory_space<vmem>>, vector<128x256xbf16>
    %cst_334 = arith.constant dense<0.000000e+00> : vector<16x256xf32>
    %467 = tpu.matmul %465, %466, %cst_334 {dimension_numbers = #tpu.dot_dimension_numbers<[1], [0], [0], [1], [0, 0, 1, 1], [], []>} : vector<16x128xbf16>, vector<128x256xbf16>, vector<16x256xf32> -> vector<16x256xf32>
    %468 = arith.addf %463, %467 : vector<16x256xf32>
    %c9 = arith.constant 9 : index
    %c0_335 = arith.constant 0 : index
    %469 = vector.load %arg22[%c9, %c0_335] : memref<26x128xf32, #tpu.memory_space<vmem>>, vector<16x128xf32>
    %470 = arith.truncf %469 : vector<16x128xf32> to vector<16x128xbf16>
    %c896_336 = arith.constant 896 : index
    %c0_337 = arith.constant 0 : index
    %471 = vector.load %arg12[%c896_336, %c0_337] : memref<1152x256xbf16, #tpu.memory_space<vmem>>, vector<128x256xbf16>
    %cst_338 = arith.constant dense<0.000000e+00> : vector<16x256xf32>
    %472 = tpu.matmul %470, %471, %cst_338 {dimension_numbers = #tpu.dot_dimension_numbers<[1], [0], [0], [1], [0, 0, 1, 1], [], []>} : vector<16x128xbf16>, vector<128x256xbf16>, vector<16x256xf32> -> vector<16x256xf32>
    %473 = arith.addf %468, %472 : vector<16x256xf32>
    %c10_339 = arith.constant 10 : index
    %c0_340 = arith.constant 0 : index
    %474 = vector.load %arg22[%c10_339, %c0_340] : memref<26x128xf32, #tpu.memory_space<vmem>>, vector<16x128xf32>
    %475 = arith.truncf %474 : vector<16x128xf32> to vector<16x128xbf16>
    %c1024_341 = arith.constant 1024 : index
    %c0_342 = arith.constant 0 : index
    %476 = vector.load %arg12[%c1024_341, %c0_342] : memref<1152x256xbf16, #tpu.memory_space<vmem>>, vector<128x256xbf16>
    %cst_343 = arith.constant dense<0.000000e+00> : vector<16x256xf32>
    %477 = tpu.matmul %475, %476, %cst_343 {dimension_numbers = #tpu.dot_dimension_numbers<[1], [0], [0], [1], [0, 0, 1, 1], [], []>} : vector<16x128xbf16>, vector<128x256xbf16>, vector<16x256xf32> -> vector<16x256xf32>
    %478 = arith.addf %473, %477 : vector<16x256xf32>
    %c0_344 = arith.constant 0 : index
    %c0_345 = arith.constant 0 : index
    %479 = vector.load %arg13[%c0_344, %c0_345] : memref<1x256xf32, #tpu.memory_space<vmem>>, vector<1x256xf32>
    %480 = vector.broadcast %479 : vector<1x256xf32> to vector<16x256xf32>
    %481 = arith.addf %478, %480 : vector<16x256xf32>
    %482 = math.tanh %481 : vector<16x256xf32>
    %483 = vector.extract_strided_slice %482 {offsets = [5, 0], sizes = [2, 256], strides = [1, 1]} : vector<16x256xf32> to vector<2x256xf32>
    %c0_346 = arith.constant 0 : index
    %c0_347 = arith.constant 0 : index
    %c0_348 = arith.constant 0 : index
    %484 = vector.load %arg17[%c0_346, %c0_347, %c0_348] : memref<1x4x256xf32, #tpu.memory_space<vmem>>, vector<1x2x256xf32>
    %485 = vector.shape_cast %484 : vector<1x2x256xf32> to vector<2x256xf32>
    %486 = vector.shape_cast %483 : vector<2x256xf32> to vector<1x2x256xf32>
    tpu.vector_store %arg17[%c0_346, %c0_347, %c0_348], %486 {strides = array<i32>} : memref<1x4x256xf32, #tpu.memory_space<vmem>>, vector<1x2x256xf32>,
    %487 = vector.extract_strided_slice %482 {offsets = [9, 0], sizes = [2, 256], strides = [1, 1]} : vector<16x256xf32> to vector<2x256xf32>
    %c0_349 = arith.constant 0 : index
    %c2_350 = arith.constant 2 : index
    %c0_351 = arith.constant 0 : index
    %488 = vector.load %arg17[%c0_349, %c2_350, %c0_351] : memref<1x4x256xf32, #tpu.memory_space<vmem>>, vector<1x2x256xf32>
    %489 = vector.shape_cast %488 : vector<1x2x256xf32> to vector<2x256xf32>
    %490 = vector.shape_cast %487 : vector<2x256xf32> to vector<1x2x256xf32>
    tpu.vector_store %arg17[%c0_349, %c2_350, %c0_351], %490 {strides = array<i32>} : memref<1x4x256xf32, #tpu.memory_space<vmem>>, vector<1x2x256xf32>,
    return
  }
  func.func @transform_0(%arg0: i32) -> (i32, i32, i32) {
    %c0_i32 = arith.constant 0 : i32
    %c0_i32_0 = arith.constant 0 : i32
    %c0_i32_1 = arith.constant 0 : i32
    return %arg0, %c0_i32, %c0_i32_0 : i32, i32, i32
  }
  func.func @transform_1(%arg0: i32) -> (i32, i32) {
    %c0_i32 = arith.constant 0 : i32
    %c0_i32_0 = arith.constant 0 : i32
    %c0_i32_1 = arith.constant 0 : i32
    return %c0_i32, %c0_i32_0 : i32, i32
  }
  func.func @transform_2(%arg0: i32) -> (i32, i32) {
    %c0_i32 = arith.constant 0 : i32
    %c0_i32_0 = arith.constant 0 : i32
    %c0_i32_1 = arith.constant 0 : i32
    return %c0_i32, %c0_i32_0 : i32, i32
  }
  func.func @transform_3(%arg0: i32) -> (i32, i32) {
    %c0_i32 = arith.constant 0 : i32
    %c0_i32_0 = arith.constant 0 : i32
    %c0_i32_1 = arith.constant 0 : i32
    return %c0_i32, %c0_i32_0 : i32, i32
  }
  func.func @transform_4(%arg0: i32) -> (i32, i32) {
    %c0_i32 = arith.constant 0 : i32
    %c0_i32_0 = arith.constant 0 : i32
    %c0_i32_1 = arith.constant 0 : i32
    return %c0_i32, %c0_i32_0 : i32, i32
  }
  func.func @transform_5(%arg0: i32) -> (i32, i32) {
    %c0_i32 = arith.constant 0 : i32
    %c0_i32_0 = arith.constant 0 : i32
    %c0_i32_1 = arith.constant 0 : i32
    return %c0_i32, %c0_i32_0 : i32, i32
  }
  func.func @transform_6(%arg0: i32) -> (i32, i32) {
    %c0_i32 = arith.constant 0 : i32
    %c0_i32_0 = arith.constant 0 : i32
    %c0_i32_1 = arith.constant 0 : i32
    return %c0_i32, %c0_i32_0 : i32, i32
  }
  func.func @transform_7(%arg0: i32) -> (i32, i32) {
    %c0_i32 = arith.constant 0 : i32
    %c0_i32_0 = arith.constant 0 : i32
    %c0_i32_1 = arith.constant 0 : i32
    return %c0_i32, %c0_i32_0 : i32, i32
  }
  func.func @transform_8(%arg0: i32) -> (i32, i32) {
    %c0_i32 = arith.constant 0 : i32
    %c0_i32_0 = arith.constant 0 : i32
    %c0_i32_1 = arith.constant 0 : i32
    return %c0_i32, %c0_i32_0 : i32, i32
  }
  func.func @transform_9(%arg0: i32) -> (i32, i32) {
    %c0_i32 = arith.constant 0 : i32
    %c0_i32_0 = arith.constant 0 : i32
    %c0_i32_1 = arith.constant 0 : i32
    return %c0_i32, %c0_i32_0 : i32, i32
  }
  func.func @transform_10(%arg0: i32) -> (i32, i32) {
    %c0_i32 = arith.constant 0 : i32
    %c0_i32_0 = arith.constant 0 : i32
    %c0_i32_1 = arith.constant 0 : i32
    return %c0_i32, %c0_i32_0 : i32, i32
  }
  func.func @transform_11(%arg0: i32) -> (i32, i32) {
    %c0_i32 = arith.constant 0 : i32
    %c0_i32_0 = arith.constant 0 : i32
    %c0_i32_1 = arith.constant 0 : i32
    return %c0_i32, %c0_i32_0 : i32, i32
  }
  func.func @transform_12(%arg0: i32) -> (i32, i32) {
    %c0_i32 = arith.constant 0 : i32
    %c0_i32_0 = arith.constant 0 : i32
    %c0_i32_1 = arith.constant 0 : i32
    return %c0_i32, %c0_i32_0 : i32, i32
  }
  func.func @transform_13(%arg0: i32) -> (i32, i32, i32) {
    %c0_i32 = arith.constant 0 : i32
    %c0_i32_0 = arith.constant 0 : i32
    %c0_i32_1 = arith.constant 0 : i32
    return %arg0, %c0_i32, %c0_i32_0 : i32, i32, i32
  }
  func.func @transform_14(%arg0: i32) -> (i32, i32, i32) {
    %c0_i32 = arith.constant 0 : i32
    %c0_i32_0 = arith.constant 0 : i32
    %c0_i32_1 = arith.constant 0 : i32
    return %arg0, %c0_i32, %c0_i32_0 : i32, i32, i32
  }
  func.func @transform_15(%arg0: i32) -> (i32, i32, i32) {
    %c0_i32 = arith.constant 0 : i32
    %c0_i32_0 = arith.constant 0 : i32
    %c0_i32_1 = arith.constant 0 : i32
    return %arg0, %c0_i32, %c0_i32_0 : i32, i32, i32
  }
  func.func @transform_16(%arg0: i32) -> (i32, i32, i32) {
    %c0_i32 = arith.constant 0 : i32
    %c0_i32_0 = arith.constant 0 : i32
    %c0_i32_1 = arith.constant 0 : i32
    return %arg0, %c0_i32, %c0_i32_0 : i32, i32, i32
  }
}

</mosaic_0001>

<llo_original>
// kernel: encoder_forward.1
$region0: #{encoder_forward.1}
  #allocation0 [shape = 'u32[]', space=smem, size = 0x4, offset = 0x4, fixed_abs, tag = 'smem constant byte address 0x4 - core index']
  #allocation1 [shape = 'u32[144,128]{1,0:T(1,128)}', space=vmem, size = 0x12000, scoped, tag = 'internal scratch']
  #allocation2 [shape = 'f32[122,64]{1,0:T(8,128)}', space=vmem, size = 0x10000, scoped, tag = 'scratch operand']
  #allocation3 [shape = 'f32[122,64]{1,0:T(8,128)}', space=vmem, size = 0x10000, scoped, tag = 'scratch operand']
  #allocation4 [shape = 'f32[50,128]{1,0:T(8,128)}', space=vmem, size = 0x7000, scoped, tag = 'scratch operand']
  #allocation5 [shape = 'f32[50,128]{1,0:T(8,128)}', space=vmem, size = 0x7000, scoped, tag = 'scratch operand']
  #allocation6 [shape = 'f32[26,128]{1,0:T(8,128)}', space=vmem, size = 0x4000, scoped, tag = 'scratch operand']
  %s0 = inlined_call_operand.vmem [shape: f32[2,256,16], index: 0, kind: input, shape index: {}]
  %s1 = inlined_call_operand.vmem [shape: f32[16,64], index: 1, kind: input, shape index: {}]
  %s2 = inlined_call_operand.vmem [shape: f32[1,64], index: 2, kind: input, shape index: {}]
  %s3 = inlined_call_operand.vmem [shape: bf16[576,64], index: 3, kind: input, shape index: {}]
  %s4 = inlined_call_operand.vmem [shape: f32[1,64], index: 4, kind: input, shape index: {}]
  %s5 = inlined_call_operand.vmem [shape: bf16[576,128], index: 5, kind: input, shape index: {}]
  %s6 = inlined_call_operand.vmem [shape: f32[1,128], index: 6, kind: input, shape index: {}]
  %s7 = inlined_call_operand.vmem [shape: bf16[1152,128], index: 7, kind: input, shape index: {}]
  %s8 = inlined_call_operand.vmem [shape: f32[1,128], index: 8, kind: input, shape index: {}]
  %s9 = inlined_call_operand.vmem [shape: bf16[1152,128], index: 9, kind: input, shape index: {}]
  %s10 = inlined_call_operand.vmem [shape: f32[1,128], index: 10, kind: input, shape index: {}]
  %s11 = inlined_call_operand.vmem [shape: bf16[1152,256], index: 11, kind: input, shape index: {}]
  %s12 = inlined_call_operand.vmem [shape: f32[1,256], index: 12, kind: input, shape index: {}]
  %s13 = inlined_call_operand.hbm [shape: f32[2,256,64], index: 13, kind: output, shape index: {0}]
  %s14 = inlined_call_operand.hbm [shape: f32[2,64,128], index: 14, kind: output, shape index: {1}]
  %s15 = inlined_call_operand.hbm [shape: f32[2,16,128], index: 15, kind: output, shape index: {2}]
  %s16 = inlined_call_operand.vmem [shape: f32[2,4,256], index: 16, kind: output, shape index: {3}]
  %17 = xla_tuple %s13, %s14, %s15, %s16
  %s18 = sld [smem:[#allocation0]]
  $region109: #{encoder_forward.1} parent=0
    _
  %s20 = ssub.s32 1, %s18
  %s21 = scalar_select 0, %s20, %s18
  $region1: #{encoder_forward.1} parent=0
    #allocation7 [shape = 'u8[262144]{0}', space=vmem, size = 0x40000, scoped, tag = 'output window, operand 0']
    #allocation8 [shape = 's32[2]{0}', space=sflag, size = 0x8, scoped, tag = 'scoped memory for encoder_forward.1']
    #allocation9 [shape = 'u8[65536]{0}', space=vmem, size = 0x10000, scoped, tag = 'output window, operand 1']
    #allocation10 [shape = 's32[2]{0}', space=sflag, size = 0x8, scoped, tag = 'scoped memory for encoder_forward.1']
    #allocation11 [shape = 'u8[16384]{0}', space=vmem, size = 0x4000, scoped, tag = 'output window, operand 2']
    %22 = vsyncpa [#allocation8], 0
    %s23 = scalar_lea.sflag [#allocation8], 1
    %24 = vsyncpa %s23, 0
    %25 = vsyncpa [#allocation10], 0
    %s26 = scalar_lea.sflag [#allocation10], 1
    %27 = vsyncpa %s26, 0
    loop: start=0, step=1, limit=4
    $region2: #{encoder_forward.1} parent=1 // loop_pre_header
      _
    $region3: #{encoder_forward.1} parent=1 // loop_header
      %s29 = sphi 0, %s33
      %p30 = scmp.ge.s32.totalorder %s29, 4
      %s39 = sphi 0, %s41
      %s42 = sphi 0, %s39
      %s43 = sphi 0, %s42
      %s59 = sphi 0, %s43
      %s63 = sphi 0, %s63
      %s65 = sphi 0, %s63
      %s66 = sphi 0, %s65
      %s80 = sphi 0, %s66
      %s84 = sphi 0, %s84
      %s86 = sphi 0, %s84
      %s87 = sphi 0, %s86
      %s101 = sphi 0, %s87
      %s105 = sphi 0, %s105
      %s107 = sphi 0, %s105
      %s108 = sphi 0, %s107
      %s122 = sphi 0, %s108
      %s126 = sphi 0, %s126
      %s128 = sphi 0, %s126
      %s129 = sphi 0, %s128
      %s143 = sphi 0, %s129
      %s147 = sphi 0, %s147
      %s149 = sphi 0, %s147
      %s150 = sphi 0, %s149
      %s164 = sphi 0, %s150
      %s168 = sphi 0, %s168
      %s170 = sphi 0, %s168
      %s171 = sphi 0, %s170
      %s185 = sphi 0, %s171
      %s189 = sphi 0, %s189
      %s191 = sphi 0, %s189
      %s192 = sphi 0, %s191
      %s206 = sphi 0, %s192
      %s210 = sphi 0, %s210
      %s212 = sphi 0, %s210
      %s213 = sphi 0, %s212
      %s227 = sphi 0, %s213
      %s231 = sphi 0, %s231
      %s233 = sphi 0, %s231
      %s234 = sphi 0, %s233
      %s248 = sphi 0, %s234
      %s252 = sphi 0, %s252
      %s254 = sphi 0, %s252
      %s255 = sphi 0, %s254
      %s269 = sphi 0, %s255
      %s273 = sphi 0, %s273
      %s275 = sphi 0, %s273
      %s276 = sphi 0, %s275
      %s290 = sphi 0, %s276
      %s294 = sphi 0, %s294
      %s296 = sphi 0, %s294
      %s297 = sphi 0, %s296
      %s311 = sphi 0, %s297
      %s317 = sphi 0, %s319
      %s320 = sphi 0, %s317
      %s321 = sphi 0, %s320
      %s337 = sphi 0, %s321
      %s343 = sphi 0, %s345
      %s346 = sphi 0, %s343
      %s347 = sphi 0, %s346
      %s363 = sphi 0, %s347
      %s369 = sphi 0, %s371
      %s372 = sphi 0, %s369
      %s373 = sphi 0, %s372
      %s389 = sphi 0, %s373
      %s395 = sphi 0, %s397
      %s398 = sphi 0, %s395
      %s399 = sphi 0, %s398
      %s415 = sphi 0, %s399
    $region4: #{encoder_forward.1} parent=1 // loop_header_branch
      %32 = sbr.rel (%p30) target = $region8
    $region5: #{encoder_forward.1} parent=1 // loop_body
      %s34 = ssub.s32 %s29, 1
      %s35 = ssub.s32 %s29, 2
      %s36 = sadd.s32 %s29, 1
      %s37 = ssub.s32 %s29, %s36
      %p38 = scmp.eq.s32.totalorder %s37, 0
      %s40 = sadd.s32 %s39, 1
      %s41 = scalar_select %p38, %s39, %s40
      %p44 = pneg %p38
      %p45 = scmp.eq.s32.totalorder %s29, 1
      %p46 = por %p44, %p45
      %p47 = scmp.ne.s32.totalorder %s39, %s42
      %p48 = scmp.eq.s32.totalorder %s29, 0
      %p49 = por %p47, %p48
      %p50 = scmp.ne.s32.totalorder %s39, %s42
      %p51 = scmp.eq.s32.totalorder %s34, 1
      %p52 = por %p50, %p51
      %p53 = scmp.ne.s32.totalorder %s42, %s43
      %p54 = scmp.eq.s32.totalorder %s34, 0
      %p55 = por %p53, %p54
      %p56 = scmp.ne.s32.totalorder %s42, %s43
      %p57 = scmp.eq.s32.totalorder %s35, 1
      %p58 = por %p56, %p57
      %p60 = scmp.ne.s32.totalorder %s43, %s59
      %p61 = scmp.eq.s32.totalorder %s35, 0
      %p62 = por %p60, %p61
      %s64 = sadd.s32 %s63, 1
      %p67 = scmp.eq.s32.totalorder %s29, 1
      %p68 = scmp.ne.s32.totalorder %s63, %s65
      %p69 = scmp.eq.s32.totalorder %s29, 0
      %p70 = por %p68, %p69
      %p71 = scmp.ne.s32.totalorder %s63, %s65
      %p72 = scmp.eq.s32.totalorder %s34, 1
      %p73 = por %p71, %p72
      %p74 = scmp.ne.s32.totalorder %s65, %s66
      %p75 = scmp.eq.s32.totalorder %s34, 0
      %p76 = por %p74, %p75
      %p77 = scmp.ne.s32.totalorder %s65, %s66
      %p78 = scmp.eq.s32.totalorder %s35, 1
      %p79 = por %p77, %p78
      %p81 = scmp.ne.s32.totalorder %s66, %s80
      %p82 = scmp.eq.s32.totalorder %s35, 0
      %p83 = por %p81, %p82
      %s85 = sadd.s32 %s84, 1
      %p88 = scmp.eq.s32.totalorder %s29, 1
      %p89 = scmp.ne.s32.totalorder %s84, %s86
      %p90 = scmp.eq.s32.totalorder %s29, 0
      %p91 = por %p89, %p90
      %p92 = scmp.ne.s32.totalorder %s84, %s86
      %p93 = scmp.eq.s32.totalorder %s34, 1
      %p94 = por %p92, %p93
      %p95 = scmp.ne.s32.totalorder %s86, %s87
      %p96 = scmp.eq.s32.totalorder %s34, 0
      %p97 = por %p95, %p96
      %p98 = scmp.ne.s32.totalorder %s86, %s87
      %p99 = scmp.eq.s32.totalorder %s35, 1
      %p100 = por %p98, %p99
      %p102 = scmp.ne.s32.totalorder %s87, %s101
      %p103 = scmp.eq.s32.totalorder %s35, 0
      %p104 = por %p102, %p103
      %s106 = sadd.s32 %s105, 1
      %p109 = scmp.eq.s32.totalorder %s29, 1
      %p110 = scmp.ne.s32.totalorder %s105, %s107
      %p111 = scmp.eq.s32.totalorder %s29, 0
      %p112 = por %p110, %p111
      %p113 = scmp.ne.s32.totalorder %s105, %s107
      %p114 = scmp.eq.s32.totalorder %s34, 1
      %p115 = por %p113, %p114
      %p116 = scmp.ne.s32.totalorder %s107, %s108
      %p117 = scmp.eq.s32.totalorder %s34, 0
      %p118 = por %p116, %p117
      %p119 = scmp.ne.s32.totalorder %s107, %s108
      %p120 = scmp.eq.s32.totalorder %s35, 1
      %p121 = por %p119, %p120
      %p123 = scmp.ne.s32.totalorder %s108, %s122
      %p124 = scmp.eq.s32.totalorder %s35, 0
      %p125 = por %p123, %p124
      %s127 = sadd.s32 %s126, 1
      %p130 = scmp.eq.s32.totalorder %s29, 1
      %p131 = scmp.ne.s32.totalorder %s126, %s128
      %p132 = scmp.eq.s32.totalorder %s29, 0
      %p133 = por %p131, %p132
      %p134 = scmp.ne.s32.totalorder %s126, %s128
      %p135 = scmp.eq.s32.totalorder %s34, 1
      %p136 = por %p134, %p135
      %p137 = scmp.ne.s32.totalorder %s128, %s129
      %p138 = scmp.eq.s32.totalorder %s34, 0
      %p139 = por %p137, %p138
      %p140 = scmp.ne.s32.totalorder %s128, %s129
      %p141 = scmp.eq.s32.totalorder %s35, 1
      %p142 = por %p140, %p141
      %p144 = scmp.ne.s32.totalorder %s129, %s143
      %p145 = scmp.eq.s32.totalorder %s35, 0
      %p146 = por %p144, %p145
      %s148 = sadd.s32 %s147, 1
      %p151 = scmp.eq.s32.totalorder %s29, 1
      %p152 = scmp.ne.s32.totalorder %s147, %s149
      %p153 = scmp.eq.s32.totalorder %s29, 0
      %p154 = por %p152, %p153
      %p155 = scmp.ne.s32.totalorder %s147, %s149
      %p156 = scmp.eq.s32.totalorder %s34, 1
      %p157 = por %p155, %p156
      %p158 = scmp.ne.s32.totalorder %s149, %s150
      %p159 = scmp.eq.s32.totalorder %s34, 0
      %p160 = por %p158, %p159
      %p161 = scmp.ne.s32.totalorder %s149, %s150
      %p162 = scmp.eq.s32.totalorder %s35, 1
      %p163 = por %p161, %p162
      %p165 = scmp.ne.s32.totalorder %s150, %s164
      %p166 = scmp.eq.s32.totalorder %s35, 0
      %p167 = por %p165, %p166
      %s169 = sadd.s32 %s168, 1
      %p172 = scmp.eq.s32.totalorder %s29, 1
      %p173 = scmp.ne.s32.totalorder %s168, %s170
      %p174 = scmp.eq.s32.totalorder %s29, 0
      %p175 = por %p173, %p174
      %p176 = scmp.ne.s32.totalorder %s168, %s170
      %p177 = scmp.eq.s32.totalorder %s34, 1
      %p178 = por %p176, %p177
      %p179 = scmp.ne.s32.totalorder %s170, %s171
      %p180 = scmp.eq.s32.totalorder %s34, 0
      %p181 = por %p179, %p180
      %p182 = scmp.ne.s32.totalorder %s170, %s171
      %p183 = scmp.eq.s32.totalorder %s35, 1
      %p184 = por %p182, %p183
      %p186 = scmp.ne.s32.totalorder %s171, %s185
      %p187 = scmp.eq.s32.totalorder %s35, 0
      %p188 = por %p186, %p187
      %s190 = sadd.s32 %s189, 1
      %p193 = scmp.eq.s32.totalorder %s29, 1
      %p194 = scmp.ne.s32.totalorder %s189, %s191
      %p195 = scmp.eq.s32.totalorder %s29, 0
      %p196 = por %p194, %p195
      %p197 = scmp.ne.s32.totalorder %s189, %s191
      %p198 = scmp.eq.s32.totalorder %s34, 1
      %p199 = por %p197, %p198
      %p200 = scmp.ne.s32.totalorder %s191, %s192
      %p201 = scmp.eq.s32.totalorder %s34, 0
      %p202 = por %p200, %p201
      %p203 = scmp.ne.s32.totalorder %s191, %s192
      %p204 = scmp.eq.s32.totalorder %s35, 1
      %p205 = por %p203, %p204
      %p207 = scmp.ne.s32.totalorder %s192, %s206
      %p208 = scmp.eq.s32.totalorder %s35, 0
      %p209 = por %p207, %p208
      %s211 = sadd.s32 %s210, 1
      %p214 = scmp.eq.s32.totalorder %s29, 1
      %p215 = scmp.ne.s32.totalorder %s210, %s212
      %p216 = scmp.eq.s32.totalorder %s29, 0
      %p217 = por %p215, %p216
      %p218 = scmp.ne.s32.totalorder %s210, %s212
      %p219 = scmp.eq.s32.totalorder %s34, 1
      %p220 = por %p218, %p219
      %p221 = scmp.ne.s32.totalorder %s212, %s213
      %p222 = scmp.eq.s32.totalorder %s34, 0
      %p223 = por %p221, %p222
      %p224 = scmp.ne.s32.totalorder %s212, %s213
      %p225 = scmp.eq.s32.totalorder %s35, 1
      %p226 = por %p224, %p225
      %p228 = scmp.ne.s32.totalorder %s213, %s227
      %p229 = scmp.eq.s32.totalorder %s35, 0
      %p230 = por %p228, %p229
      %s232 = sadd.s32 %s231, 1
      %p235 = scmp.eq.s32.totalorder %s29, 1
      %p236 = scmp.ne.s32.totalorder %s231, %s233
      %p237 = scmp.eq.s32.totalorder %s29, 0
      %p238 = por %p236, %p237
      %p239 = scmp.ne.s32.totalorder %s231, %s233
      %p240 = scmp.eq.s32.totalorder %s34, 1
      %p241 = por %p239, %p240
      %p242 = scmp.ne.s32.totalorder %s233, %s234
      %p243 = scmp.eq.s32.totalorder %s34, 0
      %p244 = por %p242, %p243
      %p245 = scmp.ne.s32.totalorder %s233, %s234
      %p246 = scmp.eq.s32.totalorder %s35, 1
      %p247 = por %p245, %p246
      %p249 = scmp.ne.s32.totalorder %s234, %s248
      %p250 = scmp.eq.s32.totalorder %s35, 0
      %p251 = por %p249, %p250
      %s253 = sadd.s32 %s252, 1
      %p256 = scmp.eq.s32.totalorder %s29, 1
      %p257 = scmp.ne.s32.totalorder %s252, %s254
      %p258 = scmp.eq.s32.totalorder %s29, 0
      %p259 = por %p257, %p258
      %p260 = scmp.ne.s32.totalorder %s252, %s254
      %p261 = scmp.eq.s32.totalorder %s34, 1
      %p262 = por %p260, %p261
      %p263 = scmp.ne.s32.totalorder %s254, %s255
      %p264 = scmp.eq.s32.totalorder %s34, 0
      %p265 = por %p263, %p264
      %p266 = scmp.ne.s32.totalorder %s254, %s255
      %p267 = scmp.eq.s32.totalorder %s35, 1
      %p268 = por %p266, %p267
      %p270 = scmp.ne.s32.totalorder %s255, %s269
      %p271 = scmp.eq.s32.totalorder %s35, 0
      %p272 = por %p270, %p271
      %s274 = sadd.s32 %s273, 1
      %p277 = scmp.eq.s32.totalorder %s29, 1
      %p278 = scmp.ne.s32.totalorder %s273, %s275
      %p279 = scmp.eq.s32.totalorder %s29, 0
      %p280 = por %p278, %p279
      %p281 = scmp.ne.s32.totalorder %s273, %s275
      %p282 = scmp.eq.s32.totalorder %s34, 1
      %p283 = por %p281, %p282
      %p284 = scmp.ne.s32.totalorder %s275, %s276
      %p285 = scmp.eq.s32.totalorder %s34, 0
      %p286 = por %p284, %p285
      %p287 = scmp.ne.s32.totalorder %s275, %s276
      %p288 = scmp.eq.s32.totalorder %s35, 1
      %p289 = por %p287, %p288
      %p291 = scmp.ne.s32.totalorder %s276, %s290
      %p292 = scmp.eq.s32.totalorder %s35, 0
      %p293 = por %p291, %p292
      %s295 = sadd.s32 %s294, 1
      %p298 = scmp.eq.s32.totalorder %s29, 1
      %p299 = scmp.ne.s32.totalorder %s294, %s296
      %p300 = scmp.eq.s32.totalorder %s29, 0
      %p301 = por %p299, %p300
      %p302 = scmp.ne.s32.totalorder %s294, %s296
      %p303 = scmp.eq.s32.totalorder %s34, 1
      %p304 = por %p302, %p303
      %p305 = scmp.ne.s32.totalorder %s296, %s297
      %p306 = scmp.eq.s32.totalorder %s34, 0
      %p307 = por %p305, %p306
      %p308 = scmp.ne.s32.totalorder %s296, %s297
      %p309 = scmp.eq.s32.totalorder %s35, 1
      %p310 = por %p308, %p309
      %p312 = scmp.ne.s32.totalorder %s297, %s311
      %p313 = scmp.eq.s32.totalorder %s35, 0
      %p314 = por %p312, %p313
      %s315 = ssub.s32 %s29, %s36
      %p316 = scmp.eq.s32.totalorder %s315, 0
      %s318 = sadd.s32 %s317, 1
      %s319 = scalar_select %p316, %s317, %s318
      %p322 = pneg %p316
      %p323 = scmp.eq.s32.totalorder %s29, 1
      %p324 = por %p322, %p323
      %p325 = scmp.ne.s32.totalorder %s317, %s320
      %p326 = scmp.eq.s32.totalorder %s29, 0
      %p327 = por %p325, %p326
      %p328 = scmp.ne.s32.totalorder %s317, %s320
      %p329 = scmp.eq.s32.totalorder %s34, 1
      %p330 = por %p328, %p329
      %p331 = scmp.ne.s32.totalorder %s320, %s321
      %p332 = scmp.eq.s32.totalorder %s34, 0
      %p333 = por %p331, %p332
      %p334 = scmp.ne.s32.totalorder %s320, %s321
      %p335 = scmp.eq.s32.totalorder %s35, 1
      %p336 = por %p334, %p335
      %p338 = scmp.ne.s32.totalorder %s321, %s337
      %p339 = scmp.eq.s32.totalorder %s35, 0
      %p340 = por %p338, %p339
      %s341 = ssub.s32 %s29, %s36
      %p342 = scmp.eq.s32.totalorder %s341, 0
      %s344 = sadd.s32 %s343, 1
      %s345 = scalar_select %p342, %s343, %s344
      %p348 = pneg %p342
      %p349 = scmp.eq.s32.totalorder %s29, 1
      %p350 = por %p348, %p349
      %p351 = scmp.ne.s32.totalorder %s343, %s346
      %p352 = scmp.eq.s32.totalorder %s29, 0
      %p353 = por %p351, %p352
      %p354 = scmp.ne.s32.totalorder %s343, %s346
      %p355 = scmp.eq.s32.totalorder %s34, 1
      %p356 = por %p354, %p355
      %p357 = scmp.ne.s32.totalorder %s346, %s347
      %p358 = scmp.eq.s32.totalorder %s34, 0
      %p359 = por %p357, %p358
      %p360 = scmp.ne.s32.totalorder %s346, %s347
      %p361 = scmp.eq.s32.totalorder %s35, 1
      %p362 = por %p360, %p361
      %p364 = scmp.ne.s32.totalorder %s347, %s363
      %p365 = scmp.eq.s32.totalorder %s35, 0
      %p366 = por %p364, %p365
      %s367 = ssub.s32 %s29, %s36
      %p368 = scmp.eq.s32.totalorder %s367, 0
      %s370 = sadd.s32 %s369, 1
      %s371 = scalar_select %p368, %s369, %s370
      %p374 = pneg %p368
      %p375 = scmp.eq.s32.totalorder %s29, 1
      %p376 = por %p374, %p375
      %p377 = scmp.ne.s32.totalorder %s369, %s372
      %p378 = scmp.eq.s32.totalorder %s29, 0
      %p379 = por %p377, %p378
      %p380 = scmp.ne.s32.totalorder %s369, %s372
      %p381 = scmp.eq.s32.totalorder %s34, 1
      %p382 = por %p380, %p381
      %p383 = scmp.ne.s32.totalorder %s372, %s373
      %p384 = scmp.eq.s32.totalorder %s34, 0
      %p385 = por %p383, %p384
      %p386 = scmp.ne.s32.totalorder %s372, %s373
      %p387 = scmp.eq.s32.totalorder %s35, 1
      %p388 = por %p386, %p387
      %p390 = scmp.ne.s32.totalorder %s373, %s389
      %p391 = scmp.eq.s32.totalorder %s35, 0
      %p392 = por %p390, %p391
      %s393 = ssub.s32 %s29, %s36
      %p394 = scmp.eq.s32.totalorder %s393, 0
      %s396 = sadd.s32 %s395, 1
      %s397 = scalar_select %p394, %s395, %s396
      %p400 = pneg %p394
      %p401 = scmp.eq.s32.totalorder %s29, 1
      %p402 = por %p400, %p401
      %p403 = scmp.ne.s32.totalorder %s395, %s398
      %p404 = scmp.eq.s32.totalorder %s29, 0
      %p405 = por %p403, %p404
      %p406 = scmp.ne.s32.totalorder %s395, %s398
      %p407 = scmp.eq.s32.totalorder %s34, 1
      %p408 = por %p406, %p407
      %p409 = scmp.ne.s32.totalorder %s398, %s399
      %p410 = scmp.eq.s32.totalorder %s34, 0
      %p411 = por %p409, %p410
      %p412 = scmp.ne.s32.totalorder %s398, %s399
      %p413 = scmp.eq.s32.totalorder %s35, 1
      %p414 = por %p412, %p413
      %p416 = scmp.ne.s32.totalorder %s399, %s415
      %p417 = scmp.eq.s32.totalorder %s35, 0
      %p418 = por %p416, %p417
      %p419 = scmp.le.s32.totalorder 1, %s29
      %p420 = scmp.lt.s32.totalorder %s29, 3
      %p421 = pnand %p419, %p420
      %p422 = pneg %p421
      // Predicated region
      $region9: #{encoder_forward.1} parent=5 // pred_check
        _
      $region10: #{encoder_forward.1} parent=5 // pred_check_branch
        %424 = sbr.rel (%p421) target = $region12
      $region11: #{encoder_forward.1} parent=5 // pred_region
        %s425 = ssub.s32 %s29, 1
        // Predicated region
        $region13: #{encoder_forward.1} parent=11 // pred_check
          %p426 = pneg %p76
        $region14: #{encoder_forward.1} parent=11 // pred_check_branch
          %428 = sbr.rel (%p426) target = $region16
        $region15: #{encoder_forward.1} parent=11 // pred_region
          _
        $region16: #{encoder_forward.1} parent=11 // pred_fallthru
          _
        // Predicated region
        $region17: #{encoder_forward.1} parent=11 // pred_check
          %p429 = pneg %p97
        $region18: #{encoder_forward.1} parent=11 // pred_check_branch
          %431 = sbr.rel (%p429) target = $region20
        $region19: #{encoder_forward.1} parent=11 // pred_region
          _
        $region20: #{encoder_forward.1} parent=11 // pred_fallthru
          _
        // Predicated region
        $region21: #{encoder_forward.1} parent=11 // pred_check
          %p432 = pneg %p118
        $region22: #{encoder_forward.1} parent=11 // pred_check_branch
          %434 = sbr.rel (%p432) target = $region24
        $region23: #{encoder_forward.1} parent=11 // pred_region
          _
        $region24: #{encoder_forward.1} parent=11 // pred_fallthru
          _
        // Predicated region
        $region25: #{encoder_forward.1} parent=11 // pred_check
          %p435 = pneg %p139
        $region26: #{encoder_forward.1} parent=11 // pred_check_branch
          %437 = sbr.rel (%p435) target = $region28
        $region27: #{encoder_forward.1} parent=11 // pred_region
          _
        $region28: #{encoder_forward.1} parent=11 // pred_fallthru
          _
        // Predicated region
        $region29: #{encoder_forward.1} parent=11 // pred_check
          %p438 = pneg %p160
        $region30: #{encoder_forward.1} parent=11 // pred_check_branch
          %440 = sbr.rel (%p438) target = $region32
        $region31: #{encoder_forward.1} parent=11 // pred_region
          _
        $region32: #{encoder_forward.1} parent=11 // pred_fallthru
          _
        // Predicated region
        $region33: #{encoder_forward.1} parent=11 // pred_check
          %p441 = pneg %p181
        $region34: #{encoder_forward.1} parent=11 // pred_check_branch
          %443 = sbr.rel (%p441) target = $region36
        $region35: #{encoder_forward.1} parent=11 // pred_region
          _
        $region36: #{encoder_forward.1} parent=11 // pred_fallthru
          _
        // Predicated region
        $region37: #{encoder_forward.1} parent=11 // pred_check
          %p444 = pneg %p202
        $region38: #{encoder_forward.1} parent=11 // pred_check_branch
          %446 = sbr.rel (%p444) target = $region40
        $region39: #{encoder_forward.1} parent=11 // pred_region
          _
        $region40: #{encoder_forward.1} parent=11 // pred_fallthru
          _
        // Predicated region
        $region41: #{encoder_forward.1} parent=11 // pred_check
          %p447 = pneg %p223
        $region42: #{encoder_forward.1} parent=11 // pred_check_branch
          %449 = sbr.rel (%p447) target = $region44
        $region43: #{encoder_forward.1} parent=11 // pred_region
          _
        $region44: #{encoder_forward.1} parent=11 // pred_fallthru
          _
        // Predicated region
        $region45: #{encoder_forward.1} parent=11 // pred_check
          %p450 = pneg %p244
        $region46: #{encoder_forward.1} parent=11 // pred_check_branch
          %452 = sbr.rel (%p450) target = $region48
        $region47: #{encoder_forward.1} parent=11 // pred_region
          _
        $region48: #{encoder_forward.1} parent=11 // pred_fallthru
          _
        // Predicated region
        $region49: #{encoder_forward.1} parent=11 // pred_check
          %p453 = pneg %p265
        $region50: #{encoder_forward.1} parent=11 // pred_check_branch
          %455 = sbr.rel (%p453) target = $region52
        $region51: #{encoder_forward.1} parent=11 // pred_region
          _
        $region52: #{encoder_forward.1} parent=11 // pred_fallthru
          _
        // Predicated region
        $region53: #{encoder_forward.1} parent=11 // pred_check
          %p456 = pneg %p286
        $region54: #{encoder_forward.1} parent=11 // pred_check_branch
          %458 = sbr.rel (%p456) target = $region56
        $region55: #{encoder_forward.1} parent=11 // pred_region
          _
        $region56: #{encoder_forward.1} parent=11 // pred_fallthru
          _
        // Predicated region
        $region57: #{encoder_forward.1} parent=11 // pred_check
          %p459 = pneg %p307
        $region58: #{encoder_forward.1} parent=11 // pred_check_branch
          %461 = sbr.rel (%p459) target = $region60
        $region59: #{encoder_forward.1} parent=11 // pred_region
          _
        $region60: #{encoder_forward.1} parent=11 // pred_fallthru
          _
      $region12: #{encoder_forward.1} parent=5 // pred_fallthru
        _
      %p462 = scmp.lt.s32.totalorder %s29, 2
      // Predicated region
      $region61: #{encoder_forward.1} parent=5 // pred_check
        %p463 = pneg %p462
      $region62: #{encoder_forward.1} parent=5 // pred_check_branch
        %465 = sbr.rel (%p463) target = $region64
      $region63: #{encoder_forward.1} parent=5 // pred_region
        // Predicated region
        $region65: #{encoder_forward.1} parent=63 // pred_check
          %p466 = pneg %p49
        $region66: #{encoder_forward.1} parent=63 // pred_check_branch
          %468 = sbr.rel (%p466) target = $region68
        $region67: #{encoder_forward.1} parent=63 // pred_region
          %p469 = scmp.lt.s32.totalorder %s29, 1
          %s470 = scalar_select %p469, %s29, 1
          %s471 = smul.addr %s470, 32
          %s472 = smul.addr %s471, 8
          %s473 = scalar_lea.vmem %s0, %s472
        $region68: #{encoder_forward.1} parent=63 // pred_fallthru
          _
      $region64: #{encoder_forward.1} parent=5 // pred_fallthru
        _
      %p474 = scmp.le.s32.totalorder 1, %s29
      %p475 = scmp.lt.s32.totalorder %s29, 3
      %p476 = pnand %p474, %p475
      %p477 = pneg %p476
      // Predicated region
      $region69: #{encoder_forward.1} parent=5 // pred_check
        _
      $region70: #{encoder_forward.1} parent=5 // pred_check_branch
        %479 = sbr.rel (%p476) target = $region72
      $region71: #{encoder_forward.1} parent=5 // pred_region
        %s480 = ssub.s32 %s29, 1
        %p481 = scmp.lt.s32.totalorder %s34, 1
        %s482 = scalar_select %p481, %s34, 1
        %s483 = smul.addr %s482, 32
        %s484 = smul.addr %s483, 8
        %s485 = scalar_lea.vmem %s0, %s484
        %p486 = pneg %p55
        %p487 = pneg %p52
        %p488 = pneg %p76
        %p489 = pneg %p73
        %p490 = pneg %p97
        %p491 = pneg %p94
        %p492 = pneg %p118
        %p493 = pneg %p115
        %p494 = pneg %p139
        %p495 = pneg %p136
        %p496 = pneg %p160
        %p497 = pneg %p157
        %p498 = pneg %p181
        %p499 = pneg %p178
        %p500 = pneg %p202
        %p501 = pneg %p199
        %p502 = pneg %p223
        %p503 = pneg %p220
        %p504 = pneg %p244
        %p505 = pneg %p241
        %p506 = pneg %p265
        %p507 = pneg %p262
        %p508 = pneg %p286
        %p509 = pneg %p283
        %p510 = pneg %p307
        %p511 = pneg %p304
        %p512 = pneg %p333
        %p513 = pneg %p330
        %s514 = sand.u32 %s320, 1
        %s515 = scalar_lea.sflag [#allocation8], %s514
        %s516 = sand.u32 %s320, 1
        %s517 = smul.addr %s516, 256
        %s518 = scalar_lea.vmem [#allocation7], %s517
        %p519 = pneg %p359
        %p520 = pneg %p356
        %s521 = sand.u32 %s34, 1
        %s522 = scalar_lea.sflag [#allocation10], %s521
        %s523 = sand.u32 %s346, 1
        %s524 = smul.addr %s523, 64
        %s525 = scalar_lea.vmem [#allocation9], %s524
        %p526 = pneg %p385
        %p527 = pneg %p382
        %s528 = sand.u32 %s34, 1
        %s529 = scalar_lea.sflag [#allocation10], %s528
        %s530 = sand.u32 %s372, 1
        %s531 = smul.addr %s530, 16
        %s532 = scalar_lea.vmem [#allocation11], %s531
        %p533 = pneg %p411
        %p534 = pneg %p408
        %p535 = scmp.lt.s32.totalorder %s34, 1
        %s536 = scalar_select %p535, %s34, 1
        %s537 = smul.addr %s536, 2
        %s538 = smul.addr %s537, 4
        %s539 = scalar_lea.vmem %s16, %s538
        %p540 = scmp.lt.s32.totalorder %s34, 1
        %s541 = scalar_select %p540, %s34, 1
        %s542 = smul.addr %s541, 32
        %s543 = smul.addr %s542, 8
        %s544 = scalar_lea.vmem %s0, %s543
        %p545 = scmp.lt.s32.totalorder %s34, 1
        %s546 = scalar_select %p545, %s34, 1
        %s547 = smul.addr %s546, 2
        %s548 = smul.addr %s547, 4
        %s549 = scalar_lea.vmem %s16, %s548
        %vm551 = vcmask 523264
        %552 = vst.msk [vmem:[#allocation2] sm:$0xff] %vm551, 0.0
        %553 = vst.msk [vmem:[#allocation2 + $0x8] sm:$0xff] %vm551, 0.0
        %554 = vst.msk [vmem:[#allocation2 + $0x10] sm:$0xff] %vm551, 0.0
        %555 = vst.msk [vmem:[#allocation2 + $0x18] sm:$0xff] %vm551, 0.0
        %556 = vst.msk [vmem:[#allocation2 + $0x20] sm:$0xff] %vm551, 0.0
        %557 = vst.msk [vmem:[#allocation2 + $0x28] sm:$0xff] %vm551, 0.0
        %558 = vst.msk [vmem:[#allocation2 + $0x30] sm:$0xff] %vm551, 0.0
        %559 = vst.msk [vmem:[#allocation2 + $0x38] sm:$0xff] %vm551, 0.0
        %560 = vst.msk [vmem:[#allocation2 + $0x40] sm:$0xff] %vm551, 0.0
        %561 = vst.msk [vmem:[#allocation2 + $0x48] sm:$0xff] %vm551, 0.0
        %562 = vst.msk [vmem:[#allocation2 + $0x50] sm:$0xff] %vm551, 0.0
        %563 = vst.msk [vmem:[#allocation2 + $0x58] sm:$0xff] %vm551, 0.0
        %564 = vst.msk [vmem:[#allocation2 + $0x60] sm:$0xff] %vm551, 0.0
        %565 = vst.msk [vmem:[#allocation2 + $0x68] sm:$0xff] %vm551, 0.0
        %566 = vst.msk [vmem:[#allocation2 + $0x70] sm:$0xff] %vm551, 0.0
        %vm567 = vcmask 517120
        %568 = vst.msk [vmem:[#allocation2 + $0x78] sm:$0x3] %vm567, 0.0
        %569 = vst.msk [vmem:[#allocation3] sm:$0xff] %vm551, 0.0
        %570 = vst.msk [vmem:[#allocation3 + $0x8] sm:$0xff] %vm551, 0.0
        %571 = vst.msk [vmem:[#allocation3 + $0x10] sm:$0xff] %vm551, 0.0
        %572 = vst.msk [vmem:[#allocation3 + $0x18] sm:$0xff] %vm551, 0.0
        %573 = vst.msk [vmem:[#allocation3 + $0x20] sm:$0xff] %vm551, 0.0
        %574 = vst.msk [vmem:[#allocation3 + $0x28] sm:$0xff] %vm551, 0.0
        %575 = vst.msk [vmem:[#allocation3 + $0x30] sm:$0xff] %vm551, 0.0
        %576 = vst.msk [vmem:[#allocation3 + $0x38] sm:$0xff] %vm551, 0.0
        %577 = vst.msk [vmem:[#allocation3 + $0x40] sm:$0xff] %vm551, 0.0
        %578 = vst.msk [vmem:[#allocation3 + $0x48] sm:$0xff] %vm551, 0.0
        %579 = vst.msk [vmem:[#allocation3 + $0x50] sm:$0xff] %vm551, 0.0
        %580 = vst.msk [vmem:[#allocation3 + $0x58] sm:$0xff] %vm551, 0.0
        %581 = vst.msk [vmem:[#allocation3 + $0x60] sm:$0xff] %vm551, 0.0
        %582 = vst.msk [vmem:[#allocation3 + $0x68] sm:$0xff] %vm551, 0.0
        %583 = vst.msk [vmem:[#allocation3 + $0x70] sm:$0xff] %vm551, 0.0
        %584 = vst.msk [vmem:[#allocation3 + $0x78] sm:$0x3] %vm567, 0.0
        %585 = vst [vmem:[#allocation4] sm:$0xff] 0.0
        %586 = vst [vmem:[#allocation4 + $0x8] sm:$0xff] 0.0
        %587 = vst [vmem:[#allocation4 + $0x10] sm:$0xff] 0.0
        %588 = vst [vmem:[#allocation4 + $0x18] sm:$0xff] 0.0
        %589 = vst [vmem:[#allocation4 + $0x20] sm:$0xff] 0.0
        %590 = vst [vmem:[#allocation4 + $0x28] sm:$0xff] 0.0
        %591 = vst [vmem:[#allocation4 + $0x30] sm:$0x3] 0.0
        %592 = vst [vmem:[#allocation5] sm:$0xff] 0.0
        %593 = vst [vmem:[#allocation5 + $0x8] sm:$0xff] 0.0
        %594 = vst [vmem:[#allocation5 + $0x10] sm:$0xff] 0.0
        %595 = vst [vmem:[#allocation5 + $0x18] sm:$0xff] 0.0
        %596 = vst [vmem:[#allocation5 + $0x20] sm:$0xff] 0.0
        %597 = vst [vmem:[#allocation5 + $0x28] sm:$0xff] 0.0
        %598 = vst [vmem:[#allocation5 + $0x30] sm:$0x3] 0.0
        %599 = vst [vmem:[#allocation6] sm:$0xff] 0.0
        %600 = vst [vmem:[#allocation6 + $0x8] sm:$0xff] 0.0
        %601 = vst [vmem:[#allocation6 + $0x10] sm:$0xff] 0.0
        %602 = vst [vmem:[#allocation6 + $0x18] sm:$0x3] 0.0
        %v603 = vld [vmem:[%s544] sm:$0xff]
        %v604 = vld [vmem:[%s544 + $0x8] sm:$0xff]
        %v605 = vld [vmem:[%s544 + $0x10] sm:$0xff]
        %v606 = vld [vmem:[%s544 + $0x18] sm:$0xff]
        %v607 = vld [vmem:[%s544 + $0x20] sm:$0xff]
        %v608 = vld [vmem:[%s544 + $0x28] sm:$0xff]
        %v609 = vld [vmem:[%s544 + $0x30] sm:$0xff]
        %v610 = vld [vmem:[%s544 + $0x38] sm:$0xff]
        %v611 = vld [vmem:[%s544 + $0x40] sm:$0xff]
        %v612 = vld [vmem:[%s544 + $0x48] sm:$0xff]
        %v613 = vld [vmem:[%s544 + $0x50] sm:$0xff]
        %v614 = vld [vmem:[%s544 + $0x58] sm:$0xff]
        %v615 = vld [vmem:[%s544 + $0x60] sm:$0xff]
        %v616 = vld [vmem:[%s544 + $0x68] sm:$0xff]
        %v617 = vld [vmem:[%s544 + $0x70] sm:$0xff]
        %v618 = vld [vmem:[%s544 + $0x78] sm:$0xff]
        %v619 = vld [vmem:[%s544 + $0x80] sm:$0xff]
        %v620 = vld [vmem:[%s544 + $0x88] sm:$0xff]
        %v621 = vld [vmem:[%s544 + $0x90] sm:$0xff]
        %v622 = vld [vmem:[%s544 + $0x98] sm:$0xff]
        %v623 = vld [vmem:[%s544 + $0xa0] sm:$0xff]
        %v624 = vld [vmem:[%s544 + $0xa8] sm:$0xff]
        %v625 = vld [vmem:[%s544 + $0xb0] sm:$0xff]
        %v626 = vld [vmem:[%s544 + $0xb8] sm:$0xff]
        %v627 = vld [vmem:[%s544 + $0xc0] sm:$0xff]
        %v628 = vld [vmem:[%s544 + $0xc8] sm:$0xff]
        %v629 = vld [vmem:[%s544 + $0xd0] sm:$0xff]
        %v630 = vld [vmem:[%s544 + $0xd8] sm:$0xff]
        %v631 = vld [vmem:[%s544 + $0xe0] sm:$0xff]
        %v632 = vld [vmem:[%s544 + $0xe8] sm:$0xff]
        %v633 = vld [vmem:[%s544 + $0xf0] sm:$0xff]
        %v634 = vld [vmem:[%s544 + $0xf8] sm:$0xff]
        %v635 = vld [vmem:[%s1] sm:$0xff]
        %v636 = vld [vmem:[%s1 + $0x8] sm:$0xff]
        %v637 = vld [vmem:[%s2] sm:$0x1]
        %v639 = vlaneseq
        %v640 = vshrl.u32 %v639, 7
        %v641 = vsub.s32 0, %v640
        %v642 = vrot.slane %v637, %v641
        %vm644 = vcmask 130048
        %v646 = vsel %vm644, %v603, 0
        %v649 = vsel %vm644, %v604, 0
        %v652 = vsel %vm644, %v605, 0
        %v655 = vsel %vm644, %v606, 0
        %v658 = vsel %vm644, %v607, 0
        %v661 = vsel %vm644, %v608, 0
        %v664 = vsel %vm644, %v609, 0
        %v667 = vsel %vm644, %v610, 0
        %v670 = vsel %vm644, %v611, 0
        %v673 = vsel %vm644, %v612, 0
        %v676 = vsel %vm644, %v613, 0
        %v679 = vsel %vm644, %v614, 0
        %v682 = vsel %vm644, %v615, 0
        %v685 = vsel %vm644, %v616, 0
        %v688 = vsel %vm644, %v617, 0
        %v691 = vsel %vm644, %v618, 0
        %v694 = vsel %vm644, %v619, 0
        %v697 = vsel %vm644, %v620, 0
        %v700 = vsel %vm644, %v621, 0
        %v703 = vsel %vm644, %v622, 0
        %v706 = vsel %vm644, %v623, 0
        %v709 = vsel %vm644, %v624, 0
        %v712 = vsel %vm644, %v625, 0
        %v715 = vsel %vm644, %v626, 0
        %v718 = vsel %vm644, %v627, 0
        %v721 = vsel %vm644, %v628, 0
        %v724 = vsel %vm644, %v629, 0
        %v727 = vsel %vm644, %v630, 0
        %v730 = vsel %vm644, %v631, 0
        %v733 = vsel %vm644, %v632, 0
        %v736 = vsel %vm644, %v633, 0
        %v739 = vsel %vm644, %v634, 0
        %741 = vmatprep.subr.mxu0 0.0
        %742 = vmatpush1.msra.mxu0 0.0
        %743 = vmatprep.subr.mxu0 0.0
        %744 = vmatpush1.msra.mxu0 0.0
        %745 = vmatprep.subr.mxu0 0.0
        %746 = vmatpush1.msra.mxu0 0.0
        %747 = vmatprep.subr.mxu0 0.0
        %748 = vmatpush1.msra.mxu0 0.0
        %749 = vmatprep.subr.mxu0 0.0
        %750 = vmatpush1.msra.mxu0 0.0
        %751 = vmatprep.subr.mxu0 0.0
        %752 = vmatpush1.msra.mxu0 0.0
        %753 = vmatprep.subr.mxu0 0.0
        %754 = vmatpush1.msra.mxu0 0.0
        %755 = vmatprep.subr.mxu0 0.0
        %756 = vmatpush1.msra.mxu0 0.0
        %757 = vmatprep.subr.mxu0 0.0
        %758 = vmatpush1.msra.mxu0 0.0
        %759 = vmatprep.subr.mxu0 0.0
        %760 = vmatpush1.msra.mxu0 0.0
        %761 = vmatprep.subr.mxu0 0.0
        %762 = vmatpush1.msra.mxu0 0.0
        %763 = vmatprep.subr.mxu0 0.0
        %764 = vmatpush1.msra.mxu0 0.0
        %765 = vmatprep.subr.mxu0 0.0
        %766 = vmatpush1.msra.mxu0 0.0
        %767 = vmatprep.subr.mxu0 0.0
        %768 = vmatpush1.msra.mxu0 0.0
        %769 = vmatprep.subr.mxu0 0.0
        %770 = vmatpush1.msra.mxu0 %v636
        %771 = vmatprep.subr.mxu0 0.0
        %772 = vmatpush1.msra.mxu0 %v635
        %773 = vmatprep.subr.mxu0 0.0
        %774 = vmatpush2.msra.mxu0 0.0
        %775 = vmatprep.subr.mxu0 0.0
        %776 = vmatpush2.msra.mxu0 0.0
        %777 = vmatprep.subr.mxu0 0.0
        %778 = vmatpush2.msra.mxu0 0.0
        %779 = vmatprep.subr.mxu0 0.0
        %780 = vmatpush2.msra.mxu0 0.0
        %781 = vmatprep.subr.mxu0 0.0
        %782 = vmatpush2.msra.mxu0 0.0
        %783 = vmatprep.subr.mxu0 0.0
        %784 = vmatpush2.msra.mxu0 0.0
        %785 = vmatprep.subr.mxu0 0.0
        %786 = vmatpush2.msra.mxu0 0.0
        %787 = vmatprep.subr.mxu0 0.0
        %788 = vmatpush2.msra.mxu0 0.0
        %789 = vmatprep.subr.mxu0 0.0
        %790 = vmatpush2.msra.mxu0 0.0
        %791 = vmatprep.subr.mxu0 0.0
        %792 = vmatpush2.msra.mxu0 0.0
        %793 = vmatprep.subr.mxu0 0.0
        %794 = vmatpush2.msra.mxu0 0.0
        %795 = vmatprep.subr.mxu0 0.0
        %796 = vmatpush2.msra.mxu0 0.0
        %797 = vmatprep.subr.mxu0 0.0
        %798 = vmatpush2.msra.mxu0 0.0
        %799 = vmatprep.subr.mxu0 0.0
        %800 = vmatpush2.msra.mxu0 0.0
        %801 = vmatprep.subr.mxu0 0.0
        %802 = vmatpush2.msra.mxu0 0.0
        %803 = vmatprep.subr.mxu0 0.0
        %804 = vmatpush2.msra.mxu0 0.0
        %805 = vmatprep.mubr.f32.mxu0 0.0
        %806 = vmatmul.mubr.f32.gmra.mxu0 %v646
        %v807 = vpop.f32.mrf.mxu0
        %v808 = vadd.f32 %v642, %v807
        %v809 = vpop.f32.mrf.mxu0
        %810 = vmatprep.mubr.f32.mxu0 0.0
        %811 = vmatmul.mubr.f32.gmra.mxu0 %v649
        %v812 = vpop.f32.mrf.mxu0
        %v813 = vadd.f32 %v642, %v812
        %v814 = vpop.f32.mrf.mxu0
        %815 = vmatprep.mubr.f32.mxu0 0.0
        %816 = vmatmul.mubr.f32.gmra.mxu0 %v652
        %v817 = vpop.f32.mrf.mxu0
        %v818 = vadd.f32 %v642, %v817
        %v819 = vpop.f32.mrf.mxu0
        %820 = vmatprep.mubr.f32.mxu0 0.0
        %821 = vmatmul.mubr.f32.gmra.mxu0 %v655
        %v822 = vpop.f32.mrf.mxu0
        %v823 = vadd.f32 %v642, %v822
        %v824 = vpop.f32.mrf.mxu0
        %825 = vmatprep.mubr.f32.mxu0 0.0
        %826 = vmatmul.mubr.f32.gmra.mxu0 %v658
        %v827 = vpop.f32.mrf.mxu0
        %v828 = vadd.f32 %v642, %v827
        %v829 = vpop.f32.mrf.mxu0
        %830 = vmatprep.mubr.f32.mxu0 0.0
        %831 = vmatmul.mubr.f32.gmra.mxu0 %v661
        %v832 = vpop.f32.mrf.mxu0
        %v833 = vadd.f32 %v642, %v832
        %v834 = vpop.f32.mrf.mxu0
        %835 = vmatprep.mubr.f32.mxu0 0.0
        %836 = vmatmul.mubr.f32.gmra.mxu0 %v664
        %v837 = vpop.f32.mrf.mxu0
        %v838 = vadd.f32 %v642, %v837
        %v839 = vpop.f32.mrf.mxu0
        %840 = vmatprep.mubr.f32.mxu0 0.0
        %841 = vmatmul.mubr.f32.gmra.mxu0 %v667
        %v842 = vpop.f32.mrf.mxu0
        %v843 = vadd.f32 %v642, %v842
        %v844 = vpop.f32.mrf.mxu0
        %845 = vmatprep.mubr.f32.mxu0 0.0
        %846 = vmatmul.mubr.f32.gmra.mxu0 %v670
        %v847 = vpop.f32.mrf.mxu0
        %v848 = vadd.f32 %v642, %v847
        %v849 = vpop.f32.mrf.mxu0
        %850 = vmatprep.mubr.f32.mxu0 0.0
        %851 = vmatmul.mubr.f32.gmra.mxu0 %v673
        %v852 = vpop.f32.mrf.mxu0
        %v853 = vadd.f32 %v642, %v852
        %v854 = vpop.f32.mrf.mxu0
        %855 = vmatprep.mubr.f32.mxu0 0.0
        %856 = vmatmul.mubr.f32.gmra.mxu0 %v676
        %v857 = vpop.f32.mrf.mxu0
        %v858 = vadd.f32 %v642, %v857
        %v859 = vpop.f32.mrf.mxu0
        %860 = vmatprep.mubr.f32.mxu0 0.0
        %861 = vmatmul.mubr.f32.gmra.mxu0 %v679
        %v862 = vpop.f32.mrf.mxu0
        %v863 = vadd.f32 %v642, %v862
        %v864 = vpop.f32.mrf.mxu0
        %865 = vmatprep.mubr.f32.mxu0 0.0
        %866 = vmatmul.mubr.f32.gmra.mxu0 %v682
        %v867 = vpop.f32.mrf.mxu0
        %v868 = vadd.f32 %v642, %v867
        %v869 = vpop.f32.mrf.mxu0
        %870 = vmatprep.mubr.f32.mxu0 0.0
        %871 = vmatmul.mubr.f32.gmra.mxu0 %v685
        %v872 = vpop.f32.mrf.mxu0
        %v873 = vadd.f32 %v642, %v872
        %v874 = vpop.f32.mrf.mxu0
        %875 = vmatprep.mubr.f32.mxu0 0.0
        %876 = vmatmul.mubr.f32.gmra.mxu0 %v688
        %v877 = vpop.f32.mrf.mxu0
        %v878 = vadd.f32 %v642, %v877
        %v879 = vpop.f32.mrf.mxu0
        %880 = vmatprep.mubr.f32.mxu0 0.0
        %881 = vmatmul.mubr.f32.gmra.mxu0 %v691
        %v882 = vpop.f32.mrf.mxu0
        %v883 = vadd.f32 %v642, %v882
        %v884 = vpop.f32.mrf.mxu0
        %885 = vmatprep.mubr.f32.mxu0 0.0
        %886 = vmatmul.mubr.f32.gmra.mxu0 %v694
        %v887 = vpop.f32.mrf.mxu0
        %v888 = vadd.f32 %v642, %v887
        %v889 = vpop.f32.mrf.mxu0
        %890 = vmatprep.mubr.f32.mxu0 0.0
        %891 = vmatmul.mubr.f32.gmra.mxu0 %v697
        %v892 = vpop.f32.mrf.mxu0
        %v893 = vadd.f32 %v642, %v892
        %v894 = vpop.f32.mrf.mxu0
        %895 = vmatprep.mubr.f32.mxu0 0.0
        %896 = vmatmul.mubr.f32.gmra.mxu0 %v700
        %v897 = vpop.f32.mrf.mxu0
        %v898 = vadd.f32 %v642, %v897
        %v899 = vpop.f32.mrf.mxu0
        %900 = vmatprep.mubr.f32.mxu0 0.0
        %901 = vmatmul.mubr.f32.gmra.mxu0 %v703
        %v902 = vpop.f32.mrf.mxu0
        %v903 = vadd.f32 %v642, %v902
        %v904 = vpop.f32.mrf.mxu0
        %905 = vmatprep.mubr.f32.mxu0 0.0
        %906 = vmatmul.mubr.f32.gmra.mxu0 %v706
        %v907 = vpop.f32.mrf.mxu0
        %v908 = vadd.f32 %v642, %v907
        %v909 = vpop.f32.mrf.mxu0
        %910 = vmatprep.mubr.f32.mxu0 0.0
        %911 = vmatmul.mubr.f32.gmra.mxu0 %v709
        %v912 = vpop.f32.mrf.mxu0
        %v913 = vadd.f32 %v642, %v912
        %v914 = vpop.f32.mrf.mxu0
        %915 = vmatprep.mubr.f32.mxu0 0.0
        %916 = vmatmul.mubr.f32.gmra.mxu0 %v712
        %v917 = vpop.f32.mrf.mxu0
        %v918 = vadd.f32 %v642, %v917
        %v919 = vpop.f32.mrf.mxu0
        %920 = vmatprep.mubr.f32.mxu0 0.0
        %921 = vmatmul.mubr.f32.gmra.mxu0 %v715
        %v922 = vpop.f32.mrf.mxu0
        %v923 = vadd.f32 %v642, %v922
        %v924 = vpop.f32.mrf.mxu0
        %925 = vmatprep.mubr.f32.mxu0 0.0
        %926 = vmatmul.mubr.f32.gmra.mxu0 %v718
        %v927 = vpop.f32.mrf.mxu0
        %v928 = vadd.f32 %v642, %v927
        %v929 = vpop.f32.mrf.mxu0
        %930 = vmatprep.mubr.f32.mxu0 0.0
        %931 = vmatmul.mubr.f32.gmra.mxu0 %v721
        %v932 = vpop.f32.mrf.mxu0
        %v933 = vadd.f32 %v642, %v932
        %v934 = vpop.f32.mrf.mxu0
        %935 = vmatprep.mubr.f32.mxu0 0.0
        %936 = vmatmul.mubr.f32.gmra.mxu0 %v724
        %v937 = vpop.f32.mrf.mxu0
        %v938 = vadd.f32 %v642, %v937
        %v939 = vpop.f32.mrf.mxu0
        %940 = vmatprep.mubr.f32.mxu0 0.0
        %941 = vmatmul.mubr.f32.gmra.mxu0 %v727
        %v942 = vpop.f32.mrf.mxu0
        %v943 = vadd.f32 %v642, %v942
        %v944 = vpop.f32.mrf.mxu0
        %945 = vmatprep.mubr.f32.mxu0 0.0
        %946 = vmatmul.mubr.f32.gmra.mxu0 %v730
        %v947 = vpop.f32.mrf.mxu0
        %v948 = vadd.f32 %v642, %v947
        %v949 = vpop.f32.mrf.mxu0
        %950 = vmatprep.mubr.f32.mxu0 0.0
        %951 = vmatmul.mubr.f32.gmra.mxu0 %v733
        %v952 = vpop.f32.mrf.mxu0
        %v953 = vadd.f32 %v642, %v952
        %v954 = vpop.f32.mrf.mxu0
        %955 = vmatprep.mubr.f32.mxu0 0.0
        %956 = vmatmul.mubr.f32.gmra.mxu0 %v736
        %v957 = vpop.f32.mrf.mxu0
        %v958 = vadd.f32 %v642, %v957
        %v959 = vpop.f32.mrf.mxu0
        %960 = vmatprep.mubr.f32.mxu0 0.0
        %961 = vmatmul.mubr.f32.gmra.mxu0 %v739
        %v962 = vpop.f32.mrf.mxu0
        %v963 = vadd.f32 %v642, %v962
        %v964 = vpop.f32.mrf.mxu0
        %965 = vdwg.mxu0
        %v966 = vtanh.pop %v808
        %v967 = vtanh.pop %v813
        %v968 = vtanh.pop %v818
        %v969 = vtanh.pop %v823
        %v970 = vtanh.pop %v828
        %v971 = vtanh.pop %v833
        %v972 = vtanh.pop %v838
        %v973 = vtanh.pop %v843
        %v974 = vtanh.pop %v848
        %v975 = vtanh.pop %v853
        %v976 = vtanh.pop %v858
        %v977 = vtanh.pop %v863
        %v978 = vtanh.pop %v868
        %v979 = vtanh.pop %v873
        %v980 = vtanh.pop %v878
        %v981 = vtanh.pop %v883
        %v982 = vtanh.pop %v888
        %v983 = vtanh.pop %v893
        %v984 = vtanh.pop %v898
        %v985 = vtanh.pop %v903
        %v986 = vtanh.pop %v908
        %v987 = vtanh.pop %v913
        %v988 = vtanh.pop %v918
        %v989 = vtanh.pop %v923
        %v990 = vtanh.pop %v928
        %v991 = vtanh.pop %v933
        %v992 = vtanh.pop %v938
        %v993 = vtanh.pop %v943
        %v994 = vtanh.pop %v948
        %v995 = vtanh.pop %v953
        %v996 = vtanh.pop %v958
        %v997 = vtanh.pop %v963
        %998 = vst.msk [vmem:[%s518] sm:$0xff] %vm551, %v966
        %999 = vst.msk [vmem:[%s518 + $0x8] sm:$0xff] %vm551, %v967
        %1000 = vst.msk [vmem:[%s518 + $0x10] sm:$0xff] %vm551, %v968
        %1001 = vst.msk [vmem:[%s518 + $0x18] sm:$0xff] %vm551, %v969
        %1002 = vst.msk [vmem:[%s518 + $0x20] sm:$0xff] %vm551, %v970
        %1003 = vst.msk [vmem:[%s518 + $0x28] sm:$0xff] %vm551, %v971
        %1004 = vst.msk [vmem:[%s518 + $0x30] sm:$0xff] %vm551, %v972
        %1005 = vst.msk [vmem:[%s518 + $0x38] sm:$0xff] %vm551, %v973
        %1006 = vst.msk [vmem:[%s518 + $0x40] sm:$0xff] %vm551, %v974
        %1007 = vst.msk [vmem:[%s518 + $0x48] sm:$0xff] %vm551, %v975
        %1008 = vst.msk [vmem:[%s518 + $0x50] sm:$0xff] %vm551, %v976
        %1009 = vst.msk [vmem:[%s518 + $0x58] sm:$0xff] %vm551, %v977
        %1010 = vst.msk [vmem:[%s518 + $0x60] sm:$0xff] %vm551, %v978
        %1011 = vst.msk [vmem:[%s518 + $0x68] sm:$0xff] %vm551, %v979
        %1012 = vst.msk [vmem:[%s518 + $0x70] sm:$0xff] %vm551, %v980
        %1013 = vst.msk [vmem:[%s518 + $0x78] sm:$0xff] %vm551, %v981
        %1014 = vst.msk [vmem:[%s518 + $0x80] sm:$0xff] %vm551, %v982
        %1015 = vst.msk [vmem:[%s518 + $0x88] sm:$0xff] %vm551, %v983
        %1016 = vst.msk [vmem:[%s518 + $0x90] sm:$0xff] %vm551, %v984
        %1017 = vst.msk [vmem:[%s518 + $0x98] sm:$0xff] %vm551, %v985
        %1018 = vst.msk [vmem:[%s518 + $0xa0] sm:$0xff] %vm551, %v986
        %1019 = vst.msk [vmem:[%s518 + $0xa8] sm:$0xff] %vm551, %v987
        %1020 = vst.msk [vmem:[%s518 + $0xb0] sm:$0xff] %vm551, %v988
        %1021 = vst.msk [vmem:[%s518 + $0xb8] sm:$0xff] %vm551, %v989
        %1022 = vst.msk [vmem:[%s518 + $0xc0] sm:$0xff] %vm551, %v990
        %1023 = vst.msk [vmem:[%s518 + $0xc8] sm:$0xff] %vm551, %v991
        %1024 = vst.msk [vmem:[%s518 + $0xd0] sm:$0xff] %vm551, %v992
        %1025 = vst.msk [vmem:[%s518 + $0xd8] sm:$0xff] %vm551, %v993
        %1026 = vst.msk [vmem:[%s518 + $0xe0] sm:$0xff] %vm551, %v994
        %1027 = vst.msk [vmem:[%s518 + $0xe8] sm:$0xff] %vm551, %v995
        %1028 = vst.msk [vmem:[%s518 + $0xf0] sm:$0xff] %vm551, %v996
        %1029 = vst.msk [vmem:[%s518 + $0xf8] sm:$0xff] %vm551, %v997
        %v1030 = vlaneseq
        %v1031 = vshrl.u32 %v1030, 7
        %v1032 = vlaneseq
        %v1033 = vand.u32 %v1032, 127
        %v1034 = vmul.u32 %v1031, 2
        %vm1035 = vcmp.eq.s32.totalorder %v1033, %v1034
        %v1036 = vsel %vm1035, 1, 0
        %v1037 = vcvt.s32.f32 %v1036
        %v1038 = vadd.s32 %v1034, 1
        %vm1039 = vcmp.eq.s32.totalorder %v1033, %v1038
        %v1040 = vsel %vm1039, 1, 0
        %v1041 = vcvt.s32.f32 %v1040
        %v1042 = vmax.f32 %v966, %v968
        %v1043 = vmax.f32 %v967, %v969
        %v1045 = vsel %vm644, %v1037, 0
        %1047 = vmatprep.subr.mxu0 0.0
        %1048 = vmatpush1.msra.mxu0 0.0
        %1049 = vmatprep.subr.mxu0 0.0
        %1050 = vmatpush1.msra.mxu0 0.0
        %1051 = vmatprep.subr.mxu0 0.0
        %1052 = vmatpush1.msra.mxu0 0.0
        %1053 = vmatprep.subr.mxu0 0.0
        %1054 = vmatpush1.msra.mxu0 0.0
        %1055 = vmatprep.subr.mxu0 0.0
        %1056 = vmatpush1.msra.mxu0 0.0
        %1057 = vmatprep.subr.mxu0 0.0
        %1058 = vmatpush1.msra.mxu0 0.0
        %1059 = vmatprep.subr.mxu0 0.0
        %1060 = vmatpush1.msra.mxu0 0.0
        %1061 = vmatprep.subr.mxu0 0.0
        %1062 = vmatpush1.msra.mxu0 0.0
        %1063 = vmatprep.subr.mxu0 0.0
        %1064 = vmatpush1.msra.mxu0 0.0
        %1065 = vmatprep.subr.mxu0 0.0
        %1066 = vmatpush1.msra.mxu0 0.0
        %1067 = vmatprep.subr.mxu0 0.0
        %1068 = vmatpush1.msra.mxu0 0.0
        %1069 = vmatprep.subr.mxu0 0.0
        %1070 = vmatpush1.msra.mxu0 0.0
        %1071 = vmatprep.subr.mxu0 0.0
        %1072 = vmatpush1.msra.mxu0 0.0
        %1073 = vmatprep.subr.mxu0 0.0
        %1074 = vmatpush1.msra.mxu0 0.0
        %1075 = vmatprep.subr.mxu0 0.0
        %1076 = vmatpush1.msra.mxu0 %v1043
        %1077 = vmatprep.subr.mxu0 0.0
        %1078 = vmatpush1.msra.mxu0 %v1042
        %1079 = vmatprep.subr.mxu0 0.0
        %1080 = vmatpush2.msra.mxu0 0.0
        %1081 = vmatprep.subr.mxu0 0.0
        %1082 = vmatpush2.msra.mxu0 0.0
        %1083 = vmatprep.subr.mxu0 0.0
        %1084 = vmatpush2.msra.mxu0 0.0
        %1085 = vmatprep.subr.mxu0 0.0
        %1086 = vmatpush2.msra.mxu0 0.0
        %1087 = vmatprep.subr.mxu0 0.0
        %1088 = vmatpush2.msra.mxu0 0.0
        %1089 = vmatprep.subr.mxu0 0.0
        %1090 = vmatpush2.msra.mxu0 0.0
        %1091 = vmatprep.subr.mxu0 0.0
        %1092 = vmatpush2.msra.mxu0 0.0
        %1093 = vmatprep.subr.mxu0 0.0
        %1094 = vmatpush2.msra.mxu0 0.0
        %1095 = vmatprep.subr.mxu0 0.0
        %1096 = vmatpush2.msra.mxu0 0.0
        %1097 = vmatprep.subr.mxu0 0.0
        %1098 = vmatpush2.msra.mxu0 0.0
        %1099 = vmatprep.subr.mxu0 0.0
        %1100 = vmatpush2.msra.mxu0 0.0
        %1101 = vmatprep.subr.mxu0 0.0
        %1102 = vmatpush2.msra.mxu0 0.0
        %1103 = vmatprep.subr.mxu0 0.0
        %1104 = vmatpush2.msra.mxu0 0.0
        %1105 = vmatprep.subr.mxu0 0.0
        %1106 = vmatpush2.msra.mxu0 0.0
        %1107 = vmatprep.subr.mxu0 0.0
        %1108 = vmatpush2.msra.mxu0 0.0
        %1109 = vmatprep.subr.mxu0 0.0
        %1110 = vmatpush2.msra.mxu0 0.0
        %1111 = vmatprep.mubr.f32.mxu0 0.0
        %1112 = vmatmul.mubr.f32.gmra.mxu0 %v1045
        %v1113 = vpop.f32.mrf.mxu0
        %v1114 = vadd.f32 0.0, %v1113
        %v1115 = vpop.f32.mrf.mxu0
        %1116 = vdwg.mxu0
        %v1118 = vsel %vm644, %v1041, 0
        %1120 = vmatprep.subr.mxu0 0.0
        %1121 = vmatpush1.msra.mxu0 0.0
        %1122 = vmatprep.subr.mxu0 0.0
        %1123 = vmatpush1.msra.mxu0 0.0
        %1124 = vmatprep.subr.mxu0 0.0
        %1125 = vmatpush1.msra.mxu0 0.0
        %1126 = vmatprep.subr.mxu0 0.0
        %1127 = vmatpush1.msra.mxu0 0.0
        %1128 = vmatprep.subr.mxu0 0.0
        %1129 = vmatpush1.msra.mxu0 0.0
        %1130 = vmatprep.subr.mxu0 0.0
        %1131 = vmatpush1.msra.mxu0 0.0
        %1132 = vmatprep.subr.mxu0 0.0
        %1133 = vmatpush1.msra.mxu0 0.0
        %1134 = vmatprep.subr.mxu0 0.0
        %1135 = vmatpush1.msra.mxu0 0.0
        %1136 = vmatprep.subr.mxu0 0.0
        %1137 = vmatpush1.msra.mxu0 0.0
        %1138 = vmatprep.subr.mxu0 0.0
        %1139 = vmatpush1.msra.mxu0 0.0
        %1140 = vmatprep.subr.mxu0 0.0
        %1141 = vmatpush1.msra.mxu0 0.0
        %1142 = vmatprep.subr.mxu0 0.0
        %1143 = vmatpush1.msra.mxu0 0.0
        %1144 = vmatprep.subr.mxu0 0.0
        %1145 = vmatpush1.msra.mxu0 0.0
        %1146 = vmatprep.subr.mxu0 0.0
        %1147 = vmatpush1.msra.mxu0 0.0
        %1148 = vmatprep.subr.mxu0 0.0
        %1149 = vmatpush1.msra.mxu0 %v1043
        %1150 = vmatprep.subr.mxu0 0.0
        %1151 = vmatpush1.msra.mxu0 %v1042
        %1152 = vmatprep.subr.mxu0 0.0
        %1153 = vmatpush2.msra.mxu0 0.0
        %1154 = vmatprep.subr.mxu0 0.0
        %1155 = vmatpush2.msra.mxu0 0.0
        %1156 = vmatprep.subr.mxu0 0.0
        %1157 = vmatpush2.msra.mxu0 0.0
        %1158 = vmatprep.subr.mxu0 0.0
        %1159 = vmatpush2.msra.mxu0 0.0
        %1160 = vmatprep.subr.mxu0 0.0
        %1161 = vmatpush2.msra.mxu0 0.0
        %1162 = vmatprep.subr.mxu0 0.0
        %1163 = vmatpush2.msra.mxu0 0.0
        %1164 = vmatprep.subr.mxu0 0.0
        %1165 = vmatpush2.msra.mxu0 0.0
        %1166 = vmatprep.subr.mxu0 0.0
        %1167 = vmatpush2.msra.mxu0 0.0
        %1168 = vmatprep.subr.mxu0 0.0
        %1169 = vmatpush2.msra.mxu0 0.0
        %1170 = vmatprep.subr.mxu0 0.0
        %1171 = vmatpush2.msra.mxu0 0.0
        %1172 = vmatprep.subr.mxu0 0.0
        %1173 = vmatpush2.msra.mxu0 0.0
        %1174 = vmatprep.subr.mxu0 0.0
        %1175 = vmatpush2.msra.mxu0 0.0
        %1176 = vmatprep.subr.mxu0 0.0
        %1177 = vmatpush2.msra.mxu0 0.0
        %1178 = vmatprep.subr.mxu0 0.0
        %1179 = vmatpush2.msra.mxu0 0.0
        %1180 = vmatprep.subr.mxu0 0.0
        %1181 = vmatpush2.msra.mxu0 0.0
        %1182 = vmatprep.subr.mxu0 0.0
        %1183 = vmatpush2.msra.mxu0 0.0
        %1184 = vmatprep.mubr.f32.mxu0 0.0
        %1185 = vmatmul.mubr.f32.gmra.mxu0 %v1118
        %v1186 = vpop.f32.mrf.mxu0
        %v1187 = vadd.f32 0.0, %v1186
        %v1188 = vpop.f32.mrf.mxu0
        %1189 = vdwg.mxu0
        %v1190 = vmax.f32 %v1114, %v1187
        %1191 = vst.msk [vmem:[#allocation2 + $0x16] sm:$0xff] %vm551, %v1190
        %v1192 = vmax.f32 %v970, %v972
        %v1193 = vmax.f32 %v971, %v973
        %1194 = vmatprep.subr.mxu0 0.0
        %1195 = vmatpush1.msra.mxu0 0.0
        %1196 = vmatprep.subr.mxu0 0.0
        %1197 = vmatpush1.msra.mxu0 0.0
        %1198 = vmatprep.subr.mxu0 0.0
        %1199 = vmatpush1.msra.mxu0 0.0
        %1200 = vmatprep.subr.mxu0 0.0
        %1201 = vmatpush1.msra.mxu0 0.0
        %1202 = vmatprep.subr.mxu0 0.0
        %1203 = vmatpush1.msra.mxu0 0.0
        %1204 = vmatprep.subr.mxu0 0.0
        %1205 = vmatpush1.msra.mxu0 0.0
        %1206 = vmatprep.subr.mxu0 0.0
        %1207 = vmatpush1.msra.mxu0 0.0
        %1208 = vmatprep.subr.mxu0 0.0
        %1209 = vmatpush1.msra.mxu0 0.0
        %1210 = vmatprep.subr.mxu0 0.0
        %1211 = vmatpush1.msra.mxu0 0.0
        %1212 = vmatprep.subr.mxu0 0.0
        %1213 = vmatpush1.msra.mxu0 0.0
        %1214 = vmatprep.subr.mxu0 0.0
        %1215 = vmatpush1.msra.mxu0 0.0
        %1216 = vmatprep.subr.mxu0 0.0
        %1217 = vmatpush1.msra.mxu0 0.0
        %1218 = vmatprep.subr.mxu0 0.0
        %1219 = vmatpush1.msra.mxu0 0.0
        %1220 = vmatprep.subr.mxu0 0.0
        %1221 = vmatpush1.msra.mxu0 0.0
        %1222 = vmatprep.subr.mxu0 0.0
        %1223 = vmatpush1.msra.mxu0 %v1193
        %1224 = vmatprep.subr.mxu0 0.0
        %1225 = vmatpush1.msra.mxu0 %v1192
        %1226 = vmatprep.subr.mxu0 0.0
        %1227 = vmatpush2.msra.mxu0 0.0
        %1228 = vmatprep.subr.mxu0 0.0
        %1229 = vmatpush2.msra.mxu0 0.0
        %1230 = vmatprep.subr.mxu0 0.0
        %1231 = vmatpush2.msra.mxu0 0.0
        %1232 = vmatprep.subr.mxu0 0.0
        %1233 = vmatpush2.msra.mxu0 0.0
        %1234 = vmatprep.subr.mxu0 0.0
        %1235 = vmatpush2.msra.mxu0 0.0
        %1236 = vmatprep.subr.mxu0 0.0
        %1237 = vmatpush2.msra.mxu0 0.0
        %1238 = vmatprep.subr.mxu0 0.0
        %1239 = vmatpush2.msra.mxu0 0.0
        %1240 = vmatprep.subr.mxu0 0.0
        %1241 = vmatpush2.msra.mxu0 0.0
        %1242 = vmatprep.subr.mxu0 0.0
        %1243 = vmatpush2.msra.mxu0 0.0
        %1244 = vmatprep.subr.mxu0 0.0
        %1245 = vmatpush2.msra.mxu0 0.0
        %1246 = vmatprep.subr.mxu0 0.0
        %1247 = vmatpush2.msra.mxu0 0.0
        %1248 = vmatprep.subr.mxu0 0.0
        %1249 = vmatpush2.msra.mxu0 0.0
        %1250 = vmatprep.subr.mxu0 0.0
        %1251 = vmatpush2.msra.mxu0 0.0
        %1252 = vmatprep.subr.mxu0 0.0
        %1253 = vmatpush2.msra.mxu0 0.0
        %1254 = vmatprep.subr.mxu0 0.0
        %1255 = vmatpush2.msra.mxu0 0.0
        %1256 = vmatprep.subr.mxu0 0.0
        %1257 = vmatpush2.msra.mxu0 0.0
        %1258 = vmatprep.mubr.f32.mxu0 0.0
        %1259 = vmatmul.mubr.f32.gmra.mxu0 %v1045
        %v1260 = vpop.f32.mrf.mxu0
        %v1261 = vadd.f32 0.0, %v1260
        %v1262 = vpop.f32.mrf.mxu0
        %1263 = vdwg.mxu0
        %1264 = vmatprep.subr.mxu0 0.0
        %1265 = vmatpush1.msra.mxu0 0.0
        %1266 = vmatprep.subr.mxu0 0.0
        %1267 = vmatpush1.msra.mxu0 0.0
        %1268 = vmatprep.subr.mxu0 0.0
        %1269 = vmatpush1.msra.mxu0 0.0
        %1270 = vmatprep.subr.mxu0 0.0
        %1271 = vmatpush1.msra.mxu0 0.0
        %1272 = vmatprep.subr.mxu0 0.0
        %1273 = vmatpush1.msra.mxu0 0.0
        %1274 = vmatprep.subr.mxu0 0.0
        %1275 = vmatpush1.msra.mxu0 0.0
        %1276 = vmatprep.subr.mxu0 0.0
        %1277 = vmatpush1.msra.mxu0 0.0
        %1278 = vmatprep.subr.mxu0 0.0
        %1279 = vmatpush1.msra.mxu0 0.0
        %1280 = vmatprep.subr.mxu0 0.0
        %1281 = vmatpush1.msra.mxu0 0.0
        %1282 = vmatprep.subr.mxu0 0.0
        %1283 = vmatpush1.msra.mxu0 0.0
        %1284 = vmatprep.subr.mxu0 0.0
        %1285 = vmatpush1.msra.mxu0 0.0
        %1286 = vmatprep.subr.mxu0 0.0
        %1287 = vmatpush1.msra.mxu0 0.0
        %1288 = vmatprep.subr.mxu0 0.0
        %1289 = vmatpush1.msra.mxu0 0.0
        %1290 = vmatprep.subr.mxu0 0.0
        %1291 = vmatpush1.msra.mxu0 0.0
        %1292 = vmatprep.subr.mxu0 0.0
        %1293 = vmatpush1.msra.mxu0 %v1193
        %1294 = vmatprep.subr.mxu0 0.0
        %1295 = vmatpush1.msra.mxu0 %v1192
        %1296 = vmatprep.subr.mxu0 0.0
        %1297 = vmatpush2.msra.mxu0 0.0
        %1298 = vmatprep.subr.mxu0 0.0
        %1299 = vmatpush2.msra.mxu0 0.0
        %1300 = vmatprep.subr.mxu0 0.0
        %1301 = vmatpush2.msra.mxu0 0.0
        %1302 = vmatprep.subr.mxu0 0.0
        %1303 = vmatpush2.msra.mxu0 0.0
        %1304 = vmatprep.subr.mxu0 0.0
        %1305 = vmatpush2.msra.mxu0 0.0
        %1306 = vmatprep.subr.mxu0 0.0
        %1307 = vmatpush2.msra.mxu0 0.0
        %1308 = vmatprep.subr.mxu0 0.0
        %1309 = vmatpush2.msra.mxu0 0.0
        %1310 = vmatprep.subr.mxu0 0.0
        %1311 = vmatpush2.msra.mxu0 0.0
        %1312 = vmatprep.subr.mxu0 0.0
        %1313 = vmatpush2.msra.mxu0 0.0
        %1314 = vmatprep.subr.mxu0 0.0
        %1315 = vmatpush2.msra.mxu0 0.0
        %1316 = vmatprep.subr.mxu0 0.0
        %1317 = vmatpush2.msra.mxu0 0.0
        %1318 = vmatprep.subr.mxu0 0.0
        %1319 = vmatpush2.msra.mxu0 0.0
        %1320 = vmatprep.subr.mxu0 0.0
        %1321 = vmatpush2.msra.mxu0 0.0
        %1322 = vmatprep.subr.mxu0 0.0
        %1323 = vmatpush2.msra.mxu0 0.0
        %1324 = vmatprep.subr.mxu0 0.0
        %1325 = vmatpush2.msra.mxu0 0.0
        %1326 = vmatprep.subr.mxu0 0.0
        %1327 = vmatpush2.msra.mxu0 0.0
        %1328 = vmatprep.mubr.f32.mxu0 0.0
        %1329 = vmatmul.mubr.f32.gmra.mxu0 %v1118
        %v1330 = vpop.f32.mrf.mxu0
        %v1331 = vadd.f32 0.0, %v1330
        %v1332 = vpop.f32.mrf.mxu0
        %1333 = vdwg.mxu0
        %v1334 = vmax.f32 %v1261, %v1331
        %1335 = vst.msk [vmem:[#allocation2 + $0x20] sm:$0xff] %vm551, %v1334
        %v1336 = vmax.f32 %v974, %v976
        %v1337 = vmax.f32 %v975, %v977
        %1338 = vmatprep.subr.mxu0 0.0
        %1339 = vmatpush1.msra.mxu0 0.0
        %1340 = vmatprep.subr.mxu0 0.0
        %1341 = vmatpush1.msra.mxu0 0.0
        %1342 = vmatprep.subr.mxu0 0.0
        %1343 = vmatpush1.msra.mxu0 0.0
        %1344 = vmatprep.subr.mxu0 0.0
        %1345 = vmatpush1.msra.mxu0 0.0
        %1346 = vmatprep.subr.mxu0 0.0
        %1347 = vmatpush1.msra.mxu0 0.0
        %1348 = vmatprep.subr.mxu0 0.0
        %1349 = vmatpush1.msra.mxu0 0.0
        %1350 = vmatprep.subr.mxu0 0.0
        %1351 = vmatpush1.msra.mxu0 0.0
        %1352 = vmatprep.subr.mxu0 0.0
        %1353 = vmatpush1.msra.mxu0 0.0
        %1354 = vmatprep.subr.mxu0 0.0
        %1355 = vmatpush1.msra.mxu0 0.0
        %1356 = vmatprep.subr.mxu0 0.0
        %1357 = vmatpush1.msra.mxu0 0.0
        %1358 = vmatprep.subr.mxu0 0.0
        %1359 = vmatpush1.msra.mxu0 0.0
        %1360 = vmatprep.subr.mxu0 0.0
        %1361 = vmatpush1.msra.mxu0 0.0
        %1362 = vmatprep.subr.mxu0 0.0
        %1363 = vmatpush1.msra.mxu0 0.0
        %1364 = vmatprep.subr.mxu0 0.0
        %1365 = vmatpush1.msra.mxu0 0.0
        %1366 = vmatprep.subr.mxu0 0.0
        %1367 = vmatpush1.msra.mxu0 %v1337
        %1368 = vmatprep.subr.mxu0 0.0
        %1369 = vmatpush1.msra.mxu0 %v1336
        %1370 = vmatprep.subr.mxu0 0.0
        %1371 = vmatpush2.msra.mxu0 0.0
        %1372 = vmatprep.subr.mxu0 0.0
        %1373 = vmatpush2.msra.mxu0 0.0
        %1374 = vmatprep.subr.mxu0 0.0
        %1375 = vmatpush2.msra.mxu0 0.0
        %1376 = vmatprep.subr.mxu0 0.0
        %1377 = vmatpush2.msra.mxu0 0.0
        %1378 = vmatprep.subr.mxu0 0.0
        %1379 = vmatpush2.msra.mxu0 0.0
        %1380 = vmatprep.subr.mxu0 0.0
        %1381 = vmatpush2.msra.mxu0 0.0
        %1382 = vmatprep.subr.mxu0 0.0
        %1383 = vmatpush2.msra.mxu0 0.0
        %1384 = vmatprep.subr.mxu0 0.0
        %1385 = vmatpush2.msra.mxu0 0.0
        %1386 = vmatprep.subr.mxu0 0.0
        %1387 = vmatpush2.msra.mxu0 0.0
        %1388 = vmatprep.subr.mxu0 0.0
        %1389 = vmatpush2.msra.mxu0 0.0
        %1390 = vmatprep.subr.mxu0 0.0
        %1391 = vmatpush2.msra.mxu0 0.0
        %1392 = vmatprep.subr.mxu0 0.0
        %1393 = vmatpush2.msra.mxu0 0.0
        %1394 = vmatprep.subr.mxu0 0.0
        %1395 = vmatpush2.msra.mxu0 0.0
        %1396 = vmatprep.subr.mxu0 0.0
        %1397 = vmatpush2.msra.mxu0 0.0
        %1398 = vmatprep.subr.mxu0 0.0
        %1399 = vmatpush2.msra.mxu0 0.0
        %1400 = vmatprep.subr.mxu0 0.0
        %1401 = vmatpush2.msra.mxu0 0.0
        %1402 = vmatprep.mubr.f32.mxu0 0.0
        %1403 = vmatmul.mubr.f32.gmra.mxu0 %v1045
        %v1404 = vpop.f32.mrf.mxu0
        %v1405 = vadd.f32 0.0, %v1404
        %v1406 = vpop.f32.mrf.mxu0
        %1407 = vdwg.mxu0
        %1408 = vmatprep.subr.mxu0 0.0
        %1409 = vmatpush1.msra.mxu0 0.0
        %1410 = vmatprep.subr.mxu0 0.0
        %1411 = vmatpush1.msra.mxu0 0.0
        %1412 = vmatprep.subr.mxu0 0.0
        %1413 = vmatpush1.msra.mxu0 0.0
        %1414 = vmatprep.subr.mxu0 0.0
        %1415 = vmatpush1.msra.mxu0 0.0
        %1416 = vmatprep.subr.mxu0 0.0
        %1417 = vmatpush1.msra.mxu0 0.0
        %1418 = vmatprep.subr.mxu0 0.0
        %1419 = vmatpush1.msra.mxu0 0.0
        %1420 = vmatprep.subr.mxu0 0.0
        %1421 = vmatpush1.msra.mxu0 0.0
        %1422 = vmatprep.subr.mxu0 0.0
        %1423 = vmatpush1.msra.mxu0 0.0
        %1424 = vmatprep.subr.mxu0 0.0
        %1425 = vmatpush1.msra.mxu0 0.0
        %1426 = vmatprep.subr.mxu0 0.0
        %1427 = vmatpush1.msra.mxu0 0.0
        %1428 = vmatprep.subr.mxu0 0.0
        %1429 = vmatpush1.msra.mxu0 0.0
        %1430 = vmatprep.subr.mxu0 0.0
        %1431 = vmatpush1.msra.mxu0 0.0
        %1432 = vmatprep.subr.mxu0 0.0
        %1433 = vmatpush1.msra.mxu0 0.0
        %1434 = vmatprep.subr.mxu0 0.0
        %1435 = vmatpush1.msra.mxu0 0.0
        %1436 = vmatprep.subr.mxu0 0.0
        %1437 = vmatpush1.msra.mxu0 %v1337
        %1438 = vmatprep.subr.mxu0 0.0
        %1439 = vmatpush1.msra.mxu0 %v1336
        %1440 = vmatprep.subr.mxu0 0.0
        %1441 = vmatpush2.msra.mxu0 0.0
        %1442 = vmatprep.subr.mxu0 0.0
        %1443 = vmatpush2.msra.mxu0 0.0
        %1444 = vmatprep.subr.mxu0 0.0
        %1445 = vmatpush2.msra.mxu0 0.0
        %1446 = vmatprep.subr.mxu0 0.0
        %1447 = vmatpush2.msra.mxu0 0.0
        %1448 = vmatprep.subr.mxu0 0.0
        %1449 = vmatpush2.msra.mxu0 0.0
        %1450 = vmatprep.subr.mxu0 0.0
        %1451 = vmatpush2.msra.mxu0 0.0
        %1452 = vmatprep.subr.mxu0 0.0
        %1453 = vmatpush2.msra.mxu0 0.0
        %1454 = vmatprep.subr.mxu0 0.0
        %1455 = vmatpush2.msra.mxu0 0.0
        %1456 = vmatprep.subr.mxu0 0.0
        %1457 = vmatpush2.msra.mxu0 0.0
        %1458 = vmatprep.subr.mxu0 0.0
        %1459 = vmatpush2.msra.mxu0 0.0
        %1460 = vmatprep.subr.mxu0 0.0
        %1461 = vmatpush2.msra.mxu0 0.0
        %1462 = vmatprep.subr.mxu0 0.0
        %1463 = vmatpush2.msra.mxu0 0.0
        %1464 = vmatprep.subr.mxu0 0.0
        %1465 = vmatpush2.msra.mxu0 0.0
        %1466 = vmatprep.subr.mxu0 0.0
        %1467 = vmatpush2.msra.mxu0 0.0
        %1468 = vmatprep.subr.mxu0 0.0
        %1469 = vmatpush2.msra.mxu0 0.0
        %1470 = vmatprep.subr.mxu0 0.0
        %1471 = vmatpush2.msra.mxu0 0.0
        %1472 = vmatprep.mubr.f32.mxu0 0.0
        %1473 = vmatmul.mubr.f32.gmra.mxu0 %v1118
        %v1474 = vpop.f32.mrf.mxu0
        %v1475 = vadd.f32 0.0, %v1474
        %v1476 = vpop.f32.mrf.mxu0
        %1477 = vdwg.mxu0
        %v1478 = vmax.f32 %v1405, %v1475
        %1479 = vst.msk [vmem:[#allocation2 + $0x2a] sm:$0xff] %vm551, %v1478
        %v1480 = vmax.f32 %v978, %v980
        %v1481 = vmax.f32 %v979, %v981
        %1482 = vmatprep.subr.mxu0 0.0
        %1483 = vmatpush1.msra.mxu0 0.0
        %1484 = vmatprep.subr.mxu0 0.0
        %1485 = vmatpush1.msra.mxu0 0.0
        %1486 = vmatprep.subr.mxu0 0.0
        %1487 = vmatpush1.msra.mxu0 0.0
        %1488 = vmatprep.subr.mxu0 0.0
        %1489 = vmatpush1.msra.mxu0 0.0
        %1490 = vmatprep.subr.mxu0 0.0
        %1491 = vmatpush1.msra.mxu0 0.0
        %1492 = vmatprep.subr.mxu0 0.0
        %1493 = vmatpush1.msra.mxu0 0.0
        %1494 = vmatprep.subr.mxu0 0.0
        %1495 = vmatpush1.msra.mxu0 0.0
        %1496 = vmatprep.subr.mxu0 0.0
        %1497 = vmatpush1.msra.mxu0 0.0
        %1498 = vmatprep.subr.mxu0 0.0
        %1499 = vmatpush1.msra.mxu0 0.0
        %1500 = vmatprep.subr.mxu0 0.0
        %1501 = vmatpush1.msra.mxu0 0.0
        %1502 = vmatprep.subr.mxu0 0.0
        %1503 = vmatpush1.msra.mxu0 0.0
        %1504 = vmatprep.subr.mxu0 0.0
        %1505 = vmatpush1.msra.mxu0 0.0
        %1506 = vmatprep.subr.mxu0 0.0
        %1507 = vmatpush1.msra.mxu0 0.0
        %1508 = vmatprep.subr.mxu0 0.0
        %1509 = vmatpush1.msra.mxu0 0.0
        %1510 = vmatprep.subr.mxu0 0.0
        %1511 = vmatpush1.msra.mxu0 %v1481
        %1512 = vmatprep.subr.mxu0 0.0
        %1513 = vmatpush1.msra.mxu0 %v1480
        %1514 = vmatprep.subr.mxu0 0.0
        %1515 = vmatpush2.msra.mxu0 0.0
        %1516 = vmatprep.subr.mxu0 0.0
        %1517 = vmatpush2.msra.mxu0 0.0
        %1518 = vmatprep.subr.mxu0 0.0
        %1519 = vmatpush2.msra.mxu0 0.0
        %1520 = vmatprep.subr.mxu0 0.0
        %1521 = vmatpush2.msra.mxu0 0.0
        %1522 = vmatprep.subr.mxu0 0.0
        %1523 = vmatpush2.msra.mxu0 0.0
        %1524 = vmatprep.subr.mxu0 0.0
        %1525 = vmatpush2.msra.mxu0 0.0
        %1526 = vmatprep.subr.mxu0 0.0
        %1527 = vmatpush2.msra.mxu0 0.0
        %1528 = vmatprep.subr.mxu0 0.0
        %1529 = vmatpush2.msra.mxu0 0.0
        %1530 = vmatprep.subr.mxu0 0.0
        %1531 = vmatpush2.msra.mxu0 0.0
        %1532 = vmatprep.subr.mxu0 0.0
        %1533 = vmatpush2.msra.mxu0 0.0
        %1534 = vmatprep.subr.mxu0 0.0
        %1535 = vmatpush2.msra.mxu0 0.0
        %1536 = vmatprep.subr.mxu0 0.0
        %1537 = vmatpush2.msra.mxu0 0.0
        %1538 = vmatprep.subr.mxu0 0.0
        %1539 = vmatpush2.msra.mxu0 0.0
        %1540 = vmatprep.subr.mxu0 0.0
        %1541 = vmatpush2.msra.mxu0 0.0
        %1542 = vmatprep.subr.mxu0 0.0
        %1543 = vmatpush2.msra.mxu0 0.0
        %1544 = vmatprep.subr.mxu0 0.0
        %1545 = vmatpush2.msra.mxu0 0.0
        %1546 = vmatprep.mubr.f32.mxu0 0.0
        %1547 = vmatmul.mubr.f32.gmra.mxu0 %v1045
        %v1548 = vpop.f32.mrf.mxu0
        %v1549 = vadd.f32 0.0, %v1548
        %v1550 = vpop.f32.mrf.mxu0
        %1551 = vdwg.mxu0
        %1552 = vmatprep.subr.mxu0 0.0
        %1553 = vmatpush1.msra.mxu0 0.0
        %1554 = vmatprep.subr.mxu0 0.0
        %1555 = vmatpush1.msra.mxu0 0.0
        %1556 = vmatprep.subr.mxu0 0.0
        %1557 = vmatpush1.msra.mxu0 0.0
        %1558 = vmatprep.subr.mxu0 0.0
        %1559 = vmatpush1.msra.mxu0 0.0
        %1560 = vmatprep.subr.mxu0 0.0
        %1561 = vmatpush1.msra.mxu0 0.0
        %1562 = vmatprep.subr.mxu0 0.0
        %1563 = vmatpush1.msra.mxu0 0.0
        %1564 = vmatprep.subr.mxu0 0.0
        %1565 = vmatpush1.msra.mxu0 0.0
        %1566 = vmatprep.subr.mxu0 0.0
        %1567 = vmatpush1.msra.mxu0 0.0
        %1568 = vmatprep.subr.mxu0 0.0
        %1569 = vmatpush1.msra.mxu0 0.0
        %1570 = vmatprep.subr.mxu0 0.0
        %1571 = vmatpush1.msra.mxu0 0.0
        %1572 = vmatprep.subr.mxu0 0.0
        %1573 = vmatpush1.msra.mxu0 0.0
        %1574 = vmatprep.subr.mxu0 0.0
        %1575 = vmatpush1.msra.mxu0 0.0
        %1576 = vmatprep.subr.mxu0 0.0
        %1577 = vmatpush1.msra.mxu0 0.0
        %1578 = vmatprep.subr.mxu0 0.0
        %1579 = vmatpush1.msra.mxu0 0.0
        %1580 = vmatprep.subr.mxu0 0.0
        %1581 = vmatpush1.msra.mxu0 %v1481
        %1582 = vmatprep.subr.mxu0 0.0
        %1583 = vmatpush1.msra.mxu0 %v1480
        %1584 = vmatprep.subr.mxu0 0.0
        %1585 = vmatpush2.msra.mxu0 0.0
        %1586 = vmatprep.subr.mxu0 0.0
        %1587 = vmatpush2.msra.mxu0 0.0
        %1588 = vmatprep.subr.mxu0 0.0
        %1589 = vmatpush2.msra.mxu0 0.0
        %1590 = vmatprep.subr.mxu0 0.0
        %1591 = vmatpush2.msra.mxu0 0.0
        %1592 = vmatprep.subr.mxu0 0.0
        %1593 = vmatpush2.msra.mxu0 0.0
        %1594 = vmatprep.subr.mxu0 0.0
        %1595 = vmatpush2.msra.mxu0 0.0
        %1596 = vmatprep.subr.mxu0 0.0
        %1597 = vmatpush2.msra.mxu0 0.0
        %1598 = vmatprep.subr.mxu0 0.0
        %1599 = vmatpush2.msra.mxu0 0.0
        %1600 = vmatprep.subr.mxu0 0.0
        %1601 = vmatpush2.msra.mxu0 0.0
        %1602 = vmatprep.subr.mxu0 0.0
        %1603 = vmatpush2.msra.mxu0 0.0
        %1604 = vmatprep.subr.mxu0 0.0
        %1605 = vmatpush2.msra.mxu0 0.0
        %1606 = vmatprep.subr.mxu0 0.0
        %1607 = vmatpush2.msra.mxu0 0.0
        %1608 = vmatprep.subr.mxu0 0.0
        %1609 = vmatpush2.msra.mxu0 0.0
        %1610 = vmatprep.subr.mxu0 0.0
        %1611 = vmatpush2.msra.mxu0 0.0
        %1612 = vmatprep.subr.mxu0 0.0
        %1613 = vmatpush2.msra.mxu0 0.0
        %1614 = vmatprep.subr.mxu0 0.0
        %1615 = vmatpush2.msra.mxu0 0.0
        %1616 = vmatprep.mubr.f32.mxu0 0.0
        %1617 = vmatmul.mubr.f32.gmra.mxu0 %v1118
        %v1618 = vpop.f32.mrf.mxu0
        %v1619 = vadd.f32 0.0, %v1618
        %v1620 = vpop.f32.mrf.mxu0
        %1621 = vdwg.mxu0
        %v1622 = vmax.f32 %v1549, %v1619
        %1623 = vst.msk [vmem:[#allocation2 + $0x34] sm:$0xff] %vm551, %v1622
        %v1624 = vmax.f32 %v982, %v984
        %v1625 = vmax.f32 %v983, %v985
        %1626 = vmatprep.subr.mxu0 0.0
        %1627 = vmatpush1.msra.mxu0 0.0
        %1628 = vmatprep.subr.mxu0 0.0
        %1629 = vmatpush1.msra.mxu0 0.0
        %1630 = vmatprep.subr.mxu0 0.0
        %1631 = vmatpush1.msra.mxu0 0.0
        %1632 = vmatprep.subr.mxu0 0.0
        %1633 = vmatpush1.msra.mxu0 0.0
        %1634 = vmatprep.subr.mxu0 0.0
        %1635 = vmatpush1.msra.mxu0 0.0
        %1636 = vmatprep.subr.mxu0 0.0
        %1637 = vmatpush1.msra.mxu0 0.0
        %1638 = vmatprep.subr.mxu0 0.0
        %1639 = vmatpush1.msra.mxu0 0.0
        %1640 = vmatprep.subr.mxu0 0.0
        %1641 = vmatpush1.msra.mxu0 0.0
        %1642 = vmatprep.subr.mxu0 0.0
        %1643 = vmatpush1.msra.mxu0 0.0
        %1644 = vmatprep.subr.mxu0 0.0
        %1645 = vmatpush1.msra.mxu0 0.0
        %1646 = vmatprep.subr.mxu0 0.0
        %1647 = vmatpush1.msra.mxu0 0.0
        %1648 = vmatprep.subr.mxu0 0.0
        %1649 = vmatpush1.msra.mxu0 0.0
        %1650 = vmatprep.subr.mxu0 0.0
        %1651 = vmatpush1.msra.mxu0 0.0
        %1652 = vmatprep.subr.mxu0 0.0
        %1653 = vmatpush1.msra.mxu0 0.0
        %1654 = vmatprep.subr.mxu0 0.0
        %1655 = vmatpush1.msra.mxu0 %v1625
        %1656 = vmatprep.subr.mxu0 0.0
        %1657 = vmatpush1.msra.mxu0 %v1624
        %1658 = vmatprep.subr.mxu0 0.0
        %1659 = vmatpush2.msra.mxu0 0.0
        %1660 = vmatprep.subr.mxu0 0.0
        %1661 = vmatpush2.msra.mxu0 0.0
        %1662 = vmatprep.subr.mxu0 0.0
        %1663 = vmatpush2.msra.mxu0 0.0
        %1664 = vmatprep.subr.mxu0 0.0
        %1665 = vmatpush2.msra.mxu0 0.0
        %1666 = vmatprep.subr.mxu0 0.0
        %1667 = vmatpush2.msra.mxu0 0.0
        %1668 = vmatprep.subr.mxu0 0.0
        %1669 = vmatpush2.msra.mxu0 0.0
        %1670 = vmatprep.subr.mxu0 0.0
        %1671 = vmatpush2.msra.mxu0 0.0
        %1672 = vmatprep.subr.mxu0 0.0
        %1673 = vmatpush2.msra.mxu0 0.0
        %1674 = vmatprep.subr.mxu0 0.0
        %1675 = vmatpush2.msra.mxu0 0.0
        %1676 = vmatprep.subr.mxu0 0.0
        %1677 = vmatpush2.msra.mxu0 0.0
        %1678 = vmatprep.subr.mxu0 0.0
        %1679 = vmatpush2.msra.mxu0 0.0
        %1680 = vmatprep.subr.mxu0 0.0
        %1681 = vmatpush2.msra.mxu0 0.0
        %1682 = vmatprep.subr.mxu0 0.0
        %1683 = vmatpush2.msra.mxu0 0.0
        %1684 = vmatprep.subr.mxu0 0.0
        %1685 = vmatpush2.msra.mxu0 0.0
        %1686 = vmatprep.subr.mxu0 0.0
        %1687 = vmatpush2.msra.mxu0 0.0
        %1688 = vmatprep.subr.mxu0 0.0
        %1689 = vmatpush2.msra.mxu0 0.0
        %1690 = vmatprep.mubr.f32.mxu0 0.0
        %1691 = vmatmul.mubr.f32.gmra.mxu0 %v1045
        %v1692 = vpop.f32.mrf.mxu0
        %v1693 = vadd.f32 0.0, %v1692
        %v1694 = vpop.f32.mrf.mxu0
        %1695 = vdwg.mxu0
        %1696 = vmatprep.subr.mxu0 0.0
        %1697 = vmatpush1.msra.mxu0 0.0
        %1698 = vmatprep.subr.mxu0 0.0
        %1699 = vmatpush1.msra.mxu0 0.0
        %1700 = vmatprep.subr.mxu0 0.0
        %1701 = vmatpush1.msra.mxu0 0.0
        %1702 = vmatprep.subr.mxu0 0.0
        %1703 = vmatpush1.msra.mxu0 0.0
        %1704 = vmatprep.subr.mxu0 0.0
        %1705 = vmatpush1.msra.mxu0 0.0
        %1706 = vmatprep.subr.mxu0 0.0
        %1707 = vmatpush1.msra.mxu0 0.0
        %1708 = vmatprep.subr.mxu0 0.0
        %1709 = vmatpush1.msra.mxu0 0.0
        %1710 = vmatprep.subr.mxu0 0.0
        %1711 = vmatpush1.msra.mxu0 0.0
        %1712 = vmatprep.subr.mxu0 0.0
        %1713 = vmatpush1.msra.mxu0 0.0
        %1714 = vmatprep.subr.mxu0 0.0
        %1715 = vmatpush1.msra.mxu0 0.0
        %1716 = vmatprep.subr.mxu0 0.0
        %1717 = vmatpush1.msra.mxu0 0.0
        %1718 = vmatprep.subr.mxu0 0.0
        %1719 = vmatpush1.msra.mxu0 0.0
        %1720 = vmatprep.subr.mxu0 0.0
        %1721 = vmatpush1.msra.mxu0 0.0
        %1722 = vmatprep.subr.mxu0 0.0
        %1723 = vmatpush1.msra.mxu0 0.0
        %1724 = vmatprep.subr.mxu0 0.0
        %1725 = vmatpush1.msra.mxu0 %v1625
        %1726 = vmatprep.subr.mxu0 0.0
        %1727 = vmatpush1.msra.mxu0 %v1624
        %1728 = vmatprep.subr.mxu0 0.0
        %1729 = vmatpush2.msra.mxu0 0.0
        %1730 = vmatprep.subr.mxu0 0.0
        %1731 = vmatpush2.msra.mxu0 0.0
        %1732 = vmatprep.subr.mxu0 0.0
        %1733 = vmatpush2.msra.mxu0 0.0
        %1734 = vmatprep.subr.mxu0 0.0
        %1735 = vmatpush2.msra.mxu0 0.0
        %1736 = vmatprep.subr.mxu0 0.0
        %1737 = vmatpush2.msra.mxu0 0.0
        %1738 = vmatprep.subr.mxu0 0.0
        %1739 = vmatpush2.msra.mxu0 0.0
        %1740 = vmatprep.subr.mxu0 0.0
        %1741 = vmatpush2.msra.mxu0 0.0
        %1742 = vmatprep.subr.mxu0 0.0
        %1743 = vmatpush2.msra.mxu0 0.0
        %1744 = vmatprep.subr.mxu0 0.0
        %1745 = vmatpush2.msra.mxu0 0.0
        %1746 = vmatprep.subr.mxu0 0.0
        %1747 = vmatpush2.msra.mxu0 0.0
        %1748 = vmatprep.subr.mxu0 0.0
        %1749 = vmatpush2.msra.mxu0 0.0
        %1750 = vmatprep.subr.mxu0 0.0
        %1751 = vmatpush2.msra.mxu0 0.0
        %1752 = vmatprep.subr.mxu0 0.0
        %1753 = vmatpush2.msra.mxu0 0.0
        %1754 = vmatprep.subr.mxu0 0.0
        %1755 = vmatpush2.msra.mxu0 0.0
        %1756 = vmatprep.subr.mxu0 0.0
        %1757 = vmatpush2.msra.mxu0 0.0
        %1758 = vmatprep.subr.mxu0 0.0
        %1759 = vmatpush2.msra.mxu0 0.0
        %1760 = vmatprep.mubr.f32.mxu0 0.0
        %1761 = vmatmul.mubr.f32.gmra.mxu0 %v1118
        %v1762 = vpop.f32.mrf.mxu0
        %v1763 = vadd.f32 0.0, %v1762
        %v1764 = vpop.f32.mrf.mxu0
        %1765 = vdwg.mxu0
        %v1766 = vmax.f32 %v1693, %v1763
        %1767 = vst.msk [vmem:[#allocation2 + $0x3e] sm:$0xff] %vm551, %v1766
        %v1768 = vmax.f32 %v986, %v988
        %v1769 = vmax.f32 %v987, %v989
        %1770 = vmatprep.subr.mxu0 0.0
        %1771 = vmatpush1.msra.mxu0 0.0
        %1772 = vmatprep.subr.mxu0 0.0
        %1773 = vmatpush1.msra.mxu0 0.0
        %1774 = vmatprep.subr.mxu0 0.0
        %1775 = vmatpush1.msra.mxu0 0.0
        %1776 = vmatprep.subr.mxu0 0.0
        %1777 = vmatpush1.msra.mxu0 0.0
        %1778 = vmatprep.subr.mxu0 0.0
        %1779 = vmatpush1.msra.mxu0 0.0
        %1780 = vmatprep.subr.mxu0 0.0
        %1781 = vmatpush1.msra.mxu0 0.0
        %1782 = vmatprep.subr.mxu0 0.0
        %1783 = vmatpush1.msra.mxu0 0.0
        %1784 = vmatprep.subr.mxu0 0.0
        %1785 = vmatpush1.msra.mxu0 0.0
        %1786 = vmatprep.subr.mxu0 0.0
        %1787 = vmatpush1.msra.mxu0 0.0
        %1788 = vmatprep.subr.mxu0 0.0
        %1789 = vmatpush1.msra.mxu0 0.0
        %1790 = vmatprep.subr.mxu0 0.0
        %1791 = vmatpush1.msra.mxu0 0.0
        %1792 = vmatprep.subr.mxu0 0.0
        %1793 = vmatpush1.msra.mxu0 0.0
        %1794 = vmatprep.subr.mxu0 0.0
        %1795 = vmatpush1.msra.mxu0 0.0
        %1796 = vmatprep.subr.mxu0 0.0
        %1797 = vmatpush1.msra.mxu0 0.0
        %1798 = vmatprep.subr.mxu0 0.0
        %1799 = vmatpush1.msra.mxu0 %v1769
        %1800 = vmatprep.subr.mxu0 0.0
        %1801 = vmatpush1.msra.mxu0 %v1768
        %1802 = vmatprep.subr.mxu0 0.0
        %1803 = vmatpush2.msra.mxu0 0.0
        %1804 = vmatprep.subr.mxu0 0.0
        %1805 = vmatpush2.msra.mxu0 0.0
        %1806 = vmatprep.subr.mxu0 0.0
        %1807 = vmatpush2.msra.mxu0 0.0
        %1808 = vmatprep.subr.mxu0 0.0
        %1809 = vmatpush2.msra.mxu0 0.0
        %1810 = vmatprep.subr.mxu0 0.0
        %1811 = vmatpush2.msra.mxu0 0.0
        %1812 = vmatprep.subr.mxu0 0.0
        %1813 = vmatpush2.msra.mxu0 0.0
        %1814 = vmatprep.subr.mxu0 0.0
        %1815 = vmatpush2.msra.mxu0 0.0
        %1816 = vmatprep.subr.mxu0 0.0
        %1817 = vmatpush2.msra.mxu0 0.0
        %1818 = vmatprep.subr.mxu0 0.0
        %1819 = vmatpush2.msra.mxu0 0.0
        %1820 = vmatprep.subr.mxu0 0.0
        %1821 = vmatpush2.msra.mxu0 0.0
        %1822 = vmatprep.subr.mxu0 0.0
        %1823 = vmatpush2.msra.mxu0 0.0
        %1824 = vmatprep.subr.mxu0 0.0
        %1825 = vmatpush2.msra.mxu0 0.0
        %1826 = vmatprep.subr.mxu0 0.0
        %1827 = vmatpush2.msra.mxu0 0.0
        %1828 = vmatprep.subr.mxu0 0.0
        %1829 = vmatpush2.msra.mxu0 0.0
        %1830 = vmatprep.subr.mxu0 0.0
        %1831 = vmatpush2.msra.mxu0 0.0
        %1832 = vmatprep.subr.mxu0 0.0
        %1833 = vmatpush2.msra.mxu0 0.0
        %1834 = vmatprep.mubr.f32.mxu0 0.0
        %1835 = vmatmul.mubr.f32.gmra.mxu0 %v1045
        %v1836 = vpop.f32.mrf.mxu0
        %v1837 = vadd.f32 0.0, %v1836
        %v1838 = vpop.f32.mrf.mxu0
        %1839 = vdwg.mxu0
        %1840 = vmatprep.subr.mxu0 0.0
        %1841 = vmatpush1.msra.mxu0 0.0
        %1842 = vmatprep.subr.mxu0 0.0
        %1843 = vmatpush1.msra.mxu0 0.0
        %1844 = vmatprep.subr.mxu0 0.0
        %1845 = vmatpush1.msra.mxu0 0.0
        %1846 = vmatprep.subr.mxu0 0.0
        %1847 = vmatpush1.msra.mxu0 0.0
        %1848 = vmatprep.subr.mxu0 0.0
        %1849 = vmatpush1.msra.mxu0 0.0
        %1850 = vmatprep.subr.mxu0 0.0
        %1851 = vmatpush1.msra.mxu0 0.0
        %1852 = vmatprep.subr.mxu0 0.0
        %1853 = vmatpush1.msra.mxu0 0.0
        %1854 = vmatprep.subr.mxu0 0.0
        %1855 = vmatpush1.msra.mxu0 0.0
        %1856 = vmatprep.subr.mxu0 0.0
        %1857 = vmatpush1.msra.mxu0 0.0
        %1858 = vmatprep.subr.mxu0 0.0
        %1859 = vmatpush1.msra.mxu0 0.0
        %1860 = vmatprep.subr.mxu0 0.0
        %1861 = vmatpush1.msra.mxu0 0.0
        %1862 = vmatprep.subr.mxu0 0.0
        %1863 = vmatpush1.msra.mxu0 0.0
        %1864 = vmatprep.subr.mxu0 0.0
        %1865 = vmatpush1.msra.mxu0 0.0
        %1866 = vmatprep.subr.mxu0 0.0
        %1867 = vmatpush1.msra.mxu0 0.0
        %1868 = vmatprep.subr.mxu0 0.0
        %1869 = vmatpush1.msra.mxu0 %v1769
        %1870 = vmatprep.subr.mxu0 0.0
        %1871 = vmatpush1.msra.mxu0 %v1768
        %1872 = vmatprep.subr.mxu0 0.0
        %1873 = vmatpush2.msra.mxu0 0.0
        %1874 = vmatprep.subr.mxu0 0.0
        %1875 = vmatpush2.msra.mxu0 0.0
        %1876 = vmatprep.subr.mxu0 0.0
        %1877 = vmatpush2.msra.mxu0 0.0
        %1878 = vmatprep.subr.mxu0 0.0
        %1879 = vmatpush2.msra.mxu0 0.0
        %1880 = vmatprep.subr.mxu0 0.0
        %1881 = vmatpush2.msra.mxu0 0.0
        %1882 = vmatprep.subr.mxu0 0.0
        %1883 = vmatpush2.msra.mxu0 0.0
        %1884 = vmatprep.subr.mxu0 0.0
        %1885 = vmatpush2.msra.mxu0 0.0
        %1886 = vmatprep.subr.mxu0 0.0
        %1887 = vmatpush2.msra.mxu0 0.0
        %1888 = vmatprep.subr.mxu0 0.0
        %1889 = vmatpush2.msra.mxu0 0.0
        %1890 = vmatprep.subr.mxu0 0.0
        %1891 = vmatpush2.msra.mxu0 0.0
        %1892 = vmatprep.subr.mxu0 0.0
        %1893 = vmatpush2.msra.mxu0 0.0
        %1894 = vmatprep.subr.mxu0 0.0
        %1895 = vmatpush2.msra.mxu0 0.0
        %1896 = vmatprep.subr.mxu0 0.0
        %1897 = vmatpush2.msra.mxu0 0.0
        %1898 = vmatprep.subr.mxu0 0.0
        %1899 = vmatpush2.msra.mxu0 0.0
        %1900 = vmatprep.subr.mxu0 0.0
        %1901 = vmatpush2.msra.mxu0 0.0
        %1902 = vmatprep.subr.mxu0 0.0
        %1903 = vmatpush2.msra.mxu0 0.0
        %1904 = vmatprep.mubr.f32.mxu0 0.0
        %1905 = vmatmul.mubr.f32.gmra.mxu0 %v1118
        %v1906 = vpop.f32.mrf.mxu0
        %v1907 = vadd.f32 0.0, %v1906
        %v1908 = vpop.f32.mrf.mxu0
        %1909 = vdwg.mxu0
        %v1910 = vmax.f32 %v1837, %v1907
        %1911 = vst.msk [vmem:[#allocation2 + $0x48] sm:$0xff] %vm551, %v1910
        %v1912 = vmax.f32 %v990, %v992
        %v1913 = vmax.f32 %v991, %v993
        %1914 = vmatprep.subr.mxu0 0.0
        %1915 = vmatpush1.msra.mxu0 0.0
        %1916 = vmatprep.subr.mxu0 0.0
        %1917 = vmatpush1.msra.mxu0 0.0
        %1918 = vmatprep.subr.mxu0 0.0
        %1919 = vmatpush1.msra.mxu0 0.0
        %1920 = vmatprep.subr.mxu0 0.0
        %1921 = vmatpush1.msra.mxu0 0.0
        %1922 = vmatprep.subr.mxu0 0.0
        %1923 = vmatpush1.msra.mxu0 0.0
        %1924 = vmatprep.subr.mxu0 0.0
        %1925 = vmatpush1.msra.mxu0 0.0
        %1926 = vmatprep.subr.mxu0 0.0
        %1927 = vmatpush1.msra.mxu0 0.0
        %1928 = vmatprep.subr.mxu0 0.0
        %1929 = vmatpush1.msra.mxu0 0.0
        %1930 = vmatprep.subr.mxu0 0.0
        %1931 = vmatpush1.msra.mxu0 0.0
        %1932 = vmatprep.subr.mxu0 0.0
        %1933 = vmatpush1.msra.mxu0 0.0
        %1934 = vmatprep.subr.mxu0 0.0
        %1935 = vmatpush1.msra.mxu0 0.0
        %1936 = vmatprep.subr.mxu0 0.0
        %1937 = vmatpush1.msra.mxu0 0.0
        %1938 = vmatprep.subr.mxu0 0.0
        %1939 = vmatpush1.msra.mxu0 0.0
        %1940 = vmatprep.subr.mxu0 0.0
        %1941 = vmatpush1.msra.mxu0 0.0
        %1942 = vmatprep.subr.mxu0 0.0
        %1943 = vmatpush1.msra.mxu0 %v1913
        %1944 = vmatprep.subr.mxu0 0.0
        %1945 = vmatpush1.msra.mxu0 %v1912
        %1946 = vmatprep.subr.mxu0 0.0
        %1947 = vmatpush2.msra.mxu0 0.0
        %1948 = vmatprep.subr.mxu0 0.0
        %1949 = vmatpush2.msra.mxu0 0.0
        %1950 = vmatprep.subr.mxu0 0.0
        %1951 = vmatpush2.msra.mxu0 0.0
        %1952 = vmatprep.subr.mxu0 0.0
        %1953 = vmatpush2.msra.mxu0 0.0
        %1954 = vmatprep.subr.mxu0 0.0
        %1955 = vmatpush2.msra.mxu0 0.0
        %1956 = vmatprep.subr.mxu0 0.0
        %1957 = vmatpush2.msra.mxu0 0.0
        %1958 = vmatprep.subr.mxu0 0.0
        %1959 = vmatpush2.msra.mxu0 0.0
        %1960 = vmatprep.subr.mxu0 0.0
        %1961 = vmatpush2.msra.mxu0 0.0
        %1962 = vmatprep.subr.mxu0 0.0
        %1963 = vmatpush2.msra.mxu0 0.0
        %1964 = vmatprep.subr.mxu0 0.0
        %1965 = vmatpush2.msra.mxu0 0.0
        %1966 = vmatprep.subr.mxu0 0.0
        %1967 = vmatpush2.msra.mxu0 0.0
        %1968 = vmatprep.subr.mxu0 0.0
        %1969 = vmatpush2.msra.mxu0 0.0
        %1970 = vmatprep.subr.mxu0 0.0
        %1971 = vmatpush2.msra.mxu0 0.0
        %1972 = vmatprep.subr.mxu0 0.0
        %1973 = vmatpush2.msra.mxu0 0.0
        %1974 = vmatprep.subr.mxu0 0.0
        %1975 = vmatpush2.msra.mxu0 0.0
        %1976 = vmatprep.subr.mxu0 0.0
        %1977 = vmatpush2.msra.mxu0 0.0
        %1978 = vmatprep.mubr.f32.mxu0 0.0
        %1979 = vmatmul.mubr.f32.gmra.mxu0 %v1045
        %v1980 = vpop.f32.mrf.mxu0
        %v1981 = vadd.f32 0.0, %v1980
        %v1982 = vpop.f32.mrf.mxu0
        %1983 = vdwg.mxu0
        %1984 = vmatprep.subr.mxu0 0.0
        %1985 = vmatpush1.msra.mxu0 0.0
        %1986 = vmatprep.subr.mxu0 0.0
        %1987 = vmatpush1.msra.mxu0 0.0
        %1988 = vmatprep.subr.mxu0 0.0
        %1989 = vmatpush1.msra.mxu0 0.0
        %1990 = vmatprep.subr.mxu0 0.0
        %1991 = vmatpush1.msra.mxu0 0.0
        %1992 = vmatprep.subr.mxu0 0.0
        %1993 = vmatpush1.msra.mxu0 0.0
        %1994 = vmatprep.subr.mxu0 0.0
        %1995 = vmatpush1.msra.mxu0 0.0
        %1996 = vmatprep.subr.mxu0 0.0
        %1997 = vmatpush1.msra.mxu0 0.0
        %1998 = vmatprep.subr.mxu0 0.0
        %1999 = vmatpush1.msra.mxu0 0.0
        %2000 = vmatprep.subr.mxu0 0.0
        %2001 = vmatpush1.msra.mxu0 0.0
        %2002 = vmatprep.subr.mxu0 0.0
        %2003 = vmatpush1.msra.mxu0 0.0
        %2004 = vmatprep.subr.mxu0 0.0
        %2005 = vmatpush1.msra.mxu0 0.0
        %2006 = vmatprep.subr.mxu0 0.0
        %2007 = vmatpush1.msra.mxu0 0.0
        %2008 = vmatprep.subr.mxu0 0.0
        %2009 = vmatpush1.msra.mxu0 0.0
        %2010 = vmatprep.subr.mxu0 0.0
        %2011 = vmatpush1.msra.mxu0 0.0
        %2012 = vmatprep.subr.mxu0 0.0
        %2013 = vmatpush1.msra.mxu0 %v1913
        %2014 = vmatprep.subr.mxu0 0.0
        %2015 = vmatpush1.msra.mxu0 %v1912
        %2016 = vmatprep.subr.mxu0 0.0
        %2017 = vmatpush2.msra.mxu0 0.0
        %2018 = vmatprep.subr.mxu0 0.0
        %2019 = vmatpush2.msra.mxu0 0.0
        %2020 = vmatprep.subr.mxu0 0.0
        %2021 = vmatpush2.msra.mxu0 0.0
        %2022 = vmatprep.subr.mxu0 0.0
        %2023 = vmatpush2.msra.mxu0 0.0
        %2024 = vmatprep.subr.mxu0 0.0
        %2025 = vmatpush2.msra.mxu0 0.0
        %2026 = vmatprep.subr.mxu0 0.0
        %2027 = vmatpush2.msra.mxu0 0.0
        %2028 = vmatprep.subr.mxu0 0.0
        %2029 = vmatpush2.msra.mxu0 0.0
        %2030 = vmatprep.subr.mxu0 0.0
        %2031 = vmatpush2.msra.mxu0 0.0
        %2032 = vmatprep.subr.mxu0 0.0
        %2033 = vmatpush2.msra.mxu0 0.0
        %2034 = vmatprep.subr.mxu0 0.0
        %2035 = vmatpush2.msra.mxu0 0.0
        %2036 = vmatprep.subr.mxu0 0.0
        %2037 = vmatpush2.msra.mxu0 0.0
        %2038 = vmatprep.subr.mxu0 0.0
        %2039 = vmatpush2.msra.mxu0 0.0
        %2040 = vmatprep.subr.mxu0 0.0
        %2041 = vmatpush2.msra.mxu0 0.0
        %2042 = vmatprep.subr.mxu0 0.0
        %2043 = vmatpush2.msra.mxu0 0.0
        %2044 = vmatprep.subr.mxu0 0.0
        %2045 = vmatpush2.msra.mxu0 0.0
        %2046 = vmatprep.subr.mxu0 0.0
        %2047 = vmatpush2.msra.mxu0 0.0
        %2048 = vmatprep.mubr.f32.mxu0 0.0
        %2049 = vmatmul.mubr.f32.gmra.mxu0 %v1118
        %v2050 = vpop.f32.mrf.mxu0
        %v2051 = vadd.f32 0.0, %v2050
        %v2052 = vpop.f32.mrf.mxu0
        %2053 = vdwg.mxu0
        %v2054 = vmax.f32 %v1981, %v2051
        %2055 = vst.msk [vmem:[#allocation2 + $0x52] sm:$0xff] %vm551, %v2054
        %v2056 = vmax.f32 %v994, %v996
        %v2057 = vmax.f32 %v995, %v997
        %2058 = vmatprep.subr.mxu0 0.0
        %2059 = vmatpush1.msra.mxu0 0.0
        %2060 = vmatprep.subr.mxu0 0.0
        %2061 = vmatpush1.msra.mxu0 0.0
        %2062 = vmatprep.subr.mxu0 0.0
        %2063 = vmatpush1.msra.mxu0 0.0
        %2064 = vmatprep.subr.mxu0 0.0
        %2065 = vmatpush1.msra.mxu0 0.0
        %2066 = vmatprep.subr.mxu0 0.0
        %2067 = vmatpush1.msra.mxu0 0.0
        %2068 = vmatprep.subr.mxu0 0.0
        %2069 = vmatpush1.msra.mxu0 0.0
        %2070 = vmatprep.subr.mxu0 0.0
        %2071 = vmatpush1.msra.mxu0 0.0
        %2072 = vmatprep.subr.mxu0 0.0
        %2073 = vmatpush1.msra.mxu0 0.0
        %2074 = vmatprep.subr.mxu0 0.0
        %2075 = vmatpush1.msra.mxu0 0.0
        %2076 = vmatprep.subr.mxu0 0.0
        %2077 = vmatpush1.msra.mxu0 0.0
        %2078 = vmatprep.subr.mxu0 0.0
        %2079 = vmatpush1.msra.mxu0 0.0
        %2080 = vmatprep.subr.mxu0 0.0
        %2081 = vmatpush1.msra.mxu0 0.0
        %2082 = vmatprep.subr.mxu0 0.0
        %2083 = vmatpush1.msra.mxu0 0.0
        %2084 = vmatprep.subr.mxu0 0.0
        %2085 = vmatpush1.msra.mxu0 0.0
        %2086 = vmatprep.subr.mxu0 0.0
        %2087 = vmatpush1.msra.mxu0 %v2057
        %2088 = vmatprep.subr.mxu0 0.0
        %2089 = vmatpush1.msra.mxu0 %v2056
        %2090 = vmatprep.subr.mxu0 0.0
        %2091 = vmatpush2.msra.mxu0 0.0
        %2092 = vmatprep.subr.mxu0 0.0
        %2093 = vmatpush2.msra.mxu0 0.0
        %2094 = vmatprep.subr.mxu0 0.0
        %2095 = vmatpush2.msra.mxu0 0.0
        %2096 = vmatprep.subr.mxu0 0.0
        %2097 = vmatpush2.msra.mxu0 0.0
        %2098 = vmatprep.subr.mxu0 0.0
        %2099 = vmatpush2.msra.mxu0 0.0
        %2100 = vmatprep.subr.mxu0 0.0
        %2101 = vmatpush2.msra.mxu0 0.0
        %2102 = vmatprep.subr.mxu0 0.0
        %2103 = vmatpush2.msra.mxu0 0.0
        %2104 = vmatprep.subr.mxu0 0.0
        %2105 = vmatpush2.msra.mxu0 0.0
        %2106 = vmatprep.subr.mxu0 0.0
        %2107 = vmatpush2.msra.mxu0 0.0
        %2108 = vmatprep.subr.mxu0 0.0
        %2109 = vmatpush2.msra.mxu0 0.0
        %2110 = vmatprep.subr.mxu0 0.0
        %2111 = vmatpush2.msra.mxu0 0.0
        %2112 = vmatprep.subr.mxu0 0.0
        %2113 = vmatpush2.msra.mxu0 0.0
        %2114 = vmatprep.subr.mxu0 0.0
        %2115 = vmatpush2.msra.mxu0 0.0
        %2116 = vmatprep.subr.mxu0 0.0
        %2117 = vmatpush2.msra.mxu0 0.0
        %2118 = vmatprep.subr.mxu0 0.0
        %2119 = vmatpush2.msra.mxu0 0.0
        %2120 = vmatprep.subr.mxu0 0.0
        %2121 = vmatpush2.msra.mxu0 0.0
        %2122 = vmatprep.mubr.f32.mxu0 0.0
        %2123 = vmatmul.mubr.f32.gmra.mxu0 %v1045
        %v2124 = vpop.f32.mrf.mxu0
        %v2125 = vadd.f32 0.0, %v2124
        %v2126 = vpop.f32.mrf.mxu0
        %2127 = vdwg.mxu0
        %2128 = vmatprep.subr.mxu0 0.0
        %2129 = vmatpush1.msra.mxu0 0.0
        %2130 = vmatprep.subr.mxu0 0.0
        %2131 = vmatpush1.msra.mxu0 0.0
        %2132 = vmatprep.subr.mxu0 0.0
        %2133 = vmatpush1.msra.mxu0 0.0
        %2134 = vmatprep.subr.mxu0 0.0
        %2135 = vmatpush1.msra.mxu0 0.0
        %2136 = vmatprep.subr.mxu0 0.0
        %2137 = vmatpush1.msra.mxu0 0.0
        %2138 = vmatprep.subr.mxu0 0.0
        %2139 = vmatpush1.msra.mxu0 0.0
        %2140 = vmatprep.subr.mxu0 0.0
        %2141 = vmatpush1.msra.mxu0 0.0
        %2142 = vmatprep.subr.mxu0 0.0
        %2143 = vmatpush1.msra.mxu0 0.0
        %2144 = vmatprep.subr.mxu0 0.0
        %2145 = vmatpush1.msra.mxu0 0.0
        %2146 = vmatprep.subr.mxu0 0.0
        %2147 = vmatpush1.msra.mxu0 0.0
        %2148 = vmatprep.subr.mxu0 0.0
        %2149 = vmatpush1.msra.mxu0 0.0
        %2150 = vmatprep.subr.mxu0 0.0
        %2151 = vmatpush1.msra.mxu0 0.0
        %2152 = vmatprep.subr.mxu0 0.0
        %2153 = vmatpush1.msra.mxu0 0.0
        %2154 = vmatprep.subr.mxu0 0.0
        %2155 = vmatpush1.msra.mxu0 0.0
        %2156 = vmatprep.subr.mxu0 0.0
        %2157 = vmatpush1.msra.mxu0 %v2057
        %2158 = vmatprep.subr.mxu0 0.0
        %2159 = vmatpush1.msra.mxu0 %v2056
        %2160 = vmatprep.subr.mxu0 0.0
        %2161 = vmatpush2.msra.mxu0 0.0
        %2162 = vmatprep.subr.mxu0 0.0
        %2163 = vmatpush2.msra.mxu0 0.0
        %2164 = vmatprep.subr.mxu0 0.0
        %2165 = vmatpush2.msra.mxu0 0.0
        %2166 = vmatprep.subr.mxu0 0.0
        %2167 = vmatpush2.msra.mxu0 0.0
        %2168 = vmatprep.subr.mxu0 0.0
        %2169 = vmatpush2.msra.mxu0 0.0
        %2170 = vmatprep.subr.mxu0 0.0
        %2171 = vmatpush2.msra.mxu0 0.0
        %2172 = vmatprep.subr.mxu0 0.0
        %2173 = vmatpush2.msra.mxu0 0.0
        %2174 = vmatprep.subr.mxu0 0.0
        %2175 = vmatpush2.msra.mxu0 0.0
        %2176 = vmatprep.subr.mxu0 0.0
        %2177 = vmatpush2.msra.mxu0 0.0
        %2178 = vmatprep.subr.mxu0 0.0
        %2179 = vmatpush2.msra.mxu0 0.0
        %2180 = vmatprep.subr.mxu0 0.0
        %2181 = vmatpush2.msra.mxu0 0.0
        %2182 = vmatprep.subr.mxu0 0.0
        %2183 = vmatpush2.msra.mxu0 0.0
        %2184 = vmatprep.subr.mxu0 0.0
        %2185 = vmatpush2.msra.mxu0 0.0
        %2186 = vmatprep.subr.mxu0 0.0
        %2187 = vmatpush2.msra.mxu0 0.0
        %2188 = vmatprep.subr.mxu0 0.0
        %2189 = vmatpush2.msra.mxu0 0.0
        %2190 = vmatprep.subr.mxu0 0.0
        %2191 = vmatpush2.msra.mxu0 0.0
        %2192 = vmatprep.mubr.f32.mxu0 0.0
        %2193 = vmatmul.mubr.f32.gmra.mxu0 %v1118
        %v2194 = vpop.f32.mrf.mxu0
        %v2195 = vadd.f32 0.0, %v2194
        %v2196 = vpop.f32.mrf.mxu0
        %2197 = vdwg.mxu0
        %v2198 = vmax.f32 %v2125, %v2195
        %2199 = vst.msk [vmem:[#allocation2 + $0x5c] sm:$0xff] %vm551, %v2198
        %v2200 = vld [vmem:[#allocation2] sm:$0xff]
        %v2201 = vld [vmem:[#allocation2 + $0x8] sm:$0xff]
        %v2202 = vld [vmem:[#allocation2 + $0x10] sm:$0xff]
        %v2203 = vld [vmem:[#allocation2 + $0x18] sm:$0xff]
        %v2204 = vld [vmem:[#allocation2 + $0x20] sm:$0xff]
        %v2205 = vld [vmem:[#allocation2 + $0x28] sm:$0xff]
        %v2206 = vld [vmem:[#allocation2 + $0x30] sm:$0xff]
        %v2207 = vld [vmem:[#allocation2 + $0x38] sm:$0xff]
        %v2208 = vld [vmem:[#allocation2 + $0x40] sm:$0xff]
        %v2209 = vld [vmem:[#allocation2 + $0x48] sm:$0xff]
        %v2210 = vld [vmem:[#allocation2 + $0x50] sm:$0xff]
        %v2211 = vld [vmem:[#allocation2 + $0x58] sm:$0xff]
        %v2212 = vld [vmem:[#allocation2 + $0x60] sm:$0xf]
        %v2213 = vpack.c.bf16 %v2201, %v2200
        %v2214 = vpack.c.bf16 %v2203, %v2202
        %v2215 = vpack.c.bf16 %v2205, %v2204
        %v2216 = vpack.c.bf16 %v2207, %v2206
        %v2217 = vpack.c.bf16 %v2209, %v2208
        %v2218 = vpack.c.bf16 %v2211, %v2210
        %v2219 = vpack.c.bf16 %v2212, %v2212
        %v2220 = vld [vmem:[%s3] sm:$0xf]
        %v2221 = vld [vmem:[%s3 + $0x4] sm:$0xf]
        %v2222 = vld [vmem:[%s3 + $0x8] sm:$0xf]
        %v2223 = vld [vmem:[%s3 + $0xc] sm:$0xf]
        %v2224 = vld [vmem:[%s3 + $0x10] sm:$0xf]
        %v2225 = vld [vmem:[%s3 + $0x14] sm:$0xf]
        %v2226 = vld [vmem:[%s3 + $0x18] sm:$0xf]
        %v2227 = vld [vmem:[%s3 + $0x1c] sm:$0xf]
        %v2228 = vld [vmem:[#allocation2 + $0x1] sm:$0xff]
        %v2229 = vld [vmem:[#allocation2 + $0x9] sm:$0xff]
        %v2230 = vld [vmem:[#allocation2 + $0x11] sm:$0xff]
        %v2231 = vld [vmem:[#allocation2 + $0x19] sm:$0xff]
        %v2232 = vld [vmem:[#allocation2 + $0x21] sm:$0xff]
        %v2233 = vld [vmem:[#allocation2 + $0x29] sm:$0xff]
        %v2234 = vld [vmem:[#allocation2 + $0x31] sm:$0xff]
        %v2235 = vld [vmem:[#allocation2 + $0x39] sm:$0xff]
        %v2236 = vld [vmem:[#allocation2 + $0x41] sm:$0xff]
        %v2237 = vld [vmem:[#allocation2 + $0x49] sm:$0xff]
        %v2238 = vld [vmem:[#allocation2 + $0x51] sm:$0xff]
        %v2239 = vld [vmem:[#allocation2 + $0x59] sm:$0xff]
        %v2240 = vld [vmem:[#allocation2 + $0x61] sm:$0xf]
        %v2241 = vpack.c.bf16 %v2229, %v2228
        %v2242 = vpack.c.bf16 %v2231, %v2230
        %v2243 = vpack.c.bf16 %v2233, %v2232
        %v2244 = vpack.c.bf16 %v2235, %v2234
        %v2245 = vpack.c.bf16 %v2237, %v2236
        %v2246 = vpack.c.bf16 %v2239, %v2238
        %v2247 = vpack.c.bf16 %v2240, %v2240
        %v2248 = vld [vmem:[%s3 + $0x20] sm:$0xf]
        %v2249 = vld [vmem:[%s3 + $0x24] sm:$0xf]
        %v2250 = vld [vmem:[%s3 + $0x28] sm:$0xf]
        %v2251 = vld [vmem:[%s3 + $0x2c] sm:$0xf]
        %v2252 = vld [vmem:[%s3 + $0x30] sm:$0xf]
        %v2253 = vld [vmem:[%s3 + $0x34] sm:$0xf]
        %v2254 = vld [vmem:[%s3 + $0x38] sm:$0xf]
        %v2255 = vld [vmem:[%s3 + $0x3c] sm:$0xf]
        %v2264 = vunpack.c.l.b16 %v2248
        %v2265 = vunpack.c.l.b16 %v2249
        %v2266 = vunpack.c.l.b16 %v2250
        %v2267 = vunpack.c.l.b16 %v2251
        %v2268 = vunpack.c.l.b16 %v2252
        %v2269 = vunpack.c.l.b16 %v2253
        %v2270 = vunpack.c.l.b16 %v2254
        %v2271 = vunpack.c.l.b16 %v2255
        %v2272 = vpack.c.b16 %v2265, %v2264
        %v2273 = vpack.c.b16 %v2267, %v2266
        %v2274 = vpack.c.b16 %v2269, %v2268
        %v2275 = vpack.c.b16 %v2271, %v2270
        %v2281 = vsel %vm551, %v2241, 0
        %v2284 = vsel %vm551, %v2242, 0
        %v2287 = vsel %vm551, %v2243, 0
        %v2290 = vsel %vm551, %v2244, 0
        %v2293 = vsel %vm551, %v2245, 0
        %v2296 = vsel %vm551, %v2246, 0
        %v2299 = vsel %vm551, %v2247, 0
        %2301 = vmatprep.subr.bf16.mxu0 0
        %2302 = vmatpush1.bf16.msra.mxu0 0
        %2303 = vmatprep.subr.bf16.mxu0 0
        %2304 = vmatpush1.bf16.msra.mxu0 0
        %2305 = vmatprep.subr.bf16.mxu0 0
        %2306 = vmatpush1.bf16.msra.mxu0 0
        %2307 = vmatprep.subr.bf16.mxu0 0
        %2308 = vmatpush1.bf16.msra.mxu0 0
        %2309 = vmatprep.subr.bf16.mxu0 0
        %2310 = vmatpush1.bf16.msra.mxu0 %v2275
        %2311 = vmatprep.subr.bf16.mxu0 0
        %2312 = vmatpush1.bf16.msra.mxu0 %v2274
        %2313 = vmatprep.subr.bf16.mxu0 0
        %2314 = vmatpush1.bf16.msra.mxu0 %v2273
        %2315 = vmatprep.subr.bf16.mxu0 0
        %2316 = vmatpush1.bf16.msra.mxu0 %v2272
        %2317 = vmatprep.subr.bf16.mxu0 0
        %2318 = vmatpush2.bf16.msra.mxu0 0
        %2319 = vmatprep.subr.bf16.mxu0 0
        %2320 = vmatpush2.bf16.msra.mxu0 0
        %2321 = vmatprep.subr.bf16.mxu0 0
        %2322 = vmatpush2.bf16.msra.mxu0 0
        %2323 = vmatprep.subr.bf16.mxu0 0
        %2324 = vmatpush2.bf16.msra.mxu0 0
        %2325 = vmatprep.subr.bf16.mxu0 0
        %2326 = vmatpush2.bf16.msra.mxu0 0
        %2327 = vmatprep.subr.bf16.mxu0 0
        %2328 = vmatpush2.bf16.msra.mxu0 0
        %2329 = vmatprep.subr.bf16.mxu0 0
        %2330 = vmatpush2.bf16.msra.mxu0 0
        %2331 = vmatprep.subr.bf16.mxu0 0
        %2332 = vmatpush2.bf16.msra.mxu0 0
        %2333 = vmatprep.mubr.bf16.mxu0 0
        %2334 = vmatmul.mubr.bf16.gmra.mxu0 %v2281
        %v2335 = vpop.f32.mrf.mxu0
        %v2336 = vpop.f32.mrf.mxu0
        %v2337 = vpop.f32.mrf.mxu0
        %v2338 = vadd.f32 0.0, %v2337
        %v2339 = vpop.f32.mrf.mxu0
        %2340 = vmatprep.mubr.bf16.mxu0 0
        %2341 = vmatmul.mubr.bf16.gmra.mxu0 %v2284
        %v2342 = vpop.f32.mrf.mxu0
        %v2343 = vadd.f32 0.0, %v2342
        %v2344 = vpop.f32.mrf.mxu0
        %v2345 = vpop.f32.mrf.mxu0
        %v2346 = vadd.f32 0.0, %v2345
        %v2347 = vpop.f32.mrf.mxu0
        %2348 = vmatprep.mubr.bf16.mxu0 0
        %2349 = vmatmul.mubr.bf16.gmra.mxu0 %v2287
        %v2350 = vpop.f32.mrf.mxu0
        %v2351 = vadd.f32 0.0, %v2350
        %v2352 = vpop.f32.mrf.mxu0
        %v2353 = vpop.f32.mrf.mxu0
        %v2354 = vadd.f32 0.0, %v2353
        %v2355 = vpop.f32.mrf.mxu0
        %2356 = vmatprep.mubr.bf16.mxu0 0
        %2357 = vmatmul.mubr.bf16.gmra.mxu0 %v2290
        %v2358 = vpop.f32.mrf.mxu0
        %v2359 = vadd.f32 0.0, %v2358
        %v2360 = vpop.f32.mrf.mxu0
        %v2361 = vpop.f32.mrf.mxu0
        %v2362 = vadd.f32 0.0, %v2361
        %v2363 = vpop.f32.mrf.mxu0
        %2364 = vmatprep.mubr.bf16.mxu0 0
        %2365 = vmatmul.mubr.bf16.gmra.mxu0 %v2293
        %v2366 = vpop.f32.mrf.mxu0
        %v2367 = vadd.f32 0.0, %v2366
        %v2368 = vpop.f32.mrf.mxu0
        %v2369 = vpop.f32.mrf.mxu0
        %v2370 = vadd.f32 0.0, %v2369
        %v2371 = vpop.f32.mrf.mxu0
        %2372 = vmatprep.mubr.bf16.mxu0 0
        %2373 = vmatmul.mubr.bf16.gmra.mxu0 %v2296
        %v2374 = vpop.f32.mrf.mxu0
        %v2375 = vadd.f32 0.0, %v2374
        %v2376 = vpop.f32.mrf.mxu0
        %v2377 = vpop.f32.mrf.mxu0
        %v2378 = vadd.f32 0.0, %v2377
        %v2379 = vpop.f32.mrf.mxu0
        %2380 = vmatprep.mubr.bf16.mxu0 0
        %2381 = vmatmul.mubr.bf16.gmra.mxu0 %v2299
        %v2382 = vpop.f32.mrf.mxu0
        %v2383 = vpop.f32.mrf.mxu0
        %v2384 = vpop.f32.mrf.mxu0
        %v2385 = vpop.f32.mrf.mxu0
        %2386 = vdwg.mxu0
        %v2395 = vunpack.c.l.b16 %v2220
        %v2396 = vunpack.c.l.b16 %v2221
        %v2397 = vunpack.c.l.b16 %v2222
        %v2398 = vunpack.c.l.b16 %v2223
        %v2399 = vunpack.c.l.b16 %v2224
        %v2400 = vunpack.c.l.b16 %v2225
        %v2401 = vunpack.c.l.b16 %v2226
        %v2402 = vunpack.c.l.b16 %v2227
        %v2403 = vpack.c.b16 %v2396, %v2395
        %v2404 = vpack.c.b16 %v2398, %v2397
        %v2405 = vpack.c.b16 %v2400, %v2399
        %v2406 = vpack.c.b16 %v2402, %v2401
        %v2412 = vsel %vm551, %v2213, 0
        %v2415 = vsel %vm551, %v2214, 0
        %v2418 = vsel %vm551, %v2215, 0
        %v2421 = vsel %vm551, %v2216, 0
        %v2424 = vsel %vm551, %v2217, 0
        %v2427 = vsel %vm551, %v2218, 0
        %v2430 = vsel %vm551, %v2219, 0
        %2432 = vmatprep.subr.bf16.mxu0 0
        %2433 = vmatpush1.bf16.msra.mxu0 0
        %2434 = vmatprep.subr.bf16.mxu0 0
        %2435 = vmatpush1.bf16.msra.mxu0 0
        %2436 = vmatprep.subr.bf16.mxu0 0
        %2437 = vmatpush1.bf16.msra.mxu0 0
        %2438 = vmatprep.subr.bf16.mxu0 0
        %2439 = vmatpush1.bf16.msra.mxu0 0
        %2440 = vmatprep.subr.bf16.mxu0 0
        %2441 = vmatpush1.bf16.msra.mxu0 %v2406
        %2442 = vmatprep.subr.bf16.mxu0 0
        %2443 = vmatpush1.bf16.msra.mxu0 %v2405
        %2444 = vmatprep.subr.bf16.mxu0 0
        %2445 = vmatpush1.bf16.msra.mxu0 %v2404
        %2446 = vmatprep.subr.bf16.mxu0 0
        %2447 = vmatpush1.bf16.msra.mxu0 %v2403
        %2448 = vmatprep.subr.bf16.mxu0 0
        %2449 = vmatpush2.bf16.msra.mxu0 0
        %2450 = vmatprep.subr.bf16.mxu0 0
        %2451 = vmatpush2.bf16.msra.mxu0 0
        %2452 = vmatprep.subr.bf16.mxu0 0
        %2453 = vmatpush2.bf16.msra.mxu0 0
        %2454 = vmatprep.subr.bf16.mxu0 0
        %2455 = vmatpush2.bf16.msra.mxu0 0
        %2456 = vmatprep.subr.bf16.mxu0 0
        %2457 = vmatpush2.bf16.msra.mxu0 0
        %2458 = vmatprep.subr.bf16.mxu0 0
        %2459 = vmatpush2.bf16.msra.mxu0 0
        %2460 = vmatprep.subr.bf16.mxu0 0
        %2461 = vmatpush2.bf16.msra.mxu0 0
        %2462 = vmatprep.subr.bf16.mxu0 0
        %2463 = vmatpush2.bf16.msra.mxu0 0
        %2464 = vmatprep.mubr.bf16.mxu0 0
        %2465 = vmatmul.mubr.bf16.gmra.mxu0 %v2412
        %v2466 = vpop.f32.mrf.mxu0
        %v2467 = vpop.f32.mrf.mxu0
        %v2468 = vpop.f32.mrf.mxu0
        %v2469 = vadd.f32 %v2338, %v2468
        %v2470 = vpop.f32.mrf.mxu0
        %2471 = vmatprep.mubr.bf16.mxu0 0
        %2472 = vmatmul.mubr.bf16.gmra.mxu0 %v2415
        %v2473 = vpop.f32.mrf.mxu0
        %v2474 = vadd.f32 %v2343, %v2473
        %v2475 = vpop.f32.mrf.mxu0
        %v2476 = vpop.f32.mrf.mxu0
        %v2477 = vadd.f32 %v2346, %v2476
        %v2478 = vpop.f32.mrf.mxu0
        %2479 = vmatprep.mubr.bf16.mxu0 0
        %2480 = vmatmul.mubr.bf16.gmra.mxu0 %v2418
        %v2481 = vpop.f32.mrf.mxu0
        %v2482 = vadd.f32 %v2351, %v2481
        %v2483 = vpop.f32.mrf.mxu0
        %v2484 = vpop.f32.mrf.mxu0
        %v2485 = vadd.f32 %v2354, %v2484
        %v2486 = vpop.f32.mrf.mxu0
        %2487 = vmatprep.mubr.bf16.mxu0 0
        %2488 = vmatmul.mubr.bf16.gmra.mxu0 %v2421
        %v2489 = vpop.f32.mrf.mxu0
        %v2490 = vadd.f32 %v2359, %v2489
        %v2491 = vpop.f32.mrf.mxu0
        %v2492 = vpop.f32.mrf.mxu0
        %v2493 = vadd.f32 %v2362, %v2492
        %v2494 = vpop.f32.mrf.mxu0
        %2495 = vmatprep.mubr.bf16.mxu0 0
        %2496 = vmatmul.mubr.bf16.gmra.mxu0 %v2424
        %v2497 = vpop.f32.mrf.mxu0
        %v2498 = vadd.f32 %v2367, %v2497
        %v2499 = vpop.f32.mrf.mxu0
        %v2500 = vpop.f32.mrf.mxu0
        %v2501 = vadd.f32 %v2370, %v2500
        %v2502 = vpop.f32.mrf.mxu0
        %2503 = vmatprep.mubr.bf16.mxu0 0
        %2504 = vmatmul.mubr.bf16.gmra.mxu0 %v2427
        %v2505 = vpop.f32.mrf.mxu0
        %v2506 = vadd.f32 %v2375, %v2505
        %v2507 = vpop.f32.mrf.mxu0
        %v2508 = vpop.f32.mrf.mxu0
        %v2509 = vadd.f32 %v2378, %v2508
        %v2510 = vpop.f32.mrf.mxu0
        %2511 = vmatprep.mubr.bf16.mxu0 0
        %2512 = vmatmul.mubr.bf16.gmra.mxu0 %v2430
        %v2513 = vpop.f32.mrf.mxu0
        %v2514 = vpop.f32.mrf.mxu0
        %v2515 = vpop.f32.mrf.mxu0
        %v2516 = vpop.f32.mrf.mxu0
        %2517 = vdwg.mxu0
        %v2518 = vld [vmem:[#allocation2 + $0x2] sm:$0xff]
        %v2519 = vld [vmem:[#allocation2 + $0xa] sm:$0xff]
        %v2520 = vld [vmem:[#allocation2 + $0x12] sm:$0xff]
        %v2521 = vld [vmem:[#allocation2 + $0x1a] sm:$0xff]
        %v2522 = vld [vmem:[#allocation2 + $0x22] sm:$0xff]
        %v2523 = vld [vmem:[#allocation2 + $0x2a] sm:$0xff]
        %v2524 = vld [vmem:[#allocation2 + $0x32] sm:$0xff]
        %v2525 = vld [vmem:[#allocation2 + $0x3a] sm:$0xff]
        %v2526 = vld [vmem:[#allocation2 + $0x42] sm:$0xff]
        %v2527 = vld [vmem:[#allocation2 + $0x4a] sm:$0xff]
        %v2528 = vld [vmem:[#allocation2 + $0x52] sm:$0xff]
        %v2529 = vld [vmem:[#allocation2 + $0x5a] sm:$0xff]
        %v2530 = vld [vmem:[#allocation2 + $0x62] sm:$0xf]
        %v2531 = vpack.c.bf16 %v2519, %v2518
        %v2532 = vpack.c.bf16 %v2521, %v2520
        %v2533 = vpack.c.bf16 %v2523, %v2522
        %v2534 = vpack.c.bf16 %v2525, %v2524
        %v2535 = vpack.c.bf16 %v2527, %v2526
        %v2536 = vpack.c.bf16 %v2529, %v2528
        %v2537 = vpack.c.bf16 %v2530, %v2530
        %v2538 = vld [vmem:[%s3 + $0x40] sm:$0xf]
        %v2539 = vld [vmem:[%s3 + $0x44] sm:$0xf]
        %v2540 = vld [vmem:[%s3 + $0x48] sm:$0xf]
        %v2541 = vld [vmem:[%s3 + $0x4c] sm:$0xf]
        %v2542 = vld [vmem:[%s3 + $0x50] sm:$0xf]
        %v2543 = vld [vmem:[%s3 + $0x54] sm:$0xf]
        %v2544 = vld [vmem:[%s3 + $0x58] sm:$0xf]
        %v2545 = vld [vmem:[%s3 + $0x5c] sm:$0xf]
        %v2554 = vunpack.c.l.b16 %v2538
        %v2555 = vunpack.c.l.b16 %v2539
        %v2556 = vunpack.c.l.b16 %v2540
        %v2557 = vunpack.c.l.b16 %v2541
        %v2558 = vunpack.c.l.b16 %v2542
        %v2559 = vunpack.c.l.b16 %v2543
        %v2560 = vunpack.c.l.b16 %v2544
        %v2561 = vunpack.c.l.b16 %v2545
        %v2562 = vpack.c.b16 %v2555, %v2554
        %v2563 = vpack.c.b16 %v2557, %v2556
        %v2564 = vpack.c.b16 %v2559, %v2558
        %v2565 = vpack.c.b16 %v2561, %v2560
        %v2571 = vsel %vm551, %v2531, 0
        %v2574 = vsel %vm551, %v2532, 0
        %v2577 = vsel %vm551, %v2533, 0
        %v2580 = vsel %vm551, %v2534, 0
        %v2583 = vsel %vm551, %v2535, 0
        %v2586 = vsel %vm551, %v2536, 0
        %v2589 = vsel %vm551, %v2537, 0
        %2591 = vmatprep.subr.bf16.mxu0 0
        %2592 = vmatpush1.bf16.msra.mxu0 0
        %2593 = vmatprep.subr.bf16.mxu0 0
        %2594 = vmatpush1.bf16.msra.mxu0 0
        %2595 = vmatprep.subr.bf16.mxu0 0
        %2596 = vmatpush1.bf16.msra.mxu0 0
        %2597 = vmatprep.subr.bf16.mxu0 0
        %2598 = vmatpush1.bf16.msra.mxu0 0
        %2599 = vmatprep.subr.bf16.mxu0 0
        %2600 = vmatpush1.bf16.msra.mxu0 %v2565
        %2601 = vmatprep.subr.bf16.mxu0 0
        %2602 = vmatpush1.bf16.msra.mxu0 %v2564
        %2603 = vmatprep.subr.bf16.mxu0 0
        %2604 = vmatpush1.bf16.msra.mxu0 %v2563
        %2605 = vmatprep.subr.bf16.mxu0 0
        %2606 = vmatpush1.bf16.msra.mxu0 %v2562
        %2607 = vmatprep.subr.bf16.mxu0 0
        %2608 = vmatpush2.bf16.msra.mxu0 0
        %2609 = vmatprep.subr.bf16.mxu0 0
        %2610 = vmatpush2.bf16.msra.mxu0 0
        %2611 = vmatprep.subr.bf16.mxu0 0
        %2612 = vmatpush2.bf16.msra.mxu0 0
        %2613 = vmatprep.subr.bf16.mxu0 0
        %2614 = vmatpush2.bf16.msra.mxu0 0
        %2615 = vmatprep.subr.bf16.mxu0 0
        %2616 = vmatpush2.bf16.msra.mxu0 0
        %2617 = vmatprep.subr.bf16.mxu0 0
        %2618 = vmatpush2.bf16.msra.mxu0 0
        %2619 = vmatprep.subr.bf16.mxu0 0
        %2620 = vmatpush2.bf16.msra.mxu0 0
        %2621 = vmatprep.subr.bf16.mxu0 0
        %2622 = vmatpush2.bf16.msra.mxu0 0
        %2623 = vmatprep.mubr.bf16.mxu0 0
        %2624 = vmatmul.mubr.bf16.gmra.mxu0 %v2571
        %v2625 = vpop.f32.mrf.mxu0
        %v2626 = vpop.f32.mrf.mxu0
        %v2627 = vpop.f32.mrf.mxu0
        %v2628 = vadd.f32 0.0, %v2627
        %v2629 = vpop.f32.mrf.mxu0
        %2630 = vmatprep.mubr.bf16.mxu0 0
        %2631 = vmatmul.mubr.bf16.gmra.mxu0 %v2574
        %v2632 = vpop.f32.mrf.mxu0
        %v2633 = vadd.f32 0.0, %v2632
        %v2634 = vpop.f32.mrf.mxu0
        %v2635 = vpop.f32.mrf.mxu0
        %v2636 = vadd.f32 0.0, %v2635
        %v2637 = vpop.f32.mrf.mxu0
        %2638 = vmatprep.mubr.bf16.mxu0 0
        %2639 = vmatmul.mubr.bf16.gmra.mxu0 %v2577
        %v2640 = vpop.f32.mrf.mxu0
        %v2641 = vadd.f32 0.0, %v2640
        %v2642 = vpop.f32.mrf.mxu0
        %v2643 = vpop.f32.mrf.mxu0
        %v2644 = vadd.f32 0.0, %v2643
        %v2645 = vpop.f32.mrf.mxu0
        %2646 = vmatprep.mubr.bf16.mxu0 0
        %2647 = vmatmul.mubr.bf16.gmra.mxu0 %v2580
        %v2648 = vpop.f32.mrf.mxu0
        %v2649 = vadd.f32 0.0, %v2648
        %v2650 = vpop.f32.mrf.mxu0
        %v2651 = vpop.f32.mrf.mxu0
        %v2652 = vadd.f32 0.0, %v2651
        %v2653 = vpop.f32.mrf.mxu0
        %2654 = vmatprep.mubr.bf16.mxu0 0
        %2655 = vmatmul.mubr.bf16.gmra.mxu0 %v2583
        %v2656 = vpop.f32.mrf.mxu0
        %v2657 = vadd.f32 0.0, %v2656
        %v2658 = vpop.f32.mrf.mxu0
        %v2659 = vpop.f32.mrf.mxu0
        %v2660 = vadd.f32 0.0, %v2659
        %v2661 = vpop.f32.mrf.mxu0
        %2662 = vmatprep.mubr.bf16.mxu0 0
        %2663 = vmatmul.mubr.bf16.gmra.mxu0 %v2586
        %v2664 = vpop.f32.mrf.mxu0
        %v2665 = vadd.f32 0.0, %v2664
        %v2666 = vpop.f32.mrf.mxu0
        %v2667 = vpop.f32.mrf.mxu0
        %v2668 = vadd.f32 0.0, %v2667
        %v2669 = vpop.f32.mrf.mxu0
        %2670 = vmatprep.mubr.bf16.mxu0 0
        %2671 = vmatmul.mubr.bf16.gmra.mxu0 %v2589
        %v2672 = vpop.f32.mrf.mxu0
        %v2673 = vpop.f32.mrf.mxu0
        %v2674 = vpop.f32.mrf.mxu0
        %v2675 = vpop.f32.mrf.mxu0
        %2676 = vdwg.mxu0
        %v2677 = vadd.f32 %v2469, %v2628
        %v2678 = vadd.f32 %v2474, %v2633
        %v2679 = vadd.f32 %v2477, %v2636
        %v2680 = vadd.f32 %v2482, %v2641
        %v2681 = vadd.f32 %v2485, %v2644
        %v2682 = vadd.f32 %v2490, %v2649
        %v2683 = vadd.f32 %v2493, %v2652
        %v2684 = vadd.f32 %v2498, %v2657
        %v2685 = vadd.f32 %v2501, %v2660
        %v2686 = vadd.f32 %v2506, %v2665
        %v2687 = vadd.f32 %v2509, %v2668
        %v2688 = vld [vmem:[#allocation2 + $0xa] sm:$0xff]
        %v2689 = vld [vmem:[#allocation2 + $0x12] sm:$0xff]
        %v2690 = vld [vmem:[#allocation2 + $0x1a] sm:$0xff]
        %v2691 = vld [vmem:[#allocation2 + $0x22] sm:$0xff]
        %v2692 = vld [vmem:[#allocation2 + $0x2a] sm:$0xff]
        %v2693 = vld [vmem:[#allocation2 + $0x32] sm:$0xff]
        %v2694 = vld [vmem:[#allocation2 + $0x3a] sm:$0xff]
        %v2695 = vld [vmem:[#allocation2 + $0x42] sm:$0xff]
        %v2696 = vld [vmem:[#allocation2 + $0x4a] sm:$0xff]
        %v2697 = vld [vmem:[#allocation2 + $0x52] sm:$0xff]
        %v2698 = vld [vmem:[#allocation2 + $0x5a] sm:$0xff]
        %v2699 = vld [vmem:[#allocation2 + $0x62] sm:$0xff]
        %v2700 = vld [vmem:[#allocation2 + $0x6a] sm:$0xf]
        %v2701 = vpack.c.bf16 %v2689, %v2688
        %v2702 = vpack.c.bf16 %v2691, %v2690
        %v2703 = vpack.c.bf16 %v2693, %v2692
        %v2704 = vpack.c.bf16 %v2695, %v2694
        %v2705 = vpack.c.bf16 %v2697, %v2696
        %v2706 = vpack.c.bf16 %v2699, %v2698
        %v2707 = vpack.c.bf16 %v2700, %v2700
        %v2708 = vld [vmem:[%s3 + $0x60] sm:$0xf]
        %v2709 = vld [vmem:[%s3 + $0x64] sm:$0xf]
        %v2710 = vld [vmem:[%s3 + $0x68] sm:$0xf]
        %v2711 = vld [vmem:[%s3 + $0x6c] sm:$0xf]
        %v2712 = vld [vmem:[%s3 + $0x70] sm:$0xf]
        %v2713 = vld [vmem:[%s3 + $0x74] sm:$0xf]
        %v2714 = vld [vmem:[%s3 + $0x78] sm:$0xf]
        %v2715 = vld [vmem:[%s3 + $0x7c] sm:$0xf]
        %v2724 = vunpack.c.l.b16 %v2708
        %v2725 = vunpack.c.l.b16 %v2709
        %v2726 = vunpack.c.l.b16 %v2710
        %v2727 = vunpack.c.l.b16 %v2711
        %v2728 = vunpack.c.l.b16 %v2712
        %v2729 = vunpack.c.l.b16 %v2713
        %v2730 = vunpack.c.l.b16 %v2714
        %v2731 = vunpack.c.l.b16 %v2715
        %v2732 = vpack.c.b16 %v2725, %v2724
        %v2733 = vpack.c.b16 %v2727, %v2726
        %v2734 = vpack.c.b16 %v2729, %v2728
        %v2735 = vpack.c.b16 %v2731, %v2730
        %v2741 = vsel %vm551, %v2701, 0
        %v2744 = vsel %vm551, %v2702, 0
        %v2747 = vsel %vm551, %v2703, 0
        %v2750 = vsel %vm551, %v2704, 0
        %v2753 = vsel %vm551, %v2705, 0
        %v2756 = vsel %vm551, %v2706, 0
        %v2759 = vsel %vm551, %v2707, 0
        %2761 = vmatprep.subr.bf16.mxu0 0
        %2762 = vmatpush1.bf16.msra.mxu0 0
        %2763 = vmatprep.subr.bf16.mxu0 0
        %2764 = vmatpush1.bf16.msra.mxu0 0
        %2765 = vmatprep.subr.bf16.mxu0 0
        %2766 = vmatpush1.bf16.msra.mxu0 0
        %2767 = vmatprep.subr.bf16.mxu0 0
        %2768 = vmatpush1.bf16.msra.mxu0 0
        %2769 = vmatprep.subr.bf16.mxu0 0
        %2770 = vmatpush1.bf16.msra.mxu0 %v2735
        %2771 = vmatprep.subr.bf16.mxu0 0
        %2772 = vmatpush1.bf16.msra.mxu0 %v2734
        %2773 = vmatprep.subr.bf16.mxu0 0
        %2774 = vmatpush1.bf16.msra.mxu0 %v2733
        %2775 = vmatprep.subr.bf16.mxu0 0
        %2776 = vmatpush1.bf16.msra.mxu0 %v2732
        %2777 = vmatprep.subr.bf16.mxu0 0
        %2778 = vmatpush2.bf16.msra.mxu0 0
        %2779 = vmatprep.subr.bf16.mxu0 0
        %2780 = vmatpush2.bf16.msra.mxu0 0
        %2781 = vmatprep.subr.bf16.mxu0 0
        %2782 = vmatpush2.bf16.msra.mxu0 0
        %2783 = vmatprep.subr.bf16.mxu0 0
        %2784 = vmatpush2.bf16.msra.mxu0 0
        %2785 = vmatprep.subr.bf16.mxu0 0
        %2786 = vmatpush2.bf16.msra.mxu0 0
        %2787 = vmatprep.subr.bf16.mxu0 0
        %2788 = vmatpush2.bf16.msra.mxu0 0
        %2789 = vmatprep.subr.bf16.mxu0 0
        %2790 = vmatpush2.bf16.msra.mxu0 0
        %2791 = vmatprep.subr.bf16.mxu0 0
        %2792 = vmatpush2.bf16.msra.mxu0 0
        %2793 = vmatprep.mubr.bf16.mxu0 0
        %2794 = vmatmul.mubr.bf16.gmra.mxu0 %v2741
        %v2795 = vpop.f32.mrf.mxu0
        %v2796 = vpop.f32.mrf.mxu0
        %v2797 = vpop.f32.mrf.mxu0
        %v2798 = vadd.f32 0.0, %v2797
        %v2799 = vpop.f32.mrf.mxu0
        %2800 = vmatprep.mubr.bf16.mxu0 0
        %2801 = vmatmul.mubr.bf16.gmra.mxu0 %v2744
        %v2802 = vpop.f32.mrf.mxu0
        %v2803 = vadd.f32 0.0, %v2802
        %v2804 = vpop.f32.mrf.mxu0
        %v2805 = vpop.f32.mrf.mxu0
        %v2806 = vadd.f32 0.0, %v2805
        %v2807 = vpop.f32.mrf.mxu0
        %2808 = vmatprep.mubr.bf16.mxu0 0
        %2809 = vmatmul.mubr.bf16.gmra.mxu0 %v2747
        %v2810 = vpop.f32.mrf.mxu0
        %v2811 = vadd.f32 0.0, %v2810
        %v2812 = vpop.f32.mrf.mxu0
        %v2813 = vpop.f32.mrf.mxu0
        %v2814 = vadd.f32 0.0, %v2813
        %v2815 = vpop.f32.mrf.mxu0
        %2816 = vmatprep.mubr.bf16.mxu0 0
        %2817 = vmatmul.mubr.bf16.gmra.mxu0 %v2750
        %v2818 = vpop.f32.mrf.mxu0
        %v2819 = vadd.f32 0.0, %v2818
        %v2820 = vpop.f32.mrf.mxu0
        %v2821 = vpop.f32.mrf.mxu0
        %v2822 = vadd.f32 0.0, %v2821
        %v2823 = vpop.f32.mrf.mxu0
        %2824 = vmatprep.mubr.bf16.mxu0 0
        %2825 = vmatmul.mubr.bf16.gmra.mxu0 %v2753
        %v2826 = vpop.f32.mrf.mxu0
        %v2827 = vadd.f32 0.0, %v2826
        %v2828 = vpop.f32.mrf.mxu0
        %v2829 = vpop.f32.mrf.mxu0
        %v2830 = vadd.f32 0.0, %v2829
        %v2831 = vpop.f32.mrf.mxu0
        %2832 = vmatprep.mubr.bf16.mxu0 0
        %2833 = vmatmul.mubr.bf16.gmra.mxu0 %v2756
        %v2834 = vpop.f32.mrf.mxu0
        %v2835 = vadd.f32 0.0, %v2834
        %v2836 = vpop.f32.mrf.mxu0
        %v2837 = vpop.f32.mrf.mxu0
        %v2838 = vadd.f32 0.0, %v2837
        %v2839 = vpop.f32.mrf.mxu0
        %2840 = vmatprep.mubr.bf16.mxu0 0
        %2841 = vmatmul.mubr.bf16.gmra.mxu0 %v2759
        %v2842 = vpop.f32.mrf.mxu0
        %v2843 = vpop.f32.mrf.mxu0
        %v2844 = vpop.f32.mrf.mxu0
        %v2845 = vpop.f32.mrf.mxu0
        %2846 = vdwg.mxu0
        %v2847 = vadd.f32 %v2677, %v2798
        %v2848 = vadd.f32 %v2678, %v2803
        %v2849 = vadd.f32 %v2679, %v2806
        %v2850 = vadd.f32 %v2680, %v2811
        %v2851 = vadd.f32 %v2681, %v2814
        %v2852 = vadd.f32 %v2682, %v2819
        %v2853 = vadd.f32 %v2683, %v2822
        %v2854 = vadd.f32 %v2684, %v2827
        %v2855 = vadd.f32 %v2685, %v2830
        %v2856 = vadd.f32 %v2686, %v2835
        %v2857 = vadd.f32 %v2687, %v2838
        %v2858 = vld [vmem:[#allocation2 + $0xb] sm:$0xff]
        %v2859 = vld [vmem:[#allocation2 + $0x13] sm:$0xff]
        %v2860 = vld [vmem:[#allocation2 + $0x1b] sm:$0xff]
        %v2861 = vld [vmem:[#allocation2 + $0x23] sm:$0xff]
        %v2862 = vld [vmem:[#allocation2 + $0x2b] sm:$0xff]
        %v2863 = vld [vmem:[#allocation2 + $0x33] sm:$0xff]
        %v2864 = vld [vmem:[#allocation2 + $0x3b] sm:$0xff]
        %v2865 = vld [vmem:[#allocation2 + $0x43] sm:$0xff]
        %v2866 = vld [vmem:[#allocation2 + $0x4b] sm:$0xff]
        %v2867 = vld [vmem:[#allocation2 + $0x53] sm:$0xff]
        %v2868 = vld [vmem:[#allocation2 + $0x5b] sm:$0xff]
        %v2869 = vld [vmem:[#allocation2 + $0x63] sm:$0xff]
        %v2870 = vld [vmem:[#allocation2 + $0x6b] sm:$0xf]
        %v2871 = vpack.c.bf16 %v2859, %v2858
        %v2872 = vpack.c.bf16 %v2861, %v2860
        %v2873 = vpack.c.bf16 %v2863, %v2862
        %v2874 = vpack.c.bf16 %v2865, %v2864
        %v2875 = vpack.c.bf16 %v2867, %v2866
        %v2876 = vpack.c.bf16 %v2869, %v2868
        %v2877 = vpack.c.bf16 %v2870, %v2870
        %v2878 = vld [vmem:[%s3 + $0x80] sm:$0xf]
        %v2879 = vld [vmem:[%s3 + $0x84] sm:$0xf]
        %v2880 = vld [vmem:[%s3 + $0x88] sm:$0xf]
        %v2881 = vld [vmem:[%s3 + $0x8c] sm:$0xf]
        %v2882 = vld [vmem:[%s3 + $0x90] sm:$0xf]
        %v2883 = vld [vmem:[%s3 + $0x94] sm:$0xf]
        %v2884 = vld [vmem:[%s3 + $0x98] sm:$0xf]
        %v2885 = vld [vmem:[%s3 + $0x9c] sm:$0xf]
        %v2894 = vunpack.c.l.b16 %v2878
        %v2895 = vunpack.c.l.b16 %v2879
        %v2896 = vunpack.c.l.b16 %v2880
        %v2897 = vunpack.c.l.b16 %v2881
        %v2898 = vunpack.c.l.b16 %v2882
        %v2899 = vunpack.c.l.b16 %v2883
        %v2900 = vunpack.c.l.b16 %v2884
        %v2901 = vunpack.c.l.b16 %v2885
        %v2902 = vpack.c.b16 %v2895, %v2894
        %v2903 = vpack.c.b16 %v2897, %v2896
        %v2904 = vpack.c.b16 %v2899, %v2898
        %v2905 = vpack.c.b16 %v2901, %v2900
        %v2911 = vsel %vm551, %v2871, 0
        %v2914 = vsel %vm551, %v2872, 0
        %v2917 = vsel %vm551, %v2873, 0
        %v2920 = vsel %vm551, %v2874, 0
        %v2923 = vsel %vm551, %v2875, 0
        %v2926 = vsel %vm551, %v2876, 0
        %v2929 = vsel %vm551, %v2877, 0
        %2931 = vmatprep.subr.bf16.mxu0 0
        %2932 = vmatpush1.bf16.msra.mxu0 0
        %2933 = vmatprep.subr.bf16.mxu0 0
        %2934 = vmatpush1.bf16.msra.mxu0 0
        %2935 = vmatprep.subr.bf16.mxu0 0
        %2936 = vmatpush1.bf16.msra.mxu0 0
        %2937 = vmatprep.subr.bf16.mxu0 0
        %2938 = vmatpush1.bf16.msra.mxu0 0
        %2939 = vmatprep.subr.bf16.mxu0 0
        %2940 = vmatpush1.bf16.msra.mxu0 %v2905
        %2941 = vmatprep.subr.bf16.mxu0 0
        %2942 = vmatpush1.bf16.msra.mxu0 %v2904
        %2943 = vmatprep.subr.bf16.mxu0 0
        %2944 = vmatpush1.bf16.msra.mxu0 %v2903
        %2945 = vmatprep.subr.bf16.mxu0 0
        %2946 = vmatpush1.bf16.msra.mxu0 %v2902
        %2947 = vmatprep.subr.bf16.mxu0 0
        %2948 = vmatpush2.bf16.msra.mxu0 0
        %2949 = vmatprep.subr.bf16.mxu0 0
        %2950 = vmatpush2.bf16.msra.mxu0 0
        %2951 = vmatprep.subr.bf16.mxu0 0
        %2952 = vmatpush2.bf16.msra.mxu0 0
        %2953 = vmatprep.subr.bf16.mxu0 0
        %2954 = vmatpush2.bf16.msra.mxu0 0
        %2955 = vmatprep.subr.bf16.mxu0 0
        %2956 = vmatpush2.bf16.msra.mxu0 0
        %2957 = vmatprep.subr.bf16.mxu0 0
        %2958 = vmatpush2.bf16.msra.mxu0 0
        %2959 = vmatprep.subr.bf16.mxu0 0
        %2960 = vmatpush2.bf16.msra.mxu0 0
        %2961 = vmatprep.subr.bf16.mxu0 0
        %2962 = vmatpush2.bf16.msra.mxu0 0
        %2963 = vmatprep.mubr.bf16.mxu0 0
        %2964 = vmatmul.mubr.bf16.gmra.mxu0 %v2911
        %v2965 = vpop.f32.mrf.mxu0
        %v2966 = vpop.f32.mrf.mxu0
        %v2967 = vpop.f32.mrf.mxu0
        %v2968 = vadd.f32 0.0, %v2967
        %v2969 = vpop.f32.mrf.mxu0
        %2970 = vmatprep.mubr.bf16.mxu0 0
        %2971 = vmatmul.mubr.bf16.gmra.mxu0 %v2914
        %v2972 = vpop.f32.mrf.mxu0
        %v2973 = vadd.f32 0.0, %v2972
        %v2974 = vpop.f32.mrf.mxu0
        %v2975 = vpop.f32.mrf.mxu0
        %v2976 = vadd.f32 0.0, %v2975
        %v2977 = vpop.f32.mrf.mxu0
        %2978 = vmatprep.mubr.bf16.mxu0 0
        %2979 = vmatmul.mubr.bf16.gmra.mxu0 %v2917
        %v2980 = vpop.f32.mrf.mxu0
        %v2981 = vadd.f32 0.0, %v2980
        %v2982 = vpop.f32.mrf.mxu0
        %v2983 = vpop.f32.mrf.mxu0
        %v2984 = vadd.f32 0.0, %v2983
        %v2985 = vpop.f32.mrf.mxu0
        %2986 = vmatprep.mubr.bf16.mxu0 0
        %2987 = vmatmul.mubr.bf16.gmra.mxu0 %v2920
        %v2988 = vpop.f32.mrf.mxu0
        %v2989 = vadd.f32 0.0, %v2988
        %v2990 = vpop.f32.mrf.mxu0
        %v2991 = vpop.f32.mrf.mxu0
        %v2992 = vadd.f32 0.0, %v2991
        %v2993 = vpop.f32.mrf.mxu0
        %2994 = vmatprep.mubr.bf16.mxu0 0
        %2995 = vmatmul.mubr.bf16.gmra.mxu0 %v2923
        %v2996 = vpop.f32.mrf.mxu0
        %v2997 = vadd.f32 0.0, %v2996
        %v2998 = vpop.f32.mrf.mxu0
        %v2999 = vpop.f32.mrf.mxu0
        %v3000 = vadd.f32 0.0, %v2999
        %v3001 = vpop.f32.mrf.mxu0
        %3002 = vmatprep.mubr.bf16.mxu0 0
        %3003 = vmatmul.mubr.bf16.gmra.mxu0 %v2926
        %v3004 = vpop.f32.mrf.mxu0
        %v3005 = vadd.f32 0.0, %v3004
        %v3006 = vpop.f32.mrf.mxu0
        %v3007 = vpop.f32.mrf.mxu0
        %v3008 = vadd.f32 0.0, %v3007
        %v3009 = vpop.f32.mrf.mxu0
        %3010 = vmatprep.mubr.bf16.mxu0 0
        %3011 = vmatmul.mubr.bf16.gmra.mxu0 %v2929
        %v3012 = vpop.f32.mrf.mxu0
        %v3013 = vpop.f32.mrf.mxu0
        %v3014 = vpop.f32.mrf.mxu0
        %v3015 = vpop.f32.mrf.mxu0
        %3016 = vdwg.mxu0
        %v3017 = vadd.f32 %v2847, %v2968
        %v3018 = vadd.f32 %v2848, %v2973
        %v3019 = vadd.f32 %v2849, %v2976
        %v3020 = vadd.f32 %v2850, %v2981
        %v3021 = vadd.f32 %v2851, %v2984
        %v3022 = vadd.f32 %v2852, %v2989
        %v3023 = vadd.f32 %v2853, %v2992
        %v3024 = vadd.f32 %v2854, %v2997
        %v3025 = vadd.f32 %v2855, %v3000
        %v3026 = vadd.f32 %v2856, %v3005
        %v3027 = vadd.f32 %v2857, %v3008
        %v3028 = vld [vmem:[#allocation2 + $0xc] sm:$0xff]
        %v3029 = vld [vmem:[#allocation2 + $0x14] sm:$0xff]
        %v3030 = vld [vmem:[#allocation2 + $0x1c] sm:$0xff]
        %v3031 = vld [vmem:[#allocation2 + $0x24] sm:$0xff]
        %v3032 = vld [vmem:[#allocation2 + $0x2c] sm:$0xff]
        %v3033 = vld [vmem:[#allocation2 + $0x34] sm:$0xff]
        %v3034 = vld [vmem:[#allocation2 + $0x3c] sm:$0xff]
        %v3035 = vld [vmem:[#allocation2 + $0x44] sm:$0xff]
        %v3036 = vld [vmem:[#allocation2 + $0x4c] sm:$0xff]
        %v3037 = vld [vmem:[#allocation2 + $0x54] sm:$0xff]
        %v3038 = vld [vmem:[#allocation2 + $0x5c] sm:$0xff]
        %v3039 = vld [vmem:[#allocation2 + $0x64] sm:$0xff]
        %v3040 = vld [vmem:[#allocation2 + $0x6c] sm:$0xf]
        %v3041 = vpack.c.bf16 %v3029, %v3028
        %v3042 = vpack.c.bf16 %v3031, %v3030
        %v3043 = vpack.c.bf16 %v3033, %v3032
        %v3044 = vpack.c.bf16 %v3035, %v3034
        %v3045 = vpack.c.bf16 %v3037, %v3036
        %v3046 = vpack.c.bf16 %v3039, %v3038
        %v3047 = vpack.c.bf16 %v3040, %v3040
        %v3048 = vld [vmem:[%s3 + $0xa0] sm:$0xf]
        %v3049 = vld [vmem:[%s3 + $0xa4] sm:$0xf]
        %v3050 = vld [vmem:[%s3 + $0xa8] sm:$0xf]
        %v3051 = vld [vmem:[%s3 + $0xac] sm:$0xf]
        %v3052 = vld [vmem:[%s3 + $0xb0] sm:$0xf]
        %v3053 = vld [vmem:[%s3 + $0xb4] sm:$0xf]
        %v3054 = vld [vmem:[%s3 + $0xb8] sm:$0xf]
        %v3055 = vld [vmem:[%s3 + $0xbc] sm:$0xf]
        %v3064 = vunpack.c.l.b16 %v3048
        %v3065 = vunpack.c.l.b16 %v3049
        %v3066 = vunpack.c.l.b16 %v3050
        %v3067 = vunpack.c.l.b16 %v3051
        %v3068 = vunpack.c.l.b16 %v3052
        %v3069 = vunpack.c.l.b16 %v3053
        %v3070 = vunpack.c.l.b16 %v3054
        %v3071 = vunpack.c.l.b16 %v3055
        %v3072 = vpack.c.b16 %v3065, %v3064
        %v3073 = vpack.c.b16 %v3067, %v3066
        %v3074 = vpack.c.b16 %v3069, %v3068
        %v3075 = vpack.c.b16 %v3071, %v3070
        %v3081 = vsel %vm551, %v3041, 0
        %v3084 = vsel %vm551, %v3042, 0
        %v3087 = vsel %vm551, %v3043, 0
        %v3090 = vsel %vm551, %v3044, 0
        %v3093 = vsel %vm551, %v3045, 0
        %v3096 = vsel %vm551, %v3046, 0
        %v3099 = vsel %vm551, %v3047, 0
        %3101 = vmatprep.subr.bf16.mxu0 0
        %3102 = vmatpush1.bf16.msra.mxu0 0
        %3103 = vmatprep.subr.bf16.mxu0 0
        %3104 = vmatpush1.bf16.msra.mxu0 0
        %3105 = vmatprep.subr.bf16.mxu0 0
        %3106 = vmatpush1.bf16.msra.mxu0 0
        %3107 = vmatprep.subr.bf16.mxu0 0
        %3108 = vmatpush1.bf16.msra.mxu0 0
        %3109 = vmatprep.subr.bf16.mxu0 0
        %3110 = vmatpush1.bf16.msra.mxu0 %v3075
        %3111 = vmatprep.subr.bf16.mxu0 0
        %3112 = vmatpush1.bf16.msra.mxu0 %v3074
        %3113 = vmatprep.subr.bf16.mxu0 0
        %3114 = vmatpush1.bf16.msra.mxu0 %v3073
        %3115 = vmatprep.subr.bf16.mxu0 0
        %3116 = vmatpush1.bf16.msra.mxu0 %v3072
        %3117 = vmatprep.subr.bf16.mxu0 0
        %3118 = vmatpush2.bf16.msra.mxu0 0
        %3119 = vmatprep.subr.bf16.mxu0 0
        %3120 = vmatpush2.bf16.msra.mxu0 0
        %3121 = vmatprep.subr.bf16.mxu0 0
        %3122 = vmatpush2.bf16.msra.mxu0 0
        %3123 = vmatprep.subr.bf16.mxu0 0
        %3124 = vmatpush2.bf16.msra.mxu0 0
        %3125 = vmatprep.subr.bf16.mxu0 0
        %3126 = vmatpush2.bf16.msra.mxu0 0
        %3127 = vmatprep.subr.bf16.mxu0 0
        %3128 = vmatpush2.bf16.msra.mxu0 0
        %3129 = vmatprep.subr.bf16.mxu0 0
        %3130 = vmatpush2.bf16.msra.mxu0 0
        %3131 = vmatprep.subr.bf16.mxu0 0
        %3132 = vmatpush2.bf16.msra.mxu0 0
        %3133 = vmatprep.mubr.bf16.mxu0 0
        %3134 = vmatmul.mubr.bf16.gmra.mxu0 %v3081
        %v3135 = vpop.f32.mrf.mxu0
        %v3136 = vpop.f32.mrf.mxu0
        %v3137 = vpop.f32.mrf.mxu0
        %v3138 = vadd.f32 0.0, %v3137
        %v3139 = vpop.f32.mrf.mxu0
        %3140 = vmatprep.mubr.bf16.mxu0 0
        %3141 = vmatmul.mubr.bf16.gmra.mxu0 %v3084
        %v3142 = vpop.f32.mrf.mxu0
        %v3143 = vadd.f32 0.0, %v3142
        %v3144 = vpop.f32.mrf.mxu0
        %v3145 = vpop.f32.mrf.mxu0
        %v3146 = vadd.f32 0.0, %v3145
        %v3147 = vpop.f32.mrf.mxu0
        %3148 = vmatprep.mubr.bf16.mxu0 0
        %3149 = vmatmul.mubr.bf16.gmra.mxu0 %v3087
        %v3150 = vpop.f32.mrf.mxu0
        %v3151 = vadd.f32 0.0, %v3150
        %v3152 = vpop.f32.mrf.mxu0
        %v3153 = vpop.f32.mrf.mxu0
        %v3154 = vadd.f32 0.0, %v3153
        %v3155 = vpop.f32.mrf.mxu0
        %3156 = vmatprep.mubr.bf16.mxu0 0
        %3157 = vmatmul.mubr.bf16.gmra.mxu0 %v3090
        %v3158 = vpop.f32.mrf.mxu0
        %v3159 = vadd.f32 0.0, %v3158
        %v3160 = vpop.f32.mrf.mxu0
        %v3161 = vpop.f32.mrf.mxu0
        %v3162 = vadd.f32 0.0, %v3161
        %v3163 = vpop.f32.mrf.mxu0
        %3164 = vmatprep.mubr.bf16.mxu0 0
        %3165 = vmatmul.mubr.bf16.gmra.mxu0 %v3093
        %v3166 = vpop.f32.mrf.mxu0
        %v3167 = vadd.f32 0.0, %v3166
        %v3168 = vpop.f32.mrf.mxu0
        %v3169 = vpop.f32.mrf.mxu0
        %v3170 = vadd.f32 0.0, %v3169
        %v3171 = vpop.f32.mrf.mxu0
        %3172 = vmatprep.mubr.bf16.mxu0 0
        %3173 = vmatmul.mubr.bf16.gmra.mxu0 %v3096
        %v3174 = vpop.f32.mrf.mxu0
        %v3175 = vadd.f32 0.0, %v3174
        %v3176 = vpop.f32.mrf.mxu0
        %v3177 = vpop.f32.mrf.mxu0
        %v3178 = vadd.f32 0.0, %v3177
        %v3179 = vpop.f32.mrf.mxu0
        %3180 = vmatprep.mubr.bf16.mxu0 0
        %3181 = vmatmul.mubr.bf16.gmra.mxu0 %v3099
        %v3182 = vpop.f32.mrf.mxu0
        %v3183 = vpop.f32.mrf.mxu0
        %v3184 = vpop.f32.mrf.mxu0
        %v3185 = vpop.f32.mrf.mxu0
        %3186 = vdwg.mxu0
        %v3187 = vadd.f32 %v3017, %v3138
        %v3188 = vadd.f32 %v3018, %v3143
        %v3189 = vadd.f32 %v3019, %v3146
        %v3190 = vadd.f32 %v3020, %v3151
        %v3191 = vadd.f32 %v3021, %v3154
        %v3192 = vadd.f32 %v3022, %v3159
        %v3193 = vadd.f32 %v3023, %v3162
        %v3194 = vadd.f32 %v3024, %v3167
        %v3195 = vadd.f32 %v3025, %v3170
        %v3196 = vadd.f32 %v3026, %v3175
        %v3197 = vadd.f32 %v3027, %v3178
        %v3198 = vld [vmem:[#allocation2 + $0x14] sm:$0xff]
        %v3199 = vld [vmem:[#allocation2 + $0x1c] sm:$0xff]
        %v3200 = vld [vmem:[#allocation2 + $0x24] sm:$0xff]
        %v3201 = vld [vmem:[#allocation2 + $0x2c] sm:$0xff]
        %v3202 = vld [vmem:[#allocation2 + $0x34] sm:$0xff]
        %v3203 = vld [vmem:[#allocation2 + $0x3c] sm:$0xff]
        %v3204 = vld [vmem:[#allocation2 + $0x44] sm:$0xff]
        %v3205 = vld [vmem:[#allocation2 + $0x4c] sm:$0xff]
        %v3206 = vld [vmem:[#allocation2 + $0x54] sm:$0xff]
        %v3207 = vld [vmem:[#allocation2 + $0x5c] sm:$0xff]
        %v3208 = vld [vmem:[#allocation2 + $0x64] sm:$0xff]
        %v3209 = vld [vmem:[#allocation2 + $0x6c] sm:$0xff]
        %v3210 = vld [vmem:[#allocation2 + $0x74] sm:$0xf]
        %v3211 = vpack.c.bf16 %v3199, %v3198
        %v3212 = vpack.c.bf16 %v3201, %v3200
        %v3213 = vpack.c.bf16 %v3203, %v3202
        %v3214 = vpack.c.bf16 %v3205, %v3204
        %v3215 = vpack.c.bf16 %v3207, %v3206
        %v3216 = vpack.c.bf16 %v3209, %v3208
        %v3217 = vpack.c.bf16 %v3210, %v3210
        %v3218 = vld [vmem:[%s3 + $0xc0] sm:$0xf]
        %v3219 = vld [vmem:[%s3 + $0xc4] sm:$0xf]
        %v3220 = vld [vmem:[%s3 + $0xc8] sm:$0xf]
        %v3221 = vld [vmem:[%s3 + $0xcc] sm:$0xf]
        %v3222 = vld [vmem:[%s3 + $0xd0] sm:$0xf]
        %v3223 = vld [vmem:[%s3 + $0xd4] sm:$0xf]
        %v3224 = vld [vmem:[%s3 + $0xd8] sm:$0xf]
        %v3225 = vld [vmem:[%s3 + $0xdc] sm:$0xf]
        %v3234 = vunpack.c.l.b16 %v3218
        %v3235 = vunpack.c.l.b16 %v3219
        %v3236 = vunpack.c.l.b16 %v3220
        %v3237 = vunpack.c.l.b16 %v3221
        %v3238 = vunpack.c.l.b16 %v3222
        %v3239 = vunpack.c.l.b16 %v3223
        %v3240 = vunpack.c.l.b16 %v3224
        %v3241 = vunpack.c.l.b16 %v3225
        %v3242 = vpack.c.b16 %v3235, %v3234
        %v3243 = vpack.c.b16 %v3237, %v3236
        %v3244 = vpack.c.b16 %v3239, %v3238
        %v3245 = vpack.c.b16 %v3241, %v3240
        %v3251 = vsel %vm551, %v3211, 0
        %v3254 = vsel %vm551, %v3212, 0
        %v3257 = vsel %vm551, %v3213, 0
        %v3260 = vsel %vm551, %v3214, 0
        %v3263 = vsel %vm551, %v3215, 0
        %v3266 = vsel %vm551, %v3216, 0
        %v3269 = vsel %vm551, %v3217, 0
        %3271 = vmatprep.subr.bf16.mxu0 0
        %3272 = vmatpush1.bf16.msra.mxu0 0
        %3273 = vmatprep.subr.bf16.mxu0 0
        %3274 = vmatpush1.bf16.msra.mxu0 0
        %3275 = vmatprep.subr.bf16.mxu0 0
        %3276 = vmatpush1.bf16.msra.mxu0 0
        %3277 = vmatprep.subr.bf16.mxu0 0
        %3278 = vmatpush1.bf16.msra.mxu0 0
        %3279 = vmatprep.subr.bf16.mxu0 0
        %3280 = vmatpush1.bf16.msra.mxu0 %v3245
        %3281 = vmatprep.subr.bf16.mxu0 0
        %3282 = vmatpush1.bf16.msra.mxu0 %v3244
        %3283 = vmatprep.subr.bf16.mxu0 0
        %3284 = vmatpush1.bf16.msra.mxu0 %v3243
        %3285 = vmatprep.subr.bf16.mxu0 0
        %3286 = vmatpush1.bf16.msra.mxu0 %v3242
        %3287 = vmatprep.subr.bf16.mxu0 0
        %3288 = vmatpush2.bf16.msra.mxu0 0
        %3289 = vmatprep.subr.bf16.mxu0 0
        %3290 = vmatpush2.bf16.msra.mxu0 0
        %3291 = vmatprep.subr.bf16.mxu0 0
        %3292 = vmatpush2.bf16.msra.mxu0 0
        %3293 = vmatprep.subr.bf16.mxu0 0
        %3294 = vmatpush2.bf16.msra.mxu0 0
        %3295 = vmatprep.subr.bf16.mxu0 0
        %3296 = vmatpush2.bf16.msra.mxu0 0
        %3297 = vmatprep.subr.bf16.mxu0 0
        %3298 = vmatpush2.bf16.msra.mxu0 0
        %3299 = vmatprep.subr.bf16.mxu0 0
        %3300 = vmatpush2.bf16.msra.mxu0 0
        %3301 = vmatprep.subr.bf16.mxu0 0
        %3302 = vmatpush2.bf16.msra.mxu0 0
        %3303 = vmatprep.mubr.bf16.mxu0 0
        %3304 = vmatmul.mubr.bf16.gmra.mxu0 %v3251
        %v3305 = vpop.f32.mrf.mxu0
        %v3306 = vpop.f32.mrf.mxu0
        %v3307 = vpop.f32.mrf.mxu0
        %v3308 = vadd.f32 0.0, %v3307
        %v3309 = vpop.f32.mrf.mxu0
        %3310 = vmatprep.mubr.bf16.mxu0 0
        %3311 = vmatmul.mubr.bf16.gmra.mxu0 %v3254
        %v3312 = vpop.f32.mrf.mxu0
        %v3313 = vadd.f32 0.0, %v3312
        %v3314 = vpop.f32.mrf.mxu0
        %v3315 = vpop.f32.mrf.mxu0
        %v3316 = vadd.f32 0.0, %v3315
        %v3317 = vpop.f32.mrf.mxu0
        %3318 = vmatprep.mubr.bf16.mxu0 0
        %3319 = vmatmul.mubr.bf16.gmra.mxu0 %v3257
        %v3320 = vpop.f32.mrf.mxu0
        %v3321 = vadd.f32 0.0, %v3320
        %v3322 = vpop.f32.mrf.mxu0
        %v3323 = vpop.f32.mrf.mxu0
        %v3324 = vadd.f32 0.0, %v3323
        %v3325 = vpop.f32.mrf.mxu0
        %3326 = vmatprep.mubr.bf16.mxu0 0
        %3327 = vmatmul.mubr.bf16.gmra.mxu0 %v3260
        %v3328 = vpop.f32.mrf.mxu0
        %v3329 = vadd.f32 0.0, %v3328
        %v3330 = vpop.f32.mrf.mxu0
        %v3331 = vpop.f32.mrf.mxu0
        %v3332 = vadd.f32 0.0, %v3331
        %v3333 = vpop.f32.mrf.mxu0
        %3334 = vmatprep.mubr.bf16.mxu0 0
        %3335 = vmatmul.mubr.bf16.gmra.mxu0 %v3263
        %v3336 = vpop.f32.mrf.mxu0
        %v3337 = vadd.f32 0.0, %v3336
        %v3338 = vpop.f32.mrf.mxu0
        %v3339 = vpop.f32.mrf.mxu0
        %v3340 = vadd.f32 0.0, %v3339
        %v3341 = vpop.f32.mrf.mxu0
        %3342 = vmatprep.mubr.bf16.mxu0 0
        %3343 = vmatmul.mubr.bf16.gmra.mxu0 %v3266
        %v3344 = vpop.f32.mrf.mxu0
        %v3345 = vadd.f32 0.0, %v3344
        %v3346 = vpop.f32.mrf.mxu0
        %v3347 = vpop.f32.mrf.mxu0
        %v3348 = vadd.f32 0.0, %v3347
        %v3349 = vpop.f32.mrf.mxu0
        %3350 = vmatprep.mubr.bf16.mxu0 0
        %3351 = vmatmul.mubr.bf16.gmra.mxu0 %v3269
        %v3352 = vpop.f32.mrf.mxu0
        %v3353 = vpop.f32.mrf.mxu0
        %v3354 = vpop.f32.mrf.mxu0
        %v3355 = vpop.f32.mrf.mxu0
        %3356 = vdwg.mxu0
        %v3357 = vadd.f32 %v3187, %v3308
        %v3358 = vadd.f32 %v3188, %v3313
        %v3359 = vadd.f32 %v3189, %v3316
        %v3360 = vadd.f32 %v3190, %v3321
        %v3361 = vadd.f32 %v3191, %v3324
        %v3362 = vadd.f32 %v3192, %v3329
        %v3363 = vadd.f32 %v3193, %v3332
        %v3364 = vadd.f32 %v3194, %v3337
        %v3365 = vadd.f32 %v3195, %v3340
        %v3366 = vadd.f32 %v3196, %v3345
        %v3367 = vadd.f32 %v3197, %v3348
        %v3368 = vld [vmem:[#allocation2 + $0x15] sm:$0xff]
        %v3369 = vld [vmem:[#allocation2 + $0x1d] sm:$0xff]
        %v3370 = vld [vmem:[#allocation2 + $0x25] sm:$0xff]
        %v3371 = vld [vmem:[#allocation2 + $0x2d] sm:$0xff]
        %v3372 = vld [vmem:[#allocation2 + $0x35] sm:$0xff]
        %v3373 = vld [vmem:[#allocation2 + $0x3d] sm:$0xff]
        %v3374 = vld [vmem:[#allocation2 + $0x45] sm:$0xff]
        %v3375 = vld [vmem:[#allocation2 + $0x4d] sm:$0xff]
        %v3376 = vld [vmem:[#allocation2 + $0x55] sm:$0xff]
        %v3377 = vld [vmem:[#allocation2 + $0x5d] sm:$0xff]
        %v3378 = vld [vmem:[#allocation2 + $0x65] sm:$0xff]
        %v3379 = vld [vmem:[#allocation2 + $0x6d] sm:$0xff]
        %v3380 = vld [vmem:[#allocation2 + $0x75] sm:$0xf]
        %v3381 = vpack.c.bf16 %v3369, %v3368
        %v3382 = vpack.c.bf16 %v3371, %v3370
        %v3383 = vpack.c.bf16 %v3373, %v3372
        %v3384 = vpack.c.bf16 %v3375, %v3374
        %v3385 = vpack.c.bf16 %v3377, %v3376
        %v3386 = vpack.c.bf16 %v3379, %v3378
        %v3387 = vpack.c.bf16 %v3380, %v3380
        %v3388 = vld [vmem:[%s3 + $0xe0] sm:$0xf]
        %v3389 = vld [vmem:[%s3 + $0xe4] sm:$0xf]
        %v3390 = vld [vmem:[%s3 + $0xe8] sm:$0xf]
        %v3391 = vld [vmem:[%s3 + $0xec] sm:$0xf]
        %v3392 = vld [vmem:[%s3 + $0xf0] sm:$0xf]
        %v3393 = vld [vmem:[%s3 + $0xf4] sm:$0xf]
        %v3394 = vld [vmem:[%s3 + $0xf8] sm:$0xf]
        %v3395 = vld [vmem:[%s3 + $0xfc] sm:$0xf]
        %v3404 = vunpack.c.l.b16 %v3388
        %v3405 = vunpack.c.l.b16 %v3389
        %v3406 = vunpack.c.l.b16 %v3390
        %v3407 = vunpack.c.l.b16 %v3391
        %v3408 = vunpack.c.l.b16 %v3392
        %v3409 = vunpack.c.l.b16 %v3393
        %v3410 = vunpack.c.l.b16 %v3394
        %v3411 = vunpack.c.l.b16 %v3395
        %v3412 = vpack.c.b16 %v3405, %v3404
        %v3413 = vpack.c.b16 %v3407, %v3406
        %v3414 = vpack.c.b16 %v3409, %v3408
        %v3415 = vpack.c.b16 %v3411, %v3410
        %v3421 = vsel %vm551, %v3381, 0
        %v3424 = vsel %vm551, %v3382, 0
        %v3427 = vsel %vm551, %v3383, 0
        %v3430 = vsel %vm551, %v3384, 0
        %v3433 = vsel %vm551, %v3385, 0
        %v3436 = vsel %vm551, %v3386, 0
        %v3439 = vsel %vm551, %v3387, 0
        %3441 = vmatprep.subr.bf16.mxu0 0
        %3442 = vmatpush1.bf16.msra.mxu0 0
        %3443 = vmatprep.subr.bf16.mxu0 0
        %3444 = vmatpush1.bf16.msra.mxu0 0
        %3445 = vmatprep.subr.bf16.mxu0 0
        %3446 = vmatpush1.bf16.msra.mxu0 0
        %3447 = vmatprep.subr.bf16.mxu0 0
        %3448 = vmatpush1.bf16.msra.mxu0 0
        %3449 = vmatprep.subr.bf16.mxu0 0
        %3450 = vmatpush1.bf16.msra.mxu0 %v3415
        %3451 = vmatprep.subr.bf16.mxu0 0
        %3452 = vmatpush1.bf16.msra.mxu0 %v3414
        %3453 = vmatprep.subr.bf16.mxu0 0
        %3454 = vmatpush1.bf16.msra.mxu0 %v3413
        %3455 = vmatprep.subr.bf16.mxu0 0
        %3456 = vmatpush1.bf16.msra.mxu0 %v3412
        %3457 = vmatprep.subr.bf16.mxu0 0
        %3458 = vmatpush2.bf16.msra.mxu0 0
        %3459 = vmatprep.subr.bf16.mxu0 0
        %3460 = vmatpush2.bf16.msra.mxu0 0
        %3461 = vmatprep.subr.bf16.mxu0 0
        %3462 = vmatpush2.bf16.msra.mxu0 0
        %3463 = vmatprep.subr.bf16.mxu0 0
        %3464 = vmatpush2.bf16.msra.mxu0 0
        %3465 = vmatprep.subr.bf16.mxu0 0
        %3466 = vmatpush2.bf16.msra.mxu0 0
        %3467 = vmatprep.subr.bf16.mxu0 0
        %3468 = vmatpush2.bf16.msra.mxu0 0
        %3469 = vmatprep.subr.bf16.mxu0 0
        %3470 = vmatpush2.bf16.msra.mxu0 0
        %3471 = vmatprep.subr.bf16.mxu0 0
        %3472 = vmatpush2.bf16.msra.mxu0 0
        %3473 = vmatprep.mubr.bf16.mxu0 0
        %3474 = vmatmul.mubr.bf16.gmra.mxu0 %v3421
        %v3475 = vpop.f32.mrf.mxu0
        %v3476 = vpop.f32.mrf.mxu0
        %v3477 = vpop.f32.mrf.mxu0
        %v3478 = vadd.f32 0.0, %v3477
        %v3479 = vpop.f32.mrf.mxu0
        %3480 = vmatprep.mubr.bf16.mxu0 0
        %3481 = vmatmul.mubr.bf16.gmra.mxu0 %v3424
        %v3482 = vpop.f32.mrf.mxu0
        %v3483 = vadd.f32 0.0, %v3482
        %v3484 = vpop.f32.mrf.mxu0
        %v3485 = vpop.f32.mrf.mxu0
        %v3486 = vadd.f32 0.0, %v3485
        %v3487 = vpop.f32.mrf.mxu0
        %3488 = vmatprep.mubr.bf16.mxu0 0
        %3489 = vmatmul.mubr.bf16.gmra.mxu0 %v3427
        %v3490 = vpop.f32.mrf.mxu0
        %v3491 = vadd.f32 0.0, %v3490
        %v3492 = vpop.f32.mrf.mxu0
        %v3493 = vpop.f32.mrf.mxu0
        %v3494 = vadd.f32 0.0, %v3493
        %v3495 = vpop.f32.mrf.mxu0
        %3496 = vmatprep.mubr.bf16.mxu0 0
        %3497 = vmatmul.mubr.bf16.gmra.mxu0 %v3430
        %v3498 = vpop.f32.mrf.mxu0
        %v3499 = vadd.f32 0.0, %v3498
        %v3500 = vpop.f32.mrf.mxu0
        %v3501 = vpop.f32.mrf.mxu0
        %v3502 = vadd.f32 0.0, %v3501
        %v3503 = vpop.f32.mrf.mxu0
        %3504 = vmatprep.mubr.bf16.mxu0 0
        %3505 = vmatmul.mubr.bf16.gmra.mxu0 %v3433
        %v3506 = vpop.f32.mrf.mxu0
        %v3507 = vadd.f32 0.0, %v3506
        %v3508 = vpop.f32.mrf.mxu0
        %v3509 = vpop.f32.mrf.mxu0
        %v3510 = vadd.f32 0.0, %v3509
        %v3511 = vpop.f32.mrf.mxu0
        %3512 = vmatprep.mubr.bf16.mxu0 0
        %3513 = vmatmul.mubr.bf16.gmra.mxu0 %v3436
        %v3514 = vpop.f32.mrf.mxu0
        %v3515 = vadd.f32 0.0, %v3514
        %v3516 = vpop.f32.mrf.mxu0
        %v3517 = vpop.f32.mrf.mxu0
        %v3518 = vadd.f32 0.0, %v3517
        %v3519 = vpop.f32.mrf.mxu0
        %3520 = vmatprep.mubr.bf16.mxu0 0
        %3521 = vmatmul.mubr.bf16.gmra.mxu0 %v3439
        %v3522 = vpop.f32.mrf.mxu0
        %v3523 = vpop.f32.mrf.mxu0
        %v3524 = vpop.f32.mrf.mxu0
        %v3525 = vpop.f32.mrf.mxu0
        %3526 = vdwg.mxu0
        %v3527 = vadd.f32 %v3357, %v3478
        %v3528 = vadd.f32 %v3358, %v3483
        %v3529 = vadd.f32 %v3359, %v3486
        %v3530 = vadd.f32 %v3360, %v3491
        %v3531 = vadd.f32 %v3361, %v3494
        %v3532 = vadd.f32 %v3362, %v3499
        %v3533 = vadd.f32 %v3363, %v3502
        %v3534 = vadd.f32 %v3364, %v3507
        %v3535 = vadd.f32 %v3365, %v3510
        %v3536 = vadd.f32 %v3366, %v3515
        %v3537 = vadd.f32 %v3367, %v3518
        %v3538 = vld [vmem:[#allocation2 + $0x16] sm:$0xff]
        %v3539 = vld [vmem:[#allocation2 + $0x1e] sm:$0xff]
        %v3540 = vld [vmem:[#allocation2 + $0x26] sm:$0xff]
        %v3541 = vld [vmem:[#allocation2 + $0x2e] sm:$0xff]
        %v3542 = vld [vmem:[#allocation2 + $0x36] sm:$0xff]
        %v3543 = vld [vmem:[#allocation2 + $0x3e] sm:$0xff]
        %v3544 = vld [vmem:[#allocation2 + $0x46] sm:$0xff]
        %v3545 = vld [vmem:[#allocation2 + $0x4e] sm:$0xff]
        %v3546 = vld [vmem:[#allocation2 + $0x56] sm:$0xff]
        %v3547 = vld [vmem:[#allocation2 + $0x5e] sm:$0xff]
        %v3548 = vld [vmem:[#allocation2 + $0x66] sm:$0xff]
        %v3549 = vld [vmem:[#allocation2 + $0x6e] sm:$0xff]
        %v3550 = vld [vmem:[#allocation2 + $0x76] sm:$0xf]
        %v3551 = vpack.c.bf16 %v3539, %v3538
        %v3552 = vpack.c.bf16 %v3541, %v3540
        %v3553 = vpack.c.bf16 %v3543, %v3542
        %v3554 = vpack.c.bf16 %v3545, %v3544
        %v3555 = vpack.c.bf16 %v3547, %v3546
        %v3556 = vpack.c.bf16 %v3549, %v3548
        %v3557 = vpack.c.bf16 %v3550, %v3550
        %v3558 = vld [vmem:[%s3 + $0x100] sm:$0xf]
        %v3559 = vld [vmem:[%s3 + $0x104] sm:$0xf]
        %v3560 = vld [vmem:[%s3 + $0x108] sm:$0xf]
        %v3561 = vld [vmem:[%s3 + $0x10c] sm:$0xf]
        %v3562 = vld [vmem:[%s3 + $0x110] sm:$0xf]
        %v3563 = vld [vmem:[%s3 + $0x114] sm:$0xf]
        %v3564 = vld [vmem:[%s3 + $0x118] sm:$0xf]
        %v3565 = vld [vmem:[%s3 + $0x11c] sm:$0xf]
        %v3574 = vunpack.c.l.b16 %v3558
        %v3575 = vunpack.c.l.b16 %v3559
        %v3576 = vunpack.c.l.b16 %v3560
        %v3577 = vunpack.c.l.b16 %v3561
        %v3578 = vunpack.c.l.b16 %v3562
        %v3579 = vunpack.c.l.b16 %v3563
        %v3580 = vunpack.c.l.b16 %v3564
        %v3581 = vunpack.c.l.b16 %v3565
        %v3582 = vpack.c.b16 %v3575, %v3574
        %v3583 = vpack.c.b16 %v3577, %v3576
        %v3584 = vpack.c.b16 %v3579, %v3578
        %v3585 = vpack.c.b16 %v3581, %v3580
        %v3591 = vsel %vm551, %v3551, 0
        %v3594 = vsel %vm551, %v3552, 0
        %v3597 = vsel %vm551, %v3553, 0
        %v3600 = vsel %vm551, %v3554, 0
        %v3603 = vsel %vm551, %v3555, 0
        %v3606 = vsel %vm551, %v3556, 0
        %v3609 = vsel %vm551, %v3557, 0
        %3611 = vmatprep.subr.bf16.mxu0 0
        %3612 = vmatpush1.bf16.msra.mxu0 0
        %3613 = vmatprep.subr.bf16.mxu0 0
        %3614 = vmatpush1.bf16.msra.mxu0 0
        %3615 = vmatprep.subr.bf16.mxu0 0
        %3616 = vmatpush1.bf16.msra.mxu0 0
        %3617 = vmatprep.subr.bf16.mxu0 0
        %3618 = vmatpush1.bf16.msra.mxu0 0
        %3619 = vmatprep.subr.bf16.mxu0 0
        %3620 = vmatpush1.bf16.msra.mxu0 %v3585
        %3621 = vmatprep.subr.bf16.mxu0 0
        %3622 = vmatpush1.bf16.msra.mxu0 %v3584
        %3623 = vmatprep.subr.bf16.mxu0 0
        %3624 = vmatpush1.bf16.msra.mxu0 %v3583
        %3625 = vmatprep.subr.bf16.mxu0 0
        %3626 = vmatpush1.bf16.msra.mxu0 %v3582
        %3627 = vmatprep.subr.bf16.mxu0 0
        %3628 = vmatpush2.bf16.msra.mxu0 0
        %3629 = vmatprep.subr.bf16.mxu0 0
        %3630 = vmatpush2.bf16.msra.mxu0 0
        %3631 = vmatprep.subr.bf16.mxu0 0
        %3632 = vmatpush2.bf16.msra.mxu0 0
        %3633 = vmatprep.subr.bf16.mxu0 0
        %3634 = vmatpush2.bf16.msra.mxu0 0
        %3635 = vmatprep.subr.bf16.mxu0 0
        %3636 = vmatpush2.bf16.msra.mxu0 0
        %3637 = vmatprep.subr.bf16.mxu0 0
        %3638 = vmatpush2.bf16.msra.mxu0 0
        %3639 = vmatprep.subr.bf16.mxu0 0
        %3640 = vmatpush2.bf16.msra.mxu0 0
        %3641 = vmatprep.subr.bf16.mxu0 0
        %3642 = vmatpush2.bf16.msra.mxu0 0
        %3643 = vmatprep.mubr.bf16.mxu0 0
        %3644 = vmatmul.mubr.bf16.gmra.mxu0 %v3591
        %v3645 = vpop.f32.mrf.mxu0
        %v3646 = vpop.f32.mrf.mxu0
        %v3647 = vpop.f32.mrf.mxu0
        %v3648 = vadd.f32 0.0, %v3647
        %v3649 = vpop.f32.mrf.mxu0
        %3650 = vmatprep.mubr.bf16.mxu0 0
        %3651 = vmatmul.mubr.bf16.gmra.mxu0 %v3594
        %v3652 = vpop.f32.mrf.mxu0
        %v3653 = vadd.f32 0.0, %v3652
        %v3654 = vpop.f32.mrf.mxu0
        %v3655 = vpop.f32.mrf.mxu0
        %v3656 = vadd.f32 0.0, %v3655
        %v3657 = vpop.f32.mrf.mxu0
        %3658 = vmatprep.mubr.bf16.mxu0 0
        %3659 = vmatmul.mubr.bf16.gmra.mxu0 %v3597
        %v3660 = vpop.f32.mrf.mxu0
        %v3661 = vadd.f32 0.0, %v3660
        %v3662 = vpop.f32.mrf.mxu0
        %v3663 = vpop.f32.mrf.mxu0
        %v3664 = vadd.f32 0.0, %v3663
        %v3665 = vpop.f32.mrf.mxu0
        %3666 = vmatprep.mubr.bf16.mxu0 0
        %3667 = vmatmul.mubr.bf16.gmra.mxu0 %v3600
        %v3668 = vpop.f32.mrf.mxu0
        %v3669 = vadd.f32 0.0, %v3668
        %v3670 = vpop.f32.mrf.mxu0
        %v3671 = vpop.f32.mrf.mxu0
        %v3672 = vadd.f32 0.0, %v3671
        %v3673 = vpop.f32.mrf.mxu0
        %3674 = vmatprep.mubr.bf16.mxu0 0
        %3675 = vmatmul.mubr.bf16.gmra.mxu0 %v3603
        %v3676 = vpop.f32.mrf.mxu0
        %v3677 = vadd.f32 0.0, %v3676
        %v3678 = vpop.f32.mrf.mxu0
        %v3679 = vpop.f32.mrf.mxu0
        %v3680 = vadd.f32 0.0, %v3679
        %v3681 = vpop.f32.mrf.mxu0
        %3682 = vmatprep.mubr.bf16.mxu0 0
        %3683 = vmatmul.mubr.bf16.gmra.mxu0 %v3606
        %v3684 = vpop.f32.mrf.mxu0
        %v3685 = vadd.f32 0.0, %v3684
        %v3686 = vpop.f32.mrf.mxu0
        %v3687 = vpop.f32.mrf.mxu0
        %v3688 = vadd.f32 0.0, %v3687
        %v3689 = vpop.f32.mrf.mxu0
        %3690 = vmatprep.mubr.bf16.mxu0 0
        %3691 = vmatmul.mubr.bf16.gmra.mxu0 %v3609
        %v3692 = vpop.f32.mrf.mxu0
        %v3693 = vpop.f32.mrf.mxu0
        %v3694 = vpop.f32.mrf.mxu0
        %v3695 = vpop.f32.mrf.mxu0
        %3696 = vdwg.mxu0
        %v3697 = vadd.f32 %v3527, %v3648
        %v3698 = vadd.f32 %v3528, %v3653
        %v3699 = vadd.f32 %v3529, %v3656
        %v3700 = vadd.f32 %v3530, %v3661
        %v3701 = vadd.f32 %v3531, %v3664
        %v3702 = vadd.f32 %v3532, %v3669
        %v3703 = vadd.f32 %v3533, %v3672
        %v3704 = vadd.f32 %v3534, %v3677
        %v3705 = vadd.f32 %v3535, %v3680
        %v3706 = vadd.f32 %v3536, %v3685
        %v3707 = vadd.f32 %v3537, %v3688
        %v3708 = vld [vmem:[%s4] sm:$0x1]
        %v3710 = vlaneseq
        %v3711 = vshrl.u32 %v3710, 7
        %v3712 = vsub.s32 0, %v3711
        %v3713 = vrot.slane %v3708, %v3712
        %v3715 = vadd.f32 %v3697, %v3713
        %v3716 = vadd.f32 %v3698, %v3713
        %v3717 = vadd.f32 %v3699, %v3713
        %v3718 = vadd.f32 %v3700, %v3713
        %v3719 = vadd.f32 %v3701, %v3713
        %v3720 = vadd.f32 %v3702, %v3713
        %v3721 = vadd.f32 %v3703, %v3713
        %v3722 = vadd.f32 %v3704, %v3713
        %v3723 = vadd.f32 %v3705, %v3713
        %v3724 = vadd.f32 %v3706, %v3713
        %v3725 = vadd.f32 %v3707, %v3713
        %v3726 = vtanh.pop %v3715
        %v3727 = vtanh.pop %v3716
        %v3728 = vtanh.pop %v3717
        %v3729 = vtanh.pop %v3718
        %v3730 = vtanh.pop %v3719
        %v3731 = vtanh.pop %v3720
        %v3732 = vtanh.pop %v3721
        %v3733 = vtanh.pop %v3722
        %v3734 = vtanh.pop %v3723
        %v3735 = vtanh.pop %v3724
        %v3736 = vtanh.pop %v3725
        %vm3737 = vcmask 523267
        %3738 = vst.msk [vmem:[#allocation3 + $0x13] sm:$0xf8] %vm3737, %v3726
        %vm3739 = vcmask 518144
        %3740 = vst.msk [vmem:[#allocation3 + $0x1b] sm:$0x7] %vm3739, %v3727
        %vm3741 = vcmask 523269
        %3742 = vst.msk [vmem:[#allocation3 + $0x1b] sm:$0xe0] %vm3741, %v3727
        %vm3743 = vcmask 520192
        %3744 = vst.msk [vmem:[#allocation3 + $0x23] sm:$0x1f] %vm3743, %v3728
        %vm3745 = vcmask 523271
        %3746 = vst.msk [vmem:[#allocation3 + $0x23] sm:$0x80] %vm3745, %v3728
        %vm3747 = vcmask 522240
        %3748 = vst.msk [vmem:[#allocation3 + $0x2b] sm:$0x7f] %vm3747, %v3729
        %vm3749 = vcmask 523265
        %3750 = vst.msk [vmem:[#allocation3 + $0x33] sm:$0xfe] %vm3749, %v3730
        %vm3751 = vcmask 516096
        %3752 = vst.msk [vmem:[#allocation3 + $0x3b] sm:$0x1] %vm3751, %v3731
        %3753 = vst.msk [vmem:[#allocation3 + $0x3b] sm:$0xf8] %vm3737, %v3731
        %3754 = vst.msk [vmem:[#allocation3 + $0x43] sm:$0x7] %vm3739, %v3732
        %3755 = vst.msk [vmem:[#allocation3 + $0x43] sm:$0xe0] %vm3741, %v3732
        %3756 = vst.msk [vmem:[#allocation3 + $0x4b] sm:$0x1f] %vm3743, %v3733
        %3757 = vst.msk [vmem:[#allocation3 + $0x4b] sm:$0x80] %vm3745, %v3733
        %3758 = vst.msk [vmem:[#allocation3 + $0x53] sm:$0x7f] %vm3747, %v3734
        %3759 = vst.msk [vmem:[#allocation3 + $0x5b] sm:$0xfe] %vm3749, %v3735
        %3760 = vst.msk [vmem:[#allocation3 + $0x63] sm:$0x1] %vm3751, %v3736
        %v3761 = vld [vmem:[#allocation3] sm:$0xff]
        %v3762 = vld [vmem:[#allocation3 + $0x8] sm:$0xff]
        %v3763 = vld [vmem:[#allocation3 + $0x10] sm:$0xff]
        %v3764 = vld [vmem:[#allocation3 + $0x18] sm:$0xff]
        %v3765 = vld [vmem:[#allocation3 + $0x20] sm:$0xff]
        %v3766 = vld [vmem:[#allocation3 + $0x28] sm:$0xff]
        %v3767 = vld [vmem:[#allocation3 + $0x30] sm:$0xff]
        %v3768 = vld [vmem:[#allocation3 + $0x38] sm:$0xff]
        %v3769 = vld [vmem:[#allocation3 + $0x40] sm:$0xff]
        %v3770 = vld [vmem:[#allocation3 + $0x48] sm:$0xff]
        %v3771 = vld [vmem:[#allocation3 + $0x50] sm:$0xff]
        %v3772 = vld [vmem:[#allocation3 + $0x58] sm:$0xff]
        %v3773 = vld [vmem:[#allocation3 + $0x60] sm:$0xf]
        %v3774 = vpack.c.bf16 %v3762, %v3761
        %v3775 = vpack.c.bf16 %v3764, %v3763
        %v3776 = vpack.c.bf16 %v3766, %v3765
        %v3777 = vpack.c.bf16 %v3768, %v3767
        %v3778 = vpack.c.bf16 %v3770, %v3769
        %v3779 = vpack.c.bf16 %v3772, %v3771
        %v3780 = vpack.c.bf16 %v3773, %v3773
        %v3781 = vld [vmem:[%s5] sm:$0xf]
        %v3782 = vld [vmem:[%s5 + $0x4] sm:$0xf]
        %v3783 = vld [vmem:[%s5 + $0x8] sm:$0xf]
        %v3784 = vld [vmem:[%s5 + $0xc] sm:$0xf]
        %v3785 = vld [vmem:[%s5 + $0x10] sm:$0xf]
        %v3786 = vld [vmem:[%s5 + $0x14] sm:$0xf]
        %v3787 = vld [vmem:[%s5 + $0x18] sm:$0xf]
        %v3788 = vld [vmem:[%s5 + $0x1c] sm:$0xf]
        %v3789 = vld [vmem:[#allocation3 + $0x1] sm:$0xff]
        %v3790 = vld [vmem:[#allocation3 + $0x9] sm:$0xff]
        %v3791 = vld [vmem:[#allocation3 + $0x11] sm:$0xff]
        %v3792 = vld [vmem:[#allocation3 + $0x19] sm:$0xff]
        %v3793 = vld [vmem:[#allocation3 + $0x21] sm:$0xff]
        %v3794 = vld [vmem:[#allocation3 + $0x29] sm:$0xff]
        %v3795 = vld [vmem:[#allocation3 + $0x31] sm:$0xff]
        %v3796 = vld [vmem:[#allocation3 + $0x39] sm:$0xff]
        %v3797 = vld [vmem:[#allocation3 + $0x41] sm:$0xff]
        %v3798 = vld [vmem:[#allocation3 + $0x49] sm:$0xff]
        %v3799 = vld [vmem:[#allocation3 + $0x51] sm:$0xff]
        %v3800 = vld [vmem:[#allocation3 + $0x59] sm:$0xff]
        %v3801 = vld [vmem:[#allocation3 + $0x61] sm:$0xf]
        %v3802 = vpack.c.bf16 %v3790, %v3789
        %v3803 = vpack.c.bf16 %v3792, %v3791
        %v3804 = vpack.c.bf16 %v3794, %v3793
        %v3805 = vpack.c.bf16 %v3796, %v3795
        %v3806 = vpack.c.bf16 %v3798, %v3797
        %v3807 = vpack.c.bf16 %v3800, %v3799
        %v3808 = vpack.c.bf16 %v3801, %v3801
        %v3809 = vld [vmem:[%s5 + $0x20] sm:$0xf]
        %v3810 = vld [vmem:[%s5 + $0x24] sm:$0xf]
        %v3811 = vld [vmem:[%s5 + $0x28] sm:$0xf]
        %v3812 = vld [vmem:[%s5 + $0x2c] sm:$0xf]
        %v3813 = vld [vmem:[%s5 + $0x30] sm:$0xf]
        %v3814 = vld [vmem:[%s5 + $0x34] sm:$0xf]
        %v3815 = vld [vmem:[%s5 + $0x38] sm:$0xf]
        %v3816 = vld [vmem:[%s5 + $0x3c] sm:$0xf]
        %v3825 = vunpack.c.l.b16 %v3809
        %v3826 = vunpack.c.l.b16 %v3810
        %v3827 = vunpack.c.l.b16 %v3811
        %v3828 = vunpack.c.l.b16 %v3812
        %v3829 = vunpack.c.l.b16 %v3813
        %v3830 = vunpack.c.l.b16 %v3814
        %v3831 = vunpack.c.l.b16 %v3815
        %v3832 = vunpack.c.l.b16 %v3816
        %v3833 = vpack.c.b16 %v3826, %v3825
        %v3834 = vpack.c.b16 %v3828, %v3827
        %v3835 = vpack.c.b16 %v3830, %v3829
        %v3836 = vpack.c.b16 %v3832, %v3831
        %v3842 = vsel %vm551, %v3802, 0
        %v3845 = vsel %vm551, %v3803, 0
        %v3848 = vsel %vm551, %v3804, 0
        %v3851 = vsel %vm551, %v3805, 0
        %v3854 = vsel %vm551, %v3806, 0
        %v3857 = vsel %vm551, %v3807, 0
        %v3860 = vsel %vm551, %v3808, 0
        %3862 = vmatprep.subr.bf16.mxu0 0
        %3863 = vmatpush1.bf16.msra.mxu0 0
        %3864 = vmatprep.subr.bf16.mxu0 0
        %3865 = vmatpush1.bf16.msra.mxu0 0
        %3866 = vmatprep.subr.bf16.mxu0 0
        %3867 = vmatpush1.bf16.msra.mxu0 0
        %3868 = vmatprep.subr.bf16.mxu0 0
        %3869 = vmatpush1.bf16.msra.mxu0 0
        %3870 = vmatprep.subr.bf16.mxu0 0
        %3871 = vmatpush1.bf16.msra.mxu0 %v3836
        %3872 = vmatprep.subr.bf16.mxu0 0
        %3873 = vmatpush1.bf16.msra.mxu0 %v3835
        %3874 = vmatprep.subr.bf16.mxu0 0
        %3875 = vmatpush1.bf16.msra.mxu0 %v3834
        %3876 = vmatprep.subr.bf16.mxu0 0
        %3877 = vmatpush1.bf16.msra.mxu0 %v3833
        %3878 = vmatprep.subr.bf16.mxu0 0
        %3879 = vmatpush2.bf16.msra.mxu0 0
        %3880 = vmatprep.subr.bf16.mxu0 0
        %3881 = vmatpush2.bf16.msra.mxu0 0
        %3882 = vmatprep.subr.bf16.mxu0 0
        %3883 = vmatpush2.bf16.msra.mxu0 0
        %3884 = vmatprep.subr.bf16.mxu0 0
        %3885 = vmatpush2.bf16.msra.mxu0 0
        %3886 = vmatprep.subr.bf16.mxu0 0
        %3887 = vmatpush2.bf16.msra.mxu0 0
        %3888 = vmatprep.subr.bf16.mxu0 0
        %3889 = vmatpush2.bf16.msra.mxu0 0
        %3890 = vmatprep.subr.bf16.mxu0 0
        %3891 = vmatpush2.bf16.msra.mxu0 0
        %3892 = vmatprep.subr.bf16.mxu0 0
        %3893 = vmatpush2.bf16.msra.mxu0 0
        %3894 = vmatprep.mubr.bf16.mxu0 0
        %3895 = vmatmul.mubr.bf16.gmra.mxu0 %v3842
        %v3896 = vpop.f32.mrf.mxu0
        %v3897 = vpop.f32.mrf.mxu0
        %v3898 = vpop.f32.mrf.mxu0
        %v3899 = vadd.f32 0.0, %v3898
        %v3900 = vpop.f32.mrf.mxu0
        %3901 = vmatprep.mubr.bf16.mxu0 0
        %3902 = vmatmul.mubr.bf16.gmra.mxu0 %v3845
        %v3903 = vpop.f32.mrf.mxu0
        %v3904 = vadd.f32 0.0, %v3903
        %v3905 = vpop.f32.mrf.mxu0
        %v3906 = vpop.f32.mrf.mxu0
        %v3907 = vadd.f32 0.0, %v3906
        %v3908 = vpop.f32.mrf.mxu0
        %3909 = vmatprep.mubr.bf16.mxu0 0
        %3910 = vmatmul.mubr.bf16.gmra.mxu0 %v3848
        %v3911 = vpop.f32.mrf.mxu0
        %v3912 = vadd.f32 0.0, %v3911
        %v3913 = vpop.f32.mrf.mxu0
        %v3914 = vpop.f32.mrf.mxu0
        %v3915 = vadd.f32 0.0, %v3914
        %v3916 = vpop.f32.mrf.mxu0
        %3917 = vmatprep.mubr.bf16.mxu0 0
        %3918 = vmatmul.mubr.bf16.gmra.mxu0 %v3851
        %v3919 = vpop.f32.mrf.mxu0
        %v3920 = vadd.f32 0.0, %v3919
        %v3921 = vpop.f32.mrf.mxu0
        %v3922 = vpop.f32.mrf.mxu0
        %v3923 = vadd.f32 0.0, %v3922
        %v3924 = vpop.f32.mrf.mxu0
        %3925 = vmatprep.mubr.bf16.mxu0 0
        %3926 = vmatmul.mubr.bf16.gmra.mxu0 %v3854
        %v3927 = vpop.f32.mrf.mxu0
        %v3928 = vadd.f32 0.0, %v3927
        %v3929 = vpop.f32.mrf.mxu0
        %v3930 = vpop.f32.mrf.mxu0
        %v3931 = vadd.f32 0.0, %v3930
        %v3932 = vpop.f32.mrf.mxu0
        %3933 = vmatprep.mubr.bf16.mxu0 0
        %3934 = vmatmul.mubr.bf16.gmra.mxu0 %v3857
        %v3935 = vpop.f32.mrf.mxu0
        %v3936 = vadd.f32 0.0, %v3935
        %v3937 = vpop.f32.mrf.mxu0
        %v3938 = vpop.f32.mrf.mxu0
        %v3939 = vadd.f32 0.0, %v3938
        %v3940 = vpop.f32.mrf.mxu0
        %3941 = vmatprep.mubr.bf16.mxu0 0
        %3942 = vmatmul.mubr.bf16.gmra.mxu0 %v3860
        %v3943 = vpop.f32.mrf.mxu0
        %v3944 = vpop.f32.mrf.mxu0
        %v3945 = vpop.f32.mrf.mxu0
        %v3946 = vpop.f32.mrf.mxu0
        %3947 = vdwg.mxu0
        %v3956 = vunpack.c.l.b16 %v3781
        %v3957 = vunpack.c.l.b16 %v3782
        %v3958 = vunpack.c.l.b16 %v3783
        %v3959 = vunpack.c.l.b16 %v3784
        %v3960 = vunpack.c.l.b16 %v3785
        %v3961 = vunpack.c.l.b16 %v3786
        %v3962 = vunpack.c.l.b16 %v3787
        %v3963 = vunpack.c.l.b16 %v3788
        %v3964 = vpack.c.b16 %v3957, %v3956
        %v3965 = vpack.c.b16 %v3959, %v3958
        %v3966 = vpack.c.b16 %v3961, %v3960
        %v3967 = vpack.c.b16 %v3963, %v3962
        %v3973 = vsel %vm551, %v3774, 0
        %v3976 = vsel %vm551, %v3775, 0
        %v3979 = vsel %vm551, %v3776, 0
        %v3982 = vsel %vm551, %v3777, 0
        %v3985 = vsel %vm551, %v3778, 0
        %v3988 = vsel %vm551, %v3779, 0
        %v3991 = vsel %vm551, %v3780, 0
        %3993 = vmatprep.subr.bf16.mxu0 0
        %3994 = vmatpush1.bf16.msra.mxu0 0
        %3995 = vmatprep.subr.bf16.mxu0 0
        %3996 = vmatpush1.bf16.msra.mxu0 0
        %3997 = vmatprep.subr.bf16.mxu0 0
        %3998 = vmatpush1.bf16.msra.mxu0 0
        %3999 = vmatprep.subr.bf16.mxu0 0
        %4000 = vmatpush1.bf16.msra.mxu0 0
        %4001 = vmatprep.subr.bf16.mxu0 0
        %4002 = vmatpush1.bf16.msra.mxu0 %v3967
        %4003 = vmatprep.subr.bf16.mxu0 0
        %4004 = vmatpush1.bf16.msra.mxu0 %v3966
        %4005 = vmatprep.subr.bf16.mxu0 0
        %4006 = vmatpush1.bf16.msra.mxu0 %v3965
        %4007 = vmatprep.subr.bf16.mxu0 0
        %4008 = vmatpush1.bf16.msra.mxu0 %v3964
        %4009 = vmatprep.subr.bf16.mxu0 0
        %4010 = vmatpush2.bf16.msra.mxu0 0
        %4011 = vmatprep.subr.bf16.mxu0 0
        %4012 = vmatpush2.bf16.msra.mxu0 0
        %4013 = vmatprep.subr.bf16.mxu0 0
        %4014 = vmatpush2.bf16.msra.mxu0 0
        %4015 = vmatprep.subr.bf16.mxu0 0
        %4016 = vmatpush2.bf16.msra.mxu0 0
        %4017 = vmatprep.subr.bf16.mxu0 0
        %4018 = vmatpush2.bf16.msra.mxu0 0
        %4019 = vmatprep.subr.bf16.mxu0 0
        %4020 = vmatpush2.bf16.msra.mxu0 0
        %4021 = vmatprep.subr.bf16.mxu0 0
        %4022 = vmatpush2.bf16.msra.mxu0 0
        %4023 = vmatprep.subr.bf16.mxu0 0
        %4024 = vmatpush2.bf16.msra.mxu0 0
        %4025 = vmatprep.mubr.bf16.mxu0 0
        %4026 = vmatmul.mubr.bf16.gmra.mxu0 %v3973
        %v4027 = vpop.f32.mrf.mxu0
        %v4028 = vpop.f32.mrf.mxu0
        %v4029 = vpop.f32.mrf.mxu0
        %v4030 = vadd.f32 %v3899, %v4029
        %v4031 = vpop.f32.mrf.mxu0
        %4032 = vmatprep.mubr.bf16.mxu0 0
        %4033 = vmatmul.mubr.bf16.gmra.mxu0 %v3976
        %v4034 = vpop.f32.mrf.mxu0
        %v4035 = vadd.f32 %v3904, %v4034
        %v4036 = vpop.f32.mrf.mxu0
        %v4037 = vpop.f32.mrf.mxu0
        %v4038 = vadd.f32 %v3907, %v4037
        %v4039 = vpop.f32.mrf.mxu0
        %4040 = vmatprep.mubr.bf16.mxu0 0
        %4041 = vmatmul.mubr.bf16.gmra.mxu0 %v3979
        %v4042 = vpop.f32.mrf.mxu0
        %v4043 = vadd.f32 %v3912, %v4042
        %v4044 = vpop.f32.mrf.mxu0
        %v4045 = vpop.f32.mrf.mxu0
        %v4046 = vadd.f32 %v3915, %v4045
        %v4047 = vpop.f32.mrf.mxu0
        %4048 = vmatprep.mubr.bf16.mxu0 0
        %4049 = vmatmul.mubr.bf16.gmra.mxu0 %v3982
        %v4050 = vpop.f32.mrf.mxu0
        %v4051 = vadd.f32 %v3920, %v4050
        %v4052 = vpop.f32.mrf.mxu0
        %v4053 = vpop.f32.mrf.mxu0
        %v4054 = vadd.f32 %v3923, %v4053
        %v4055 = vpop.f32.mrf.mxu0
        %4056 = vmatprep.mubr.bf16.mxu0 0
        %4057 = vmatmul.mubr.bf16.gmra.mxu0 %v3985
        %v4058 = vpop.f32.mrf.mxu0
        %v4059 = vadd.f32 %v3928, %v4058
        %v4060 = vpop.f32.mrf.mxu0
        %v4061 = vpop.f32.mrf.mxu0
        %v4062 = vadd.f32 %v3931, %v4061
        %v4063 = vpop.f32.mrf.mxu0
        %4064 = vmatprep.mubr.bf16.mxu0 0
        %4065 = vmatmul.mubr.bf16.gmra.mxu0 %v3988
        %v4066 = vpop.f32.mrf.mxu0
        %v4067 = vadd.f32 %v3936, %v4066
        %v4068 = vpop.f32.mrf.mxu0
        %v4069 = vpop.f32.mrf.mxu0
        %v4070 = vadd.f32 %v3939, %v4069
        %v4071 = vpop.f32.mrf.mxu0
        %4072 = vmatprep.mubr.bf16.mxu0 0
        %4073 = vmatmul.mubr.bf16.gmra.mxu0 %v3991
        %v4074 = vpop.f32.mrf.mxu0
        %v4075 = vpop.f32.mrf.mxu0
        %v4076 = vpop.f32.mrf.mxu0
        %v4077 = vpop.f32.mrf.mxu0
        %4078 = vdwg.mxu0
        %v4079 = vld [vmem:[#allocation3 + $0x2] sm:$0xff]
        %v4080 = vld [vmem:[#allocation3 + $0xa] sm:$0xff]
        %v4081 = vld [vmem:[#allocation3 + $0x12] sm:$0xff]
        %v4082 = vld [vmem:[#allocation3 + $0x1a] sm:$0xff]
        %v4083 = vld [vmem:[#allocation3 + $0x22] sm:$0xff]
        %v4084 = vld [vmem:[#allocation3 + $0x2a] sm:$0xff]
        %v4085 = vld [vmem:[#allocation3 + $0x32] sm:$0xff]
        %v4086 = vld [vmem:[#allocation3 + $0x3a] sm:$0xff]
        %v4087 = vld [vmem:[#allocation3 + $0x42] sm:$0xff]
        %v4088 = vld [vmem:[#allocation3 + $0x4a] sm:$0xff]
        %v4089 = vld [vmem:[#allocation3 + $0x52] sm:$0xff]
        %v4090 = vld [vmem:[#allocation3 + $0x5a] sm:$0xff]
        %v4091 = vld [vmem:[#allocation3 + $0x62] sm:$0xf]
        %v4092 = vpack.c.bf16 %v4080, %v4079
        %v4093 = vpack.c.bf16 %v4082, %v4081
        %v4094 = vpack.c.bf16 %v4084, %v4083
        %v4095 = vpack.c.bf16 %v4086, %v4085
        %v4096 = vpack.c.bf16 %v4088, %v4087
        %v4097 = vpack.c.bf16 %v4090, %v4089
        %v4098 = vpack.c.bf16 %v4091, %v4091
        %v4099 = vld [vmem:[%s5 + $0x40] sm:$0xf]
        %v4100 = vld [vmem:[%s5 + $0x44] sm:$0xf]
        %v4101 = vld [vmem:[%s5 + $0x48] sm:$0xf]
        %v4102 = vld [vmem:[%s5 + $0x4c] sm:$0xf]
        %v4103 = vld [vmem:[%s5 + $0x50] sm:$0xf]
        %v4104 = vld [vmem:[%s5 + $0x54] sm:$0xf]
        %v4105 = vld [vmem:[%s5 + $0x58] sm:$0xf]
        %v4106 = vld [vmem:[%s5 + $0x5c] sm:$0xf]
        %v4115 = vunpack.c.l.b16 %v4099
        %v4116 = vunpack.c.l.b16 %v4100
        %v4117 = vunpack.c.l.b16 %v4101
        %v4118 = vunpack.c.l.b16 %v4102
        %v4119 = vunpack.c.l.b16 %v4103
        %v4120 = vunpack.c.l.b16 %v4104
        %v4121 = vunpack.c.l.b16 %v4105
        %v4122 = vunpack.c.l.b16 %v4106
        %v4123 = vpack.c.b16 %v4116, %v4115
        %v4124 = vpack.c.b16 %v4118, %v4117
        %v4125 = vpack.c.b16 %v4120, %v4119
        %v4126 = vpack.c.b16 %v4122, %v4121
        %v4132 = vsel %vm551, %v4092, 0
        %v4135 = vsel %vm551, %v4093, 0
        %v4138 = vsel %vm551, %v4094, 0
        %v4141 = vsel %vm551, %v4095, 0
        %v4144 = vsel %vm551, %v4096, 0
        %v4147 = vsel %vm551, %v4097, 0
        %v4150 = vsel %vm551, %v4098, 0
        %4152 = vmatprep.subr.bf16.mxu0 0
        %4153 = vmatpush1.bf16.msra.mxu0 0
        %4154 = vmatprep.subr.bf16.mxu0 0
        %4155 = vmatpush1.bf16.msra.mxu0 0
        %4156 = vmatprep.subr.bf16.mxu0 0
        %4157 = vmatpush1.bf16.msra.mxu0 0
        %4158 = vmatprep.subr.bf16.mxu0 0
        %4159 = vmatpush1.bf16.msra.mxu0 0
        %4160 = vmatprep.subr.bf16.mxu0 0
        %4161 = vmatpush1.bf16.msra.mxu0 %v4126
        %4162 = vmatprep.subr.bf16.mxu0 0
        %4163 = vmatpush1.bf16.msra.mxu0 %v4125
        %4164 = vmatprep.subr.bf16.mxu0 0
        %4165 = vmatpush1.bf16.msra.mxu0 %v4124
        %4166 = vmatprep.subr.bf16.mxu0 0
        %4167 = vmatpush1.bf16.msra.mxu0 %v4123
        %4168 = vmatprep.subr.bf16.mxu0 0
        %4169 = vmatpush2.bf16.msra.mxu0 0
        %4170 = vmatprep.subr.bf16.mxu0 0
        %4171 = vmatpush2.bf16.msra.mxu0 0
        %4172 = vmatprep.subr.bf16.mxu0 0
        %4173 = vmatpush2.bf16.msra.mxu0 0
        %4174 = vmatprep.subr.bf16.mxu0 0
        %4175 = vmatpush2.bf16.msra.mxu0 0
        %4176 = vmatprep.subr.bf16.mxu0 0
        %4177 = vmatpush2.bf16.msra.mxu0 0
        %4178 = vmatprep.subr.bf16.mxu0 0
        %4179 = vmatpush2.bf16.msra.mxu0 0
        %4180 = vmatprep.subr.bf16.mxu0 0
        %4181 = vmatpush2.bf16.msra.mxu0 0
        %4182 = vmatprep.subr.bf16.mxu0 0
        %4183 = vmatpush2.bf16.msra.mxu0 0
        %4184 = vmatprep.mubr.bf16.mxu0 0
        %4185 = vmatmul.mubr.bf16.gmra.mxu0 %v4132
        %v4186 = vpop.f32.mrf.mxu0
        %v4187 = vpop.f32.mrf.mxu0
        %v4188 = vpop.f32.mrf.mxu0
        %v4189 = vadd.f32 0.0, %v4188
        %v4190 = vpop.f32.mrf.mxu0
        %4191 = vmatprep.mubr.bf16.mxu0 0
        %4192 = vmatmul.mubr.bf16.gmra.mxu0 %v4135
        %v4193 = vpop.f32.mrf.mxu0
        %v4194 = vadd.f32 0.0, %v4193
        %v4195 = vpop.f32.mrf.mxu0
        %v4196 = vpop.f32.mrf.mxu0
        %v4197 = vadd.f32 0.0, %v4196
        %v4198 = vpop.f32.mrf.mxu0
        %4199 = vmatprep.mubr.bf16.mxu0 0
        %4200 = vmatmul.mubr.bf16.gmra.mxu0 %v4138
        %v4201 = vpop.f32.mrf.mxu0
        %v4202 = vadd.f32 0.0, %v4201
        %v4203 = vpop.f32.mrf.mxu0
        %v4204 = vpop.f32.mrf.mxu0
        %v4205 = vadd.f32 0.0, %v4204
        %v4206 = vpop.f32.mrf.mxu0
        %4207 = vmatprep.mubr.bf16.mxu0 0
        %4208 = vmatmul.mubr.bf16.gmra.mxu0 %v4141
        %v4209 = vpop.f32.mrf.mxu0
        %v4210 = vadd.f32 0.0, %v4209
        %v4211 = vpop.f32.mrf.mxu0
        %v4212 = vpop.f32.mrf.mxu0
        %v4213 = vadd.f32 0.0, %v4212
        %v4214 = vpop.f32.mrf.mxu0
        %4215 = vmatprep.mubr.bf16.mxu0 0
        %4216 = vmatmul.mubr.bf16.gmra.mxu0 %v4144
        %v4217 = vpop.f32.mrf.mxu0
        %v4218 = vadd.f32 0.0, %v4217
        %v4219 = vpop.f32.mrf.mxu0
        %v4220 = vpop.f32.mrf.mxu0
        %v4221 = vadd.f32 0.0, %v4220
        %v4222 = vpop.f32.mrf.mxu0
        %4223 = vmatprep.mubr.bf16.mxu0 0
        %4224 = vmatmul.mubr.bf16.gmra.mxu0 %v4147
        %v4225 = vpop.f32.mrf.mxu0
        %v4226 = vadd.f32 0.0, %v4225
        %v4227 = vpop.f32.mrf.mxu0
        %v4228 = vpop.f32.mrf.mxu0
        %v4229 = vadd.f32 0.0, %v4228
        %v4230 = vpop.f32.mrf.mxu0
        %4231 = vmatprep.mubr.bf16.mxu0 0
        %4232 = vmatmul.mubr.bf16.gmra.mxu0 %v4150
        %v4233 = vpop.f32.mrf.mxu0
        %v4234 = vpop.f32.mrf.mxu0
        %v4235 = vpop.f32.mrf.mxu0
        %v4236 = vpop.f32.mrf.mxu0
        %4237 = vdwg.mxu0
        %v4238 = vadd.f32 %v4030, %v4189
        %v4239 = vadd.f32 %v4035, %v4194
        %v4240 = vadd.f32 %v4038, %v4197
        %v4241 = vadd.f32 %v4043, %v4202
        %v4242 = vadd.f32 %v4046, %v4205
        %v4243 = vadd.f32 %v4051, %v4210
        %v4244 = vadd.f32 %v4054, %v4213
        %v4245 = vadd.f32 %v4059, %v4218
        %v4246 = vadd.f32 %v4062, %v4221
        %v4247 = vadd.f32 %v4067, %v4226
        %v4248 = vadd.f32 %v4070, %v4229
        %v4249 = vld [vmem:[#allocation3 + $0xa] sm:$0xff]
        %v4250 = vld [vmem:[#allocation3 + $0x12] sm:$0xff]
        %v4251 = vld [vmem:[#allocation3 + $0x1a] sm:$0xff]
        %v4252 = vld [vmem:[#allocation3 + $0x22] sm:$0xff]
        %v4253 = vld [vmem:[#allocation3 + $0x2a] sm:$0xff]
        %v4254 = vld [vmem:[#allocation3 + $0x32] sm:$0xff]
        %v4255 = vld [vmem:[#allocation3 + $0x3a] sm:$0xff]
        %v4256 = vld [vmem:[#allocation3 + $0x42] sm:$0xff]
        %v4257 = vld [vmem:[#allocation3 + $0x4a] sm:$0xff]
        %v4258 = vld [vmem:[#allocation3 + $0x52] sm:$0xff]
        %v4259 = vld [vmem:[#allocation3 + $0x5a] sm:$0xff]
        %v4260 = vld [vmem:[#allocation3 + $0x62] sm:$0xff]
        %v4261 = vld [vmem:[#allocation3 + $0x6a] sm:$0xf]
        %v4262 = vpack.c.bf16 %v4250, %v4249
        %v4263 = vpack.c.bf16 %v4252, %v4251
        %v4264 = vpack.c.bf16 %v4254, %v4253
        %v4265 = vpack.c.bf16 %v4256, %v4255
        %v4266 = vpack.c.bf16 %v4258, %v4257
        %v4267 = vpack.c.bf16 %v4260, %v4259
        %v4268 = vpack.c.bf16 %v4261, %v4261
        %v4269 = vld [vmem:[%s5 + $0x60] sm:$0xf]
        %v4270 = vld [vmem:[%s5 + $0x64] sm:$0xf]
        %v4271 = vld [vmem:[%s5 + $0x68] sm:$0xf]
        %v4272 = vld [vmem:[%s5 + $0x6c] sm:$0xf]
        %v4273 = vld [vmem:[%s5 + $0x70] sm:$0xf]
        %v4274 = vld [vmem:[%s5 + $0x74] sm:$0xf]
        %v4275 = vld [vmem:[%s5 + $0x78] sm:$0xf]
        %v4276 = vld [vmem:[%s5 + $0x7c] sm:$0xf]
        %v4285 = vunpack.c.l.b16 %v4269
        %v4286 = vunpack.c.l.b16 %v4270
        %v4287 = vunpack.c.l.b16 %v4271
        %v4288 = vunpack.c.l.b16 %v4272
        %v4289 = vunpack.c.l.b16 %v4273
        %v4290 = vunpack.c.l.b16 %v4274
        %v4291 = vunpack.c.l.b16 %v4275
        %v4292 = vunpack.c.l.b16 %v4276
        %v4293 = vpack.c.b16 %v4286, %v4285
        %v4294 = vpack.c.b16 %v4288, %v4287
        %v4295 = vpack.c.b16 %v4290, %v4289
        %v4296 = vpack.c.b16 %v4292, %v4291
        %v4302 = vsel %vm551, %v4262, 0
        %v4305 = vsel %vm551, %v4263, 0
        %v4308 = vsel %vm551, %v4264, 0
        %v4311 = vsel %vm551, %v4265, 0
        %v4314 = vsel %vm551, %v4266, 0
        %v4317 = vsel %vm551, %v4267, 0
        %v4320 = vsel %vm551, %v4268, 0
        %4322 = vmatprep.subr.bf16.mxu0 0
        %4323 = vmatpush1.bf16.msra.mxu0 0
        %4324 = vmatprep.subr.bf16.mxu0 0
        %4325 = vmatpush1.bf16.msra.mxu0 0
        %4326 = vmatprep.subr.bf16.mxu0 0
        %4327 = vmatpush1.bf16.msra.mxu0 0
        %4328 = vmatprep.subr.bf16.mxu0 0
        %4329 = vmatpush1.bf16.msra.mxu0 0
        %4330 = vmatprep.subr.bf16.mxu0 0
        %4331 = vmatpush1.bf16.msra.mxu0 %v4296
        %4332 = vmatprep.subr.bf16.mxu0 0
        %4333 = vmatpush1.bf16.msra.mxu0 %v4295
        %4334 = vmatprep.subr.bf16.mxu0 0
        %4335 = vmatpush1.bf16.msra.mxu0 %v4294
        %4336 = vmatprep.subr.bf16.mxu0 0
        %4337 = vmatpush1.bf16.msra.mxu0 %v4293
        %4338 = vmatprep.subr.bf16.mxu0 0
        %4339 = vmatpush2.bf16.msra.mxu0 0
        %4340 = vmatprep.subr.bf16.mxu0 0
        %4341 = vmatpush2.bf16.msra.mxu0 0
        %4342 = vmatprep.subr.bf16.mxu0 0
        %4343 = vmatpush2.bf16.msra.mxu0 0
        %4344 = vmatprep.subr.bf16.mxu0 0
        %4345 = vmatpush2.bf16.msra.mxu0 0
        %4346 = vmatprep.subr.bf16.mxu0 0
        %4347 = vmatpush2.bf16.msra.mxu0 0
        %4348 = vmatprep.subr.bf16.mxu0 0
        %4349 = vmatpush2.bf16.msra.mxu0 0
        %4350 = vmatprep.subr.bf16.mxu0 0
        %4351 = vmatpush2.bf16.msra.mxu0 0
        %4352 = vmatprep.subr.bf16.mxu0 0
        %4353 = vmatpush2.bf16.msra.mxu0 0
        %4354 = vmatprep.mubr.bf16.mxu0 0
        %4355 = vmatmul.mubr.bf16.gmra.mxu0 %v4302
        %v4356 = vpop.f32.mrf.mxu0
        %v4357 = vpop.f32.mrf.mxu0
        %v4358 = vpop.f32.mrf.mxu0
        %v4359 = vadd.f32 0.0, %v4358
        %v4360 = vpop.f32.mrf.mxu0
        %4361 = vmatprep.mubr.bf16.mxu0 0
        %4362 = vmatmul.mubr.bf16.gmra.mxu0 %v4305
        %v4363 = vpop.f32.mrf.mxu0
        %v4364 = vadd.f32 0.0, %v4363
        %v4365 = vpop.f32.mrf.mxu0
        %v4366 = vpop.f32.mrf.mxu0
        %v4367 = vadd.f32 0.0, %v4366
        %v4368 = vpop.f32.mrf.mxu0
        %4369 = vmatprep.mubr.bf16.mxu0 0
        %4370 = vmatmul.mubr.bf16.gmra.mxu0 %v4308
        %v4371 = vpop.f32.mrf.mxu0
        %v4372 = vadd.f32 0.0, %v4371
        %v4373 = vpop.f32.mrf.mxu0
        %v4374 = vpop.f32.mrf.mxu0
        %v4375 = vadd.f32 0.0, %v4374
        %v4376 = vpop.f32.mrf.mxu0
        %4377 = vmatprep.mubr.bf16.mxu0 0
        %4378 = vmatmul.mubr.bf16.gmra.mxu0 %v4311
        %v4379 = vpop.f32.mrf.mxu0
        %v4380 = vadd.f32 0.0, %v4379
        %v4381 = vpop.f32.mrf.mxu0
        %v4382 = vpop.f32.mrf.mxu0
        %v4383 = vadd.f32 0.0, %v4382
        %v4384 = vpop.f32.mrf.mxu0
        %4385 = vmatprep.mubr.bf16.mxu0 0
        %4386 = vmatmul.mubr.bf16.gmra.mxu0 %v4314
        %v4387 = vpop.f32.mrf.mxu0
        %v4388 = vadd.f32 0.0, %v4387
        %v4389 = vpop.f32.mrf.mxu0
        %v4390 = vpop.f32.mrf.mxu0
        %v4391 = vadd.f32 0.0, %v4390
        %v4392 = vpop.f32.mrf.mxu0
        %4393 = vmatprep.mubr.bf16.mxu0 0
        %4394 = vmatmul.mubr.bf16.gmra.mxu0 %v4317
        %v4395 = vpop.f32.mrf.mxu0
        %v4396 = vadd.f32 0.0, %v4395
        %v4397 = vpop.f32.mrf.mxu0
        %v4398 = vpop.f32.mrf.mxu0
        %v4399 = vadd.f32 0.0, %v4398
        %v4400 = vpop.f32.mrf.mxu0
        %4401 = vmatprep.mubr.bf16.mxu0 0
        %4402 = vmatmul.mubr.bf16.gmra.mxu0 %v4320
        %v4403 = vpop.f32.mrf.mxu0
        %v4404 = vpop.f32.mrf.mxu0
        %v4405 = vpop.f32.mrf.mxu0
        %v4406 = vpop.f32.mrf.mxu0
        %4407 = vdwg.mxu0
        %v4408 = vadd.f32 %v4238, %v4359
        %v4409 = vadd.f32 %v4239, %v4364
        %v4410 = vadd.f32 %v4240, %v4367
        %v4411 = vadd.f32 %v4241, %v4372
        %v4412 = vadd.f32 %v4242, %v4375
        %v4413 = vadd.f32 %v4243, %v4380
        %v4414 = vadd.f32 %v4244, %v4383
        %v4415 = vadd.f32 %v4245, %v4388
        %v4416 = vadd.f32 %v4246, %v4391
        %v4417 = vadd.f32 %v4247, %v4396
        %v4418 = vadd.f32 %v4248, %v4399
        %v4419 = vld [vmem:[#allocation3 + $0xb] sm:$0xff]
        %v4420 = vld [vmem:[#allocation3 + $0x13] sm:$0xff]
        %v4421 = vld [vmem:[#allocation3 + $0x1b] sm:$0xff]
        %v4422 = vld [vmem:[#allocation3 + $0x23] sm:$0xff]
        %v4423 = vld [vmem:[#allocation3 + $0x2b] sm:$0xff]
        %v4424 = vld [vmem:[#allocation3 + $0x33] sm:$0xff]
        %v4425 = vld [vmem:[#allocation3 + $0x3b] sm:$0xff]
        %v4426 = vld [vmem:[#allocation3 + $0x43] sm:$0xff]
        %v4427 = vld [vmem:[#allocation3 + $0x4b] sm:$0xff]
        %v4428 = vld [vmem:[#allocation3 + $0x53] sm:$0xff]
        %v4429 = vld [vmem:[#allocation3 + $0x5b] sm:$0xff]
        %v4430 = vld [vmem:[#allocation3 + $0x63] sm:$0xff]
        %v4431 = vld [vmem:[#allocation3 + $0x6b] sm:$0xf]
        %v4432 = vpack.c.bf16 %v4420, %v4419
        %v4433 = vpack.c.bf16 %v4422, %v4421
        %v4434 = vpack.c.bf16 %v4424, %v4423
        %v4435 = vpack.c.bf16 %v4426, %v4425
        %v4436 = vpack.c.bf16 %v4428, %v4427
        %v4437 = vpack.c.bf16 %v4430, %v4429
        %v4438 = vpack.c.bf16 %v4431, %v4431
        %v4439 = vld [vmem:[%s5 + $0x80] sm:$0xf]
        %v4440 = vld [vmem:[%s5 + $0x84] sm:$0xf]
        %v4441 = vld [vmem:[%s5 + $0x88] sm:$0xf]
        %v4442 = vld [vmem:[%s5 + $0x8c] sm:$0xf]
        %v4443 = vld [vmem:[%s5 + $0x90] sm:$0xf]
        %v4444 = vld [vmem:[%s5 + $0x94] sm:$0xf]
        %v4445 = vld [vmem:[%s5 + $0x98] sm:$0xf]
        %v4446 = vld [vmem:[%s5 + $0x9c] sm:$0xf]
        %v4455 = vunpack.c.l.b16 %v4439
        %v4456 = vunpack.c.l.b16 %v4440
        %v4457 = vunpack.c.l.b16 %v4441
        %v4458 = vunpack.c.l.b16 %v4442
        %v4459 = vunpack.c.l.b16 %v4443
        %v4460 = vunpack.c.l.b16 %v4444
        %v4461 = vunpack.c.l.b16 %v4445
        %v4462 = vunpack.c.l.b16 %v4446
        %v4463 = vpack.c.b16 %v4456, %v4455
        %v4464 = vpack.c.b16 %v4458, %v4457
        %v4465 = vpack.c.b16 %v4460, %v4459
        %v4466 = vpack.c.b16 %v4462, %v4461
        %v4472 = vsel %vm551, %v4432, 0
        %v4475 = vsel %vm551, %v4433, 0
        %v4478 = vsel %vm551, %v4434, 0
        %v4481 = vsel %vm551, %v4435, 0
        %v4484 = vsel %vm551, %v4436, 0
        %v4487 = vsel %vm551, %v4437, 0
        %v4490 = vsel %vm551, %v4438, 0
        %4492 = vmatprep.subr.bf16.mxu0 0
        %4493 = vmatpush1.bf16.msra.mxu0 0
        %4494 = vmatprep.subr.bf16.mxu0 0
        %4495 = vmatpush1.bf16.msra.mxu0 0
        %4496 = vmatprep.subr.bf16.mxu0 0
        %4497 = vmatpush1.bf16.msra.mxu0 0
        %4498 = vmatprep.subr.bf16.mxu0 0
        %4499 = vmatpush1.bf16.msra.mxu0 0
        %4500 = vmatprep.subr.bf16.mxu0 0
        %4501 = vmatpush1.bf16.msra.mxu0 %v4466
        %4502 = vmatprep.subr.bf16.mxu0 0
        %4503 = vmatpush1.bf16.msra.mxu0 %v4465
        %4504 = vmatprep.subr.bf16.mxu0 0
        %4505 = vmatpush1.bf16.msra.mxu0 %v4464
        %4506 = vmatprep.subr.bf16.mxu0 0
        %4507 = vmatpush1.bf16.msra.mxu0 %v4463
        %4508 = vmatprep.subr.bf16.mxu0 0
        %4509 = vmatpush2.bf16.msra.mxu0 0
        %4510 = vmatprep.subr.bf16.mxu0 0
        %4511 = vmatpush2.bf16.msra.mxu0 0
        %4512 = vmatprep.subr.bf16.mxu0 0
        %4513 = vmatpush2.bf16.msra.mxu0 0
        %4514 = vmatprep.subr.bf16.mxu0 0
        %4515 = vmatpush2.bf16.msra.mxu0 0
        %4516 = vmatprep.subr.bf16.mxu0 0
        %4517 = vmatpush2.bf16.msra.mxu0 0
        %4518 = vmatprep.subr.bf16.mxu0 0
        %4519 = vmatpush2.bf16.msra.mxu0 0
        %4520 = vmatprep.subr.bf16.mxu0 0
        %4521 = vmatpush2.bf16.msra.mxu0 0
        %4522 = vmatprep.subr.bf16.mxu0 0
        %4523 = vmatpush2.bf16.msra.mxu0 0
        %4524 = vmatprep.mubr.bf16.mxu0 0
        %4525 = vmatmul.mubr.bf16.gmra.mxu0 %v4472
        %v4526 = vpop.f32.mrf.mxu0
        %v4527 = vpop.f32.mrf.mxu0
        %v4528 = vpop.f32.mrf.mxu0
        %v4529 = vadd.f32 0.0, %v4528
        %v4530 = vpop.f32.mrf.mxu0
        %4531 = vmatprep.mubr.bf16.mxu0 0
        %4532 = vmatmul.mubr.bf16.gmra.mxu0 %v4475
        %v4533 = vpop.f32.mrf.mxu0
        %v4534 = vadd.f32 0.0, %v4533
        %v4535 = vpop.f32.mrf.mxu0
        %v4536 = vpop.f32.mrf.mxu0
        %v4537 = vadd.f32 0.0, %v4536
        %v4538 = vpop.f32.mrf.mxu0
        %4539 = vmatprep.mubr.bf16.mxu0 0
        %4540 = vmatmul.mubr.bf16.gmra.mxu0 %v4478
        %v4541 = vpop.f32.mrf.mxu0
        %v4542 = vadd.f32 0.0, %v4541
        %v4543 = vpop.f32.mrf.mxu0
        %v4544 = vpop.f32.mrf.mxu0
        %v4545 = vadd.f32 0.0, %v4544
        %v4546 = vpop.f32.mrf.mxu0
        %4547 = vmatprep.mubr.bf16.mxu0 0
        %4548 = vmatmul.mubr.bf16.gmra.mxu0 %v4481
        %v4549 = vpop.f32.mrf.mxu0
        %v4550 = vadd.f32 0.0, %v4549
        %v4551 = vpop.f32.mrf.mxu0
        %v4552 = vpop.f32.mrf.mxu0
        %v4553 = vadd.f32 0.0, %v4552
        %v4554 = vpop.f32.mrf.mxu0
        %4555 = vmatprep.mubr.bf16.mxu0 0
        %4556 = vmatmul.mubr.bf16.gmra.mxu0 %v4484
        %v4557 = vpop.f32.mrf.mxu0
        %v4558 = vadd.f32 0.0, %v4557
        %v4559 = vpop.f32.mrf.mxu0
        %v4560 = vpop.f32.mrf.mxu0
        %v4561 = vadd.f32 0.0, %v4560
        %v4562 = vpop.f32.mrf.mxu0
        %4563 = vmatprep.mubr.bf16.mxu0 0
        %4564 = vmatmul.mubr.bf16.gmra.mxu0 %v4487
        %v4565 = vpop.f32.mrf.mxu0
        %v4566 = vadd.f32 0.0, %v4565
        %v4567 = vpop.f32.mrf.mxu0
        %v4568 = vpop.f32.mrf.mxu0
        %v4569 = vadd.f32 0.0, %v4568
        %v4570 = vpop.f32.mrf.mxu0
        %4571 = vmatprep.mubr.bf16.mxu0 0
        %4572 = vmatmul.mubr.bf16.gmra.mxu0 %v4490
        %v4573 = vpop.f32.mrf.mxu0
        %v4574 = vpop.f32.mrf.mxu0
        %v4575 = vpop.f32.mrf.mxu0
        %v4576 = vpop.f32.mrf.mxu0
        %4577 = vdwg.mxu0
        %v4578 = vadd.f32 %v4408, %v4529
        %v4579 = vadd.f32 %v4409, %v4534
        %v4580 = vadd.f32 %v4410, %v4537
        %v4581 = vadd.f32 %v4411, %v4542
        %v4582 = vadd.f32 %v4412, %v4545
        %v4583 = vadd.f32 %v4413, %v4550
        %v4584 = vadd.f32 %v4414, %v4553
        %v4585 = vadd.f32 %v4415, %v4558
        %v4586 = vadd.f32 %v4416, %v4561
        %v4587 = vadd.f32 %v4417, %v4566
        %v4588 = vadd.f32 %v4418, %v4569
        %v4589 = vld [vmem:[#allocation3 + $0xc] sm:$0xff]
        %v4590 = vld [vmem:[#allocation3 + $0x14] sm:$0xff]
        %v4591 = vld [vmem:[#allocation3 + $0x1c] sm:$0xff]
        %v4592 = vld [vmem:[#allocation3 + $0x24] sm:$0xff]
        %v4593 = vld [vmem:[#allocation3 + $0x2c] sm:$0xff]
        %v4594 = vld [vmem:[#allocation3 + $0x34] sm:$0xff]
        %v4595 = vld [vmem:[#allocation3 + $0x3c] sm:$0xff]
        %v4596 = vld [vmem:[#allocation3 + $0x44] sm:$0xff]
        %v4597 = vld [vmem:[#allocation3 + $0x4c] sm:$0xff]
        %v4598 = vld [vmem:[#allocation3 + $0x54] sm:$0xff]
        %v4599 = vld [vmem:[#allocation3 + $0x5c] sm:$0xff]
        %v4600 = vld [vmem:[#allocation3 + $0x64] sm:$0xff]
        %v4601 = vld [vmem:[#allocation3 + $0x6c] sm:$0xf]
        %v4602 = vpack.c.bf16 %v4590, %v4589
        %v4603 = vpack.c.bf16 %v4592, %v4591
        %v4604 = vpack.c.bf16 %v4594, %v4593
        %v4605 = vpack.c.bf16 %v4596, %v4595
        %v4606 = vpack.c.bf16 %v4598, %v4597
        %v4607 = vpack.c.bf16 %v4600, %v4599
        %v4608 = vpack.c.bf16 %v4601, %v4601
        %v4609 = vld [vmem:[%s5 + $0xa0] sm:$0xf]
        %v4610 = vld [vmem:[%s5 + $0xa4] sm:$0xf]
        %v4611 = vld [vmem:[%s5 + $0xa8] sm:$0xf]
        %v4612 = vld [vmem:[%s5 + $0xac] sm:$0xf]
        %v4613 = vld [vmem:[%s5 + $0xb0] sm:$0xf]
        %v4614 = vld [vmem:[%s5 + $0xb4] sm:$0xf]
        %v4615 = vld [vmem:[%s5 + $0xb8] sm:$0xf]
        %v4616 = vld [vmem:[%s5 + $0xbc] sm:$0xf]
        %v4625 = vunpack.c.l.b16 %v4609
        %v4626 = vunpack.c.l.b16 %v4610
        %v4627 = vunpack.c.l.b16 %v4611
        %v4628 = vunpack.c.l.b16 %v4612
        %v4629 = vunpack.c.l.b16 %v4613
        %v4630 = vunpack.c.l.b16 %v4614
        %v4631 = vunpack.c.l.b16 %v4615
        %v4632 = vunpack.c.l.b16 %v4616
        %v4633 = vpack.c.b16 %v4626, %v4625
        %v4634 = vpack.c.b16 %v4628, %v4627
        %v4635 = vpack.c.b16 %v4630, %v4629
        %v4636 = vpack.c.b16 %v4632, %v4631
        %v4642 = vsel %vm551, %v4602, 0
        %v4645 = vsel %vm551, %v4603, 0
        %v4648 = vsel %vm551, %v4604, 0
        %v4651 = vsel %vm551, %v4605, 0
        %v4654 = vsel %vm551, %v4606, 0
        %v4657 = vsel %vm551, %v4607, 0
        %v4660 = vsel %vm551, %v4608, 0
        %4662 = vmatprep.subr.bf16.mxu0 0
        %4663 = vmatpush1.bf16.msra.mxu0 0
        %4664 = vmatprep.subr.bf16.mxu0 0
        %4665 = vmatpush1.bf16.msra.mxu0 0
        %4666 = vmatprep.subr.bf16.mxu0 0
        %4667 = vmatpush1.bf16.msra.mxu0 0
        %4668 = vmatprep.subr.bf16.mxu0 0
        %4669 = vmatpush1.bf16.msra.mxu0 0
        %4670 = vmatprep.subr.bf16.mxu0 0
        %4671 = vmatpush1.bf16.msra.mxu0 %v4636
        %4672 = vmatprep.subr.bf16.mxu0 0
        %4673 = vmatpush1.bf16.msra.mxu0 %v4635
        %4674 = vmatprep.subr.bf16.mxu0 0
        %4675 = vmatpush1.bf16.msra.mxu0 %v4634
        %4676 = vmatprep.subr.bf16.mxu0 0
        %4677 = vmatpush1.bf16.msra.mxu0 %v4633
        %4678 = vmatprep.subr.bf16.mxu0 0
        %4679 = vmatpush2.bf16.msra.mxu0 0
        %4680 = vmatprep.subr.bf16.mxu0 0
        %4681 = vmatpush2.bf16.msra.mxu0 0
        %4682 = vmatprep.subr.bf16.mxu0 0
        %4683 = vmatpush2.bf16.msra.mxu0 0
        %4684 = vmatprep.subr.bf16.mxu0 0
        %4685 = vmatpush2.bf16.msra.mxu0 0
        %4686 = vmatprep.subr.bf16.mxu0 0
        %4687 = vmatpush2.bf16.msra.mxu0 0
        %4688 = vmatprep.subr.bf16.mxu0 0
        %4689 = vmatpush2.bf16.msra.mxu0 0
        %4690 = vmatprep.subr.bf16.mxu0 0
        %4691 = vmatpush2.bf16.msra.mxu0 0
        %4692 = vmatprep.subr.bf16.mxu0 0
        %4693 = vmatpush2.bf16.msra.mxu0 0
        %4694 = vmatprep.mubr.bf16.mxu0 0
        %4695 = vmatmul.mubr.bf16.gmra.mxu0 %v4642
        %v4696 = vpop.f32.mrf.mxu0
        %v4697 = vpop.f32.mrf.mxu0
        %v4698 = vpop.f32.mrf.mxu0
        %v4699 = vadd.f32 0.0, %v4698
        %v4700 = vpop.f32.mrf.mxu0
        %4701 = vmatprep.mubr.bf16.mxu0 0
        %4702 = vmatmul.mubr.bf16.gmra.mxu0 %v4645
        %v4703 = vpop.f32.mrf.mxu0
        %v4704 = vadd.f32 0.0, %v4703
        %v4705 = vpop.f32.mrf.mxu0
        %v4706 = vpop.f32.mrf.mxu0
        %v4707 = vadd.f32 0.0, %v4706
        %v4708 = vpop.f32.mrf.mxu0
        %4709 = vmatprep.mubr.bf16.mxu0 0
        %4710 = vmatmul.mubr.bf16.gmra.mxu0 %v4648
        %v4711 = vpop.f32.mrf.mxu0
        %v4712 = vadd.f32 0.0, %v4711
        %v4713 = vpop.f32.mrf.mxu0
        %v4714 = vpop.f32.mrf.mxu0
        %v4715 = vadd.f32 0.0, %v4714
        %v4716 = vpop.f32.mrf.mxu0
        %4717 = vmatprep.mubr.bf16.mxu0 0
        %4718 = vmatmul.mubr.bf16.gmra.mxu0 %v4651
        %v4719 = vpop.f32.mrf.mxu0
        %v4720 = vadd.f32 0.0, %v4719
        %v4721 = vpop.f32.mrf.mxu0
        %v4722 = vpop.f32.mrf.mxu0
        %v4723 = vadd.f32 0.0, %v4722
        %v4724 = vpop.f32.mrf.mxu0
        %4725 = vmatprep.mubr.bf16.mxu0 0
        %4726 = vmatmul.mubr.bf16.gmra.mxu0 %v4654
        %v4727 = vpop.f32.mrf.mxu0
        %v4728 = vadd.f32 0.0, %v4727
        %v4729 = vpop.f32.mrf.mxu0
        %v4730 = vpop.f32.mrf.mxu0
        %v4731 = vadd.f32 0.0, %v4730
        %v4732 = vpop.f32.mrf.mxu0
        %4733 = vmatprep.mubr.bf16.mxu0 0
        %4734 = vmatmul.mubr.bf16.gmra.mxu0 %v4657
        %v4735 = vpop.f32.mrf.mxu0
        %v4736 = vadd.f32 0.0, %v4735
        %v4737 = vpop.f32.mrf.mxu0
        %v4738 = vpop.f32.mrf.mxu0
        %v4739 = vadd.f32 0.0, %v4738
        %v4740 = vpop.f32.mrf.mxu0
        %4741 = vmatprep.mubr.bf16.mxu0 0
        %4742 = vmatmul.mubr.bf16.gmra.mxu0 %v4660
        %v4743 = vpop.f32.mrf.mxu0
        %v4744 = vpop.f32.mrf.mxu0
        %v4745 = vpop.f32.mrf.mxu0
        %v4746 = vpop.f32.mrf.mxu0
        %4747 = vdwg.mxu0
        %v4748 = vadd.f32 %v4578, %v4699
        %v4749 = vadd.f32 %v4579, %v4704
        %v4750 = vadd.f32 %v4580, %v4707
        %v4751 = vadd.f32 %v4581, %v4712
        %v4752 = vadd.f32 %v4582, %v4715
        %v4753 = vadd.f32 %v4583, %v4720
        %v4754 = vadd.f32 %v4584, %v4723
        %v4755 = vadd.f32 %v4585, %v4728
        %v4756 = vadd.f32 %v4586, %v4731
        %v4757 = vadd.f32 %v4587, %v4736
        %v4758 = vadd.f32 %v4588, %v4739
        %v4759 = vld [vmem:[#allocation3 + $0x14] sm:$0xff]
        %v4760 = vld [vmem:[#allocation3 + $0x1c] sm:$0xff]
        %v4761 = vld [vmem:[#allocation3 + $0x24] sm:$0xff]
        %v4762 = vld [vmem:[#allocation3 + $0x2c] sm:$0xff]
        %v4763 = vld [vmem:[#allocation3 + $0x34] sm:$0xff]
        %v4764 = vld [vmem:[#allocation3 + $0x3c] sm:$0xff]
        %v4765 = vld [vmem:[#allocation3 + $0x44] sm:$0xff]
        %v4766 = vld [vmem:[#allocation3 + $0x4c] sm:$0xff]
        %v4767 = vld [vmem:[#allocation3 + $0x54] sm:$0xff]
        %v4768 = vld [vmem:[#allocation3 + $0x5c] sm:$0xff]
        %v4769 = vld [vmem:[#allocation3 + $0x64] sm:$0xff]
        %v4770 = vld [vmem:[#allocation3 + $0x6c] sm:$0xff]
        %v4771 = vld [vmem:[#allocation3 + $0x74] sm:$0xf]
        %v4772 = vpack.c.bf16 %v4760, %v4759
        %v4773 = vpack.c.bf16 %v4762, %v4761
        %v4774 = vpack.c.bf16 %v4764, %v4763
        %v4775 = vpack.c.bf16 %v4766, %v4765
        %v4776 = vpack.c.bf16 %v4768, %v4767
        %v4777 = vpack.c.bf16 %v4770, %v4769
        %v4778 = vpack.c.bf16 %v4771, %v4771
        %v4779 = vld [vmem:[%s5 + $0xc0] sm:$0xf]
        %v4780 = vld [vmem:[%s5 + $0xc4] sm:$0xf]
        %v4781 = vld [vmem:[%s5 + $0xc8] sm:$0xf]
        %v4782 = vld [vmem:[%s5 + $0xcc] sm:$0xf]
        %v4783 = vld [vmem:[%s5 + $0xd0] sm:$0xf]
        %v4784 = vld [vmem:[%s5 + $0xd4] sm:$0xf]
        %v4785 = vld [vmem:[%s5 + $0xd8] sm:$0xf]
        %v4786 = vld [vmem:[%s5 + $0xdc] sm:$0xf]
        %v4795 = vunpack.c.l.b16 %v4779
        %v4796 = vunpack.c.l.b16 %v4780
        %v4797 = vunpack.c.l.b16 %v4781
        %v4798 = vunpack.c.l.b16 %v4782
        %v4799 = vunpack.c.l.b16 %v4783
        %v4800 = vunpack.c.l.b16 %v4784
        %v4801 = vunpack.c.l.b16 %v4785
        %v4802 = vunpack.c.l.b16 %v4786
        %v4803 = vpack.c.b16 %v4796, %v4795
        %v4804 = vpack.c.b16 %v4798, %v4797
        %v4805 = vpack.c.b16 %v4800, %v4799
        %v4806 = vpack.c.b16 %v4802, %v4801
        %v4812 = vsel %vm551, %v4772, 0
        %v4815 = vsel %vm551, %v4773, 0
        %v4818 = vsel %vm551, %v4774, 0
        %v4821 = vsel %vm551, %v4775, 0
        %v4824 = vsel %vm551, %v4776, 0
        %v4827 = vsel %vm551, %v4777, 0
        %v4830 = vsel %vm551, %v4778, 0
        %4832 = vmatprep.subr.bf16.mxu0 0
        %4833 = vmatpush1.bf16.msra.mxu0 0
        %4834 = vmatprep.subr.bf16.mxu0 0
        %4835 = vmatpush1.bf16.msra.mxu0 0
        %4836 = vmatprep.subr.bf16.mxu0 0
        %4837 = vmatpush1.bf16.msra.mxu0 0
        %4838 = vmatprep.subr.bf16.mxu0 0
        %4839 = vmatpush1.bf16.msra.mxu0 0
        %4840 = vmatprep.subr.bf16.mxu0 0
        %4841 = vmatpush1.bf16.msra.mxu0 %v4806
        %4842 = vmatprep.subr.bf16.mxu0 0
        %4843 = vmatpush1.bf16.msra.mxu0 %v4805
        %4844 = vmatprep.subr.bf16.mxu0 0
        %4845 = vmatpush1.bf16.msra.mxu0 %v4804
        %4846 = vmatprep.subr.bf16.mxu0 0
        %4847 = vmatpush1.bf16.msra.mxu0 %v4803
        %4848 = vmatprep.subr.bf16.mxu0 0
        %4849 = vmatpush2.bf16.msra.mxu0 0
        %4850 = vmatprep.subr.bf16.mxu0 0
        %4851 = vmatpush2.bf16.msra.mxu0 0
        %4852 = vmatprep.subr.bf16.mxu0 0
        %4853 = vmatpush2.bf16.msra.mxu0 0
        %4854 = vmatprep.subr.bf16.mxu0 0
        %4855 = vmatpush2.bf16.msra.mxu0 0
        %4856 = vmatprep.subr.bf16.mxu0 0
        %4857 = vmatpush2.bf16.msra.mxu0 0
        %4858 = vmatprep.subr.bf16.mxu0 0
        %4859 = vmatpush2.bf16.msra.mxu0 0
        %4860 = vmatprep.subr.bf16.mxu0 0
        %4861 = vmatpush2.bf16.msra.mxu0 0
        %4862 = vmatprep.subr.bf16.mxu0 0
        %4863 = vmatpush2.bf16.msra.mxu0 0
        %4864 = vmatprep.mubr.bf16.mxu0 0
        %4865 = vmatmul.mubr.bf16.gmra.mxu0 %v4812
        %v4866 = vpop.f32.mrf.mxu0
        %v4867 = vpop.f32.mrf.mxu0
        %v4868 = vpop.f32.mrf.mxu0
        %v4869 = vadd.f32 0.0, %v4868
        %v4870 = vpop.f32.mrf.mxu0
        %4871 = vmatprep.mubr.bf16.mxu0 0
        %4872 = vmatmul.mubr.bf16.gmra.mxu0 %v4815
        %v4873 = vpop.f32.mrf.mxu0
        %v4874 = vadd.f32 0.0, %v4873
        %v4875 = vpop.f32.mrf.mxu0
        %v4876 = vpop.f32.mrf.mxu0
        %v4877 = vadd.f32 0.0, %v4876
        %v4878 = vpop.f32.mrf.mxu0
        %4879 = vmatprep.mubr.bf16.mxu0 0
        %4880 = vmatmul.mubr.bf16.gmra.mxu0 %v4818
        %v4881 = vpop.f32.mrf.mxu0
        %v4882 = vadd.f32 0.0, %v4881
        %v4883 = vpop.f32.mrf.mxu0
        %v4884 = vpop.f32.mrf.mxu0
        %v4885 = vadd.f32 0.0, %v4884
        %v4886 = vpop.f32.mrf.mxu0
        %4887 = vmatprep.mubr.bf16.mxu0 0
        %4888 = vmatmul.mubr.bf16.gmra.mxu0 %v4821
        %v4889 = vpop.f32.mrf.mxu0
        %v4890 = vadd.f32 0.0, %v4889
        %v4891 = vpop.f32.mrf.mxu0
        %v4892 = vpop.f32.mrf.mxu0
        %v4893 = vadd.f32 0.0, %v4892
        %v4894 = vpop.f32.mrf.mxu0
        %4895 = vmatprep.mubr.bf16.mxu0 0
        %4896 = vmatmul.mubr.bf16.gmra.mxu0 %v4824
        %v4897 = vpop.f32.mrf.mxu0
        %v4898 = vadd.f32 0.0, %v4897
        %v4899 = vpop.f32.mrf.mxu0
        %v4900 = vpop.f32.mrf.mxu0
        %v4901 = vadd.f32 0.0, %v4900
        %v4902 = vpop.f32.mrf.mxu0
        %4903 = vmatprep.mubr.bf16.mxu0 0
        %4904 = vmatmul.mubr.bf16.gmra.mxu0 %v4827
        %v4905 = vpop.f32.mrf.mxu0
        %v4906 = vadd.f32 0.0, %v4905
        %v4907 = vpop.f32.mrf.mxu0
        %v4908 = vpop.f32.mrf.mxu0
        %v4909 = vadd.f32 0.0, %v4908
        %v4910 = vpop.f32.mrf.mxu0
        %4911 = vmatprep.mubr.bf16.mxu0 0
        %4912 = vmatmul.mubr.bf16.gmra.mxu0 %v4830
        %v4913 = vpop.f32.mrf.mxu0
        %v4914 = vpop.f32.mrf.mxu0
        %v4915 = vpop.f32.mrf.mxu0
        %v4916 = vpop.f32.mrf.mxu0
        %4917 = vdwg.mxu0
        %v4918 = vadd.f32 %v4748, %v4869
        %v4919 = vadd.f32 %v4749, %v4874
        %v4920 = vadd.f32 %v4750, %v4877
        %v4921 = vadd.f32 %v4751, %v4882
        %v4922 = vadd.f32 %v4752, %v4885
        %v4923 = vadd.f32 %v4753, %v4890
        %v4924 = vadd.f32 %v4754, %v4893
        %v4925 = vadd.f32 %v4755, %v4898
        %v4926 = vadd.f32 %v4756, %v4901
        %v4927 = vadd.f32 %v4757, %v4906
        %v4928 = vadd.f32 %v4758, %v4909
        %v4929 = vld [vmem:[#allocation3 + $0x15] sm:$0xff]
        %v4930 = vld [vmem:[#allocation3 + $0x1d] sm:$0xff]
        %v4931 = vld [vmem:[#allocation3 + $0x25] sm:$0xff]
        %v4932 = vld [vmem:[#allocation3 + $0x2d] sm:$0xff]
        %v4933 = vld [vmem:[#allocation3 + $0x35] sm:$0xff]
        %v4934 = vld [vmem:[#allocation3 + $0x3d] sm:$0xff]
        %v4935 = vld [vmem:[#allocation3 + $0x45] sm:$0xff]
        %v4936 = vld [vmem:[#allocation3 + $0x4d] sm:$0xff]
        %v4937 = vld [vmem:[#allocation3 + $0x55] sm:$0xff]
        %v4938 = vld [vmem:[#allocation3 + $0x5d] sm:$0xff]
        %v4939 = vld [vmem:[#allocation3 + $0x65] sm:$0xff]
        %v4940 = vld [vmem:[#allocation3 + $0x6d] sm:$0xff]
        %v4941 = vld [vmem:[#allocation3 + $0x75] sm:$0xf]
        %v4942 = vpack.c.bf16 %v4930, %v4929
        %v4943 = vpack.c.bf16 %v4932, %v4931
        %v4944 = vpack.c.bf16 %v4934, %v4933
        %v4945 = vpack.c.bf16 %v4936, %v4935
        %v4946 = vpack.c.bf16 %v4938, %v4937
        %v4947 = vpack.c.bf16 %v4940, %v4939
        %v4948 = vpack.c.bf16 %v4941, %v4941
        %v4949 = vld [vmem:[%s5 + $0xe0] sm:$0xf]
        %v4950 = vld [vmem:[%s5 + $0xe4] sm:$0xf]
        %v4951 = vld [vmem:[%s5 + $0xe8] sm:$0xf]
        %v4952 = vld [vmem:[%s5 + $0xec] sm:$0xf]
        %v4953 = vld [vmem:[%s5 + $0xf0] sm:$0xf]
        %v4954 = vld [vmem:[%s5 + $0xf4] sm:$0xf]
        %v4955 = vld [vmem:[%s5 + $0xf8] sm:$0xf]
        %v4956 = vld [vmem:[%s5 + $0xfc] sm:$0xf]
        %v4965 = vunpack.c.l.b16 %v4949
        %v4966 = vunpack.c.l.b16 %v4950
        %v4967 = vunpack.c.l.b16 %v4951
        %v4968 = vunpack.c.l.b16 %v4952
        %v4969 = vunpack.c.l.b16 %v4953
        %v4970 = vunpack.c.l.b16 %v4954
        %v4971 = vunpack.c.l.b16 %v4955
        %v4972 = vunpack.c.l.b16 %v4956
        %v4973 = vpack.c.b16 %v4966, %v4965
        %v4974 = vpack.c.b16 %v4968, %v4967
        %v4975 = vpack.c.b16 %v4970, %v4969
        %v4976 = vpack.c.b16 %v4972, %v4971
        %v4982 = vsel %vm551, %v4942, 0
        %v4985 = vsel %vm551, %v4943, 0
        %v4988 = vsel %vm551, %v4944, 0
        %v4991 = vsel %vm551, %v4945, 0
        %v4994 = vsel %vm551, %v4946, 0
        %v4997 = vsel %vm551, %v4947, 0
        %v5000 = vsel %vm551, %v4948, 0
        %5002 = vmatprep.subr.bf16.mxu0 0
        %5003 = vmatpush1.bf16.msra.mxu0 0
        %5004 = vmatprep.subr.bf16.mxu0 0
        %5005 = vmatpush1.bf16.msra.mxu0 0
        %5006 = vmatprep.subr.bf16.mxu0 0
        %5007 = vmatpush1.bf16.msra.mxu0 0
        %5008 = vmatprep.subr.bf16.mxu0 0
        %5009 = vmatpush1.bf16.msra.mxu0 0
        %5010 = vmatprep.subr.bf16.mxu0 0
        %5011 = vmatpush1.bf16.msra.mxu0 %v4976
        %5012 = vmatprep.subr.bf16.mxu0 0
        %5013 = vmatpush1.bf16.msra.mxu0 %v4975
        %5014 = vmatprep.subr.bf16.mxu0 0
        %5015 = vmatpush1.bf16.msra.mxu0 %v4974
        %5016 = vmatprep.subr.bf16.mxu0 0
        %5017 = vmatpush1.bf16.msra.mxu0 %v4973
        %5018 = vmatprep.subr.bf16.mxu0 0
        %5019 = vmatpush2.bf16.msra.mxu0 0
        %5020 = vmatprep.subr.bf16.mxu0 0
        %5021 = vmatpush2.bf16.msra.mxu0 0
        %5022 = vmatprep.subr.bf16.mxu0 0
        %5023 = vmatpush2.bf16.msra.mxu0 0
        %5024 = vmatprep.subr.bf16.mxu0 0
        %5025 = vmatpush2.bf16.msra.mxu0 0
        %5026 = vmatprep.subr.bf16.mxu0 0
        %5027 = vmatpush2.bf16.msra.mxu0 0
        %5028 = vmatprep.subr.bf16.mxu0 0
        %5029 = vmatpush2.bf16.msra.mxu0 0
        %5030 = vmatprep.subr.bf16.mxu0 0
        %5031 = vmatpush2.bf16.msra.mxu0 0
        %5032 = vmatprep.subr.bf16.mxu0 0
        %5033 = vmatpush2.bf16.msra.mxu0 0
        %5034 = vmatprep.mubr.bf16.mxu0 0
        %5035 = vmatmul.mubr.bf16.gmra.mxu0 %v4982
        %v5036 = vpop.f32.mrf.mxu0
        %v5037 = vpop.f32.mrf.mxu0
        %v5038 = vpop.f32.mrf.mxu0
        %v5039 = vadd.f32 0.0, %v5038
        %v5040 = vpop.f32.mrf.mxu0
        %5041 = vmatprep.mubr.bf16.mxu0 0
        %5042 = vmatmul.mubr.bf16.gmra.mxu0 %v4985
        %v5043 = vpop.f32.mrf.mxu0
        %v5044 = vadd.f32 0.0, %v5043
        %v5045 = vpop.f32.mrf.mxu0
        %v5046 = vpop.f32.mrf.mxu0
        %v5047 = vadd.f32 0.0, %v5046
        %v5048 = vpop.f32.mrf.mxu0
        %5049 = vmatprep.mubr.bf16.mxu0 0
        %5050 = vmatmul.mubr.bf16.gmra.mxu0 %v4988
        %v5051 = vpop.f32.mrf.mxu0
        %v5052 = vadd.f32 0.0, %v5051
        %v5053 = vpop.f32.mrf.mxu0
        %v5054 = vpop.f32.mrf.mxu0
        %v5055 = vadd.f32 0.0, %v5054
        %v5056 = vpop.f32.mrf.mxu0
        %5057 = vmatprep.mubr.bf16.mxu0 0
        %5058 = vmatmul.mubr.bf16.gmra.mxu0 %v4991
        %v5059 = vpop.f32.mrf.mxu0
        %v5060 = vadd.f32 0.0, %v5059
        %v5061 = vpop.f32.mrf.mxu0
        %v5062 = vpop.f32.mrf.mxu0
        %v5063 = vadd.f32 0.0, %v5062
        %v5064 = vpop.f32.mrf.mxu0
        %5065 = vmatprep.mubr.bf16.mxu0 0
        %5066 = vmatmul.mubr.bf16.gmra.mxu0 %v4994
        %v5067 = vpop.f32.mrf.mxu0
        %v5068 = vadd.f32 0.0, %v5067
        %v5069 = vpop.f32.mrf.mxu0
        %v5070 = vpop.f32.mrf.mxu0
        %v5071 = vadd.f32 0.0, %v5070
        %v5072 = vpop.f32.mrf.mxu0
        %5073 = vmatprep.mubr.bf16.mxu0 0
        %5074 = vmatmul.mubr.bf16.gmra.mxu0 %v4997
        %v5075 = vpop.f32.mrf.mxu0
        %v5076 = vadd.f32 0.0, %v5075
        %v5077 = vpop.f32.mrf.mxu0
        %v5078 = vpop.f32.mrf.mxu0
        %v5079 = vadd.f32 0.0, %v5078
        %v5080 = vpop.f32.mrf.mxu0
        %5081 = vmatprep.mubr.bf16.mxu0 0
        %5082 = vmatmul.mubr.bf16.gmra.mxu0 %v5000
        %v5083 = vpop.f32.mrf.mxu0
        %v5084 = vpop.f32.mrf.mxu0
        %v5085 = vpop.f32.mrf.mxu0
        %v5086 = vpop.f32.mrf.mxu0
        %5087 = vdwg.mxu0
        %v5088 = vadd.f32 %v4918, %v5039
        %v5089 = vadd.f32 %v4919, %v5044
        %v5090 = vadd.f32 %v4920, %v5047
        %v5091 = vadd.f32 %v4921, %v5052
        %v5092 = vadd.f32 %v4922, %v5055
        %v5093 = vadd.f32 %v4923, %v5060
        %v5094 = vadd.f32 %v4924, %v5063
        %v5095 = vadd.f32 %v4925, %v5068
        %v5096 = vadd.f32 %v4926, %v5071
        %v5097 = vadd.f32 %v4927, %v5076
        %v5098 = vadd.f32 %v4928, %v5079
        %v5099 = vld [vmem:[#allocation3 + $0x16] sm:$0xff]
        %v5100 = vld [vmem:[#allocation3 + $0x1e] sm:$0xff]
        %v5101 = vld [vmem:[#allocation3 + $0x26] sm:$0xff]
        %v5102 = vld [vmem:[#allocation3 + $0x2e] sm:$0xff]
        %v5103 = vld [vmem:[#allocation3 + $0x36] sm:$0xff]
        %v5104 = vld [vmem:[#allocation3 + $0x3e] sm:$0xff]
        %v5105 = vld [vmem:[#allocation3 + $0x46] sm:$0xff]
        %v5106 = vld [vmem:[#allocation3 + $0x4e] sm:$0xff]
        %v5107 = vld [vmem:[#allocation3 + $0x56] sm:$0xff]
        %v5108 = vld [vmem:[#allocation3 + $0x5e] sm:$0xff]
        %v5109 = vld [vmem:[#allocation3 + $0x66] sm:$0xff]
        %v5110 = vld [vmem:[#allocation3 + $0x6e] sm:$0xff]
        %v5111 = vld [vmem:[#allocation3 + $0x76] sm:$0xf]
        %v5112 = vpack.c.bf16 %v5100, %v5099
        %v5113 = vpack.c.bf16 %v5102, %v5101
        %v5114 = vpack.c.bf16 %v5104, %v5103
        %v5115 = vpack.c.bf16 %v5106, %v5105
        %v5116 = vpack.c.bf16 %v5108, %v5107
        %v5117 = vpack.c.bf16 %v5110, %v5109
        %v5118 = vpack.c.bf16 %v5111, %v5111
        %v5119 = vld [vmem:[%s5 + $0x100] sm:$0xf]
        %v5120 = vld [vmem:[%s5 + $0x104] sm:$0xf]
        %v5121 = vld [vmem:[%s5 + $0x108] sm:$0xf]
        %v5122 = vld [vmem:[%s5 + $0x10c] sm:$0xf]
        %v5123 = vld [vmem:[%s5 + $0x110] sm:$0xf]
        %v5124 = vld [vmem:[%s5 + $0x114] sm:$0xf]
        %v5125 = vld [vmem:[%s5 + $0x118] sm:$0xf]
        %v5126 = vld [vmem:[%s5 + $0x11c] sm:$0xf]
        %v5135 = vunpack.c.l.b16 %v5119
        %v5136 = vunpack.c.l.b16 %v5120
        %v5137 = vunpack.c.l.b16 %v5121
        %v5138 = vunpack.c.l.b16 %v5122
        %v5139 = vunpack.c.l.b16 %v5123
        %v5140 = vunpack.c.l.b16 %v5124
        %v5141 = vunpack.c.l.b16 %v5125
        %v5142 = vunpack.c.l.b16 %v5126
        %v5143 = vpack.c.b16 %v5136, %v5135
        %v5144 = vpack.c.b16 %v5138, %v5137
        %v5145 = vpack.c.b16 %v5140, %v5139
        %v5146 = vpack.c.b16 %v5142, %v5141
        %v5152 = vsel %vm551, %v5112, 0
        %v5155 = vsel %vm551, %v5113, 0
        %v5158 = vsel %vm551, %v5114, 0
        %v5161 = vsel %vm551, %v5115, 0
        %v5164 = vsel %vm551, %v5116, 0
        %v5167 = vsel %vm551, %v5117, 0
        %v5170 = vsel %vm551, %v5118, 0
        %5172 = vmatprep.subr.bf16.mxu0 0
        %5173 = vmatpush1.bf16.msra.mxu0 0
        %5174 = vmatprep.subr.bf16.mxu0 0
        %5175 = vmatpush1.bf16.msra.mxu0 0
        %5176 = vmatprep.subr.bf16.mxu0 0
        %5177 = vmatpush1.bf16.msra.mxu0 0
        %5178 = vmatprep.subr.bf16.mxu0 0
        %5179 = vmatpush1.bf16.msra.mxu0 0
        %5180 = vmatprep.subr.bf16.mxu0 0
        %5181 = vmatpush1.bf16.msra.mxu0 %v5146
        %5182 = vmatprep.subr.bf16.mxu0 0
        %5183 = vmatpush1.bf16.msra.mxu0 %v5145
        %5184 = vmatprep.subr.bf16.mxu0 0
        %5185 = vmatpush1.bf16.msra.mxu0 %v5144
        %5186 = vmatprep.subr.bf16.mxu0 0
        %5187 = vmatpush1.bf16.msra.mxu0 %v5143
        %5188 = vmatprep.subr.bf16.mxu0 0
        %5189 = vmatpush2.bf16.msra.mxu0 0
        %5190 = vmatprep.subr.bf16.mxu0 0
        %5191 = vmatpush2.bf16.msra.mxu0 0
        %5192 = vmatprep.subr.bf16.mxu0 0
        %5193 = vmatpush2.bf16.msra.mxu0 0
        %5194 = vmatprep.subr.bf16.mxu0 0
        %5195 = vmatpush2.bf16.msra.mxu0 0
        %5196 = vmatprep.subr.bf16.mxu0 0
        %5197 = vmatpush2.bf16.msra.mxu0 0
        %5198 = vmatprep.subr.bf16.mxu0 0
        %5199 = vmatpush2.bf16.msra.mxu0 0
        %5200 = vmatprep.subr.bf16.mxu0 0
        %5201 = vmatpush2.bf16.msra.mxu0 0
        %5202 = vmatprep.subr.bf16.mxu0 0
        %5203 = vmatpush2.bf16.msra.mxu0 0
        %5204 = vmatprep.mubr.bf16.mxu0 0
        %5205 = vmatmul.mubr.bf16.gmra.mxu0 %v5152
        %v5206 = vpop.f32.mrf.mxu0
        %v5207 = vpop.f32.mrf.mxu0
        %v5208 = vpop.f32.mrf.mxu0
        %v5209 = vadd.f32 0.0, %v5208
        %v5210 = vpop.f32.mrf.mxu0
        %5211 = vmatprep.mubr.bf16.mxu0 0
        %5212 = vmatmul.mubr.bf16.gmra.mxu0 %v5155
        %v5213 = vpop.f32.mrf.mxu0
        %v5214 = vadd.f32 0.0, %v5213
        %v5215 = vpop.f32.mrf.mxu0
        %v5216 = vpop.f32.mrf.mxu0
        %v5217 = vadd.f32 0.0, %v5216
        %v5218 = vpop.f32.mrf.mxu0
        %5219 = vmatprep.mubr.bf16.mxu0 0
        %5220 = vmatmul.mubr.bf16.gmra.mxu0 %v5158
        %v5221 = vpop.f32.mrf.mxu0
        %v5222 = vadd.f32 0.0, %v5221
        %v5223 = vpop.f32.mrf.mxu0
        %v5224 = vpop.f32.mrf.mxu0
        %v5225 = vadd.f32 0.0, %v5224
        %v5226 = vpop.f32.mrf.mxu0
        %5227 = vmatprep.mubr.bf16.mxu0 0
        %5228 = vmatmul.mubr.bf16.gmra.mxu0 %v5161
        %v5229 = vpop.f32.mrf.mxu0
        %v5230 = vadd.f32 0.0, %v5229
        %v5231 = vpop.f32.mrf.mxu0
        %v5232 = vpop.f32.mrf.mxu0
        %v5233 = vadd.f32 0.0, %v5232
        %v5234 = vpop.f32.mrf.mxu0
        %5235 = vmatprep.mubr.bf16.mxu0 0
        %5236 = vmatmul.mubr.bf16.gmra.mxu0 %v5164
        %v5237 = vpop.f32.mrf.mxu0
        %v5238 = vadd.f32 0.0, %v5237
        %v5239 = vpop.f32.mrf.mxu0
        %v5240 = vpop.f32.mrf.mxu0
        %v5241 = vadd.f32 0.0, %v5240
        %v5242 = vpop.f32.mrf.mxu0
        %5243 = vmatprep.mubr.bf16.mxu0 0
        %5244 = vmatmul.mubr.bf16.gmra.mxu0 %v5167
        %v5245 = vpop.f32.mrf.mxu0
        %v5246 = vadd.f32 0.0, %v5245
        %v5247 = vpop.f32.mrf.mxu0
        %v5248 = vpop.f32.mrf.mxu0
        %v5249 = vadd.f32 0.0, %v5248
        %v5250 = vpop.f32.mrf.mxu0
        %5251 = vmatprep.mubr.bf16.mxu0 0
        %5252 = vmatmul.mubr.bf16.gmra.mxu0 %v5170
        %v5253 = vpop.f32.mrf.mxu0
        %v5254 = vpop.f32.mrf.mxu0
        %v5255 = vpop.f32.mrf.mxu0
        %v5256 = vpop.f32.mrf.mxu0
        %5257 = vdwg.mxu0
        %v5258 = vadd.f32 %v5088, %v5209
        %v5259 = vadd.f32 %v5089, %v5214
        %v5260 = vadd.f32 %v5090, %v5217
        %v5261 = vadd.f32 %v5091, %v5222
        %v5262 = vadd.f32 %v5092, %v5225
        %v5263 = vadd.f32 %v5093, %v5230
        %v5264 = vadd.f32 %v5094, %v5233
        %v5265 = vadd.f32 %v5095, %v5238
        %v5266 = vadd.f32 %v5096, %v5241
        %v5267 = vadd.f32 %v5097, %v5246
        %v5268 = vadd.f32 %v5098, %v5249
        %v5269 = vld [vmem:[%s6] sm:$0x1]
        %v5271 = vlaneseq
        %v5272 = vshrl.u32 %v5271, 7
        %v5273 = vsub.s32 0, %v5272
        %v5274 = vrot.slane %v5269, %v5273
        %v5276 = vadd.f32 %v5258, %v5274
        %v5277 = vadd.f32 %v5259, %v5274
        %v5278 = vadd.f32 %v5260, %v5274
        %v5279 = vadd.f32 %v5261, %v5274
        %v5280 = vadd.f32 %v5262, %v5274
        %v5281 = vadd.f32 %v5263, %v5274
        %v5282 = vadd.f32 %v5264, %v5274
        %v5283 = vadd.f32 %v5265, %v5274
        %v5284 = vadd.f32 %v5266, %v5274
        %v5285 = vadd.f32 %v5267, %v5274
        %v5286 = vadd.f32 %v5268, %v5274
        %v5287 = vtanh.pop %v5276
        %v5288 = vtanh.pop %v5277
        %v5289 = vtanh.pop %v5278
        %v5290 = vtanh.pop %v5279
        %v5291 = vtanh.pop %v5280
        %v5292 = vtanh.pop %v5281
        %v5293 = vtanh.pop %v5282
        %v5294 = vtanh.pop %v5283
        %v5295 = vtanh.pop %v5284
        %v5296 = vtanh.pop %v5285
        %v5297 = vtanh.pop %v5286
        %5298 = vst [vmem:[%s525 - $0x3] sm:$0xf8] %v5287
        %5299 = vst [vmem:[%s525 + $0x5] sm:$0x7] %v5288
        %5300 = vst [vmem:[%s525 + $0x3] sm:$0xe0] %v5288
        %5301 = vst [vmem:[%s525 + $0xb] sm:$0x1f] %v5289
        %5302 = vst [vmem:[%s525 + $0x9] sm:$0x80] %v5289
        %5303 = vst [vmem:[%s525 + $0x11] sm:$0x7f] %v5290
        %5304 = vst [vmem:[%s525 + $0x17] sm:$0xfe] %v5291
        %5305 = vst [vmem:[%s525 + $0x1f] sm:$0x1] %v5292
        %5306 = vst [vmem:[%s525 + $0x1d] sm:$0xf8] %v5292
        %5307 = vst [vmem:[%s525 + $0x25] sm:$0x7] %v5293
        %5308 = vst [vmem:[%s525 + $0x23] sm:$0xe0] %v5293
        %5309 = vst [vmem:[%s525 + $0x2b] sm:$0x1f] %v5294
        %5310 = vst [vmem:[%s525 + $0x29] sm:$0x80] %v5294
        %5311 = vst [vmem:[%s525 + $0x31] sm:$0x7f] %v5295
        %5312 = vst [vmem:[%s525 + $0x37] sm:$0xfe] %v5296
        %5313 = vst [vmem:[%s525 + $0x3f] sm:$0x1] %v5297
        %vm5316 = vcmask 1045504
        %v5317 = vrot.slane %v5288, 2
        %v5318 = vrot.slane %v5289, 2
        %v5319 = vsel %vm5316, %v5317, %v5318
        %v5322 = vmax.f32 %v5287, %v5319
        %v5323 = vmax.f32 %v5288, %v5318
        %vm5326 = vcmask 1044480
        %v5327 = vrot.slane %v5322, 3
        %v5328 = vrot.slane %v5323, 3
        %v5329 = vsel %vm5326, %v5327, %v5328
        %vm5331 = vcmask 64512
        %v5332 = vsel %vm5331, %v1037, 0
        %5334 = vmatprep.subr.mxu0 0.0
        %5335 = vmatpush1.msra.mxu0 0.0
        %5336 = vmatprep.subr.mxu0 0.0
        %5337 = vmatpush1.msra.mxu0 0.0
        %5338 = vmatprep.subr.mxu0 0.0
        %5339 = vmatpush1.msra.mxu0 0.0
        %5340 = vmatprep.subr.mxu0 0.0
        %5341 = vmatpush1.msra.mxu0 0.0
        %5342 = vmatprep.subr.mxu0 0.0
        %5343 = vmatpush1.msra.mxu0 0.0
        %5344 = vmatprep.subr.mxu0 0.0
        %5345 = vmatpush1.msra.mxu0 0.0
        %5346 = vmatprep.subr.mxu0 0.0
        %5347 = vmatpush1.msra.mxu0 0.0
        %5348 = vmatprep.subr.mxu0 0.0
        %5349 = vmatpush1.msra.mxu0 0.0
        %5350 = vmatprep.subr.mxu0 0.0
        %5351 = vmatpush1.msra.mxu0 0.0
        %5352 = vmatprep.subr.mxu0 0.0
        %5353 = vmatpush1.msra.mxu0 0.0
        %5354 = vmatprep.subr.mxu0 0.0
        %5355 = vmatpush1.msra.mxu0 0.0
        %5356 = vmatprep.subr.mxu0 0.0
        %5357 = vmatpush1.msra.mxu0 0.0
        %5358 = vmatprep.subr.mxu0 0.0
        %5359 = vmatpush1.msra.mxu0 0.0
        %5360 = vmatprep.subr.mxu0 0.0
        %5361 = vmatpush1.msra.mxu0 0.0
        %5362 = vmatprep.subr.mxu0 0.0
        %5363 = vmatpush1.msra.mxu0 0.0
        %5364 = vmatprep.subr.mxu0 0.0
        %5365 = vmatpush1.msra.mxu0 %v5329
        %5366 = vmatprep.subr.mxu0 0.0
        %5367 = vmatpush2.msra.mxu0 0.0
        %5368 = vmatprep.subr.mxu0 0.0
        %5369 = vmatpush2.msra.mxu0 0.0
        %5370 = vmatprep.subr.mxu0 0.0
        %5371 = vmatpush2.msra.mxu0 0.0
        %5372 = vmatprep.subr.mxu0 0.0
        %5373 = vmatpush2.msra.mxu0 0.0
        %5374 = vmatprep.subr.mxu0 0.0
        %5375 = vmatpush2.msra.mxu0 0.0
        %5376 = vmatprep.subr.mxu0 0.0
        %5377 = vmatpush2.msra.mxu0 0.0
        %5378 = vmatprep.subr.mxu0 0.0
        %5379 = vmatpush2.msra.mxu0 0.0
        %5380 = vmatprep.subr.mxu0 0.0
        %5381 = vmatpush2.msra.mxu0 0.0
        %5382 = vmatprep.subr.mxu0 0.0
        %5383 = vmatpush2.msra.mxu0 0.0
        %5384 = vmatprep.subr.mxu0 0.0
        %5385 = vmatpush2.msra.mxu0 0.0
        %5386 = vmatprep.subr.mxu0 0.0
        %5387 = vmatpush2.msra.mxu0 0.0
        %5388 = vmatprep.subr.mxu0 0.0
        %5389 = vmatpush2.msra.mxu0 0.0
        %5390 = vmatprep.subr.mxu0 0.0
        %5391 = vmatpush2.msra.mxu0 0.0
        %5392 = vmatprep.subr.mxu0 0.0
        %5393 = vmatpush2.msra.mxu0 0.0
        %5394 = vmatprep.subr.mxu0 0.0
        %5395 = vmatpush2.msra.mxu0 0.0
        %5396 = vmatprep.subr.mxu0 0.0
        %5397 = vmatpush2.msra.mxu0 0.0
        %5398 = vmatprep.mubr.f32.mxu0 0.0
        %5399 = vmatmul.mubr.f32.gmra.mxu0 %v5332
        %v5400 = vpop.f32.mrf.mxu0
        %v5401 = vadd.f32 0.0, %v5400
        %v5402 = vpop.f32.mrf.mxu0
        %5403 = vdwg.mxu0
        %v5404 = vsel %vm5331, %v1041, 0
        %5406 = vmatprep.subr.mxu0 0.0
        %5407 = vmatpush1.msra.mxu0 0.0
        %5408 = vmatprep.subr.mxu0 0.0
        %5409 = vmatpush1.msra.mxu0 0.0
        %5410 = vmatprep.subr.mxu0 0.0
        %5411 = vmatpush1.msra.mxu0 0.0
        %5412 = vmatprep.subr.mxu0 0.0
        %5413 = vmatpush1.msra.mxu0 0.0
        %5414 = vmatprep.subr.mxu0 0.0
        %5415 = vmatpush1.msra.mxu0 0.0
        %5416 = vmatprep.subr.mxu0 0.0
        %5417 = vmatpush1.msra.mxu0 0.0
        %5418 = vmatprep.subr.mxu0 0.0
        %5419 = vmatpush1.msra.mxu0 0.0
        %5420 = vmatprep.subr.mxu0 0.0
        %5421 = vmatpush1.msra.mxu0 0.0
        %5422 = vmatprep.subr.mxu0 0.0
        %5423 = vmatpush1.msra.mxu0 0.0
        %5424 = vmatprep.subr.mxu0 0.0
        %5425 = vmatpush1.msra.mxu0 0.0
        %5426 = vmatprep.subr.mxu0 0.0
        %5427 = vmatpush1.msra.mxu0 0.0
        %5428 = vmatprep.subr.mxu0 0.0
        %5429 = vmatpush1.msra.mxu0 0.0
        %5430 = vmatprep.subr.mxu0 0.0
        %5431 = vmatpush1.msra.mxu0 0.0
        %5432 = vmatprep.subr.mxu0 0.0
        %5433 = vmatpush1.msra.mxu0 0.0
        %5434 = vmatprep.subr.mxu0 0.0
        %5435 = vmatpush1.msra.mxu0 0.0
        %5436 = vmatprep.subr.mxu0 0.0
        %5437 = vmatpush1.msra.mxu0 %v5329
        %5438 = vmatprep.subr.mxu0 0.0
        %5439 = vmatpush2.msra.mxu0 0.0
        %5440 = vmatprep.subr.mxu0 0.0
        %5441 = vmatpush2.msra.mxu0 0.0
        %5442 = vmatprep.subr.mxu0 0.0
        %5443 = vmatpush2.msra.mxu0 0.0
        %5444 = vmatprep.subr.mxu0 0.0
        %5445 = vmatpush2.msra.mxu0 0.0
        %5446 = vmatprep.subr.mxu0 0.0
        %5447 = vmatpush2.msra.mxu0 0.0
        %5448 = vmatprep.subr.mxu0 0.0
        %5449 = vmatpush2.msra.mxu0 0.0
        %5450 = vmatprep.subr.mxu0 0.0
        %5451 = vmatpush2.msra.mxu0 0.0
        %5452 = vmatprep.subr.mxu0 0.0
        %5453 = vmatpush2.msra.mxu0 0.0
        %5454 = vmatprep.subr.mxu0 0.0
        %5455 = vmatpush2.msra.mxu0 0.0
        %5456 = vmatprep.subr.mxu0 0.0
        %5457 = vmatpush2.msra.mxu0 0.0
        %5458 = vmatprep.subr.mxu0 0.0
        %5459 = vmatpush2.msra.mxu0 0.0
        %5460 = vmatprep.subr.mxu0 0.0
        %5461 = vmatpush2.msra.mxu0 0.0
        %5462 = vmatprep.subr.mxu0 0.0
        %5463 = vmatpush2.msra.mxu0 0.0
        %5464 = vmatprep.subr.mxu0 0.0
        %5465 = vmatpush2.msra.mxu0 0.0
        %5466 = vmatprep.subr.mxu0 0.0
        %5467 = vmatpush2.msra.mxu0 0.0
        %5468 = vmatprep.subr.mxu0 0.0
        %5469 = vmatpush2.msra.mxu0 0.0
        %5470 = vmatprep.mubr.f32.mxu0 0.0
        %5471 = vmatmul.mubr.f32.gmra.mxu0 %v5404
        %v5472 = vpop.f32.mrf.mxu0
        %v5473 = vadd.f32 0.0, %v5472
        %v5474 = vpop.f32.mrf.mxu0
        %5475 = vdwg.mxu0
        %v5476 = vmax.f32 %v5401, %v5473
        %5477 = vst [vmem:[#allocation4 + $0xe] sm:$0xf] %v5476
        %v5480 = vrot.slane %v5291, 2
        %v5481 = vrot.slane %v5292, 2
        %v5482 = vsel %vm5316, %v5480, %v5481
        %v5485 = vmax.f32 %v5289, %v5480
        %v5486 = vmax.f32 %v5290, %v5482
        %vm5489 = vcmask 1040384
        %v5490 = vrot.slane %v5485, 7
        %v5491 = vrot.slane %v5486, 7
        %v5492 = vsel %vm5489, %v5490, %v5491
        %5494 = vmatprep.subr.mxu0 0.0
        %5495 = vmatpush1.msra.mxu0 0.0
        %5496 = vmatprep.subr.mxu0 0.0
        %5497 = vmatpush1.msra.mxu0 0.0
        %5498 = vmatprep.subr.mxu0 0.0
        %5499 = vmatpush1.msra.mxu0 0.0
        %5500 = vmatprep.subr.mxu0 0.0
        %5501 = vmatpush1.msra.mxu0 0.0
        %5502 = vmatprep.subr.mxu0 0.0
        %5503 = vmatpush1.msra.mxu0 0.0
        %5504 = vmatprep.subr.mxu0 0.0
        %5505 = vmatpush1.msra.mxu0 0.0
        %5506 = vmatprep.subr.mxu0 0.0
        %5507 = vmatpush1.msra.mxu0 0.0
        %5508 = vmatprep.subr.mxu0 0.0
        %5509 = vmatpush1.msra.mxu0 0.0
        %5510 = vmatprep.subr.mxu0 0.0
        %5511 = vmatpush1.msra.mxu0 0.0
        %5512 = vmatprep.subr.mxu0 0.0
        %5513 = vmatpush1.msra.mxu0 0.0
        %5514 = vmatprep.subr.mxu0 0.0
        %5515 = vmatpush1.msra.mxu0 0.0
        %5516 = vmatprep.subr.mxu0 0.0
        %5517 = vmatpush1.msra.mxu0 0.0
        %5518 = vmatprep.subr.mxu0 0.0
        %5519 = vmatpush1.msra.mxu0 0.0
        %5520 = vmatprep.subr.mxu0 0.0
        %5521 = vmatpush1.msra.mxu0 0.0
        %5522 = vmatprep.subr.mxu0 0.0
        %5523 = vmatpush1.msra.mxu0 0.0
        %5524 = vmatprep.subr.mxu0 0.0
        %5525 = vmatpush1.msra.mxu0 %v5492
        %5526 = vmatprep.subr.mxu0 0.0
        %5527 = vmatpush2.msra.mxu0 0.0
        %5528 = vmatprep.subr.mxu0 0.0
        %5529 = vmatpush2.msra.mxu0 0.0
        %5530 = vmatprep.subr.mxu0 0.0
        %5531 = vmatpush2.msra.mxu0 0.0
        %5532 = vmatprep.subr.mxu0 0.0
        %5533 = vmatpush2.msra.mxu0 0.0
        %5534 = vmatprep.subr.mxu0 0.0
        %5535 = vmatpush2.msra.mxu0 0.0
        %5536 = vmatprep.subr.mxu0 0.0
        %5537 = vmatpush2.msra.mxu0 0.0
        %5538 = vmatprep.subr.mxu0 0.0
        %5539 = vmatpush2.msra.mxu0 0.0
        %5540 = vmatprep.subr.mxu0 0.0
        %5541 = vmatpush2.msra.mxu0 0.0
        %5542 = vmatprep.subr.mxu0 0.0
        %5543 = vmatpush2.msra.mxu0 0.0
        %5544 = vmatprep.subr.mxu0 0.0
        %5545 = vmatpush2.msra.mxu0 0.0
        %5546 = vmatprep.subr.mxu0 0.0
        %5547 = vmatpush2.msra.mxu0 0.0
        %5548 = vmatprep.subr.mxu0 0.0
        %5549 = vmatpush2.msra.mxu0 0.0
        %5550 = vmatprep.subr.mxu0 0.0
        %5551 = vmatpush2.msra.mxu0 0.0
        %5552 = vmatprep.subr.mxu0 0.0
        %5553 = vmatpush2.msra.mxu0 0.0
        %5554 = vmatprep.subr.mxu0 0.0
        %5555 = vmatpush2.msra.mxu0 0.0
        %5556 = vmatprep.subr.mxu0 0.0
        %5557 = vmatpush2.msra.mxu0 0.0
        %5558 = vmatprep.mubr.f32.mxu0 0.0
        %5559 = vmatmul.mubr.f32.gmra.mxu0 %v5332
        %v5560 = vpop.f32.mrf.mxu0
        %v5561 = vadd.f32 0.0, %v5560
        %v5562 = vpop.f32.mrf.mxu0
        %5563 = vdwg.mxu0
        %5564 = vmatprep.subr.mxu0 0.0
        %5565 = vmatpush1.msra.mxu0 0.0
        %5566 = vmatprep.subr.mxu0 0.0
        %5567 = vmatpush1.msra.mxu0 0.0
        %5568 = vmatprep.subr.mxu0 0.0
        %5569 = vmatpush1.msra.mxu0 0.0
        %5570 = vmatprep.subr.mxu0 0.0
        %5571 = vmatpush1.msra.mxu0 0.0
        %5572 = vmatprep.subr.mxu0 0.0
        %5573 = vmatpush1.msra.mxu0 0.0
        %5574 = vmatprep.subr.mxu0 0.0
        %5575 = vmatpush1.msra.mxu0 0.0
        %5576 = vmatprep.subr.mxu0 0.0
        %5577 = vmatpush1.msra.mxu0 0.0
        %5578 = vmatprep.subr.mxu0 0.0
        %5579 = vmatpush1.msra.mxu0 0.0
        %5580 = vmatprep.subr.mxu0 0.0
        %5581 = vmatpush1.msra.mxu0 0.0
        %5582 = vmatprep.subr.mxu0 0.0
        %5583 = vmatpush1.msra.mxu0 0.0
        %5584 = vmatprep.subr.mxu0 0.0
        %5585 = vmatpush1.msra.mxu0 0.0
        %5586 = vmatprep.subr.mxu0 0.0
        %5587 = vmatpush1.msra.mxu0 0.0
        %5588 = vmatprep.subr.mxu0 0.0
        %5589 = vmatpush1.msra.mxu0 0.0
        %5590 = vmatprep.subr.mxu0 0.0
        %5591 = vmatpush1.msra.mxu0 0.0
        %5592 = vmatprep.subr.mxu0 0.0
        %5593 = vmatpush1.msra.mxu0 0.0
        %5594 = vmatprep.subr.mxu0 0.0
        %5595 = vmatpush1.msra.mxu0 %v5492
        %5596 = vmatprep.subr.mxu0 0.0
        %5597 = vmatpush2.msra.mxu0 0.0
        %5598 = vmatprep.subr.mxu0 0.0
        %5599 = vmatpush2.msra.mxu0 0.0
        %5600 = vmatprep.subr.mxu0 0.0
        %5601 = vmatpush2.msra.mxu0 0.0
        %5602 = vmatprep.subr.mxu0 0.0
        %5603 = vmatpush2.msra.mxu0 0.0
        %5604 = vmatprep.subr.mxu0 0.0
        %5605 = vmatpush2.msra.mxu0 0.0
        %5606 = vmatprep.subr.mxu0 0.0
        %5607 = vmatpush2.msra.mxu0 0.0
        %5608 = vmatprep.subr.mxu0 0.0
        %5609 = vmatpush2.msra.mxu0 0.0
        %5610 = vmatprep.subr.mxu0 0.0
        %5611 = vmatpush2.msra.mxu0 0.0
        %5612 = vmatprep.subr.mxu0 0.0
        %5613 = vmatpush2.msra.mxu0 0.0
        %5614 = vmatprep.subr.mxu0 0.0
        %5615 = vmatpush2.msra.mxu0 0.0
        %5616 = vmatprep.subr.mxu0 0.0
        %5617 = vmatpush2.msra.mxu0 0.0
        %5618 = vmatprep.subr.mxu0 0.0
        %5619 = vmatpush2.msra.mxu0 0.0
        %5620 = vmatprep.subr.mxu0 0.0
        %5621 = vmatpush2.msra.mxu0 0.0
        %5622 = vmatprep.subr.mxu0 0.0
        %5623 = vmatpush2.msra.mxu0 0.0
        %5624 = vmatprep.subr.mxu0 0.0
        %5625 = vmatpush2.msra.mxu0 0.0
        %5626 = vmatprep.subr.mxu0 0.0
        %5627 = vmatpush2.msra.mxu0 0.0
        %5628 = vmatprep.mubr.f32.mxu0 0.0
        %5629 = vmatmul.mubr.f32.gmra.mxu0 %v5404
        %v5630 = vpop.f32.mrf.mxu0
        %v5631 = vadd.f32 0.0, %v5630
        %v5632 = vpop.f32.mrf.mxu0
        %5633 = vdwg.mxu0
        %v5634 = vmax.f32 %v5561, %v5631
        %5635 = vst [vmem:[#allocation4 + $0x14] sm:$0xf] %v5634
        %v5638 = vrot.slane %v5293, 2
        %v5639 = vrot.slane %v5294, 2
        %v5640 = vsel %vm5316, %v5638, %v5639
        %v5643 = vmax.f32 %v5292, %v5640
        %v5644 = vmax.f32 %v5293, %v5639
        %v5647 = vrot.slane %v5643, 3
        %v5648 = vrot.slane %v5644, 3
        %v5649 = vsel %vm5326, %v5647, %v5648
        %5651 = vmatprep.subr.mxu0 0.0
        %5652 = vmatpush1.msra.mxu0 0.0
        %5653 = vmatprep.subr.mxu0 0.0
        %5654 = vmatpush1.msra.mxu0 0.0
        %5655 = vmatprep.subr.mxu0 0.0
        %5656 = vmatpush1.msra.mxu0 0.0
        %5657 = vmatprep.subr.mxu0 0.0
        %5658 = vmatpush1.msra.mxu0 0.0
        %5659 = vmatprep.subr.mxu0 0.0
        %5660 = vmatpush1.msra.mxu0 0.0
        %5661 = vmatprep.subr.mxu0 0.0
        %5662 = vmatpush1.msra.mxu0 0.0
        %5663 = vmatprep.subr.mxu0 0.0
        %5664 = vmatpush1.msra.mxu0 0.0
        %5665 = vmatprep.subr.mxu0 0.0
        %5666 = vmatpush1.msra.mxu0 0.0
        %5667 = vmatprep.subr.mxu0 0.0
        %5668 = vmatpush1.msra.mxu0 0.0
        %5669 = vmatprep.subr.mxu0 0.0
        %5670 = vmatpush1.msra.mxu0 0.0
        %5671 = vmatprep.subr.mxu0 0.0
        %5672 = vmatpush1.msra.mxu0 0.0
        %5673 = vmatprep.subr.mxu0 0.0
        %5674 = vmatpush1.msra.mxu0 0.0
        %5675 = vmatprep.subr.mxu0 0.0
        %5676 = vmatpush1.msra.mxu0 0.0
        %5677 = vmatprep.subr.mxu0 0.0
        %5678 = vmatpush1.msra.mxu0 0.0
        %5679 = vmatprep.subr.mxu0 0.0
        %5680 = vmatpush1.msra.mxu0 0.0
        %5681 = vmatprep.subr.mxu0 0.0
        %5682 = vmatpush1.msra.mxu0 %v5649
        %5683 = vmatprep.subr.mxu0 0.0
        %5684 = vmatpush2.msra.mxu0 0.0
        %5685 = vmatprep.subr.mxu0 0.0
        %5686 = vmatpush2.msra.mxu0 0.0
        %5687 = vmatprep.subr.mxu0 0.0
        %5688 = vmatpush2.msra.mxu0 0.0
        %5689 = vmatprep.subr.mxu0 0.0
        %5690 = vmatpush2.msra.mxu0 0.0
        %5691 = vmatprep.subr.mxu0 0.0
        %5692 = vmatpush2.msra.mxu0 0.0
        %5693 = vmatprep.subr.mxu0 0.0
        %5694 = vmatpush2.msra.mxu0 0.0
        %5695 = vmatprep.subr.mxu0 0.0
        %5696 = vmatpush2.msra.mxu0 0.0
        %5697 = vmatprep.subr.mxu0 0.0
        %5698 = vmatpush2.msra.mxu0 0.0
        %5699 = vmatprep.subr.mxu0 0.0
        %5700 = vmatpush2.msra.mxu0 0.0
        %5701 = vmatprep.subr.mxu0 0.0
        %5702 = vmatpush2.msra.mxu0 0.0
        %5703 = vmatprep.subr.mxu0 0.0
        %5704 = vmatpush2.msra.mxu0 0.0
        %5705 = vmatprep.subr.mxu0 0.0
        %5706 = vmatpush2.msra.mxu0 0.0
        %5707 = vmatprep.subr.mxu0 0.0
        %5708 = vmatpush2.msra.mxu0 0.0
        %5709 = vmatprep.subr.mxu0 0.0
        %5710 = vmatpush2.msra.mxu0 0.0
        %5711 = vmatprep.subr.mxu0 0.0
        %5712 = vmatpush2.msra.mxu0 0.0
        %5713 = vmatprep.subr.mxu0 0.0
        %5714 = vmatpush2.msra.mxu0 0.0
        %5715 = vmatprep.mubr.f32.mxu0 0.0
        %5716 = vmatmul.mubr.f32.gmra.mxu0 %v5332
        %v5717 = vpop.f32.mrf.mxu0
        %v5718 = vadd.f32 0.0, %v5717
        %v5719 = vpop.f32.mrf.mxu0
        %5720 = vdwg.mxu0
        %5721 = vmatprep.subr.mxu0 0.0
        %5722 = vmatpush1.msra.mxu0 0.0
        %5723 = vmatprep.subr.mxu0 0.0
        %5724 = vmatpush1.msra.mxu0 0.0
        %5725 = vmatprep.subr.mxu0 0.0
        %5726 = vmatpush1.msra.mxu0 0.0
        %5727 = vmatprep.subr.mxu0 0.0
        %5728 = vmatpush1.msra.mxu0 0.0
        %5729 = vmatprep.subr.mxu0 0.0
        %5730 = vmatpush1.msra.mxu0 0.0
        %5731 = vmatprep.subr.mxu0 0.0
        %5732 = vmatpush1.msra.mxu0 0.0
        %5733 = vmatprep.subr.mxu0 0.0
        %5734 = vmatpush1.msra.mxu0 0.0
        %5735 = vmatprep.subr.mxu0 0.0
        %5736 = vmatpush1.msra.mxu0 0.0
        %5737 = vmatprep.subr.mxu0 0.0
        %5738 = vmatpush1.msra.mxu0 0.0
        %5739 = vmatprep.subr.mxu0 0.0
        %5740 = vmatpush1.msra.mxu0 0.0
        %5741 = vmatprep.subr.mxu0 0.0
        %5742 = vmatpush1.msra.mxu0 0.0
        %5743 = vmatprep.subr.mxu0 0.0
        %5744 = vmatpush1.msra.mxu0 0.0
        %5745 = vmatprep.subr.mxu0 0.0
        %5746 = vmatpush1.msra.mxu0 0.0
        %5747 = vmatprep.subr.mxu0 0.0
        %5748 = vmatpush1.msra.mxu0 0.0
        %5749 = vmatprep.subr.mxu0 0.0
        %5750 = vmatpush1.msra.mxu0 0.0
        %5751 = vmatprep.subr.mxu0 0.0
        %5752 = vmatpush1.msra.mxu0 %v5649
        %5753 = vmatprep.subr.mxu0 0.0
        %5754 = vmatpush2.msra.mxu0 0.0
        %5755 = vmatprep.subr.mxu0 0.0
        %5756 = vmatpush2.msra.mxu0 0.0
        %5757 = vmatprep.subr.mxu0 0.0
        %5758 = vmatpush2.msra.mxu0 0.0
        %5759 = vmatprep.subr.mxu0 0.0
        %5760 = vmatpush2.msra.mxu0 0.0
        %5761 = vmatprep.subr.mxu0 0.0
        %5762 = vmatpush2.msra.mxu0 0.0
        %5763 = vmatprep.subr.mxu0 0.0
        %5764 = vmatpush2.msra.mxu0 0.0
        %5765 = vmatprep.subr.mxu0 0.0
        %5766 = vmatpush2.msra.mxu0 0.0
        %5767 = vmatprep.subr.mxu0 0.0
        %5768 = vmatpush2.msra.mxu0 0.0
        %5769 = vmatprep.subr.mxu0 0.0
        %5770 = vmatpush2.msra.mxu0 0.0
        %5771 = vmatprep.subr.mxu0 0.0
        %5772 = vmatpush2.msra.mxu0 0.0
        %5773 = vmatprep.subr.mxu0 0.0
        %5774 = vmatpush2.msra.mxu0 0.0
        %5775 = vmatprep.subr.mxu0 0.0
        %5776 = vmatpush2.msra.mxu0 0.0
        %5777 = vmatprep.subr.mxu0 0.0
        %5778 = vmatpush2.msra.mxu0 0.0
        %5779 = vmatprep.subr.mxu0 0.0
        %5780 = vmatpush2.msra.mxu0 0.0
        %5781 = vmatprep.subr.mxu0 0.0
        %5782 = vmatpush2.msra.mxu0 0.0
        %5783 = vmatprep.subr.mxu0 0.0
        %5784 = vmatpush2.msra.mxu0 0.0
        %5785 = vmatprep.mubr.f32.mxu0 0.0
        %5786 = vmatmul.mubr.f32.gmra.mxu0 %v5404
        %v5787 = vpop.f32.mrf.mxu0
        %v5788 = vadd.f32 0.0, %v5787
        %v5789 = vpop.f32.mrf.mxu0
        %5790 = vdwg.mxu0
        %v5791 = vmax.f32 %v5718, %v5788
        %5792 = vst [vmem:[#allocation4 + $0x1a] sm:$0xf] %v5791
        %v5795 = vrot.slane %v5296, 2
        %v5796 = vrot.slane %v5297, 2
        %v5797 = vsel %vm5316, %v5795, %v5796
        %v5800 = vmax.f32 %v5294, %v5795
        %v5801 = vmax.f32 %v5295, %v5797
        %v5804 = vrot.slane %v5800, 7
        %v5805 = vrot.slane %v5801, 7
        %v5806 = vsel %vm5489, %v5804, %v5805
        %5808 = vmatprep.subr.mxu0 0.0
        %5809 = vmatpush1.msra.mxu0 0.0
        %5810 = vmatprep.subr.mxu0 0.0
        %5811 = vmatpush1.msra.mxu0 0.0
        %5812 = vmatprep.subr.mxu0 0.0
        %5813 = vmatpush1.msra.mxu0 0.0
        %5814 = vmatprep.subr.mxu0 0.0
        %5815 = vmatpush1.msra.mxu0 0.0
        %5816 = vmatprep.subr.mxu0 0.0
        %5817 = vmatpush1.msra.mxu0 0.0
        %5818 = vmatprep.subr.mxu0 0.0
        %5819 = vmatpush1.msra.mxu0 0.0
        %5820 = vmatprep.subr.mxu0 0.0
        %5821 = vmatpush1.msra.mxu0 0.0
        %5822 = vmatprep.subr.mxu0 0.0
        %5823 = vmatpush1.msra.mxu0 0.0
        %5824 = vmatprep.subr.mxu0 0.0
        %5825 = vmatpush1.msra.mxu0 0.0
        %5826 = vmatprep.subr.mxu0 0.0
        %5827 = vmatpush1.msra.mxu0 0.0
        %5828 = vmatprep.subr.mxu0 0.0
        %5829 = vmatpush1.msra.mxu0 0.0
        %5830 = vmatprep.subr.mxu0 0.0
        %5831 = vmatpush1.msra.mxu0 0.0
        %5832 = vmatprep.subr.mxu0 0.0
        %5833 = vmatpush1.msra.mxu0 0.0
        %5834 = vmatprep.subr.mxu0 0.0
        %5835 = vmatpush1.msra.mxu0 0.0
        %5836 = vmatprep.subr.mxu0 0.0
        %5837 = vmatpush1.msra.mxu0 0.0
        %5838 = vmatprep.subr.mxu0 0.0
        %5839 = vmatpush1.msra.mxu0 %v5806
        %5840 = vmatprep.subr.mxu0 0.0
        %5841 = vmatpush2.msra.mxu0 0.0
        %5842 = vmatprep.subr.mxu0 0.0
        %5843 = vmatpush2.msra.mxu0 0.0
        %5844 = vmatprep.subr.mxu0 0.0
        %5845 = vmatpush2.msra.mxu0 0.0
        %5846 = vmatprep.subr.mxu0 0.0
        %5847 = vmatpush2.msra.mxu0 0.0
        %5848 = vmatprep.subr.mxu0 0.0
        %5849 = vmatpush2.msra.mxu0 0.0
        %5850 = vmatprep.subr.mxu0 0.0
        %5851 = vmatpush2.msra.mxu0 0.0
        %5852 = vmatprep.subr.mxu0 0.0
        %5853 = vmatpush2.msra.mxu0 0.0
        %5854 = vmatprep.subr.mxu0 0.0
        %5855 = vmatpush2.msra.mxu0 0.0
        %5856 = vmatprep.subr.mxu0 0.0
        %5857 = vmatpush2.msra.mxu0 0.0
        %5858 = vmatprep.subr.mxu0 0.0
        %5859 = vmatpush2.msra.mxu0 0.0
        %5860 = vmatprep.subr.mxu0 0.0
        %5861 = vmatpush2.msra.mxu0 0.0
        %5862 = vmatprep.subr.mxu0 0.0
        %5863 = vmatpush2.msra.mxu0 0.0
        %5864 = vmatprep.subr.mxu0 0.0
        %5865 = vmatpush2.msra.mxu0 0.0
        %5866 = vmatprep.subr.mxu0 0.0
        %5867 = vmatpush2.msra.mxu0 0.0
        %5868 = vmatprep.subr.mxu0 0.0
        %5869 = vmatpush2.msra.mxu0 0.0
        %5870 = vmatprep.subr.mxu0 0.0
        %5871 = vmatpush2.msra.mxu0 0.0
        %5872 = vmatprep.mubr.f32.mxu0 0.0
        %5873 = vmatmul.mubr.f32.gmra.mxu0 %v5332
        %v5874 = vpop.f32.mrf.mxu0
        %v5875 = vadd.f32 0.0, %v5874
        %v5876 = vpop.f32.mrf.mxu0
        %5877 = vdwg.mxu0
        %5878 = vmatprep.subr.mxu0 0.0
        %5879 = vmatpush1.msra.mxu0 0.0
        %5880 = vmatprep.subr.mxu0 0.0
        %5881 = vmatpush1.msra.mxu0 0.0
        %5882 = vmatprep.subr.mxu0 0.0
        %5883 = vmatpush1.msra.mxu0 0.0
        %5884 = vmatprep.subr.mxu0 0.0
        %5885 = vmatpush1.msra.mxu0 0.0
        %5886 = vmatprep.subr.mxu0 0.0
        %5887 = vmatpush1.msra.mxu0 0.0
        %5888 = vmatprep.subr.mxu0 0.0
        %5889 = vmatpush1.msra.mxu0 0.0
        %5890 = vmatprep.subr.mxu0 0.0
        %5891 = vmatpush1.msra.mxu0 0.0
        %5892 = vmatprep.subr.mxu0 0.0
        %5893 = vmatpush1.msra.mxu0 0.0
        %5894 = vmatprep.subr.mxu0 0.0
        %5895 = vmatpush1.msra.mxu0 0.0
        %5896 = vmatprep.subr.mxu0 0.0
        %5897 = vmatpush1.msra.mxu0 0.0
        %5898 = vmatprep.subr.mxu0 0.0
        %5899 = vmatpush1.msra.mxu0 0.0
        %5900 = vmatprep.subr.mxu0 0.0
        %5901 = vmatpush1.msra.mxu0 0.0
        %5902 = vmatprep.subr.mxu0 0.0
        %5903 = vmatpush1.msra.mxu0 0.0
        %5904 = vmatprep.subr.mxu0 0.0
        %5905 = vmatpush1.msra.mxu0 0.0
        %5906 = vmatprep.subr.mxu0 0.0
        %5907 = vmatpush1.msra.mxu0 0.0
        %5908 = vmatprep.subr.mxu0 0.0
        %5909 = vmatpush1.msra.mxu0 %v5806
        %5910 = vmatprep.subr.mxu0 0.0
        %5911 = vmatpush2.msra.mxu0 0.0
        %5912 = vmatprep.subr.mxu0 0.0
        %5913 = vmatpush2.msra.mxu0 0.0
        %5914 = vmatprep.subr.mxu0 0.0
        %5915 = vmatpush2.msra.mxu0 0.0
        %5916 = vmatprep.subr.mxu0 0.0
        %5917 = vmatpush2.msra.mxu0 0.0
        %5918 = vmatprep.subr.mxu0 0.0
        %5919 = vmatpush2.msra.mxu0 0.0
        %5920 = vmatprep.subr.mxu0 0.0
        %5921 = vmatpush2.msra.mxu0 0.0
        %5922 = vmatprep.subr.mxu0 0.0
        %5923 = vmatpush2.msra.mxu0 0.0
        %5924 = vmatprep.subr.mxu0 0.0
        %5925 = vmatpush2.msra.mxu0 0.0
        %5926 = vmatprep.subr.mxu0 0.0
        %5927 = vmatpush2.msra.mxu0 0.0
        %5928 = vmatprep.subr.mxu0 0.0
        %5929 = vmatpush2.msra.mxu0 0.0
        %5930 = vmatprep.subr.mxu0 0.0
        %5931 = vmatpush2.msra.mxu0 0.0
        %5932 = vmatprep.subr.mxu0 0.0
        %5933 = vmatpush2.msra.mxu0 0.0
        %5934 = vmatprep.subr.mxu0 0.0
        %5935 = vmatpush2.msra.mxu0 0.0
        %5936 = vmatprep.subr.mxu0 0.0
        %5937 = vmatpush2.msra.mxu0 0.0
        %5938 = vmatprep.subr.mxu0 0.0
        %5939 = vmatpush2.msra.mxu0 0.0
        %5940 = vmatprep.subr.mxu0 0.0
        %5941 = vmatpush2.msra.mxu0 0.0
        %5942 = vmatprep.mubr.f32.mxu0 0.0
        %5943 = vmatmul.mubr.f32.gmra.mxu0 %v5404
        %v5944 = vpop.f32.mrf.mxu0
        %v5945 = vadd.f32 0.0, %v5944
        %v5946 = vpop.f32.mrf.mxu0
        %5947 = vdwg.mxu0
        %v5948 = vmax.f32 %v5875, %v5945
        %5949 = vst [vmem:[#allocation4 + $0x20] sm:$0xf] %v5948
        %v5950 = vld [vmem:[#allocation4] sm:$0xff]
        %v5951 = vld [vmem:[#allocation4 + $0x8] sm:$0xff]
        %v5952 = vld [vmem:[#allocation4 + $0x10] sm:$0xff]
        %v5953 = vld [vmem:[#allocation4 + $0x18] sm:$0xff]
        %v5954 = vld [vmem:[#allocation4 + $0x20] sm:$0xf]
        %v5955 = vpack.c.bf16 %v5951, %v5950
        %v5956 = vpack.c.bf16 %v5953, %v5952
        %v5957 = vpack.c.bf16 %v5954, %v5954
        %v5958 = vld [vmem:[%s7] sm:$0xf]
        %v5959 = vld [vmem:[%s7 + $0x4] sm:$0xf]
        %v5960 = vld [vmem:[%s7 + $0x8] sm:$0xf]
        %v5961 = vld [vmem:[%s7 + $0xc] sm:$0xf]
        %v5962 = vld [vmem:[%s7 + $0x10] sm:$0xf]
        %v5963 = vld [vmem:[%s7 + $0x14] sm:$0xf]
        %v5964 = vld [vmem:[%s7 + $0x18] sm:$0xf]
        %v5965 = vld [vmem:[%s7 + $0x1c] sm:$0xf]
        %v5966 = vld [vmem:[%s7 + $0x20] sm:$0xf]
        %v5967 = vld [vmem:[%s7 + $0x24] sm:$0xf]
        %v5968 = vld [vmem:[%s7 + $0x28] sm:$0xf]
        %v5969 = vld [vmem:[%s7 + $0x2c] sm:$0xf]
        %v5970 = vld [vmem:[%s7 + $0x30] sm:$0xf]
        %v5971 = vld [vmem:[%s7 + $0x34] sm:$0xf]
        %v5972 = vld [vmem:[%s7 + $0x38] sm:$0xf]
        %v5973 = vld [vmem:[%s7 + $0x3c] sm:$0xf]
        %v5974 = vld [vmem:[#allocation4 + $0x1] sm:$0xff]
        %v5975 = vld [vmem:[#allocation4 + $0x9] sm:$0xff]
        %v5976 = vld [vmem:[#allocation4 + $0x11] sm:$0xff]
        %v5977 = vld [vmem:[#allocation4 + $0x19] sm:$0xff]
        %v5978 = vld [vmem:[#allocation4 + $0x21] sm:$0xf]
        %v5979 = vpack.c.bf16 %v5975, %v5974
        %v5980 = vpack.c.bf16 %v5977, %v5976
        %v5981 = vpack.c.bf16 %v5978, %v5978
        %v5982 = vld [vmem:[%s7 + $0x40] sm:$0xf]
        %v5983 = vld [vmem:[%s7 + $0x44] sm:$0xf]
        %v5984 = vld [vmem:[%s7 + $0x48] sm:$0xf]
        %v5985 = vld [vmem:[%s7 + $0x4c] sm:$0xf]
        %v5986 = vld [vmem:[%s7 + $0x50] sm:$0xf]
        %v5987 = vld [vmem:[%s7 + $0x54] sm:$0xf]
        %v5988 = vld [vmem:[%s7 + $0x58] sm:$0xf]
        %v5989 = vld [vmem:[%s7 + $0x5c] sm:$0xf]
        %v5990 = vld [vmem:[%s7 + $0x60] sm:$0xf]
        %v5991 = vld [vmem:[%s7 + $0x64] sm:$0xf]
        %v5992 = vld [vmem:[%s7 + $0x68] sm:$0xf]
        %v5993 = vld [vmem:[%s7 + $0x6c] sm:$0xf]
        %v5994 = vld [vmem:[%s7 + $0x70] sm:$0xf]
        %v5995 = vld [vmem:[%s7 + $0x74] sm:$0xf]
        %v5996 = vld [vmem:[%s7 + $0x78] sm:$0xf]
        %v5997 = vld [vmem:[%s7 + $0x7c] sm:$0xf]
        %v6014 = vunpack.c.l.b16 %v5982
        %v6015 = vunpack.c.l.b16 %v5983
        %v6016 = vunpack.c.l.b16 %v5984
        %v6017 = vunpack.c.l.b16 %v5985
        %v6018 = vunpack.c.l.b16 %v5986
        %v6019 = vunpack.c.l.b16 %v5987
        %v6020 = vunpack.c.l.b16 %v5988
        %v6021 = vunpack.c.l.b16 %v5989
        %v6022 = vunpack.c.l.b16 %v5990
        %v6023 = vunpack.c.l.b16 %v5991
        %v6024 = vunpack.c.l.b16 %v5992
        %v6025 = vunpack.c.l.b16 %v5993
        %v6026 = vunpack.c.l.b16 %v5994
        %v6027 = vunpack.c.l.b16 %v5995
        %v6028 = vunpack.c.l.b16 %v5996
        %v6029 = vunpack.c.l.b16 %v5997
        %v6030 = vpack.c.b16 %v6015, %v6014
        %v6031 = vpack.c.b16 %v6017, %v6016
        %v6032 = vpack.c.b16 %v6019, %v6018
        %v6033 = vpack.c.b16 %v6021, %v6020
        %v6034 = vpack.c.b16 %v6023, %v6022
        %v6035 = vpack.c.b16 %v6025, %v6024
        %v6036 = vpack.c.b16 %v6027, %v6026
        %v6037 = vpack.c.b16 %v6029, %v6028
        %6046 = vmatprep.subr.bf16.mxu0 0
        %6047 = vmatpush1.bf16.msra.mxu0 %v6037
        %6048 = vmatprep.subr.bf16.mxu0 0
        %6049 = vmatpush1.bf16.msra.mxu0 %v6036
        %6050 = vmatprep.subr.bf16.mxu0 0
        %6051 = vmatpush1.bf16.msra.mxu0 %v6035
        %6052 = vmatprep.subr.bf16.mxu0 0
        %6053 = vmatpush1.bf16.msra.mxu0 %v6034
        %6054 = vmatprep.subr.bf16.mxu0 0
        %6055 = vmatpush1.bf16.msra.mxu0 %v6033
        %6056 = vmatprep.subr.bf16.mxu0 0
        %6057 = vmatpush1.bf16.msra.mxu0 %v6032
        %6058 = vmatprep.subr.bf16.mxu0 0
        %6059 = vmatpush1.bf16.msra.mxu0 %v6031
        %6060 = vmatprep.subr.bf16.mxu0 0
        %6061 = vmatpush1.bf16.msra.mxu0 %v6030
        %6062 = vmatprep.subr.bf16.mxu0 0
        %6063 = vmatpush2.bf16.msra.mxu0 0
        %6064 = vmatprep.subr.bf16.mxu0 0
        %6065 = vmatpush2.bf16.msra.mxu0 0
        %6066 = vmatprep.subr.bf16.mxu0 0
        %6067 = vmatpush2.bf16.msra.mxu0 0
        %6068 = vmatprep.subr.bf16.mxu0 0
        %6069 = vmatpush2.bf16.msra.mxu0 0
        %6070 = vmatprep.subr.bf16.mxu0 0
        %6071 = vmatpush2.bf16.msra.mxu0 0
        %6072 = vmatprep.subr.bf16.mxu0 0
        %6073 = vmatpush2.bf16.msra.mxu0 0
        %6074 = vmatprep.subr.bf16.mxu0 0
        %6075 = vmatpush2.bf16.msra.mxu0 0
        %6076 = vmatprep.subr.bf16.mxu0 0
        %6077 = vmatpush2.bf16.msra.mxu0 0
        %6078 = vmatprep.mubr.bf16.mxu0 0
        %6079 = vmatmul.mubr.bf16.gmra.mxu0 %v5979
        %v6080 = vpop.f32.mrf.mxu0
        %v6081 = vadd.f32 0.0, %v6080
        %v6082 = vpop.f32.mrf.mxu0
        %v6083 = vpop.f32.mrf.mxu0
        %v6084 = vadd.f32 0.0, %v6083
        %v6085 = vpop.f32.mrf.mxu0
        %6086 = vmatprep.mubr.bf16.mxu0 0
        %6087 = vmatmul.mubr.bf16.gmra.mxu0 %v5980
        %v6088 = vpop.f32.mrf.mxu0
        %v6089 = vadd.f32 0.0, %v6088
        %v6090 = vpop.f32.mrf.mxu0
        %v6091 = vpop.f32.mrf.mxu0
        %v6092 = vadd.f32 0.0, %v6091
        %v6093 = vpop.f32.mrf.mxu0
        %6094 = vmatprep.mubr.bf16.mxu0 0
        %6095 = vmatmul.mubr.bf16.gmra.mxu0 %v5981
        %v6096 = vpop.f32.mrf.mxu0
        %v6097 = vpop.f32.mrf.mxu0
        %v6098 = vpop.f32.mrf.mxu0
        %v6099 = vpop.f32.mrf.mxu0
        %6100 = vdwg.mxu0
        %v6117 = vunpack.c.l.b16 %v5958
        %v6118 = vunpack.c.l.b16 %v5959
        %v6119 = vunpack.c.l.b16 %v5960
        %v6120 = vunpack.c.l.b16 %v5961
        %v6121 = vunpack.c.l.b16 %v5962
        %v6122 = vunpack.c.l.b16 %v5963
        %v6123 = vunpack.c.l.b16 %v5964
        %v6124 = vunpack.c.l.b16 %v5965
        %v6125 = vunpack.c.l.b16 %v5966
        %v6126 = vunpack.c.l.b16 %v5967
        %v6127 = vunpack.c.l.b16 %v5968
        %v6128 = vunpack.c.l.b16 %v5969
        %v6129 = vunpack.c.l.b16 %v5970
        %v6130 = vunpack.c.l.b16 %v5971
        %v6131 = vunpack.c.l.b16 %v5972
        %v6132 = vunpack.c.l.b16 %v5973
        %v6133 = vpack.c.b16 %v6118, %v6117
        %v6134 = vpack.c.b16 %v6120, %v6119
        %v6135 = vpack.c.b16 %v6122, %v6121
        %v6136 = vpack.c.b16 %v6124, %v6123
        %v6137 = vpack.c.b16 %v6126, %v6125
        %v6138 = vpack.c.b16 %v6128, %v6127
        %v6139 = vpack.c.b16 %v6130, %v6129
        %v6140 = vpack.c.b16 %v6132, %v6131
        %6149 = vmatprep.subr.bf16.mxu0 0
        %6150 = vmatpush1.bf16.msra.mxu0 %v6140
        %6151 = vmatprep.subr.bf16.mxu0 0
        %6152 = vmatpush1.bf16.msra.mxu0 %v6139
        %6153 = vmatprep.subr.bf16.mxu0 0
        %6154 = vmatpush1.bf16.msra.mxu0 %v6138
        %6155 = vmatprep.subr.bf16.mxu0 0
        %6156 = vmatpush1.bf16.msra.mxu0 %v6137
        %6157 = vmatprep.subr.bf16.mxu0 0
        %6158 = vmatpush1.bf16.msra.mxu0 %v6136
        %6159 = vmatprep.subr.bf16.mxu0 0
        %6160 = vmatpush1.bf16.msra.mxu0 %v6135
        %6161 = vmatprep.subr.bf16.mxu0 0
        %6162 = vmatpush1.bf16.msra.mxu0 %v6134
        %6163 = vmatprep.subr.bf16.mxu0 0
        %6164 = vmatpush1.bf16.msra.mxu0 %v6133
        %6165 = vmatprep.subr.bf16.mxu0 0
        %6166 = vmatpush2.bf16.msra.mxu0 0
        %6167 = vmatprep.subr.bf16.mxu0 0
        %6168 = vmatpush2.bf16.msra.mxu0 0
        %6169 = vmatprep.subr.bf16.mxu0 0
        %6170 = vmatpush2.bf16.msra.mxu0 0
        %6171 = vmatprep.subr.bf16.mxu0 0
        %6172 = vmatpush2.bf16.msra.mxu0 0
        %6173 = vmatprep.subr.bf16.mxu0 0
        %6174 = vmatpush2.bf16.msra.mxu0 0
        %6175 = vmatprep.subr.bf16.mxu0 0
        %6176 = vmatpush2.bf16.msra.mxu0 0
        %6177 = vmatprep.subr.bf16.mxu0 0
        %6178 = vmatpush2.bf16.msra.mxu0 0
        %6179 = vmatprep.subr.bf16.mxu0 0
        %6180 = vmatpush2.bf16.msra.mxu0 0
        %6181 = vmatprep.mubr.bf16.mxu0 0
        %6182 = vmatmul.mubr.bf16.gmra.mxu0 %v5955
        %v6183 = vpop.f32.mrf.mxu0
        %v6184 = vadd.f32 %v6081, %v6183
        %v6185 = vpop.f32.mrf.mxu0
        %v6186 = vpop.f32.mrf.mxu0
        %v6187 = vadd.f32 %v6084, %v6186
        %v6188 = vpop.f32.mrf.mxu0
        %6189 = vmatprep.mubr.bf16.mxu0 0
        %6190 = vmatmul.mubr.bf16.gmra.mxu0 %v5956
        %v6191 = vpop.f32.mrf.mxu0
        %v6192 = vadd.f32 %v6089, %v6191
        %v6193 = vpop.f32.mrf.mxu0
        %v6194 = vpop.f32.mrf.mxu0
        %v6195 = vadd.f32 %v6092, %v6194
        %v6196 = vpop.f32.mrf.mxu0
        %6197 = vmatprep.mubr.bf16.mxu0 0
        %6198 = vmatmul.mubr.bf16.gmra.mxu0 %v5957
        %v6199 = vpop.f32.mrf.mxu0
        %v6200 = vpop.f32.mrf.mxu0
        %v6201 = vpop.f32.mrf.mxu0
        %v6202 = vpop.f32.mrf.mxu0
        %6203 = vdwg.mxu0
        %v6204 = vld [vmem:[#allocation4 + $0x2] sm:$0xff]
        %v6205 = vld [vmem:[#allocation4 + $0xa] sm:$0xff]
        %v6206 = vld [vmem:[#allocation4 + $0x12] sm:$0xff]
        %v6207 = vld [vmem:[#allocation4 + $0x1a] sm:$0xff]
        %v6208 = vld [vmem:[#allocation4 + $0x22] sm:$0xf]
        %v6209 = vpack.c.bf16 %v6205, %v6204
        %v6210 = vpack.c.bf16 %v6207, %v6206
        %v6211 = vpack.c.bf16 %v6208, %v6208
        %v6212 = vld [vmem:[%s7 + $0x80] sm:$0xf]
        %v6213 = vld [vmem:[%s7 + $0x84] sm:$0xf]
        %v6214 = vld [vmem:[%s7 + $0x88] sm:$0xf]
        %v6215 = vld [vmem:[%s7 + $0x8c] sm:$0xf]
        %v6216 = vld [vmem:[%s7 + $0x90] sm:$0xf]
        %v6217 = vld [vmem:[%s7 + $0x94] sm:$0xf]
        %v6218 = vld [vmem:[%s7 + $0x98] sm:$0xf]
        %v6219 = vld [vmem:[%s7 + $0x9c] sm:$0xf]
        %v6220 = vld [vmem:[%s7 + $0xa0] sm:$0xf]
        %v6221 = vld [vmem:[%s7 + $0xa4] sm:$0xf]
        %v6222 = vld [vmem:[%s7 + $0xa8] sm:$0xf]
        %v6223 = vld [vmem:[%s7 + $0xac] sm:$0xf]
        %v6224 = vld [vmem:[%s7 + $0xb0] sm:$0xf]
        %v6225 = vld [vmem:[%s7 + $0xb4] sm:$0xf]
        %v6226 = vld [vmem:[%s7 + $0xb8] sm:$0xf]
        %v6227 = vld [vmem:[%s7 + $0xbc] sm:$0xf]
        %v6244 = vunpack.c.l.b16 %v6212
        %v6245 = vunpack.c.l.b16 %v6213
        %v6246 = vunpack.c.l.b16 %v6214
        %v6247 = vunpack.c.l.b16 %v6215
        %v6248 = vunpack.c.l.b16 %v6216
        %v6249 = vunpack.c.l.b16 %v6217
        %v6250 = vunpack.c.l.b16 %v6218
        %v6251 = vunpack.c.l.b16 %v6219
        %v6252 = vunpack.c.l.b16 %v6220
        %v6253 = vunpack.c.l.b16 %v6221
        %v6254 = vunpack.c.l.b16 %v6222
        %v6255 = vunpack.c.l.b16 %v6223
        %v6256 = vunpack.c.l.b16 %v6224
        %v6257 = vunpack.c.l.b16 %v6225
        %v6258 = vunpack.c.l.b16 %v6226
        %v6259 = vunpack.c.l.b16 %v6227
        %v6260 = vpack.c.b16 %v6245, %v6244
        %v6261 = vpack.c.b16 %v6247, %v6246
        %v6262 = vpack.c.b16 %v6249, %v6248
        %v6263 = vpack.c.b16 %v6251, %v6250
        %v6264 = vpack.c.b16 %v6253, %v6252
        %v6265 = vpack.c.b16 %v6255, %v6254
        %v6266 = vpack.c.b16 %v6257, %v6256
        %v6267 = vpack.c.b16 %v6259, %v6258
        %6276 = vmatprep.subr.bf16.mxu0 0
        %6277 = vmatpush1.bf16.msra.mxu0 %v6267
        %6278 = vmatprep.subr.bf16.mxu0 0
        %6279 = vmatpush1.bf16.msra.mxu0 %v6266
        %6280 = vmatprep.subr.bf16.mxu0 0
        %6281 = vmatpush1.bf16.msra.mxu0 %v6265
        %6282 = vmatprep.subr.bf16.mxu0 0
        %6283 = vmatpush1.bf16.msra.mxu0 %v6264
        %6284 = vmatprep.subr.bf16.mxu0 0
        %6285 = vmatpush1.bf16.msra.mxu0 %v6263
        %6286 = vmatprep.subr.bf16.mxu0 0
        %6287 = vmatpush1.bf16.msra.mxu0 %v6262
        %6288 = vmatprep.subr.bf16.mxu0 0
        %6289 = vmatpush1.bf16.msra.mxu0 %v6261
        %6290 = vmatprep.subr.bf16.mxu0 0
        %6291 = vmatpush1.bf16.msra.mxu0 %v6260
        %6292 = vmatprep.subr.bf16.mxu0 0
        %6293 = vmatpush2.bf16.msra.mxu0 0
        %6294 = vmatprep.subr.bf16.mxu0 0
        %6295 = vmatpush2.bf16.msra.mxu0 0
        %6296 = vmatprep.subr.bf16.mxu0 0
        %6297 = vmatpush2.bf16.msra.mxu0 0
        %6298 = vmatprep.subr.bf16.mxu0 0
        %6299 = vmatpush2.bf16.msra.mxu0 0
        %6300 = vmatprep.subr.bf16.mxu0 0
        %6301 = vmatpush2.bf16.msra.mxu0 0
        %6302 = vmatprep.subr.bf16.mxu0 0
        %6303 = vmatpush2.bf16.msra.mxu0 0
        %6304 = vmatprep.subr.bf16.mxu0 0
        %6305 = vmatpush2.bf16.msra.mxu0 0
        %6306 = vmatprep.subr.bf16.mxu0 0
        %6307 = vmatpush2.bf16.msra.mxu0 0
        %6308 = vmatprep.mubr.bf16.mxu0 0
        %6309 = vmatmul.mubr.bf16.gmra.mxu0 %v6209
        %v6310 = vpop.f32.mrf.mxu0
        %v6311 = vadd.f32 0.0, %v6310
        %v6312 = vpop.f32.mrf.mxu0
        %v6313 = vpop.f32.mrf.mxu0
        %v6314 = vadd.f32 0.0, %v6313
        %v6315 = vpop.f32.mrf.mxu0
        %6316 = vmatprep.mubr.bf16.mxu0 0
        %6317 = vmatmul.mubr.bf16.gmra.mxu0 %v6210
        %v6318 = vpop.f32.mrf.mxu0
        %v6319 = vadd.f32 0.0, %v6318
        %v6320 = vpop.f32.mrf.mxu0
        %v6321 = vpop.f32.mrf.mxu0
        %v6322 = vadd.f32 0.0, %v6321
        %v6323 = vpop.f32.mrf.mxu0
        %6324 = vmatprep.mubr.bf16.mxu0 0
        %6325 = vmatmul.mubr.bf16.gmra.mxu0 %v6211
        %v6326 = vpop.f32.mrf.mxu0
        %v6327 = vpop.f32.mrf.mxu0
        %v6328 = vpop.f32.mrf.mxu0
        %v6329 = vpop.f32.mrf.mxu0
        %6330 = vdwg.mxu0
        %v6331 = vadd.f32 %v6184, %v6311
        %v6332 = vadd.f32 %v6187, %v6314
        %v6333 = vadd.f32 %v6192, %v6319
        %v6334 = vadd.f32 %v6195, %v6322
        %v6335 = vld [vmem:[#allocation4 + $0x6] sm:$0xff]
        %v6336 = vld [vmem:[#allocation4 + $0xe] sm:$0xff]
        %v6337 = vld [vmem:[#allocation4 + $0x16] sm:$0xff]
        %v6338 = vld [vmem:[#allocation4 + $0x1e] sm:$0xff]
        %v6339 = vld [vmem:[#allocation4 + $0x26] sm:$0xf]
        %v6340 = vpack.c.bf16 %v6336, %v6335
        %v6341 = vpack.c.bf16 %v6338, %v6337
        %v6342 = vpack.c.bf16 %v6339, %v6339
        %v6343 = vld [vmem:[%s7 + $0xc0] sm:$0xf]
        %v6344 = vld [vmem:[%s7 + $0xc4] sm:$0xf]
        %v6345 = vld [vmem:[%s7 + $0xc8] sm:$0xf]
        %v6346 = vld [vmem:[%s7 + $0xcc] sm:$0xf]
        %v6347 = vld [vmem:[%s7 + $0xd0] sm:$0xf]
        %v6348 = vld [vmem:[%s7 + $0xd4] sm:$0xf]
        %v6349 = vld [vmem:[%s7 + $0xd8] sm:$0xf]
        %v6350 = vld [vmem:[%s7 + $0xdc] sm:$0xf]
        %v6351 = vld [vmem:[%s7 + $0xe0] sm:$0xf]
        %v6352 = vld [vmem:[%s7 + $0xe4] sm:$0xf]
        %v6353 = vld [vmem:[%s7 + $0xe8] sm:$0xf]
        %v6354 = vld [vmem:[%s7 + $0xec] sm:$0xf]
        %v6355 = vld [vmem:[%s7 + $0xf0] sm:$0xf]
        %v6356 = vld [vmem:[%s7 + $0xf4] sm:$0xf]
        %v6357 = vld [vmem:[%s7 + $0xf8] sm:$0xf]
        %v6358 = vld [vmem:[%s7 + $0xfc] sm:$0xf]
        %v6375 = vunpack.c.l.b16 %v6343
        %v6376 = vunpack.c.l.b16 %v6344
        %v6377 = vunpack.c.l.b16 %v6345
        %v6378 = vunpack.c.l.b16 %v6346
        %v6379 = vunpack.c.l.b16 %v6347
        %v6380 = vunpack.c.l.b16 %v6348
        %v6381 = vunpack.c.l.b16 %v6349
        %v6382 = vunpack.c.l.b16 %v6350
        %v6383 = vunpack.c.l.b16 %v6351
        %v6384 = vunpack.c.l.b16 %v6352
        %v6385 = vunpack.c.l.b16 %v6353
        %v6386 = vunpack.c.l.b16 %v6354
        %v6387 = vunpack.c.l.b16 %v6355
        %v6388 = vunpack.c.l.b16 %v6356
        %v6389 = vunpack.c.l.b16 %v6357
        %v6390 = vunpack.c.l.b16 %v6358
        %v6391 = vpack.c.b16 %v6376, %v6375
        %v6392 = vpack.c.b16 %v6378, %v6377
        %v6393 = vpack.c.b16 %v6380, %v6379
        %v6394 = vpack.c.b16 %v6382, %v6381
        %v6395 = vpack.c.b16 %v6384, %v6383
        %v6396 = vpack.c.b16 %v6386, %v6385
        %v6397 = vpack.c.b16 %v6388, %v6387
        %v6398 = vpack.c.b16 %v6390, %v6389
        %6407 = vmatprep.subr.bf16.mxu0 0
        %6408 = vmatpush1.bf16.msra.mxu0 %v6398
        %6409 = vmatprep.subr.bf16.mxu0 0
        %6410 = vmatpush1.bf16.msra.mxu0 %v6397
        %6411 = vmatprep.subr.bf16.mxu0 0
        %6412 = vmatpush1.bf16.msra.mxu0 %v6396
        %6413 = vmatprep.subr.bf16.mxu0 0
        %6414 = vmatpush1.bf16.msra.mxu0 %v6395
        %6415 = vmatprep.subr.bf16.mxu0 0
        %6416 = vmatpush1.bf16.msra.mxu0 %v6394
        %6417 = vmatprep.subr.bf16.mxu0 0
        %6418 = vmatpush1.bf16.msra.mxu0 %v6393
        %6419 = vmatprep.subr.bf16.mxu0 0
        %6420 = vmatpush1.bf16.msra.mxu0 %v6392
        %6421 = vmatprep.subr.bf16.mxu0 0
        %6422 = vmatpush1.bf16.msra.mxu0 %v6391
        %6423 = vmatprep.subr.bf16.mxu0 0
        %6424 = vmatpush2.bf16.msra.mxu0 0
        %6425 = vmatprep.subr.bf16.mxu0 0
        %6426 = vmatpush2.bf16.msra.mxu0 0
        %6427 = vmatprep.subr.bf16.mxu0 0
        %6428 = vmatpush2.bf16.msra.mxu0 0
        %6429 = vmatprep.subr.bf16.mxu0 0
        %6430 = vmatpush2.bf16.msra.mxu0 0
        %6431 = vmatprep.subr.bf16.mxu0 0
        %6432 = vmatpush2.bf16.msra.mxu0 0
        %6433 = vmatprep.subr.bf16.mxu0 0
        %6434 = vmatpush2.bf16.msra.mxu0 0
        %6435 = vmatprep.subr.bf16.mxu0 0
        %6436 = vmatpush2.bf16.msra.mxu0 0
        %6437 = vmatprep.subr.bf16.mxu0 0
        %6438 = vmatpush2.bf16.msra.mxu0 0
        %6439 = vmatprep.mubr.bf16.mxu0 0
        %6440 = vmatmul.mubr.bf16.gmra.mxu0 %v6340
        %v6441 = vpop.f32.mrf.mxu0
        %v6442 = vadd.f32 0.0, %v6441
        %v6443 = vpop.f32.mrf.mxu0
        %v6444 = vpop.f32.mrf.mxu0
        %v6445 = vadd.f32 0.0, %v6444
        %v6446 = vpop.f32.mrf.mxu0
        %6447 = vmatprep.mubr.bf16.mxu0 0
        %6448 = vmatmul.mubr.bf16.gmra.mxu0 %v6341
        %v6449 = vpop.f32.mrf.mxu0
        %v6450 = vadd.f32 0.0, %v6449
        %v6451 = vpop.f32.mrf.mxu0
        %v6452 = vpop.f32.mrf.mxu0
        %v6453 = vadd.f32 0.0, %v6452
        %v6454 = vpop.f32.mrf.mxu0
        %6455 = vmatprep.mubr.bf16.mxu0 0
        %6456 = vmatmul.mubr.bf16.gmra.mxu0 %v6342
        %v6457 = vpop.f32.mrf.mxu0
        %v6458 = vpop.f32.mrf.mxu0
        %v6459 = vpop.f32.mrf.mxu0
        %v6460 = vpop.f32.mrf.mxu0
        %6461 = vdwg.mxu0
        %v6462 = vadd.f32 %v6331, %v6442
        %v6463 = vadd.f32 %v6332, %v6445
        %v6464 = vadd.f32 %v6333, %v6450
        %v6465 = vadd.f32 %v6334, %v6453
        %v6466 = vld [vmem:[#allocation4 + $0x7] sm:$0xff]
        %v6467 = vld [vmem:[#allocation4 + $0xf] sm:$0xff]
        %v6468 = vld [vmem:[#allocation4 + $0x17] sm:$0xff]
        %v6469 = vld [vmem:[#allocation4 + $0x1f] sm:$0xff]
        %v6470 = vld [vmem:[#allocation4 + $0x27] sm:$0xf]
        %v6471 = vpack.c.bf16 %v6467, %v6466
        %v6472 = vpack.c.bf16 %v6469, %v6468
        %v6473 = vpack.c.bf16 %v6470, %v6470
        %v6474 = vld [vmem:[%s7 + $0x100] sm:$0xf]
        %v6475 = vld [vmem:[%s7 + $0x104] sm:$0xf]
        %v6476 = vld [vmem:[%s7 + $0x108] sm:$0xf]
        %v6477 = vld [vmem:[%s7 + $0x10c] sm:$0xf]
        %v6478 = vld [vmem:[%s7 + $0x110] sm:$0xf]
        %v6479 = vld [vmem:[%s7 + $0x114] sm:$0xf]
        %v6480 = vld [vmem:[%s7 + $0x118] sm:$0xf]
        %v6481 = vld [vmem:[%s7 + $0x11c] sm:$0xf]
        %v6482 = vld [vmem:[%s7 + $0x120] sm:$0xf]
        %v6483 = vld [vmem:[%s7 + $0x124] sm:$0xf]
        %v6484 = vld [vmem:[%s7 + $0x128] sm:$0xf]
        %v6485 = vld [vmem:[%s7 + $0x12c] sm:$0xf]
        %v6486 = vld [vmem:[%s7 + $0x130] sm:$0xf]
        %v6487 = vld [vmem:[%s7 + $0x134] sm:$0xf]
        %v6488 = vld [vmem:[%s7 + $0x138] sm:$0xf]
        %v6489 = vld [vmem:[%s7 + $0x13c] sm:$0xf]
        %v6506 = vunpack.c.l.b16 %v6474
        %v6507 = vunpack.c.l.b16 %v6475
        %v6508 = vunpack.c.l.b16 %v6476
        %v6509 = vunpack.c.l.b16 %v6477
        %v6510 = vunpack.c.l.b16 %v6478
        %v6511 = vunpack.c.l.b16 %v6479
        %v6512 = vunpack.c.l.b16 %v6480
        %v6513 = vunpack.c.l.b16 %v6481
        %v6514 = vunpack.c.l.b16 %v6482
        %v6515 = vunpack.c.l.b16 %v6483
        %v6516 = vunpack.c.l.b16 %v6484
        %v6517 = vunpack.c.l.b16 %v6485
        %v6518 = vunpack.c.l.b16 %v6486
        %v6519 = vunpack.c.l.b16 %v6487
        %v6520 = vunpack.c.l.b16 %v6488
        %v6521 = vunpack.c.l.b16 %v6489
        %v6522 = vpack.c.b16 %v6507, %v6506
        %v6523 = vpack.c.b16 %v6509, %v6508
        %v6524 = vpack.c.b16 %v6511, %v6510
        %v6525 = vpack.c.b16 %v6513, %v6512
        %v6526 = vpack.c.b16 %v6515, %v6514
        %v6527 = vpack.c.b16 %v6517, %v6516
        %v6528 = vpack.c.b16 %v6519, %v6518
        %v6529 = vpack.c.b16 %v6521, %v6520
        %6538 = vmatprep.subr.bf16.mxu0 0
        %6539 = vmatpush1.bf16.msra.mxu0 %v6529
        %6540 = vmatprep.subr.bf16.mxu0 0
        %6541 = vmatpush1.bf16.msra.mxu0 %v6528
        %6542 = vmatprep.subr.bf16.mxu0 0
        %6543 = vmatpush1.bf16.msra.mxu0 %v6527
        %6544 = vmatprep.subr.bf16.mxu0 0
        %6545 = vmatpush1.bf16.msra.mxu0 %v6526
        %6546 = vmatprep.subr.bf16.mxu0 0
        %6547 = vmatpush1.bf16.msra.mxu0 %v6525
        %6548 = vmatprep.subr.bf16.mxu0 0
        %6549 = vmatpush1.bf16.msra.mxu0 %v6524
        %6550 = vmatprep.subr.bf16.mxu0 0
        %6551 = vmatpush1.bf16.msra.mxu0 %v6523
        %6552 = vmatprep.subr.bf16.mxu0 0
        %6553 = vmatpush1.bf16.msra.mxu0 %v6522
        %6554 = vmatprep.subr.bf16.mxu0 0
        %6555 = vmatpush2.bf16.msra.mxu0 0
        %6556 = vmatprep.subr.bf16.mxu0 0
        %6557 = vmatpush2.bf16.msra.mxu0 0
        %6558 = vmatprep.subr.bf16.mxu0 0
        %6559 = vmatpush2.bf16.msra.mxu0 0
        %6560 = vmatprep.subr.bf16.mxu0 0
        %6561 = vmatpush2.bf16.msra.mxu0 0
        %6562 = vmatprep.subr.bf16.mxu0 0
        %6563 = vmatpush2.bf16.msra.mxu0 0
        %6564 = vmatprep.subr.bf16.mxu0 0
        %6565 = vmatpush2.bf16.msra.mxu0 0
        %6566 = vmatprep.subr.bf16.mxu0 0
        %6567 = vmatpush2.bf16.msra.mxu0 0
        %6568 = vmatprep.subr.bf16.mxu0 0
        %6569 = vmatpush2.bf16.msra.mxu0 0
        %6570 = vmatprep.mubr.bf16.mxu0 0
        %6571 = vmatmul.mubr.bf16.gmra.mxu0 %v6471
        %v6572 = vpop.f32.mrf.mxu0
        %v6573 = vadd.f32 0.0, %v6572
        %v6574 = vpop.f32.mrf.mxu0
        %v6575 = vpop.f32.mrf.mxu0
        %v6576 = vadd.f32 0.0, %v6575
        %v6577 = vpop.f32.mrf.mxu0
        %6578 = vmatprep.mubr.bf16.mxu0 0
        %6579 = vmatmul.mubr.bf16.gmra.mxu0 %v6472
        %v6580 = vpop.f32.mrf.mxu0
        %v6581 = vadd.f32 0.0, %v6580
        %v6582 = vpop.f32.mrf.mxu0
        %v6583 = vpop.f32.mrf.mxu0
        %v6584 = vadd.f32 0.0, %v6583
        %v6585 = vpop.f32.mrf.mxu0
        %6586 = vmatprep.mubr.bf16.mxu0 0
        %6587 = vmatmul.mubr.bf16.gmra.mxu0 %v6473
        %v6588 = vpop.f32.mrf.mxu0
        %v6589 = vpop.f32.mrf.mxu0
        %v6590 = vpop.f32.mrf.mxu0
        %v6591 = vpop.f32.mrf.mxu0
        %6592 = vdwg.mxu0
        %v6593 = vadd.f32 %v6462, %v6573
        %v6594 = vadd.f32 %v6463, %v6576
        %v6595 = vadd.f32 %v6464, %v6581
        %v6596 = vadd.f32 %v6465, %v6584
        %v6597 = vld [vmem:[#allocation4 + $0x8] sm:$0xff]
        %v6598 = vld [vmem:[#allocation4 + $0x10] sm:$0xff]
        %v6599 = vld [vmem:[#allocation4 + $0x18] sm:$0xff]
        %v6600 = vld [vmem:[#allocation4 + $0x20] sm:$0xff]
        %v6601 = vld [vmem:[#allocation4 + $0x28] sm:$0xf]
        %v6602 = vpack.c.bf16 %v6598, %v6597
        %v6603 = vpack.c.bf16 %v6600, %v6599
        %v6604 = vpack.c.bf16 %v6601, %v6601
        %v6605 = vld [vmem:[%s7 + $0x140] sm:$0xf]
        %v6606 = vld [vmem:[%s7 + $0x144] sm:$0xf]
        %v6607 = vld [vmem:[%s7 + $0x148] sm:$0xf]
        %v6608 = vld [vmem:[%s7 + $0x14c] sm:$0xf]
        %v6609 = vld [vmem:[%s7 + $0x150] sm:$0xf]
        %v6610 = vld [vmem:[%s7 + $0x154] sm:$0xf]
        %v6611 = vld [vmem:[%s7 + $0x158] sm:$0xf]
        %v6612 = vld [vmem:[%s7 + $0x15c] sm:$0xf]
        %v6613 = vld [vmem:[%s7 + $0x160] sm:$0xf]
        %v6614 = vld [vmem:[%s7 + $0x164] sm:$0xf]
        %v6615 = vld [vmem:[%s7 + $0x168] sm:$0xf]
        %v6616 = vld [vmem:[%s7 + $0x16c] sm:$0xf]
        %v6617 = vld [vmem:[%s7 + $0x170] sm:$0xf]
        %v6618 = vld [vmem:[%s7 + $0x174] sm:$0xf]
        %v6619 = vld [vmem:[%s7 + $0x178] sm:$0xf]
        %v6620 = vld [vmem:[%s7 + $0x17c] sm:$0xf]
        %v6637 = vunpack.c.l.b16 %v6605
        %v6638 = vunpack.c.l.b16 %v6606
        %v6639 = vunpack.c.l.b16 %v6607
        %v6640 = vunpack.c.l.b16 %v6608
        %v6641 = vunpack.c.l.b16 %v6609
        %v6642 = vunpack.c.l.b16 %v6610
        %v6643 = vunpack.c.l.b16 %v6611
        %v6644 = vunpack.c.l.b16 %v6612
        %v6645 = vunpack.c.l.b16 %v6613
        %v6646 = vunpack.c.l.b16 %v6614
        %v6647 = vunpack.c.l.b16 %v6615
        %v6648 = vunpack.c.l.b16 %v6616
        %v6649 = vunpack.c.l.b16 %v6617
        %v6650 = vunpack.c.l.b16 %v6618
        %v6651 = vunpack.c.l.b16 %v6619
        %v6652 = vunpack.c.l.b16 %v6620
        %v6653 = vpack.c.b16 %v6638, %v6637
        %v6654 = vpack.c.b16 %v6640, %v6639
        %v6655 = vpack.c.b16 %v6642, %v6641
        %v6656 = vpack.c.b16 %v6644, %v6643
        %v6657 = vpack.c.b16 %v6646, %v6645
        %v6658 = vpack.c.b16 %v6648, %v6647
        %v6659 = vpack.c.b16 %v6650, %v6649
        %v6660 = vpack.c.b16 %v6652, %v6651
        %6669 = vmatprep.subr.bf16.mxu0 0
        %6670 = vmatpush1.bf16.msra.mxu0 %v6660
        %6671 = vmatprep.subr.bf16.mxu0 0
        %6672 = vmatpush1.bf16.msra.mxu0 %v6659
        %6673 = vmatprep.subr.bf16.mxu0 0
        %6674 = vmatpush1.bf16.msra.mxu0 %v6658
        %6675 = vmatprep.subr.bf16.mxu0 0
        %6676 = vmatpush1.bf16.msra.mxu0 %v6657
        %6677 = vmatprep.subr.bf16.mxu0 0
        %6678 = vmatpush1.bf16.msra.mxu0 %v6656
        %6679 = vmatprep.subr.bf16.mxu0 0
        %6680 = vmatpush1.bf16.msra.mxu0 %v6655
        %6681 = vmatprep.subr.bf16.mxu0 0
        %6682 = vmatpush1.bf16.msra.mxu0 %v6654
        %6683 = vmatprep.subr.bf16.mxu0 0
        %6684 = vmatpush1.bf16.msra.mxu0 %v6653
        %6685 = vmatprep.subr.bf16.mxu0 0
        %6686 = vmatpush2.bf16.msra.mxu0 0
        %6687 = vmatprep.subr.bf16.mxu0 0
        %6688 = vmatpush2.bf16.msra.mxu0 0
        %6689 = vmatprep.subr.bf16.mxu0 0
        %6690 = vmatpush2.bf16.msra.mxu0 0
        %6691 = vmatprep.subr.bf16.mxu0 0
        %6692 = vmatpush2.bf16.msra.mxu0 0
        %6693 = vmatprep.subr.bf16.mxu0 0
        %6694 = vmatpush2.bf16.msra.mxu0 0
        %6695 = vmatprep.subr.bf16.mxu0 0
        %6696 = vmatpush2.bf16.msra.mxu0 0
        %6697 = vmatprep.subr.bf16.mxu0 0
        %6698 = vmatpush2.bf16.msra.mxu0 0
        %6699 = vmatprep.subr.bf16.mxu0 0
        %6700 = vmatpush2.bf16.msra.mxu0 0
        %6701 = vmatprep.mubr.bf16.mxu0 0
        %6702 = vmatmul.mubr.bf16.gmra.mxu0 %v6602
        %v6703 = vpop.f32.mrf.mxu0
        %v6704 = vadd.f32 0.0, %v6703
        %v6705 = vpop.f32.mrf.mxu0
        %v6706 = vpop.f32.mrf.mxu0
        %v6707 = vadd.f32 0.0, %v6706
        %v6708 = vpop.f32.mrf.mxu0
        %6709 = vmatprep.mubr.bf16.mxu0 0
        %6710 = vmatmul.mubr.bf16.gmra.mxu0 %v6603
        %v6711 = vpop.f32.mrf.mxu0
        %v6712 = vadd.f32 0.0, %v6711
        %v6713 = vpop.f32.mrf.mxu0
        %v6714 = vpop.f32.mrf.mxu0
        %v6715 = vadd.f32 0.0, %v6714
        %v6716 = vpop.f32.mrf.mxu0
        %6717 = vmatprep.mubr.bf16.mxu0 0
        %6718 = vmatmul.mubr.bf16.gmra.mxu0 %v6604
        %v6719 = vpop.f32.mrf.mxu0
        %v6720 = vpop.f32.mrf.mxu0
        %v6721 = vpop.f32.mrf.mxu0
        %v6722 = vpop.f32.mrf.mxu0
        %6723 = vdwg.mxu0
        %v6724 = vadd.f32 %v6593, %v6704
        %v6725 = vadd.f32 %v6594, %v6707
        %v6726 = vadd.f32 %v6595, %v6712
        %v6727 = vadd.f32 %v6596, %v6715
        %v6728 = vld [vmem:[#allocation4 + $0xc] sm:$0xff]
        %v6729 = vld [vmem:[#allocation4 + $0x14] sm:$0xff]
        %v6730 = vld [vmem:[#allocation4 + $0x1c] sm:$0xff]
        %v6731 = vld [vmem:[#allocation4 + $0x24] sm:$0xff]
        %v6732 = vld [vmem:[#allocation4 + $0x2c] sm:$0xf]
        %v6733 = vpack.c.bf16 %v6729, %v6728
        %v6734 = vpack.c.bf16 %v6731, %v6730
        %v6735 = vpack.c.bf16 %v6732, %v6732
        %v6736 = vld [vmem:[%s7 + $0x180] sm:$0xf]
        %v6737 = vld [vmem:[%s7 + $0x184] sm:$0xf]
        %v6738 = vld [vmem:[%s7 + $0x188] sm:$0xf]
        %v6739 = vld [vmem:[%s7 + $0x18c] sm:$0xf]
        %v6740 = vld [vmem:[%s7 + $0x190] sm:$0xf]
        %v6741 = vld [vmem:[%s7 + $0x194] sm:$0xf]
        %v6742 = vld [vmem:[%s7 + $0x198] sm:$0xf]
        %v6743 = vld [vmem:[%s7 + $0x19c] sm:$0xf]
        %v6744 = vld [vmem:[%s7 + $0x1a0] sm:$0xf]
        %v6745 = vld [vmem:[%s7 + $0x1a4] sm:$0xf]
        %v6746 = vld [vmem:[%s7 + $0x1a8] sm:$0xf]
        %v6747 = vld [vmem:[%s7 + $0x1ac] sm:$0xf]
        %v6748 = vld [vmem:[%s7 + $0x1b0] sm:$0xf]
        %v6749 = vld [vmem:[%s7 + $0x1b4] sm:$0xf]
        %v6750 = vld [vmem:[%s7 + $0x1b8] sm:$0xf]
        %v6751 = vld [vmem:[%s7 + $0x1bc] sm:$0xf]
        %v6768 = vunpack.c.l.b16 %v6736
        %v6769 = vunpack.c.l.b16 %v6737
        %v6770 = vunpack.c.l.b16 %v6738
        %v6771 = vunpack.c.l.b16 %v6739
        %v6772 = vunpack.c.l.b16 %v6740
        %v6773 = vunpack.c.l.b16 %v6741
        %v6774 = vunpack.c.l.b16 %v6742
        %v6775 = vunpack.c.l.b16 %v6743
        %v6776 = vunpack.c.l.b16 %v6744
        %v6777 = vunpack.c.l.b16 %v6745
        %v6778 = vunpack.c.l.b16 %v6746
        %v6779 = vunpack.c.l.b16 %v6747
        %v6780 = vunpack.c.l.b16 %v6748
        %v6781 = vunpack.c.l.b16 %v6749
        %v6782 = vunpack.c.l.b16 %v6750
        %v6783 = vunpack.c.l.b16 %v6751
        %v6784 = vpack.c.b16 %v6769, %v6768
        %v6785 = vpack.c.b16 %v6771, %v6770
        %v6786 = vpack.c.b16 %v6773, %v6772
        %v6787 = vpack.c.b16 %v6775, %v6774
        %v6788 = vpack.c.b16 %v6777, %v6776
        %v6789 = vpack.c.b16 %v6779, %v6778
        %v6790 = vpack.c.b16 %v6781, %v6780
        %v6791 = vpack.c.b16 %v6783, %v6782
        %6800 = vmatprep.subr.bf16.mxu0 0
        %6801 = vmatpush1.bf16.msra.mxu0 %v6791
        %6802 = vmatprep.subr.bf16.mxu0 0
        %6803 = vmatpush1.bf16.msra.mxu0 %v6790
        %6804 = vmatprep.subr.bf16.mxu0 0
        %6805 = vmatpush1.bf16.msra.mxu0 %v6789
        %6806 = vmatprep.subr.bf16.mxu0 0
        %6807 = vmatpush1.bf16.msra.mxu0 %v6788
        %6808 = vmatprep.subr.bf16.mxu0 0
        %6809 = vmatpush1.bf16.msra.mxu0 %v6787
        %6810 = vmatprep.subr.bf16.mxu0 0
        %6811 = vmatpush1.bf16.msra.mxu0 %v6786
        %6812 = vmatprep.subr.bf16.mxu0 0
        %6813 = vmatpush1.bf16.msra.mxu0 %v6785
        %6814 = vmatprep.subr.bf16.mxu0 0
        %6815 = vmatpush1.bf16.msra.mxu0 %v6784
        %6816 = vmatprep.subr.bf16.mxu0 0
        %6817 = vmatpush2.bf16.msra.mxu0 0
        %6818 = vmatprep.subr.bf16.mxu0 0
        %6819 = vmatpush2.bf16.msra.mxu0 0
        %6820 = vmatprep.subr.bf16.mxu0 0
        %6821 = vmatpush2.bf16.msra.mxu0 0
        %6822 = vmatprep.subr.bf16.mxu0 0
        %6823 = vmatpush2.bf16.msra.mxu0 0
        %6824 = vmatprep.subr.bf16.mxu0 0
        %6825 = vmatpush2.bf16.msra.mxu0 0
        %6826 = vmatprep.subr.bf16.mxu0 0
        %6827 = vmatpush2.bf16.msra.mxu0 0
        %6828 = vmatprep.subr.bf16.mxu0 0
        %6829 = vmatpush2.bf16.msra.mxu0 0
        %6830 = vmatprep.subr.bf16.mxu0 0
        %6831 = vmatpush2.bf16.msra.mxu0 0
        %6832 = vmatprep.mubr.bf16.mxu0 0
        %6833 = vmatmul.mubr.bf16.gmra.mxu0 %v6733
        %v6834 = vpop.f32.mrf.mxu0
        %v6835 = vadd.f32 0.0, %v6834
        %v6836 = vpop.f32.mrf.mxu0
        %v6837 = vpop.f32.mrf.mxu0
        %v6838 = vadd.f32 0.0, %v6837
        %v6839 = vpop.f32.mrf.mxu0
        %6840 = vmatprep.mubr.bf16.mxu0 0
        %6841 = vmatmul.mubr.bf16.gmra.mxu0 %v6734
        %v6842 = vpop.f32.mrf.mxu0
        %v6843 = vadd.f32 0.0, %v6842
        %v6844 = vpop.f32.mrf.mxu0
        %v6845 = vpop.f32.mrf.mxu0
        %v6846 = vadd.f32 0.0, %v6845
        %v6847 = vpop.f32.mrf.mxu0
        %6848 = vmatprep.mubr.bf16.mxu0 0
        %6849 = vmatmul.mubr.bf16.gmra.mxu0 %v6735
        %v6850 = vpop.f32.mrf.mxu0
        %v6851 = vpop.f32.mrf.mxu0
        %v6852 = vpop.f32.mrf.mxu0
        %v6853 = vpop.f32.mrf.mxu0
        %6854 = vdwg.mxu0
        %v6855 = vadd.f32 %v6724, %v6835
        %v6856 = vadd.f32 %v6725, %v6838
        %v6857 = vadd.f32 %v6726, %v6843
        %v6858 = vadd.f32 %v6727, %v6846
        %v6859 = vld [vmem:[#allocation4 + $0xd] sm:$0xff]
        %v6860 = vld [vmem:[#allocation4 + $0x15] sm:$0xff]
        %v6861 = vld [vmem:[#allocation4 + $0x1d] sm:$0xff]
        %v6862 = vld [vmem:[#allocation4 + $0x25] sm:$0xff]
        %v6863 = vld [vmem:[#allocation4 + $0x2d] sm:$0xf]
        %v6864 = vpack.c.bf16 %v6860, %v6859
        %v6865 = vpack.c.bf16 %v6862, %v6861
        %v6866 = vpack.c.bf16 %v6863, %v6863
        %v6867 = vld [vmem:[%s7 + $0x1c0] sm:$0xf]
        %v6868 = vld [vmem:[%s7 + $0x1c4] sm:$0xf]
        %v6869 = vld [vmem:[%s7 + $0x1c8] sm:$0xf]
        %v6870 = vld [vmem:[%s7 + $0x1cc] sm:$0xf]
        %v6871 = vld [vmem:[%s7 + $0x1d0] sm:$0xf]
        %v6872 = vld [vmem:[%s7 + $0x1d4] sm:$0xf]
        %v6873 = vld [vmem:[%s7 + $0x1d8] sm:$0xf]
        %v6874 = vld [vmem:[%s7 + $0x1dc] sm:$0xf]
        %v6875 = vld [vmem:[%s7 + $0x1e0] sm:$0xf]
        %v6876 = vld [vmem:[%s7 + $0x1e4] sm:$0xf]
        %v6877 = vld [vmem:[%s7 + $0x1e8] sm:$0xf]
        %v6878 = vld [vmem:[%s7 + $0x1ec] sm:$0xf]
        %v6879 = vld [vmem:[%s7 + $0x1f0] sm:$0xf]
        %v6880 = vld [vmem:[%s7 + $0x1f4] sm:$0xf]
        %v6881 = vld [vmem:[%s7 + $0x1f8] sm:$0xf]
        %v6882 = vld [vmem:[%s7 + $0x1fc] sm:$0xf]
        %v6899 = vunpack.c.l.b16 %v6867
        %v6900 = vunpack.c.l.b16 %v6868
        %v6901 = vunpack.c.l.b16 %v6869
        %v6902 = vunpack.c.l.b16 %v6870
        %v6903 = vunpack.c.l.b16 %v6871
        %v6904 = vunpack.c.l.b16 %v6872
        %v6905 = vunpack.c.l.b16 %v6873
        %v6906 = vunpack.c.l.b16 %v6874
        %v6907 = vunpack.c.l.b16 %v6875
        %v6908 = vunpack.c.l.b16 %v6876
        %v6909 = vunpack.c.l.b16 %v6877
        %v6910 = vunpack.c.l.b16 %v6878
        %v6911 = vunpack.c.l.b16 %v6879
        %v6912 = vunpack.c.l.b16 %v6880
        %v6913 = vunpack.c.l.b16 %v6881
        %v6914 = vunpack.c.l.b16 %v6882
        %v6915 = vpack.c.b16 %v6900, %v6899
        %v6916 = vpack.c.b16 %v6902, %v6901
        %v6917 = vpack.c.b16 %v6904, %v6903
        %v6918 = vpack.c.b16 %v6906, %v6905
        %v6919 = vpack.c.b16 %v6908, %v6907
        %v6920 = vpack.c.b16 %v6910, %v6909
        %v6921 = vpack.c.b16 %v6912, %v6911
        %v6922 = vpack.c.b16 %v6914, %v6913
        %6931 = vmatprep.subr.bf16.mxu0 0
        %6932 = vmatpush1.bf16.msra.mxu0 %v6922
        %6933 = vmatprep.subr.bf16.mxu0 0
        %6934 = vmatpush1.bf16.msra.mxu0 %v6921
        %6935 = vmatprep.subr.bf16.mxu0 0
        %6936 = vmatpush1.bf16.msra.mxu0 %v6920
        %6937 = vmatprep.subr.bf16.mxu0 0
        %6938 = vmatpush1.bf16.msra.mxu0 %v6919
        %6939 = vmatprep.subr.bf16.mxu0 0
        %6940 = vmatpush1.bf16.msra.mxu0 %v6918
        %6941 = vmatprep.subr.bf16.mxu0 0
        %6942 = vmatpush1.bf16.msra.mxu0 %v6917
        %6943 = vmatprep.subr.bf16.mxu0 0
        %6944 = vmatpush1.bf16.msra.mxu0 %v6916
        %6945 = vmatprep.subr.bf16.mxu0 0
        %6946 = vmatpush1.bf16.msra.mxu0 %v6915
        %6947 = vmatprep.subr.bf16.mxu0 0
        %6948 = vmatpush2.bf16.msra.mxu0 0
        %6949 = vmatprep.subr.bf16.mxu0 0
        %6950 = vmatpush2.bf16.msra.mxu0 0
        %6951 = vmatprep.subr.bf16.mxu0 0
        %6952 = vmatpush2.bf16.msra.mxu0 0
        %6953 = vmatprep.subr.bf16.mxu0 0
        %6954 = vmatpush2.bf16.msra.mxu0 0
        %6955 = vmatprep.subr.bf16.mxu0 0
        %6956 = vmatpush2.bf16.msra.mxu0 0
        %6957 = vmatprep.subr.bf16.mxu0 0
        %6958 = vmatpush2.bf16.msra.mxu0 0
        %6959 = vmatprep.subr.bf16.mxu0 0
        %6960 = vmatpush2.bf16.msra.mxu0 0
        %6961 = vmatprep.subr.bf16.mxu0 0
        %6962 = vmatpush2.bf16.msra.mxu0 0
        %6963 = vmatprep.mubr.bf16.mxu0 0
        %6964 = vmatmul.mubr.bf16.gmra.mxu0 %v6864
        %v6965 = vpop.f32.mrf.mxu0
        %v6966 = vadd.f32 0.0, %v6965
        %v6967 = vpop.f32.mrf.mxu0
        %v6968 = vpop.f32.mrf.mxu0
        %v6969 = vadd.f32 0.0, %v6968
        %v6970 = vpop.f32.mrf.mxu0
        %6971 = vmatprep.mubr.bf16.mxu0 0
        %6972 = vmatmul.mubr.bf16.gmra.mxu0 %v6865
        %v6973 = vpop.f32.mrf.mxu0
        %v6974 = vadd.f32 0.0, %v6973
        %v6975 = vpop.f32.mrf.mxu0
        %v6976 = vpop.f32.mrf.mxu0
        %v6977 = vadd.f32 0.0, %v6976
        %v6978 = vpop.f32.mrf.mxu0
        %6979 = vmatprep.mubr.bf16.mxu0 0
        %6980 = vmatmul.mubr.bf16.gmra.mxu0 %v6866
        %v6981 = vpop.f32.mrf.mxu0
        %v6982 = vpop.f32.mrf.mxu0
        %v6983 = vpop.f32.mrf.mxu0
        %v6984 = vpop.f32.mrf.mxu0
        %6985 = vdwg.mxu0
        %v6986 = vadd.f32 %v6855, %v6966
        %v6987 = vadd.f32 %v6856, %v6969
        %v6988 = vadd.f32 %v6857, %v6974
        %v6989 = vadd.f32 %v6858, %v6977
        %v6990 = vld [vmem:[#allocation4 + $0xe] sm:$0xff]
        %v6991 = vld [vmem:[#allocation4 + $0x16] sm:$0xff]
        %v6992 = vld [vmem:[#allocation4 + $0x1e] sm:$0xff]
        %v6993 = vld [vmem:[#allocation4 + $0x26] sm:$0xff]
        %v6994 = vld [vmem:[#allocation4 + $0x2e] sm:$0xf]
        %v6995 = vpack.c.bf16 %v6991, %v6990
        %v6996 = vpack.c.bf16 %v6993, %v6992
        %v6997 = vpack.c.bf16 %v6994, %v6994
        %v6998 = vld [vmem:[%s7 + $0x200] sm:$0xf]
        %v6999 = vld [vmem:[%s7 + $0x204] sm:$0xf]
        %v7000 = vld [vmem:[%s7 + $0x208] sm:$0xf]
        %v7001 = vld [vmem:[%s7 + $0x20c] sm:$0xf]
        %v7002 = vld [vmem:[%s7 + $0x210] sm:$0xf]
        %v7003 = vld [vmem:[%s7 + $0x214] sm:$0xf]
        %v7004 = vld [vmem:[%s7 + $0x218] sm:$0xf]
        %v7005 = vld [vmem:[%s7 + $0x21c] sm:$0xf]
        %v7006 = vld [vmem:[%s7 + $0x220] sm:$0xf]
        %v7007 = vld [vmem:[%s7 + $0x224] sm:$0xf]
        %v7008 = vld [vmem:[%s7 + $0x228] sm:$0xf]
        %v7009 = vld [vmem:[%s7 + $0x22c] sm:$0xf]
        %v7010 = vld [vmem:[%s7 + $0x230] sm:$0xf]
        %v7011 = vld [vmem:[%s7 + $0x234] sm:$0xf]
        %v7012 = vld [vmem:[%s7 + $0x238] sm:$0xf]
        %v7013 = vld [vmem:[%s7 + $0x23c] sm:$0xf]
        %v7030 = vunpack.c.l.b16 %v6998
        %v7031 = vunpack.c.l.b16 %v6999
        %v7032 = vunpack.c.l.b16 %v7000
        %v7033 = vunpack.c.l.b16 %v7001
        %v7034 = vunpack.c.l.b16 %v7002
        %v7035 = vunpack.c.l.b16 %v7003
        %v7036 = vunpack.c.l.b16 %v7004
        %v7037 = vunpack.c.l.b16 %v7005
        %v7038 = vunpack.c.l.b16 %v7006
        %v7039 = vunpack.c.l.b16 %v7007
        %v7040 = vunpack.c.l.b16 %v7008
        %v7041 = vunpack.c.l.b16 %v7009
        %v7042 = vunpack.c.l.b16 %v7010
        %v7043 = vunpack.c.l.b16 %v7011
        %v7044 = vunpack.c.l.b16 %v7012
        %v7045 = vunpack.c.l.b16 %v7013
        %v7046 = vpack.c.b16 %v7031, %v7030
        %v7047 = vpack.c.b16 %v7033, %v7032
        %v7048 = vpack.c.b16 %v7035, %v7034
        %v7049 = vpack.c.b16 %v7037, %v7036
        %v7050 = vpack.c.b16 %v7039, %v7038
        %v7051 = vpack.c.b16 %v7041, %v7040
        %v7052 = vpack.c.b16 %v7043, %v7042
        %v7053 = vpack.c.b16 %v7045, %v7044
        %7062 = vmatprep.subr.bf16.mxu0 0
        %7063 = vmatpush1.bf16.msra.mxu0 %v7053
        %7064 = vmatprep.subr.bf16.mxu0 0
        %7065 = vmatpush1.bf16.msra.mxu0 %v7052
        %7066 = vmatprep.subr.bf16.mxu0 0
        %7067 = vmatpush1.bf16.msra.mxu0 %v7051
        %7068 = vmatprep.subr.bf16.mxu0 0
        %7069 = vmatpush1.bf16.msra.mxu0 %v7050
        %7070 = vmatprep.subr.bf16.mxu0 0
        %7071 = vmatpush1.bf16.msra.mxu0 %v7049
        %7072 = vmatprep.subr.bf16.mxu0 0
        %7073 = vmatpush1.bf16.msra.mxu0 %v7048
        %7074 = vmatprep.subr.bf16.mxu0 0
        %7075 = vmatpush1.bf16.msra.mxu0 %v7047
        %7076 = vmatprep.subr.bf16.mxu0 0
        %7077 = vmatpush1.bf16.msra.mxu0 %v7046
        %7078 = vmatprep.subr.bf16.mxu0 0
        %7079 = vmatpush2.bf16.msra.mxu0 0
        %7080 = vmatprep.subr.bf16.mxu0 0
        %7081 = vmatpush2.bf16.msra.mxu0 0
        %7082 = vmatprep.subr.bf16.mxu0 0
        %7083 = vmatpush2.bf16.msra.mxu0 0
        %7084 = vmatprep.subr.bf16.mxu0 0
        %7085 = vmatpush2.bf16.msra.mxu0 0
        %7086 = vmatprep.subr.bf16.mxu0 0
        %7087 = vmatpush2.bf16.msra.mxu0 0
        %7088 = vmatprep.subr.bf16.mxu0 0
        %7089 = vmatpush2.bf16.msra.mxu0 0
        %7090 = vmatprep.subr.bf16.mxu0 0
        %7091 = vmatpush2.bf16.msra.mxu0 0
        %7092 = vmatprep.subr.bf16.mxu0 0
        %7093 = vmatpush2.bf16.msra.mxu0 0
        %7094 = vmatprep.mubr.bf16.mxu0 0
        %7095 = vmatmul.mubr.bf16.gmra.mxu0 %v6995
        %v7096 = vpop.f32.mrf.mxu0
        %v7097 = vadd.f32 0.0, %v7096
        %v7098 = vpop.f32.mrf.mxu0
        %v7099 = vpop.f32.mrf.mxu0
        %v7100 = vadd.f32 0.0, %v7099
        %v7101 = vpop.f32.mrf.mxu0
        %7102 = vmatprep.mubr.bf16.mxu0 0
        %7103 = vmatmul.mubr.bf16.gmra.mxu0 %v6996
        %v7104 = vpop.f32.mrf.mxu0
        %v7105 = vadd.f32 0.0, %v7104
        %v7106 = vpop.f32.mrf.mxu0
        %v7107 = vpop.f32.mrf.mxu0
        %v7108 = vadd.f32 0.0, %v7107
        %v7109 = vpop.f32.mrf.mxu0
        %7110 = vmatprep.mubr.bf16.mxu0 0
        %7111 = vmatmul.mubr.bf16.gmra.mxu0 %v6997
        %v7112 = vpop.f32.mrf.mxu0
        %v7113 = vpop.f32.mrf.mxu0
        %v7114 = vpop.f32.mrf.mxu0
        %v7115 = vpop.f32.mrf.mxu0
        %7116 = vdwg.mxu0
        %v7117 = vadd.f32 %v6986, %v7097
        %v7118 = vadd.f32 %v6987, %v7100
        %v7119 = vadd.f32 %v6988, %v7105
        %v7120 = vadd.f32 %v6989, %v7108
        %v7121 = vld [vmem:[%s8] sm:$0x1]
        %v7123 = vlaneseq
        %v7124 = vshrl.u32 %v7123, 7
        %v7125 = vsub.s32 0, %v7124
        %v7126 = vrot.slane %v7121, %v7125
        %v7128 = vadd.f32 %v7117, %v7126
        %v7129 = vadd.f32 %v7118, %v7126
        %v7130 = vadd.f32 %v7119, %v7126
        %v7131 = vadd.f32 %v7120, %v7126
        %v7132 = vtanh.pop %v7128
        %v7133 = vtanh.pop %v7129
        %v7134 = vtanh.pop %v7130
        %v7135 = vtanh.pop %v7131
        %7136 = vst [vmem:[#allocation5 + $0x7] sm:$0x80] %v7132
        %7137 = vst [vmem:[#allocation5 + $0xf] sm:$0x7] %v7133
        %7138 = vst [vmem:[#allocation5 + $0xf] sm:$0xe0] %v7133
        %7139 = vst [vmem:[#allocation5 + $0x17] sm:$0x1] %v7134
        %7140 = vst [vmem:[#allocation5 + $0x17] sm:$0x78] %v7134
        %7141 = vst [vmem:[#allocation5 + $0x1f] sm:$0x1e] %v7135
        %v7142 = vld [vmem:[#allocation5] sm:$0xff]
        %v7143 = vld [vmem:[#allocation5 + $0x8] sm:$0xff]
        %v7144 = vld [vmem:[#allocation5 + $0x10] sm:$0xff]
        %v7145 = vld [vmem:[#allocation5 + $0x18] sm:$0xff]
        %v7146 = vld [vmem:[#allocation5 + $0x20] sm:$0xf]
        %v7147 = vpack.c.bf16 %v7143, %v7142
        %v7148 = vpack.c.bf16 %v7145, %v7144
        %v7149 = vpack.c.bf16 %v7146, %v7146
        %v7150 = vld [vmem:[%s9] sm:$0xf]
        %v7151 = vld [vmem:[%s9 + $0x4] sm:$0xf]
        %v7152 = vld [vmem:[%s9 + $0x8] sm:$0xf]
        %v7153 = vld [vmem:[%s9 + $0xc] sm:$0xf]
        %v7154 = vld [vmem:[%s9 + $0x10] sm:$0xf]
        %v7155 = vld [vmem:[%s9 + $0x14] sm:$0xf]
        %v7156 = vld [vmem:[%s9 + $0x18] sm:$0xf]
        %v7157 = vld [vmem:[%s9 + $0x1c] sm:$0xf]
        %v7158 = vld [vmem:[%s9 + $0x20] sm:$0xf]
        %v7159 = vld [vmem:[%s9 + $0x24] sm:$0xf]
        %v7160 = vld [vmem:[%s9 + $0x28] sm:$0xf]
        %v7161 = vld [vmem:[%s9 + $0x2c] sm:$0xf]
        %v7162 = vld [vmem:[%s9 + $0x30] sm:$0xf]
        %v7163 = vld [vmem:[%s9 + $0x34] sm:$0xf]
        %v7164 = vld [vmem:[%s9 + $0x38] sm:$0xf]
        %v7165 = vld [vmem:[%s9 + $0x3c] sm:$0xf]
        %v7166 = vld [vmem:[#allocation5 + $0x1] sm:$0xff]
        %v7167 = vld [vmem:[#allocation5 + $0x9] sm:$0xff]
        %v7168 = vld [vmem:[#allocation5 + $0x11] sm:$0xff]
        %v7169 = vld [vmem:[#allocation5 + $0x19] sm:$0xff]
        %v7170 = vld [vmem:[#allocation5 + $0x21] sm:$0xf]
        %v7171 = vpack.c.bf16 %v7167, %v7166
        %v7172 = vpack.c.bf16 %v7169, %v7168
        %v7173 = vpack.c.bf16 %v7170, %v7170
        %v7174 = vld [vmem:[%s9 + $0x40] sm:$0xf]
        %v7175 = vld [vmem:[%s9 + $0x44] sm:$0xf]
        %v7176 = vld [vmem:[%s9 + $0x48] sm:$0xf]
        %v7177 = vld [vmem:[%s9 + $0x4c] sm:$0xf]
        %v7178 = vld [vmem:[%s9 + $0x50] sm:$0xf]
        %v7179 = vld [vmem:[%s9 + $0x54] sm:$0xf]
        %v7180 = vld [vmem:[%s9 + $0x58] sm:$0xf]
        %v7181 = vld [vmem:[%s9 + $0x5c] sm:$0xf]
        %v7182 = vld [vmem:[%s9 + $0x60] sm:$0xf]
        %v7183 = vld [vmem:[%s9 + $0x64] sm:$0xf]
        %v7184 = vld [vmem:[%s9 + $0x68] sm:$0xf]
        %v7185 = vld [vmem:[%s9 + $0x6c] sm:$0xf]
        %v7186 = vld [vmem:[%s9 + $0x70] sm:$0xf]
        %v7187 = vld [vmem:[%s9 + $0x74] sm:$0xf]
        %v7188 = vld [vmem:[%s9 + $0x78] sm:$0xf]
        %v7189 = vld [vmem:[%s9 + $0x7c] sm:$0xf]
        %v7206 = vunpack.c.l.b16 %v7174
        %v7207 = vunpack.c.l.b16 %v7175
        %v7208 = vunpack.c.l.b16 %v7176
        %v7209 = vunpack.c.l.b16 %v7177
        %v7210 = vunpack.c.l.b16 %v7178
        %v7211 = vunpack.c.l.b16 %v7179
        %v7212 = vunpack.c.l.b16 %v7180
        %v7213 = vunpack.c.l.b16 %v7181
        %v7214 = vunpack.c.l.b16 %v7182
        %v7215 = vunpack.c.l.b16 %v7183
        %v7216 = vunpack.c.l.b16 %v7184
        %v7217 = vunpack.c.l.b16 %v7185
        %v7218 = vunpack.c.l.b16 %v7186
        %v7219 = vunpack.c.l.b16 %v7187
        %v7220 = vunpack.c.l.b16 %v7188
        %v7221 = vunpack.c.l.b16 %v7189
        %v7222 = vpack.c.b16 %v7207, %v7206
        %v7223 = vpack.c.b16 %v7209, %v7208
        %v7224 = vpack.c.b16 %v7211, %v7210
        %v7225 = vpack.c.b16 %v7213, %v7212
        %v7226 = vpack.c.b16 %v7215, %v7214
        %v7227 = vpack.c.b16 %v7217, %v7216
        %v7228 = vpack.c.b16 %v7219, %v7218
        %v7229 = vpack.c.b16 %v7221, %v7220
        %7238 = vmatprep.subr.bf16.mxu0 0
        %7239 = vmatpush1.bf16.msra.mxu0 %v7229
        %7240 = vmatprep.subr.bf16.mxu0 0
        %7241 = vmatpush1.bf16.msra.mxu0 %v7228
        %7242 = vmatprep.subr.bf16.mxu0 0
        %7243 = vmatpush1.bf16.msra.mxu0 %v7227
        %7244 = vmatprep.subr.bf16.mxu0 0
        %7245 = vmatpush1.bf16.msra.mxu0 %v7226
        %7246 = vmatprep.subr.bf16.mxu0 0
        %7247 = vmatpush1.bf16.msra.mxu0 %v7225
        %7248 = vmatprep.subr.bf16.mxu0 0
        %7249 = vmatpush1.bf16.msra.mxu0 %v7224
        %7250 = vmatprep.subr.bf16.mxu0 0
        %7251 = vmatpush1.bf16.msra.mxu0 %v7223
        %7252 = vmatprep.subr.bf16.mxu0 0
        %7253 = vmatpush1.bf16.msra.mxu0 %v7222
        %7254 = vmatprep.subr.bf16.mxu0 0
        %7255 = vmatpush2.bf16.msra.mxu0 0
        %7256 = vmatprep.subr.bf16.mxu0 0
        %7257 = vmatpush2.bf16.msra.mxu0 0
        %7258 = vmatprep.subr.bf16.mxu0 0
        %7259 = vmatpush2.bf16.msra.mxu0 0
        %7260 = vmatprep.subr.bf16.mxu0 0
        %7261 = vmatpush2.bf16.msra.mxu0 0
        %7262 = vmatprep.subr.bf16.mxu0 0
        %7263 = vmatpush2.bf16.msra.mxu0 0
        %7264 = vmatprep.subr.bf16.mxu0 0
        %7265 = vmatpush2.bf16.msra.mxu0 0
        %7266 = vmatprep.subr.bf16.mxu0 0
        %7267 = vmatpush2.bf16.msra.mxu0 0
        %7268 = vmatprep.subr.bf16.mxu0 0
        %7269 = vmatpush2.bf16.msra.mxu0 0
        %7270 = vmatprep.mubr.bf16.mxu0 0
        %7271 = vmatmul.mubr.bf16.gmra.mxu0 %v7171
        %v7272 = vpop.f32.mrf.mxu0
        %v7273 = vadd.f32 0.0, %v7272
        %v7274 = vpop.f32.mrf.mxu0
        %v7275 = vpop.f32.mrf.mxu0
        %v7276 = vadd.f32 0.0, %v7275
        %v7277 = vpop.f32.mrf.mxu0
        %7278 = vmatprep.mubr.bf16.mxu0 0
        %7279 = vmatmul.mubr.bf16.gmra.mxu0 %v7172
        %v7280 = vpop.f32.mrf.mxu0
        %v7281 = vadd.f32 0.0, %v7280
        %v7282 = vpop.f32.mrf.mxu0
        %v7283 = vpop.f32.mrf.mxu0
        %v7284 = vadd.f32 0.0, %v7283
        %v7285 = vpop.f32.mrf.mxu0
        %7286 = vmatprep.mubr.bf16.mxu0 0
        %7287 = vmatmul.mubr.bf16.gmra.mxu0 %v7173
        %v7288 = vpop.f32.mrf.mxu0
        %v7289 = vpop.f32.mrf.mxu0
        %v7290 = vpop.f32.mrf.mxu0
        %v7291 = vpop.f32.mrf.mxu0
        %7292 = vdwg.mxu0
        %v7309 = vunpack.c.l.b16 %v7150
        %v7310 = vunpack.c.l.b16 %v7151
        %v7311 = vunpack.c.l.b16 %v7152
        %v7312 = vunpack.c.l.b16 %v7153
        %v7313 = vunpack.c.l.b16 %v7154
        %v7314 = vunpack.c.l.b16 %v7155
        %v7315 = vunpack.c.l.b16 %v7156
        %v7316 = vunpack.c.l.b16 %v7157
        %v7317 = vunpack.c.l.b16 %v7158
        %v7318 = vunpack.c.l.b16 %v7159
        %v7319 = vunpack.c.l.b16 %v7160
        %v7320 = vunpack.c.l.b16 %v7161
        %v7321 = vunpack.c.l.b16 %v7162
        %v7322 = vunpack.c.l.b16 %v7163
        %v7323 = vunpack.c.l.b16 %v7164
        %v7324 = vunpack.c.l.b16 %v7165
        %v7325 = vpack.c.b16 %v7310, %v7309
        %v7326 = vpack.c.b16 %v7312, %v7311
        %v7327 = vpack.c.b16 %v7314, %v7313
        %v7328 = vpack.c.b16 %v7316, %v7315
        %v7329 = vpack.c.b16 %v7318, %v7317
        %v7330 = vpack.c.b16 %v7320, %v7319
        %v7331 = vpack.c.b16 %v7322, %v7321
        %v7332 = vpack.c.b16 %v7324, %v7323
        %7341 = vmatprep.subr.bf16.mxu0 0
        %7342 = vmatpush1.bf16.msra.mxu0 %v7332
        %7343 = vmatprep.subr.bf16.mxu0 0
        %7344 = vmatpush1.bf16.msra.mxu0 %v7331
        %7345 = vmatprep.subr.bf16.mxu0 0
        %7346 = vmatpush1.bf16.msra.mxu0 %v7330
        %7347 = vmatprep.subr.bf16.mxu0 0
        %7348 = vmatpush1.bf16.msra.mxu0 %v7329
        %7349 = vmatprep.subr.bf16.mxu0 0
        %7350 = vmatpush1.bf16.msra.mxu0 %v7328
        %7351 = vmatprep.subr.bf16.mxu0 0
        %7352 = vmatpush1.bf16.msra.mxu0 %v7327
        %7353 = vmatprep.subr.bf16.mxu0 0
        %7354 = vmatpush1.bf16.msra.mxu0 %v7326
        %7355 = vmatprep.subr.bf16.mxu0 0
        %7356 = vmatpush1.bf16.msra.mxu0 %v7325
        %7357 = vmatprep.subr.bf16.mxu0 0
        %7358 = vmatpush2.bf16.msra.mxu0 0
        %7359 = vmatprep.subr.bf16.mxu0 0
        %7360 = vmatpush2.bf16.msra.mxu0 0
        %7361 = vmatprep.subr.bf16.mxu0 0
        %7362 = vmatpush2.bf16.msra.mxu0 0
        %7363 = vmatprep.subr.bf16.mxu0 0
        %7364 = vmatpush2.bf16.msra.mxu0 0
        %7365 = vmatprep.subr.bf16.mxu0 0
        %7366 = vmatpush2.bf16.msra.mxu0 0
        %7367 = vmatprep.subr.bf16.mxu0 0
        %7368 = vmatpush2.bf16.msra.mxu0 0
        %7369 = vmatprep.subr.bf16.mxu0 0
        %7370 = vmatpush2.bf16.msra.mxu0 0
        %7371 = vmatprep.subr.bf16.mxu0 0
        %7372 = vmatpush2.bf16.msra.mxu0 0
        %7373 = vmatprep.mubr.bf16.mxu0 0
        %7374 = vmatmul.mubr.bf16.gmra.mxu0 %v7147
        %v7375 = vpop.f32.mrf.mxu0
        %v7376 = vadd.f32 %v7273, %v7375
        %v7377 = vpop.f32.mrf.mxu0
        %v7378 = vpop.f32.mrf.mxu0
        %v7379 = vadd.f32 %v7276, %v7378
        %v7380 = vpop.f32.mrf.mxu0
        %7381 = vmatprep.mubr.bf16.mxu0 0
        %7382 = vmatmul.mubr.bf16.gmra.mxu0 %v7148
        %v7383 = vpop.f32.mrf.mxu0
        %v7384 = vadd.f32 %v7281, %v7383
        %v7385 = vpop.f32.mrf.mxu0
        %v7386 = vpop.f32.mrf.mxu0
        %v7387 = vadd.f32 %v7284, %v7386
        %v7388 = vpop.f32.mrf.mxu0
        %7389 = vmatprep.mubr.bf16.mxu0 0
        %7390 = vmatmul.mubr.bf16.gmra.mxu0 %v7149
        %v7391 = vpop.f32.mrf.mxu0
        %v7392 = vpop.f32.mrf.mxu0
        %v7393 = vpop.f32.mrf.mxu0
        %v7394 = vpop.f32.mrf.mxu0
        %7395 = vdwg.mxu0
        %v7396 = vld [vmem:[#allocation5 + $0x2] sm:$0xff]
        %v7397 = vld [vmem:[#allocation5 + $0xa] sm:$0xff]
        %v7398 = vld [vmem:[#allocation5 + $0x12] sm:$0xff]
        %v7399 = vld [vmem:[#allocation5 + $0x1a] sm:$0xff]
        %v7400 = vld [vmem:[#allocation5 + $0x22] sm:$0xf]
        %v7401 = vpack.c.bf16 %v7397, %v7396
        %v7402 = vpack.c.bf16 %v7399, %v7398
        %v7403 = vpack.c.bf16 %v7400, %v7400
        %v7404 = vld [vmem:[%s9 + $0x80] sm:$0xf]
        %v7405 = vld [vmem:[%s9 + $0x84] sm:$0xf]
        %v7406 = vld [vmem:[%s9 + $0x88] sm:$0xf]
        %v7407 = vld [vmem:[%s9 + $0x8c] sm:$0xf]
        %v7408 = vld [vmem:[%s9 + $0x90] sm:$0xf]
        %v7409 = vld [vmem:[%s9 + $0x94] sm:$0xf]
        %v7410 = vld [vmem:[%s9 + $0x98] sm:$0xf]
        %v7411 = vld [vmem:[%s9 + $0x9c] sm:$0xf]
        %v7412 = vld [vmem:[%s9 + $0xa0] sm:$0xf]
        %v7413 = vld [vmem:[%s9 + $0xa4] sm:$0xf]
        %v7414 = vld [vmem:[%s9 + $0xa8] sm:$0xf]
        %v7415 = vld [vmem:[%s9 + $0xac] sm:$0xf]
        %v7416 = vld [vmem:[%s9 + $0xb0] sm:$0xf]
        %v7417 = vld [vmem:[%s9 + $0xb4] sm:$0xf]
        %v7418 = vld [vmem:[%s9 + $0xb8] sm:$0xf]
        %v7419 = vld [vmem:[%s9 + $0xbc] sm:$0xf]
        %v7436 = vunpack.c.l.b16 %v7404
        %v7437 = vunpack.c.l.b16 %v7405
        %v7438 = vunpack.c.l.b16 %v7406
        %v7439 = vunpack.c.l.b16 %v7407
        %v7440 = vunpack.c.l.b16 %v7408
        %v7441 = vunpack.c.l.b16 %v7409
        %v7442 = vunpack.c.l.b16 %v7410
        %v7443 = vunpack.c.l.b16 %v7411
        %v7444 = vunpack.c.l.b16 %v7412
        %v7445 = vunpack.c.l.b16 %v7413
        %v7446 = vunpack.c.l.b16 %v7414
        %v7447 = vunpack.c.l.b16 %v7415
        %v7448 = vunpack.c.l.b16 %v7416
        %v7449 = vunpack.c.l.b16 %v7417
        %v7450 = vunpack.c.l.b16 %v7418
        %v7451 = vunpack.c.l.b16 %v7419
        %v7452 = vpack.c.b16 %v7437, %v7436
        %v7453 = vpack.c.b16 %v7439, %v7438
        %v7454 = vpack.c.b16 %v7441, %v7440
        %v7455 = vpack.c.b16 %v7443, %v7442
        %v7456 = vpack.c.b16 %v7445, %v7444
        %v7457 = vpack.c.b16 %v7447, %v7446
        %v7458 = vpack.c.b16 %v7449, %v7448
        %v7459 = vpack.c.b16 %v7451, %v7450
        %7468 = vmatprep.subr.bf16.mxu0 0
        %7469 = vmatpush1.bf16.msra.mxu0 %v7459
        %7470 = vmatprep.subr.bf16.mxu0 0
        %7471 = vmatpush1.bf16.msra.mxu0 %v7458
        %7472 = vmatprep.subr.bf16.mxu0 0
        %7473 = vmatpush1.bf16.msra.mxu0 %v7457
        %7474 = vmatprep.subr.bf16.mxu0 0
        %7475 = vmatpush1.bf16.msra.mxu0 %v7456
        %7476 = vmatprep.subr.bf16.mxu0 0
        %7477 = vmatpush1.bf16.msra.mxu0 %v7455
        %7478 = vmatprep.subr.bf16.mxu0 0
        %7479 = vmatpush1.bf16.msra.mxu0 %v7454
        %7480 = vmatprep.subr.bf16.mxu0 0
        %7481 = vmatpush1.bf16.msra.mxu0 %v7453
        %7482 = vmatprep.subr.bf16.mxu0 0
        %7483 = vmatpush1.bf16.msra.mxu0 %v7452
        %7484 = vmatprep.subr.bf16.mxu0 0
        %7485 = vmatpush2.bf16.msra.mxu0 0
        %7486 = vmatprep.subr.bf16.mxu0 0
        %7487 = vmatpush2.bf16.msra.mxu0 0
        %7488 = vmatprep.subr.bf16.mxu0 0
        %7489 = vmatpush2.bf16.msra.mxu0 0
        %7490 = vmatprep.subr.bf16.mxu0 0
        %7491 = vmatpush2.bf16.msra.mxu0 0
        %7492 = vmatprep.subr.bf16.mxu0 0
        %7493 = vmatpush2.bf16.msra.mxu0 0
        %7494 = vmatprep.subr.bf16.mxu0 0
        %7495 = vmatpush2.bf16.msra.mxu0 0
        %7496 = vmatprep.subr.bf16.mxu0 0
        %7497 = vmatpush2.bf16.msra.mxu0 0
        %7498 = vmatprep.subr.bf16.mxu0 0
        %7499 = vmatpush2.bf16.msra.mxu0 0
        %7500 = vmatprep.mubr.bf16.mxu0 0
        %7501 = vmatmul.mubr.bf16.gmra.mxu0 %v7401
        %v7502 = vpop.f32.mrf.mxu0
        %v7503 = vadd.f32 0.0, %v7502
        %v7504 = vpop.f32.mrf.mxu0
        %v7505 = vpop.f32.mrf.mxu0
        %v7506 = vadd.f32 0.0, %v7505
        %v7507 = vpop.f32.mrf.mxu0
        %7508 = vmatprep.mubr.bf16.mxu0 0
        %7509 = vmatmul.mubr.bf16.gmra.mxu0 %v7402
        %v7510 = vpop.f32.mrf.mxu0
        %v7511 = vadd.f32 0.0, %v7510
        %v7512 = vpop.f32.mrf.mxu0
        %v7513 = vpop.f32.mrf.mxu0
        %v7514 = vadd.f32 0.0, %v7513
        %v7515 = vpop.f32.mrf.mxu0
        %7516 = vmatprep.mubr.bf16.mxu0 0
        %7517 = vmatmul.mubr.bf16.gmra.mxu0 %v7403
        %v7518 = vpop.f32.mrf.mxu0
        %v7519 = vpop.f32.mrf.mxu0
        %v7520 = vpop.f32.mrf.mxu0
        %v7521 = vpop.f32.mrf.mxu0
        %7522 = vdwg.mxu0
        %v7523 = vadd.f32 %v7376, %v7503
        %v7524 = vadd.f32 %v7379, %v7506
        %v7525 = vadd.f32 %v7384, %v7511
        %v7526 = vadd.f32 %v7387, %v7514
        %v7527 = vld [vmem:[#allocation5 + $0x6] sm:$0xff]
        %v7528 = vld [vmem:[#allocation5 + $0xe] sm:$0xff]
        %v7529 = vld [vmem:[#allocation5 + $0x16] sm:$0xff]
        %v7530 = vld [vmem:[#allocation5 + $0x1e] sm:$0xff]
        %v7531 = vld [vmem:[#allocation5 + $0x26] sm:$0xf]
        %v7532 = vpack.c.bf16 %v7528, %v7527
        %v7533 = vpack.c.bf16 %v7530, %v7529
        %v7534 = vpack.c.bf16 %v7531, %v7531
        %v7535 = vld [vmem:[%s9 + $0xc0] sm:$0xf]
        %v7536 = vld [vmem:[%s9 + $0xc4] sm:$0xf]
        %v7537 = vld [vmem:[%s9 + $0xc8] sm:$0xf]
        %v7538 = vld [vmem:[%s9 + $0xcc] sm:$0xf]
        %v7539 = vld [vmem:[%s9 + $0xd0] sm:$0xf]
        %v7540 = vld [vmem:[%s9 + $0xd4] sm:$0xf]
        %v7541 = vld [vmem:[%s9 + $0xd8] sm:$0xf]
        %v7542 = vld [vmem:[%s9 + $0xdc] sm:$0xf]
        %v7543 = vld [vmem:[%s9 + $0xe0] sm:$0xf]
        %v7544 = vld [vmem:[%s9 + $0xe4] sm:$0xf]
        %v7545 = vld [vmem:[%s9 + $0xe8] sm:$0xf]
        %v7546 = vld [vmem:[%s9 + $0xec] sm:$0xf]
        %v7547 = vld [vmem:[%s9 + $0xf0] sm:$0xf]
        %v7548 = vld [vmem:[%s9 + $0xf4] sm:$0xf]
        %v7549 = vld [vmem:[%s9 + $0xf8] sm:$0xf]
        %v7550 = vld [vmem:[%s9 + $0xfc] sm:$0xf]
        %v7567 = vunpack.c.l.b16 %v7535
        %v7568 = vunpack.c.l.b16 %v7536
        %v7569 = vunpack.c.l.b16 %v7537
        %v7570 = vunpack.c.l.b16 %v7538
        %v7571 = vunpack.c.l.b16 %v7539
        %v7572 = vunpack.c.l.b16 %v7540
        %v7573 = vunpack.c.l.b16 %v7541
        %v7574 = vunpack.c.l.b16 %v7542
        %v7575 = vunpack.c.l.b16 %v7543
        %v7576 = vunpack.c.l.b16 %v7544
        %v7577 = vunpack.c.l.b16 %v7545
        %v7578 = vunpack.c.l.b16 %v7546
        %v7579 = vunpack.c.l.b16 %v7547
        %v7580 = vunpack.c.l.b16 %v7548
        %v7581 = vunpack.c.l.b16 %v7549
        %v7582 = vunpack.c.l.b16 %v7550
        %v7583 = vpack.c.b16 %v7568, %v7567
        %v7584 = vpack.c.b16 %v7570, %v7569
        %v7585 = vpack.c.b16 %v7572, %v7571
        %v7586 = vpack.c.b16 %v7574, %v7573
        %v7587 = vpack.c.b16 %v7576, %v7575
        %v7588 = vpack.c.b16 %v7578, %v7577
        %v7589 = vpack.c.b16 %v7580, %v7579
        %v7590 = vpack.c.b16 %v7582, %v7581
        %7599 = vmatprep.subr.bf16.mxu0 0
        %7600 = vmatpush1.bf16.msra.mxu0 %v7590
        %7601 = vmatprep.subr.bf16.mxu0 0
        %7602 = vmatpush1.bf16.msra.mxu0 %v7589
        %7603 = vmatprep.subr.bf16.mxu0 0
        %7604 = vmatpush1.bf16.msra.mxu0 %v7588
        %7605 = vmatprep.subr.bf16.mxu0 0
        %7606 = vmatpush1.bf16.msra.mxu0 %v7587
        %7607 = vmatprep.subr.bf16.mxu0 0
        %7608 = vmatpush1.bf16.msra.mxu0 %v7586
        %7609 = vmatprep.subr.bf16.mxu0 0
        %7610 = vmatpush1.bf16.msra.mxu0 %v7585
        %7611 = vmatprep.subr.bf16.mxu0 0
        %7612 = vmatpush1.bf16.msra.mxu0 %v7584
        %7613 = vmatprep.subr.bf16.mxu0 0
        %7614 = vmatpush1.bf16.msra.mxu0 %v7583
        %7615 = vmatprep.subr.bf16.mxu0 0
        %7616 = vmatpush2.bf16.msra.mxu0 0
        %7617 = vmatprep.subr.bf16.mxu0 0
        %7618 = vmatpush2.bf16.msra.mxu0 0
        %7619 = vmatprep.subr.bf16.mxu0 0
        %7620 = vmatpush2.bf16.msra.mxu0 0
        %7621 = vmatprep.subr.bf16.mxu0 0
        %7622 = vmatpush2.bf16.msra.mxu0 0
        %7623 = vmatprep.subr.bf16.mxu0 0
        %7624 = vmatpush2.bf16.msra.mxu0 0
        %7625 = vmatprep.subr.bf16.mxu0 0
        %7626 = vmatpush2.bf16.msra.mxu0 0
        %7627 = vmatprep.subr.bf16.mxu0 0
        %7628 = vmatpush2.bf16.msra.mxu0 0
        %7629 = vmatprep.subr.bf16.mxu0 0
        %7630 = vmatpush2.bf16.msra.mxu0 0
        %7631 = vmatprep.mubr.bf16.mxu0 0
        %7632 = vmatmul.mubr.bf16.gmra.mxu0 %v7532
        %v7633 = vpop.f32.mrf.mxu0
        %v7634 = vadd.f32 0.0, %v7633
        %v7635 = vpop.f32.mrf.mxu0
        %v7636 = vpop.f32.mrf.mxu0
        %v7637 = vadd.f32 0.0, %v7636
        %v7638 = vpop.f32.mrf.mxu0
        %7639 = vmatprep.mubr.bf16.mxu0 0
        %7640 = vmatmul.mubr.bf16.gmra.mxu0 %v7533
        %v7641 = vpop.f32.mrf.mxu0
        %v7642 = vadd.f32 0.0, %v7641
        %v7643 = vpop.f32.mrf.mxu0
        %v7644 = vpop.f32.mrf.mxu0
        %v7645 = vadd.f32 0.0, %v7644
        %v7646 = vpop.f32.mrf.mxu0
        %7647 = vmatprep.mubr.bf16.mxu0 0
        %7648 = vmatmul.mubr.bf16.gmra.mxu0 %v7534
        %v7649 = vpop.f32.mrf.mxu0
        %v7650 = vpop.f32.mrf.mxu0
        %v7651 = vpop.f32.mrf.mxu0
        %v7652 = vpop.f32.mrf.mxu0
        %7653 = vdwg.mxu0
        %v7654 = vadd.f32 %v7523, %v7634
        %v7655 = vadd.f32 %v7524, %v7637
        %v7656 = vadd.f32 %v7525, %v7642
        %v7657 = vadd.f32 %v7526, %v7645
        %v7658 = vld [vmem:[#allocation5 + $0x7] sm:$0xff]
        %v7659 = vld [vmem:[#allocation5 + $0xf] sm:$0xff]
        %v7660 = vld [vmem:[#allocation5 + $0x17] sm:$0xff]
        %v7661 = vld [vmem:[#allocation5 + $0x1f] sm:$0xff]
        %v7662 = vld [vmem:[#allocation5 + $0x27] sm:$0xf]
        %v7663 = vpack.c.bf16 %v7659, %v7658
        %v7664 = vpack.c.bf16 %v7661, %v7660
        %v7665 = vpack.c.bf16 %v7662, %v7662
        %v7666 = vld [vmem:[%s9 + $0x100] sm:$0xf]
        %v7667 = vld [vmem:[%s9 + $0x104] sm:$0xf]
        %v7668 = vld [vmem:[%s9 + $0x108] sm:$0xf]
        %v7669 = vld [vmem:[%s9 + $0x10c] sm:$0xf]
        %v7670 = vld [vmem:[%s9 + $0x110] sm:$0xf]
        %v7671 = vld [vmem:[%s9 + $0x114] sm:$0xf]
        %v7672 = vld [vmem:[%s9 + $0x118] sm:$0xf]
        %v7673 = vld [vmem:[%s9 + $0x11c] sm:$0xf]
        %v7674 = vld [vmem:[%s9 + $0x120] sm:$0xf]
        %v7675 = vld [vmem:[%s9 + $0x124] sm:$0xf]
        %v7676 = vld [vmem:[%s9 + $0x128] sm:$0xf]
        %v7677 = vld [vmem:[%s9 + $0x12c] sm:$0xf]
        %v7678 = vld [vmem:[%s9 + $0x130] sm:$0xf]
        %v7679 = vld [vmem:[%s9 + $0x134] sm:$0xf]
        %v7680 = vld [vmem:[%s9 + $0x138] sm:$0xf]
        %v7681 = vld [vmem:[%s9 + $0x13c] sm:$0xf]
        %v7698 = vunpack.c.l.b16 %v7666
        %v7699 = vunpack.c.l.b16 %v7667
        %v7700 = vunpack.c.l.b16 %v7668
        %v7701 = vunpack.c.l.b16 %v7669
        %v7702 = vunpack.c.l.b16 %v7670
        %v7703 = vunpack.c.l.b16 %v7671
        %v7704 = vunpack.c.l.b16 %v7672
        %v7705 = vunpack.c.l.b16 %v7673
        %v7706 = vunpack.c.l.b16 %v7674
        %v7707 = vunpack.c.l.b16 %v7675
        %v7708 = vunpack.c.l.b16 %v7676
        %v7709 = vunpack.c.l.b16 %v7677
        %v7710 = vunpack.c.l.b16 %v7678
        %v7711 = vunpack.c.l.b16 %v7679
        %v7712 = vunpack.c.l.b16 %v7680
        %v7713 = vunpack.c.l.b16 %v7681
        %v7714 = vpack.c.b16 %v7699, %v7698
        %v7715 = vpack.c.b16 %v7701, %v7700
        %v7716 = vpack.c.b16 %v7703, %v7702
        %v7717 = vpack.c.b16 %v7705, %v7704
        %v7718 = vpack.c.b16 %v7707, %v7706
        %v7719 = vpack.c.b16 %v7709, %v7708
        %v7720 = vpack.c.b16 %v7711, %v7710
        %v7721 = vpack.c.b16 %v7713, %v7712
        %7730 = vmatprep.subr.bf16.mxu0 0
        %7731 = vmatpush1.bf16.msra.mxu0 %v7721
        %7732 = vmatprep.subr.bf16.mxu0 0
        %7733 = vmatpush1.bf16.msra.mxu0 %v7720
        %7734 = vmatprep.subr.bf16.mxu0 0
        %7735 = vmatpush1.bf16.msra.mxu0 %v7719
        %7736 = vmatprep.subr.bf16.mxu0 0
        %7737 = vmatpush1.bf16.msra.mxu0 %v7718
        %7738 = vmatprep.subr.bf16.mxu0 0
        %7739 = vmatpush1.bf16.msra.mxu0 %v7717
        %7740 = vmatprep.subr.bf16.mxu0 0
        %7741 = vmatpush1.bf16.msra.mxu0 %v7716
        %7742 = vmatprep.subr.bf16.mxu0 0
        %7743 = vmatpush1.bf16.msra.mxu0 %v7715
        %7744 = vmatprep.subr.bf16.mxu0 0
        %7745 = vmatpush1.bf16.msra.mxu0 %v7714
        %7746 = vmatprep.subr.bf16.mxu0 0
        %7747 = vmatpush2.bf16.msra.mxu0 0
        %7748 = vmatprep.subr.bf16.mxu0 0
        %7749 = vmatpush2.bf16.msra.mxu0 0
        %7750 = vmatprep.subr.bf16.mxu0 0
        %7751 = vmatpush2.bf16.msra.mxu0 0
        %7752 = vmatprep.subr.bf16.mxu0 0
        %7753 = vmatpush2.bf16.msra.mxu0 0
        %7754 = vmatprep.subr.bf16.mxu0 0
        %7755 = vmatpush2.bf16.msra.mxu0 0
        %7756 = vmatprep.subr.bf16.mxu0 0
        %7757 = vmatpush2.bf16.msra.mxu0 0
        %7758 = vmatprep.subr.bf16.mxu0 0
        %7759 = vmatpush2.bf16.msra.mxu0 0
        %7760 = vmatprep.subr.bf16.mxu0 0
        %7761 = vmatpush2.bf16.msra.mxu0 0
        %7762 = vmatprep.mubr.bf16.mxu0 0
        %7763 = vmatmul.mubr.bf16.gmra.mxu0 %v7663
        %v7764 = vpop.f32.mrf.mxu0
        %v7765 = vadd.f32 0.0, %v7764
        %v7766 = vpop.f32.mrf.mxu0
        %v7767 = vpop.f32.mrf.mxu0
        %v7768 = vadd.f32 0.0, %v7767
        %v7769 = vpop.f32.mrf.mxu0
        %7770 = vmatprep.mubr.bf16.mxu0 0
        %7771 = vmatmul.mubr.bf16.gmra.mxu0 %v7664
        %v7772 = vpop.f32.mrf.mxu0
        %v7773 = vadd.f32 0.0, %v7772
        %v7774 = vpop.f32.mrf.mxu0
        %v7775 = vpop.f32.mrf.mxu0
        %v7776 = vadd.f32 0.0, %v7775
        %v7777 = vpop.f32.mrf.mxu0
        %7778 = vmatprep.mubr.bf16.mxu0 0
        %7779 = vmatmul.mubr.bf16.gmra.mxu0 %v7665
        %v7780 = vpop.f32.mrf.mxu0
        %v7781 = vpop.f32.mrf.mxu0
        %v7782 = vpop.f32.mrf.mxu0
        %v7783 = vpop.f32.mrf.mxu0
        %7784 = vdwg.mxu0
        %v7785 = vadd.f32 %v7654, %v7765
        %v7786 = vadd.f32 %v7655, %v7768
        %v7787 = vadd.f32 %v7656, %v7773
        %v7788 = vadd.f32 %v7657, %v7776
        %v7789 = vld [vmem:[#allocation5 + $0x8] sm:$0xff]
        %v7790 = vld [vmem:[#allocation5 + $0x10] sm:$0xff]
        %v7791 = vld [vmem:[#allocation5 + $0x18] sm:$0xff]
        %v7792 = vld [vmem:[#allocation5 + $0x20] sm:$0xff]
        %v7793 = vld [vmem:[#allocation5 + $0x28] sm:$0xf]
        %v7794 = vpack.c.bf16 %v7790, %v7789
        %v7795 = vpack.c.bf16 %v7792, %v7791
        %v7796 = vpack.c.bf16 %v7793, %v7793
        %v7797 = vld [vmem:[%s9 + $0x140] sm:$0xf]
        %v7798 = vld [vmem:[%s9 + $0x144] sm:$0xf]
        %v7799 = vld [vmem:[%s9 + $0x148] sm:$0xf]
        %v7800 = vld [vmem:[%s9 + $0x14c] sm:$0xf]
        %v7801 = vld [vmem:[%s9 + $0x150] sm:$0xf]
        %v7802 = vld [vmem:[%s9 + $0x154] sm:$0xf]
        %v7803 = vld [vmem:[%s9 + $0x158] sm:$0xf]
        %v7804 = vld [vmem:[%s9 + $0x15c] sm:$0xf]
        %v7805 = vld [vmem:[%s9 + $0x160] sm:$0xf]
        %v7806 = vld [vmem:[%s9 + $0x164] sm:$0xf]
        %v7807 = vld [vmem:[%s9 + $0x168] sm:$0xf]
        %v7808 = vld [vmem:[%s9 + $0x16c] sm:$0xf]
        %v7809 = vld [vmem:[%s9 + $0x170] sm:$0xf]
        %v7810 = vld [vmem:[%s9 + $0x174] sm:$0xf]
        %v7811 = vld [vmem:[%s9 + $0x178] sm:$0xf]
        %v7812 = vld [vmem:[%s9 + $0x17c] sm:$0xf]
        %v7829 = vunpack.c.l.b16 %v7797
        %v7830 = vunpack.c.l.b16 %v7798
        %v7831 = vunpack.c.l.b16 %v7799
        %v7832 = vunpack.c.l.b16 %v7800
        %v7833 = vunpack.c.l.b16 %v7801
        %v7834 = vunpack.c.l.b16 %v7802
        %v7835 = vunpack.c.l.b16 %v7803
        %v7836 = vunpack.c.l.b16 %v7804
        %v7837 = vunpack.c.l.b16 %v7805
        %v7838 = vunpack.c.l.b16 %v7806
        %v7839 = vunpack.c.l.b16 %v7807
        %v7840 = vunpack.c.l.b16 %v7808
        %v7841 = vunpack.c.l.b16 %v7809
        %v7842 = vunpack.c.l.b16 %v7810
        %v7843 = vunpack.c.l.b16 %v7811
        %v7844 = vunpack.c.l.b16 %v7812
        %v7845 = vpack.c.b16 %v7830, %v7829
        %v7846 = vpack.c.b16 %v7832, %v7831
        %v7847 = vpack.c.b16 %v7834, %v7833
        %v7848 = vpack.c.b16 %v7836, %v7835
        %v7849 = vpack.c.b16 %v7838, %v7837
        %v7850 = vpack.c.b16 %v7840, %v7839
        %v7851 = vpack.c.b16 %v7842, %v7841
        %v7852 = vpack.c.b16 %v7844, %v7843
        %7861 = vmatprep.subr.bf16.mxu0 0
        %7862 = vmatpush1.bf16.msra.mxu0 %v7852
        %7863 = vmatprep.subr.bf16.mxu0 0
        %7864 = vmatpush1.bf16.msra.mxu0 %v7851
        %7865 = vmatprep.subr.bf16.mxu0 0
        %7866 = vmatpush1.bf16.msra.mxu0 %v7850
        %7867 = vmatprep.subr.bf16.mxu0 0
        %7868 = vmatpush1.bf16.msra.mxu0 %v7849
        %7869 = vmatprep.subr.bf16.mxu0 0
        %7870 = vmatpush1.bf16.msra.mxu0 %v7848
        %7871 = vmatprep.subr.bf16.mxu0 0
        %7872 = vmatpush1.bf16.msra.mxu0 %v7847
        %7873 = vmatprep.subr.bf16.mxu0 0
        %7874 = vmatpush1.bf16.msra.mxu0 %v7846
        %7875 = vmatprep.subr.bf16.mxu0 0
        %7876 = vmatpush1.bf16.msra.mxu0 %v7845
        %7877 = vmatprep.subr.bf16.mxu0 0
        %7878 = vmatpush2.bf16.msra.mxu0 0
        %7879 = vmatprep.subr.bf16.mxu0 0
        %7880 = vmatpush2.bf16.msra.mxu0 0
        %7881 = vmatprep.subr.bf16.mxu0 0
        %7882 = vmatpush2.bf16.msra.mxu0 0
        %7883 = vmatprep.subr.bf16.mxu0 0
        %7884 = vmatpush2.bf16.msra.mxu0 0
        %7885 = vmatprep.subr.bf16.mxu0 0
        %7886 = vmatpush2.bf16.msra.mxu0 0
        %7887 = vmatprep.subr.bf16.mxu0 0
        %7888 = vmatpush2.bf16.msra.mxu0 0
        %7889 = vmatprep.subr.bf16.mxu0 0
        %7890 = vmatpush2.bf16.msra.mxu0 0
        %7891 = vmatprep.subr.bf16.mxu0 0
        %7892 = vmatpush2.bf16.msra.mxu0 0
        %7893 = vmatprep.mubr.bf16.mxu0 0
        %7894 = vmatmul.mubr.bf16.gmra.mxu0 %v7794
        %v7895 = vpop.f32.mrf.mxu0
        %v7896 = vadd.f32 0.0, %v7895
        %v7897 = vpop.f32.mrf.mxu0
        %v7898 = vpop.f32.mrf.mxu0
        %v7899 = vadd.f32 0.0, %v7898
        %v7900 = vpop.f32.mrf.mxu0
        %7901 = vmatprep.mubr.bf16.mxu0 0
        %7902 = vmatmul.mubr.bf16.gmra.mxu0 %v7795
        %v7903 = vpop.f32.mrf.mxu0
        %v7904 = vadd.f32 0.0, %v7903
        %v7905 = vpop.f32.mrf.mxu0
        %v7906 = vpop.f32.mrf.mxu0
        %v7907 = vadd.f32 0.0, %v7906
        %v7908 = vpop.f32.mrf.mxu0
        %7909 = vmatprep.mubr.bf16.mxu0 0
        %7910 = vmatmul.mubr.bf16.gmra.mxu0 %v7796
        %v7911 = vpop.f32.mrf.mxu0
        %v7912 = vpop.f32.mrf.mxu0
        %v7913 = vpop.f32.mrf.mxu0
        %v7914 = vpop.f32.mrf.mxu0
        %7915 = vdwg.mxu0
        %v7916 = vadd.f32 %v7785, %v7896
        %v7917 = vadd.f32 %v7786, %v7899
        %v7918 = vadd.f32 %v7787, %v7904
        %v7919 = vadd.f32 %v7788, %v7907
        %v7920 = vld [vmem:[#allocation5 + $0xc] sm:$0xff]
        %v7921 = vld [vmem:[#allocation5 + $0x14] sm:$0xff]
        %v7922 = vld [vmem:[#allocation5 + $0x1c] sm:$0xff]
        %v7923 = vld [vmem:[#allocation5 + $0x24] sm:$0xff]
        %v7924 = vld [vmem:[#allocation5 + $0x2c] sm:$0xf]
        %v7925 = vpack.c.bf16 %v7921, %v7920
        %v7926 = vpack.c.bf16 %v7923, %v7922
        %v7927 = vpack.c.bf16 %v7924, %v7924
        %v7928 = vld [vmem:[%s9 + $0x180] sm:$0xf]
        %v7929 = vld [vmem:[%s9 + $0x184] sm:$0xf]
        %v7930 = vld [vmem:[%s9 + $0x188] sm:$0xf]
        %v7931 = vld [vmem:[%s9 + $0x18c] sm:$0xf]
        %v7932 = vld [vmem:[%s9 + $0x190] sm:$0xf]
        %v7933 = vld [vmem:[%s9 + $0x194] sm:$0xf]
        %v7934 = vld [vmem:[%s9 + $0x198] sm:$0xf]
        %v7935 = vld [vmem:[%s9 + $0x19c] sm:$0xf]
        %v7936 = vld [vmem:[%s9 + $0x1a0] sm:$0xf]
        %v7937 = vld [vmem:[%s9 + $0x1a4] sm:$0xf]
        %v7938 = vld [vmem:[%s9 + $0x1a8] sm:$0xf]
        %v7939 = vld [vmem:[%s9 + $0x1ac] sm:$0xf]
        %v7940 = vld [vmem:[%s9 + $0x1b0] sm:$0xf]
        %v7941 = vld [vmem:[%s9 + $0x1b4] sm:$0xf]
        %v7942 = vld [vmem:[%s9 + $0x1b8] sm:$0xf]
        %v7943 = vld [vmem:[%s9 + $0x1bc] sm:$0xf]
        %v7960 = vunpack.c.l.b16 %v7928
        %v7961 = vunpack.c.l.b16 %v7929
        %v7962 = vunpack.c.l.b16 %v7930
        %v7963 = vunpack.c.l.b16 %v7931
        %v7964 = vunpack.c.l.b16 %v7932
        %v7965 = vunpack.c.l.b16 %v7933
        %v7966 = vunpack.c.l.b16 %v7934
        %v7967 = vunpack.c.l.b16 %v7935
        %v7968 = vunpack.c.l.b16 %v7936
        %v7969 = vunpack.c.l.b16 %v7937
        %v7970 = vunpack.c.l.b16 %v7938
        %v7971 = vunpack.c.l.b16 %v7939
        %v7972 = vunpack.c.l.b16 %v7940
        %v7973 = vunpack.c.l.b16 %v7941
        %v7974 = vunpack.c.l.b16 %v7942
        %v7975 = vunpack.c.l.b16 %v7943
        %v7976 = vpack.c.b16 %v7961, %v7960
        %v7977 = vpack.c.b16 %v7963, %v7962
        %v7978 = vpack.c.b16 %v7965, %v7964
        %v7979 = vpack.c.b16 %v7967, %v7966
        %v7980 = vpack.c.b16 %v7969, %v7968
        %v7981 = vpack.c.b16 %v7971, %v7970
        %v7982 = vpack.c.b16 %v7973, %v7972
        %v7983 = vpack.c.b16 %v7975, %v7974
        %7992 = vmatprep.subr.bf16.mxu0 0
        %7993 = vmatpush1.bf16.msra.mxu0 %v7983
        %7994 = vmatprep.subr.bf16.mxu0 0
        %7995 = vmatpush1.bf16.msra.mxu0 %v7982
        %7996 = vmatprep.subr.bf16.mxu0 0
        %7997 = vmatpush1.bf16.msra.mxu0 %v7981
        %7998 = vmatprep.subr.bf16.mxu0 0
        %7999 = vmatpush1.bf16.msra.mxu0 %v7980
        %8000 = vmatprep.subr.bf16.mxu0 0
        %8001 = vmatpush1.bf16.msra.mxu0 %v7979
        %8002 = vmatprep.subr.bf16.mxu0 0
        %8003 = vmatpush1.bf16.msra.mxu0 %v7978
        %8004 = vmatprep.subr.bf16.mxu0 0
        %8005 = vmatpush1.bf16.msra.mxu0 %v7977
        %8006 = vmatprep.subr.bf16.mxu0 0
        %8007 = vmatpush1.bf16.msra.mxu0 %v7976
        %8008 = vmatprep.subr.bf16.mxu0 0
        %8009 = vmatpush2.bf16.msra.mxu0 0
        %8010 = vmatprep.subr.bf16.mxu0 0
        %8011 = vmatpush2.bf16.msra.mxu0 0
        %8012 = vmatprep.subr.bf16.mxu0 0
        %8013 = vmatpush2.bf16.msra.mxu0 0
        %8014 = vmatprep.subr.bf16.mxu0 0
        %8015 = vmatpush2.bf16.msra.mxu0 0
        %8016 = vmatprep.subr.bf16.mxu0 0
        %8017 = vmatpush2.bf16.msra.mxu0 0
        %8018 = vmatprep.subr.bf16.mxu0 0
        %8019 = vmatpush2.bf16.msra.mxu0 0
        %8020 = vmatprep.subr.bf16.mxu0 0
        %8021 = vmatpush2.bf16.msra.mxu0 0
        %8022 = vmatprep.subr.bf16.mxu0 0
        %8023 = vmatpush2.bf16.msra.mxu0 0
        %8024 = vmatprep.mubr.bf16.mxu0 0
        %8025 = vmatmul.mubr.bf16.gmra.mxu0 %v7925
        %v8026 = vpop.f32.mrf.mxu0
        %v8027 = vadd.f32 0.0, %v8026
        %v8028 = vpop.f32.mrf.mxu0
        %v8029 = vpop.f32.mrf.mxu0
        %v8030 = vadd.f32 0.0, %v8029
        %v8031 = vpop.f32.mrf.mxu0
        %8032 = vmatprep.mubr.bf16.mxu0 0
        %8033 = vmatmul.mubr.bf16.gmra.mxu0 %v7926
        %v8034 = vpop.f32.mrf.mxu0
        %v8035 = vadd.f32 0.0, %v8034
        %v8036 = vpop.f32.mrf.mxu0
        %v8037 = vpop.f32.mrf.mxu0
        %v8038 = vadd.f32 0.0, %v8037
        %v8039 = vpop.f32.mrf.mxu0
        %8040 = vmatprep.mubr.bf16.mxu0 0
        %8041 = vmatmul.mubr.bf16.gmra.mxu0 %v7927
        %v8042 = vpop.f32.mrf.mxu0
        %v8043 = vpop.f32.mrf.mxu0
        %v8044 = vpop.f32.mrf.mxu0
        %v8045 = vpop.f32.mrf.mxu0
        %8046 = vdwg.mxu0
        %v8047 = vadd.f32 %v7916, %v8027
        %v8048 = vadd.f32 %v7917, %v8030
        %v8049 = vadd.f32 %v7918, %v8035
        %v8050 = vadd.f32 %v7919, %v8038
        %v8051 = vld [vmem:[#allocation5 + $0xd] sm:$0xff]
        %v8052 = vld [vmem:[#allocation5 + $0x15] sm:$0xff]
        %v8053 = vld [vmem:[#allocation5 + $0x1d] sm:$0xff]
        %v8054 = vld [vmem:[#allocation5 + $0x25] sm:$0xff]
        %v8055 = vld [vmem:[#allocation5 + $0x2d] sm:$0xf]
        %v8056 = vpack.c.bf16 %v8052, %v8051
        %v8057 = vpack.c.bf16 %v8054, %v8053
        %v8058 = vpack.c.bf16 %v8055, %v8055
        %v8059 = vld [vmem:[%s9 + $0x1c0] sm:$0xf]
        %v8060 = vld [vmem:[%s9 + $0x1c4] sm:$0xf]
        %v8061 = vld [vmem:[%s9 + $0x1c8] sm:$0xf]
        %v8062 = vld [vmem:[%s9 + $0x1cc] sm:$0xf]
        %v8063 = vld [vmem:[%s9 + $0x1d0] sm:$0xf]
        %v8064 = vld [vmem:[%s9 + $0x1d4] sm:$0xf]
        %v8065 = vld [vmem:[%s9 + $0x1d8] sm:$0xf]
        %v8066 = vld [vmem:[%s9 + $0x1dc] sm:$0xf]
        %v8067 = vld [vmem:[%s9 + $0x1e0] sm:$0xf]
        %v8068 = vld [vmem:[%s9 + $0x1e4] sm:$0xf]
        %v8069 = vld [vmem:[%s9 + $0x1e8] sm:$0xf]
        %v8070 = vld [vmem:[%s9 + $0x1ec] sm:$0xf]
        %v8071 = vld [vmem:[%s9 + $0x1f0] sm:$0xf]
        %v8072 = vld [vmem:[%s9 + $0x1f4] sm:$0xf]
        %v8073 = vld [vmem:[%s9 + $0x1f8] sm:$0xf]
        %v8074 = vld [vmem:[%s9 + $0x1fc] sm:$0xf]
        %v8091 = vunpack.c.l.b16 %v8059
        %v8092 = vunpack.c.l.b16 %v8060
        %v8093 = vunpack.c.l.b16 %v8061
        %v8094 = vunpack.c.l.b16 %v8062
        %v8095 = vunpack.c.l.b16 %v8063
        %v8096 = vunpack.c.l.b16 %v8064
        %v8097 = vunpack.c.l.b16 %v8065
        %v8098 = vunpack.c.l.b16 %v8066
        %v8099 = vunpack.c.l.b16 %v8067
        %v8100 = vunpack.c.l.b16 %v8068
        %v8101 = vunpack.c.l.b16 %v8069
        %v8102 = vunpack.c.l.b16 %v8070
        %v8103 = vunpack.c.l.b16 %v8071
        %v8104 = vunpack.c.l.b16 %v8072
        %v8105 = vunpack.c.l.b16 %v8073
        %v8106 = vunpack.c.l.b16 %v8074
        %v8107 = vpack.c.b16 %v8092, %v8091
        %v8108 = vpack.c.b16 %v8094, %v8093
        %v8109 = vpack.c.b16 %v8096, %v8095
        %v8110 = vpack.c.b16 %v8098, %v8097
        %v8111 = vpack.c.b16 %v8100, %v8099
        %v8112 = vpack.c.b16 %v8102, %v8101
        %v8113 = vpack.c.b16 %v8104, %v8103
        %v8114 = vpack.c.b16 %v8106, %v8105
        %8123 = vmatprep.subr.bf16.mxu0 0
        %8124 = vmatpush1.bf16.msra.mxu0 %v8114
        %8125 = vmatprep.subr.bf16.mxu0 0
        %8126 = vmatpush1.bf16.msra.mxu0 %v8113
        %8127 = vmatprep.subr.bf16.mxu0 0
        %8128 = vmatpush1.bf16.msra.mxu0 %v8112
        %8129 = vmatprep.subr.bf16.mxu0 0
        %8130 = vmatpush1.bf16.msra.mxu0 %v8111
        %8131 = vmatprep.subr.bf16.mxu0 0
        %8132 = vmatpush1.bf16.msra.mxu0 %v8110
        %8133 = vmatprep.subr.bf16.mxu0 0
        %8134 = vmatpush1.bf16.msra.mxu0 %v8109
        %8135 = vmatprep.subr.bf16.mxu0 0
        %8136 = vmatpush1.bf16.msra.mxu0 %v8108
        %8137 = vmatprep.subr.bf16.mxu0 0
        %8138 = vmatpush1.bf16.msra.mxu0 %v8107
        %8139 = vmatprep.subr.bf16.mxu0 0
        %8140 = vmatpush2.bf16.msra.mxu0 0
        %8141 = vmatprep.subr.bf16.mxu0 0
        %8142 = vmatpush2.bf16.msra.mxu0 0
        %8143 = vmatprep.subr.bf16.mxu0 0
        %8144 = vmatpush2.bf16.msra.mxu0 0
        %8145 = vmatprep.subr.bf16.mxu0 0
        %8146 = vmatpush2.bf16.msra.mxu0 0
        %8147 = vmatprep.subr.bf16.mxu0 0
        %8148 = vmatpush2.bf16.msra.mxu0 0
        %8149 = vmatprep.subr.bf16.mxu0 0
        %8150 = vmatpush2.bf16.msra.mxu0 0
        %8151 = vmatprep.subr.bf16.mxu0 0
        %8152 = vmatpush2.bf16.msra.mxu0 0
        %8153 = vmatprep.subr.bf16.mxu0 0
        %8154 = vmatpush2.bf16.msra.mxu0 0
        %8155 = vmatprep.mubr.bf16.mxu0 0
        %8156 = vmatmul.mubr.bf16.gmra.mxu0 %v8056
        %v8157 = vpop.f32.mrf.mxu0
        %v8158 = vadd.f32 0.0, %v8157
        %v8159 = vpop.f32.mrf.mxu0
        %v8160 = vpop.f32.mrf.mxu0
        %v8161 = vadd.f32 0.0, %v8160
        %v8162 = vpop.f32.mrf.mxu0
        %8163 = vmatprep.mubr.bf16.mxu0 0
        %8164 = vmatmul.mubr.bf16.gmra.mxu0 %v8057
        %v8165 = vpop.f32.mrf.mxu0
        %v8166 = vadd.f32 0.0, %v8165
        %v8167 = vpop.f32.mrf.mxu0
        %v8168 = vpop.f32.mrf.mxu0
        %v8169 = vadd.f32 0.0, %v8168
        %v8170 = vpop.f32.mrf.mxu0
        %8171 = vmatprep.mubr.bf16.mxu0 0
        %8172 = vmatmul.mubr.bf16.gmra.mxu0 %v8058
        %v8173 = vpop.f32.mrf.mxu0
        %v8174 = vpop.f32.mrf.mxu0
        %v8175 = vpop.f32.mrf.mxu0
        %v8176 = vpop.f32.mrf.mxu0
        %8177 = vdwg.mxu0
        %v8178 = vadd.f32 %v8047, %v8158
        %v8179 = vadd.f32 %v8048, %v8161
        %v8180 = vadd.f32 %v8049, %v8166
        %v8181 = vadd.f32 %v8050, %v8169
        %v8182 = vld [vmem:[#allocation5 + $0xe] sm:$0xff]
        %v8183 = vld [vmem:[#allocation5 + $0x16] sm:$0xff]
        %v8184 = vld [vmem:[#allocation5 + $0x1e] sm:$0xff]
        %v8185 = vld [vmem:[#allocation5 + $0x26] sm:$0xff]
        %v8186 = vld [vmem:[#allocation5 + $0x2e] sm:$0xf]
        %v8187 = vpack.c.bf16 %v8183, %v8182
        %v8188 = vpack.c.bf16 %v8185, %v8184
        %v8189 = vpack.c.bf16 %v8186, %v8186
        %v8190 = vld [vmem:[%s9 + $0x200] sm:$0xf]
        %v8191 = vld [vmem:[%s9 + $0x204] sm:$0xf]
        %v8192 = vld [vmem:[%s9 + $0x208] sm:$0xf]
        %v8193 = vld [vmem:[%s9 + $0x20c] sm:$0xf]
        %v8194 = vld [vmem:[%s9 + $0x210] sm:$0xf]
        %v8195 = vld [vmem:[%s9 + $0x214] sm:$0xf]
        %v8196 = vld [vmem:[%s9 + $0x218] sm:$0xf]
        %v8197 = vld [vmem:[%s9 + $0x21c] sm:$0xf]
        %v8198 = vld [vmem:[%s9 + $0x220] sm:$0xf]
        %v8199 = vld [vmem:[%s9 + $0x224] sm:$0xf]
        %v8200 = vld [vmem:[%s9 + $0x228] sm:$0xf]
        %v8201 = vld [vmem:[%s9 + $0x22c] sm:$0xf]
        %v8202 = vld [vmem:[%s9 + $0x230] sm:$0xf]
        %v8203 = vld [vmem:[%s9 + $0x234] sm:$0xf]
        %v8204 = vld [vmem:[%s9 + $0x238] sm:$0xf]
        %v8205 = vld [vmem:[%s9 + $0x23c] sm:$0xf]
        %v8222 = vunpack.c.l.b16 %v8190
        %v8223 = vunpack.c.l.b16 %v8191
        %v8224 = vunpack.c.l.b16 %v8192
        %v8225 = vunpack.c.l.b16 %v8193
        %v8226 = vunpack.c.l.b16 %v8194
        %v8227 = vunpack.c.l.b16 %v8195
        %v8228 = vunpack.c.l.b16 %v8196
        %v8229 = vunpack.c.l.b16 %v8197
        %v8230 = vunpack.c.l.b16 %v8198
        %v8231 = vunpack.c.l.b16 %v8199
        %v8232 = vunpack.c.l.b16 %v8200
        %v8233 = vunpack.c.l.b16 %v8201
        %v8234 = vunpack.c.l.b16 %v8202
        %v8235 = vunpack.c.l.b16 %v8203
        %v8236 = vunpack.c.l.b16 %v8204
        %v8237 = vunpack.c.l.b16 %v8205
        %v8238 = vpack.c.b16 %v8223, %v8222
        %v8239 = vpack.c.b16 %v8225, %v8224
        %v8240 = vpack.c.b16 %v8227, %v8226
        %v8241 = vpack.c.b16 %v8229, %v8228
        %v8242 = vpack.c.b16 %v8231, %v8230
        %v8243 = vpack.c.b16 %v8233, %v8232
        %v8244 = vpack.c.b16 %v8235, %v8234
        %v8245 = vpack.c.b16 %v8237, %v8236
        %8254 = vmatprep.subr.bf16.mxu0 0
        %8255 = vmatpush1.bf16.msra.mxu0 %v8245
        %8256 = vmatprep.subr.bf16.mxu0 0
        %8257 = vmatpush1.bf16.msra.mxu0 %v8244
        %8258 = vmatprep.subr.bf16.mxu0 0
        %8259 = vmatpush1.bf16.msra.mxu0 %v8243
        %8260 = vmatprep.subr.bf16.mxu0 0
        %8261 = vmatpush1.bf16.msra.mxu0 %v8242
        %8262 = vmatprep.subr.bf16.mxu0 0
        %8263 = vmatpush1.bf16.msra.mxu0 %v8241
        %8264 = vmatprep.subr.bf16.mxu0 0
        %8265 = vmatpush1.bf16.msra.mxu0 %v8240
        %8266 = vmatprep.subr.bf16.mxu0 0
        %8267 = vmatpush1.bf16.msra.mxu0 %v8239
        %8268 = vmatprep.subr.bf16.mxu0 0
        %8269 = vmatpush1.bf16.msra.mxu0 %v8238
        %8270 = vmatprep.subr.bf16.mxu0 0
        %8271 = vmatpush2.bf16.msra.mxu0 0
        %8272 = vmatprep.subr.bf16.mxu0 0
        %8273 = vmatpush2.bf16.msra.mxu0 0
        %8274 = vmatprep.subr.bf16.mxu0 0
        %8275 = vmatpush2.bf16.msra.mxu0 0
        %8276 = vmatprep.subr.bf16.mxu0 0
        %8277 = vmatpush2.bf16.msra.mxu0 0
        %8278 = vmatprep.subr.bf16.mxu0 0
        %8279 = vmatpush2.bf16.msra.mxu0 0
        %8280 = vmatprep.subr.bf16.mxu0 0
        %8281 = vmatpush2.bf16.msra.mxu0 0
        %8282 = vmatprep.subr.bf16.mxu0 0
        %8283 = vmatpush2.bf16.msra.mxu0 0
        %8284 = vmatprep.subr.bf16.mxu0 0
        %8285 = vmatpush2.bf16.msra.mxu0 0
        %8286 = vmatprep.mubr.bf16.mxu0 0
        %8287 = vmatmul.mubr.bf16.gmra.mxu0 %v8187
        %v8288 = vpop.f32.mrf.mxu0
        %v8289 = vadd.f32 0.0, %v8288
        %v8290 = vpop.f32.mrf.mxu0
        %v8291 = vpop.f32.mrf.mxu0
        %v8292 = vadd.f32 0.0, %v8291
        %v8293 = vpop.f32.mrf.mxu0
        %8294 = vmatprep.mubr.bf16.mxu0 0
        %8295 = vmatmul.mubr.bf16.gmra.mxu0 %v8188
        %v8296 = vpop.f32.mrf.mxu0
        %v8297 = vadd.f32 0.0, %v8296
        %v8298 = vpop.f32.mrf.mxu0
        %v8299 = vpop.f32.mrf.mxu0
        %v8300 = vadd.f32 0.0, %v8299
        %v8301 = vpop.f32.mrf.mxu0
        %8302 = vmatprep.mubr.bf16.mxu0 0
        %8303 = vmatmul.mubr.bf16.gmra.mxu0 %v8189
        %v8304 = vpop.f32.mrf.mxu0
        %v8305 = vpop.f32.mrf.mxu0
        %v8306 = vpop.f32.mrf.mxu0
        %v8307 = vpop.f32.mrf.mxu0
        %8308 = vdwg.mxu0
        %v8309 = vadd.f32 %v8178, %v8289
        %v8310 = vadd.f32 %v8179, %v8292
        %v8311 = vadd.f32 %v8180, %v8297
        %v8312 = vadd.f32 %v8181, %v8300
        %v8313 = vld [vmem:[%s10] sm:$0x1]
        %v8315 = vlaneseq
        %v8316 = vshrl.u32 %v8315, 7
        %v8317 = vsub.s32 0, %v8316
        %v8318 = vrot.slane %v8313, %v8317
        %v8320 = vadd.f32 %v8309, %v8318
        %v8321 = vadd.f32 %v8310, %v8318
        %v8322 = vadd.f32 %v8311, %v8318
        %v8323 = vadd.f32 %v8312, %v8318
        %v8324 = vtanh.pop %v8320
        %v8325 = vtanh.pop %v8321
        %v8326 = vtanh.pop %v8322
        %v8327 = vtanh.pop %v8323
        %8328 = vst [vmem:[%s532 - $0x7] sm:$0x80] %v8324
        %8329 = vst [vmem:[%s532 + $0x1] sm:$0x7] %v8325
        %8330 = vst [vmem:[%s532 - $0x1] sm:$0xe0] %v8325
        %8331 = vst [vmem:[%s532 + $0x7] sm:$0x1] %v8326
        %8332 = vst [vmem:[%s532 + $0x5] sm:$0x78] %v8326
        %8333 = vst [vmem:[%s532 + $0xb] sm:$0x1e] %v8327
        %vm8336 = vcmask 1041408
        %v8337 = vrot.slane %v8325, 6
        %v8338 = vrot.slane %v8326, 6
        %v8339 = vsel %vm8336, %v8337, %v8338
        %v8342 = vmax.f32 %v8324, %v8337
        %v8343 = vmax.f32 %v8325, %v8339
        %v8346 = vrot.slane %v8342, 7
        %v8347 = vrot.slane %v8343, 7
        %v8348 = vsel %vm5489, %v8346, %v8347
        %vm8349 = vcmask 31744
        %v8350 = vsel %vm8349, %v1037, 0
        %vm8352 = vcmask 1043456
        %v8353 = vsel %vm8352, %v8348, 0
        %8355 = vmatprep.subr.mxu0 0.0
        %8356 = vmatpush1.msra.mxu0 0.0
        %8357 = vmatprep.subr.mxu0 0.0
        %8358 = vmatpush1.msra.mxu0 0.0
        %8359 = vmatprep.subr.mxu0 0.0
        %8360 = vmatpush1.msra.mxu0 0.0
        %8361 = vmatprep.subr.mxu0 0.0
        %8362 = vmatpush1.msra.mxu0 0.0
        %8363 = vmatprep.subr.mxu0 0.0
        %8364 = vmatpush1.msra.mxu0 0.0
        %8365 = vmatprep.subr.mxu0 0.0
        %8366 = vmatpush1.msra.mxu0 0.0
        %8367 = vmatprep.subr.mxu0 0.0
        %8368 = vmatpush1.msra.mxu0 0.0
        %8369 = vmatprep.subr.mxu0 0.0
        %8370 = vmatpush1.msra.mxu0 0.0
        %8371 = vmatprep.subr.mxu0 0.0
        %8372 = vmatpush1.msra.mxu0 0.0
        %8373 = vmatprep.subr.mxu0 0.0
        %8374 = vmatpush1.msra.mxu0 0.0
        %8375 = vmatprep.subr.mxu0 0.0
        %8376 = vmatpush1.msra.mxu0 0.0
        %8377 = vmatprep.subr.mxu0 0.0
        %8378 = vmatpush1.msra.mxu0 0.0
        %8379 = vmatprep.subr.mxu0 0.0
        %8380 = vmatpush1.msra.mxu0 0.0
        %8381 = vmatprep.subr.mxu0 0.0
        %8382 = vmatpush1.msra.mxu0 0.0
        %8383 = vmatprep.subr.mxu0 0.0
        %8384 = vmatpush1.msra.mxu0 0.0
        %8385 = vmatprep.subr.mxu0 0.0
        %8386 = vmatpush1.msra.mxu0 %v8353
        %8387 = vmatprep.subr.mxu0 0.0
        %8388 = vmatpush2.msra.mxu0 0.0
        %8389 = vmatprep.subr.mxu0 0.0
        %8390 = vmatpush2.msra.mxu0 0.0
        %8391 = vmatprep.subr.mxu0 0.0
        %8392 = vmatpush2.msra.mxu0 0.0
        %8393 = vmatprep.subr.mxu0 0.0
        %8394 = vmatpush2.msra.mxu0 0.0
        %8395 = vmatprep.subr.mxu0 0.0
        %8396 = vmatpush2.msra.mxu0 0.0
        %8397 = vmatprep.subr.mxu0 0.0
        %8398 = vmatpush2.msra.mxu0 0.0
        %8399 = vmatprep.subr.mxu0 0.0
        %8400 = vmatpush2.msra.mxu0 0.0
        %8401 = vmatprep.subr.mxu0 0.0
        %8402 = vmatpush2.msra.mxu0 0.0
        %8403 = vmatprep.subr.mxu0 0.0
        %8404 = vmatpush2.msra.mxu0 0.0
        %8405 = vmatprep.subr.mxu0 0.0
        %8406 = vmatpush2.msra.mxu0 0.0
        %8407 = vmatprep.subr.mxu0 0.0
        %8408 = vmatpush2.msra.mxu0 0.0
        %8409 = vmatprep.subr.mxu0 0.0
        %8410 = vmatpush2.msra.mxu0 0.0
        %8411 = vmatprep.subr.mxu0 0.0
        %8412 = vmatpush2.msra.mxu0 0.0
        %8413 = vmatprep.subr.mxu0 0.0
        %8414 = vmatpush2.msra.mxu0 0.0
        %8415 = vmatprep.subr.mxu0 0.0
        %8416 = vmatpush2.msra.mxu0 0.0
        %8417 = vmatprep.subr.mxu0 0.0
        %8418 = vmatpush2.msra.mxu0 0.0
        %8419 = vmatprep.mubr.f32.mxu0 0.0
        %8420 = vmatmul.mubr.f32.gmra.mxu0 %v8350
        %v8421 = vpop.f32.mrf.mxu0
        %v8422 = vadd.f32 0.0, %v8421
        %v8423 = vpop.f32.mrf.mxu0
        %8424 = vdwg.mxu0
        %v8425 = vsel %vm8349, %v1041, 0
        %8427 = vmatprep.subr.mxu0 0.0
        %8428 = vmatpush1.msra.mxu0 0.0
        %8429 = vmatprep.subr.mxu0 0.0
        %8430 = vmatpush1.msra.mxu0 0.0
        %8431 = vmatprep.subr.mxu0 0.0
        %8432 = vmatpush1.msra.mxu0 0.0
        %8433 = vmatprep.subr.mxu0 0.0
        %8434 = vmatpush1.msra.mxu0 0.0
        %8435 = vmatprep.subr.mxu0 0.0
        %8436 = vmatpush1.msra.mxu0 0.0
        %8437 = vmatprep.subr.mxu0 0.0
        %8438 = vmatpush1.msra.mxu0 0.0
        %8439 = vmatprep.subr.mxu0 0.0
        %8440 = vmatpush1.msra.mxu0 0.0
        %8441 = vmatprep.subr.mxu0 0.0
        %8442 = vmatpush1.msra.mxu0 0.0
        %8443 = vmatprep.subr.mxu0 0.0
        %8444 = vmatpush1.msra.mxu0 0.0
        %8445 = vmatprep.subr.mxu0 0.0
        %8446 = vmatpush1.msra.mxu0 0.0
        %8447 = vmatprep.subr.mxu0 0.0
        %8448 = vmatpush1.msra.mxu0 0.0
        %8449 = vmatprep.subr.mxu0 0.0
        %8450 = vmatpush1.msra.mxu0 0.0
        %8451 = vmatprep.subr.mxu0 0.0
        %8452 = vmatpush1.msra.mxu0 0.0
        %8453 = vmatprep.subr.mxu0 0.0
        %8454 = vmatpush1.msra.mxu0 0.0
        %8455 = vmatprep.subr.mxu0 0.0
        %8456 = vmatpush1.msra.mxu0 0.0
        %8457 = vmatprep.subr.mxu0 0.0
        %8458 = vmatpush1.msra.mxu0 %v8353
        %8459 = vmatprep.subr.mxu0 0.0
        %8460 = vmatpush2.msra.mxu0 0.0
        %8461 = vmatprep.subr.mxu0 0.0
        %8462 = vmatpush2.msra.mxu0 0.0
        %8463 = vmatprep.subr.mxu0 0.0
        %8464 = vmatpush2.msra.mxu0 0.0
        %8465 = vmatprep.subr.mxu0 0.0
        %8466 = vmatpush2.msra.mxu0 0.0
        %8467 = vmatprep.subr.mxu0 0.0
        %8468 = vmatpush2.msra.mxu0 0.0
        %8469 = vmatprep.subr.mxu0 0.0
        %8470 = vmatpush2.msra.mxu0 0.0
        %8471 = vmatprep.subr.mxu0 0.0
        %8472 = vmatpush2.msra.mxu0 0.0
        %8473 = vmatprep.subr.mxu0 0.0
        %8474 = vmatpush2.msra.mxu0 0.0
        %8475 = vmatprep.subr.mxu0 0.0
        %8476 = vmatpush2.msra.mxu0 0.0
        %8477 = vmatprep.subr.mxu0 0.0
        %8478 = vmatpush2.msra.mxu0 0.0
        %8479 = vmatprep.subr.mxu0 0.0
        %8480 = vmatpush2.msra.mxu0 0.0
        %8481 = vmatprep.subr.mxu0 0.0
        %8482 = vmatpush2.msra.mxu0 0.0
        %8483 = vmatprep.subr.mxu0 0.0
        %8484 = vmatpush2.msra.mxu0 0.0
        %8485 = vmatprep.subr.mxu0 0.0
        %8486 = vmatpush2.msra.mxu0 0.0
        %8487 = vmatprep.subr.mxu0 0.0
        %8488 = vmatpush2.msra.mxu0 0.0
        %8489 = vmatprep.subr.mxu0 0.0
        %8490 = vmatpush2.msra.mxu0 0.0
        %8491 = vmatprep.mubr.f32.mxu0 0.0
        %8492 = vmatmul.mubr.f32.gmra.mxu0 %v8425
        %v8493 = vpop.f32.mrf.mxu0
        %v8494 = vadd.f32 0.0, %v8493
        %v8495 = vpop.f32.mrf.mxu0
        %8496 = vdwg.mxu0
        %v8497 = vmax.f32 %v8422, %v8494
        %8498 = vst [vmem:[#allocation6 + $0xa] sm:$0x3] %v8497
        %v8500 = vrot.slane %v8327, 6
        %v8502 = vmax.f32 %v8326, %v8500
        %v8504 = vrot.slane %v8502, 3
        %v8505 = vsel %vm8352, %v8504, 0
        %8507 = vmatprep.subr.mxu0 0.0
        %8508 = vmatpush1.msra.mxu0 0.0
        %8509 = vmatprep.subr.mxu0 0.0
        %8510 = vmatpush1.msra.mxu0 0.0
        %8511 = vmatprep.subr.mxu0 0.0
        %8512 = vmatpush1.msra.mxu0 0.0
        %8513 = vmatprep.subr.mxu0 0.0
        %8514 = vmatpush1.msra.mxu0 0.0
        %8515 = vmatprep.subr.mxu0 0.0
        %8516 = vmatpush1.msra.mxu0 0.0
        %8517 = vmatprep.subr.mxu0 0.0
        %8518 = vmatpush1.msra.mxu0 0.0
        %8519 = vmatprep.subr.mxu0 0.0
        %8520 = vmatpush1.msra.mxu0 0.0
        %8521 = vmatprep.subr.mxu0 0.0
        %8522 = vmatpush1.msra.mxu0 0.0
        %8523 = vmatprep.subr.mxu0 0.0
        %8524 = vmatpush1.msra.mxu0 0.0
        %8525 = vmatprep.subr.mxu0 0.0
        %8526 = vmatpush1.msra.mxu0 0.0
        %8527 = vmatprep.subr.mxu0 0.0
        %8528 = vmatpush1.msra.mxu0 0.0
        %8529 = vmatprep.subr.mxu0 0.0
        %8530 = vmatpush1.msra.mxu0 0.0
        %8531 = vmatprep.subr.mxu0 0.0
        %8532 = vmatpush1.msra.mxu0 0.0
        %8533 = vmatprep.subr.mxu0 0.0
        %8534 = vmatpush1.msra.mxu0 0.0
        %8535 = vmatprep.subr.mxu0 0.0
        %8536 = vmatpush1.msra.mxu0 0.0
        %8537 = vmatprep.subr.mxu0 0.0
        %8538 = vmatpush1.msra.mxu0 %v8505
        %8539 = vmatprep.subr.mxu0 0.0
        %8540 = vmatpush2.msra.mxu0 0.0
        %8541 = vmatprep.subr.mxu0 0.0
        %8542 = vmatpush2.msra.mxu0 0.0
        %8543 = vmatprep.subr.mxu0 0.0
        %8544 = vmatpush2.msra.mxu0 0.0
        %8545 = vmatprep.subr.mxu0 0.0
        %8546 = vmatpush2.msra.mxu0 0.0
        %8547 = vmatprep.subr.mxu0 0.0
        %8548 = vmatpush2.msra.mxu0 0.0
        %8549 = vmatprep.subr.mxu0 0.0
        %8550 = vmatpush2.msra.mxu0 0.0
        %8551 = vmatprep.subr.mxu0 0.0
        %8552 = vmatpush2.msra.mxu0 0.0
        %8553 = vmatprep.subr.mxu0 0.0
        %8554 = vmatpush2.msra.mxu0 0.0
        %8555 = vmatprep.subr.mxu0 0.0
        %8556 = vmatpush2.msra.mxu0 0.0
        %8557 = vmatprep.subr.mxu0 0.0
        %8558 = vmatpush2.msra.mxu0 0.0
        %8559 = vmatprep.subr.mxu0 0.0
        %8560 = vmatpush2.msra.mxu0 0.0
        %8561 = vmatprep.subr.mxu0 0.0
        %8562 = vmatpush2.msra.mxu0 0.0
        %8563 = vmatprep.subr.mxu0 0.0
        %8564 = vmatpush2.msra.mxu0 0.0
        %8565 = vmatprep.subr.mxu0 0.0
        %8566 = vmatpush2.msra.mxu0 0.0
        %8567 = vmatprep.subr.mxu0 0.0
        %8568 = vmatpush2.msra.mxu0 0.0
        %8569 = vmatprep.subr.mxu0 0.0
        %8570 = vmatpush2.msra.mxu0 0.0
        %8571 = vmatprep.mubr.f32.mxu0 0.0
        %8572 = vmatmul.mubr.f32.gmra.mxu0 %v8350
        %v8573 = vpop.f32.mrf.mxu0
        %v8574 = vadd.f32 0.0, %v8573
        %v8575 = vpop.f32.mrf.mxu0
        %8576 = vdwg.mxu0
        %8577 = vmatprep.subr.mxu0 0.0
        %8578 = vmatpush1.msra.mxu0 0.0
        %8579 = vmatprep.subr.mxu0 0.0
        %8580 = vmatpush1.msra.mxu0 0.0
        %8581 = vmatprep.subr.mxu0 0.0
        %8582 = vmatpush1.msra.mxu0 0.0
        %8583 = vmatprep.subr.mxu0 0.0
        %8584 = vmatpush1.msra.mxu0 0.0
        %8585 = vmatprep.subr.mxu0 0.0
        %8586 = vmatpush1.msra.mxu0 0.0
        %8587 = vmatprep.subr.mxu0 0.0
        %8588 = vmatpush1.msra.mxu0 0.0
        %8589 = vmatprep.subr.mxu0 0.0
        %8590 = vmatpush1.msra.mxu0 0.0
        %8591 = vmatprep.subr.mxu0 0.0
        %8592 = vmatpush1.msra.mxu0 0.0
        %8593 = vmatprep.subr.mxu0 0.0
        %8594 = vmatpush1.msra.mxu0 0.0
        %8595 = vmatprep.subr.mxu0 0.0
        %8596 = vmatpush1.msra.mxu0 0.0
        %8597 = vmatprep.subr.mxu0 0.0
        %8598 = vmatpush1.msra.mxu0 0.0
        %8599 = vmatprep.subr.mxu0 0.0
        %8600 = vmatpush1.msra.mxu0 0.0
        %8601 = vmatprep.subr.mxu0 0.0
        %8602 = vmatpush1.msra.mxu0 0.0
        %8603 = vmatprep.subr.mxu0 0.0
        %8604 = vmatpush1.msra.mxu0 0.0
        %8605 = vmatprep.subr.mxu0 0.0
        %8606 = vmatpush1.msra.mxu0 0.0
        %8607 = vmatprep.subr.mxu0 0.0
        %8608 = vmatpush1.msra.mxu0 %v8505
        %8609 = vmatprep.subr.mxu0 0.0
        %8610 = vmatpush2.msra.mxu0 0.0
        %8611 = vmatprep.subr.mxu0 0.0
        %8612 = vmatpush2.msra.mxu0 0.0
        %8613 = vmatprep.subr.mxu0 0.0
        %8614 = vmatpush2.msra.mxu0 0.0
        %8615 = vmatprep.subr.mxu0 0.0
        %8616 = vmatpush2.msra.mxu0 0.0
        %8617 = vmatprep.subr.mxu0 0.0
        %8618 = vmatpush2.msra.mxu0 0.0
        %8619 = vmatprep.subr.mxu0 0.0
        %8620 = vmatpush2.msra.mxu0 0.0
        %8621 = vmatprep.subr.mxu0 0.0
        %8622 = vmatpush2.msra.mxu0 0.0
        %8623 = vmatprep.subr.mxu0 0.0
        %8624 = vmatpush2.msra.mxu0 0.0
        %8625 = vmatprep.subr.mxu0 0.0
        %8626 = vmatpush2.msra.mxu0 0.0
        %8627 = vmatprep.subr.mxu0 0.0
        %8628 = vmatpush2.msra.mxu0 0.0
        %8629 = vmatprep.subr.mxu0 0.0
        %8630 = vmatpush2.msra.mxu0 0.0
        %8631 = vmatprep.subr.mxu0 0.0
        %8632 = vmatpush2.msra.mxu0 0.0
        %8633 = vmatprep.subr.mxu0 0.0
        %8634 = vmatpush2.msra.mxu0 0.0
        %8635 = vmatprep.subr.mxu0 0.0
        %8636 = vmatpush2.msra.mxu0 0.0
        %8637 = vmatprep.subr.mxu0 0.0
        %8638 = vmatpush2.msra.mxu0 0.0
        %8639 = vmatprep.subr.mxu0 0.0
        %8640 = vmatpush2.msra.mxu0 0.0
        %8641 = vmatprep.mubr.f32.mxu0 0.0
        %8642 = vmatmul.mubr.f32.gmra.mxu0 %v8425
        %v8643 = vpop.f32.mrf.mxu0
        %v8644 = vadd.f32 0.0, %v8643
        %v8645 = vpop.f32.mrf.mxu0
        %8646 = vdwg.mxu0
        %v8647 = vmax.f32 %v8574, %v8644
        %8648 = vst [vmem:[#allocation6 + $0xe] sm:$0x3] %v8647
        %v8649 = vld [vmem:[#allocation6] sm:$0xff]
        %v8650 = vld [vmem:[#allocation6 + $0x8] sm:$0xff]
        %v8651 = vpack.c.bf16 %v8650, %v8649
        %v8652 = vld [vmem:[%s11] sm:$0xff]
        %v8653 = vld [vmem:[%s11 + $0x8] sm:$0xff]
        %v8654 = vld [vmem:[%s11 + $0x10] sm:$0xff]
        %v8655 = vld [vmem:[%s11 + $0x18] sm:$0xff]
        %v8656 = vld [vmem:[%s11 + $0x20] sm:$0xff]
        %v8657 = vld [vmem:[%s11 + $0x28] sm:$0xff]
        %v8658 = vld [vmem:[%s11 + $0x30] sm:$0xff]
        %v8659 = vld [vmem:[%s11 + $0x38] sm:$0xff]
        %v8660 = vld [vmem:[%s11 + $0x40] sm:$0xff]
        %v8661 = vld [vmem:[%s11 + $0x48] sm:$0xff]
        %v8662 = vld [vmem:[%s11 + $0x50] sm:$0xff]
        %v8663 = vld [vmem:[%s11 + $0x58] sm:$0xff]
        %v8664 = vld [vmem:[%s11 + $0x60] sm:$0xff]
        %v8665 = vld [vmem:[%s11 + $0x68] sm:$0xff]
        %v8666 = vld [vmem:[%s11 + $0x70] sm:$0xff]
        %v8667 = vld [vmem:[%s11 + $0x78] sm:$0xff]
        %v8668 = vld [vmem:[#allocation6 + $0x1] sm:$0xff]
        %v8669 = vld [vmem:[#allocation6 + $0x9] sm:$0xff]
        %v8670 = vpack.c.bf16 %v8669, %v8668
        %v8671 = vld [vmem:[%s11 + $0x80] sm:$0xff]
        %v8672 = vld [vmem:[%s11 + $0x88] sm:$0xff]
        %v8673 = vld [vmem:[%s11 + $0x90] sm:$0xff]
        %v8674 = vld [vmem:[%s11 + $0x98] sm:$0xff]
        %v8675 = vld [vmem:[%s11 + $0xa0] sm:$0xff]
        %v8676 = vld [vmem:[%s11 + $0xa8] sm:$0xff]
        %v8677 = vld [vmem:[%s11 + $0xb0] sm:$0xff]
        %v8678 = vld [vmem:[%s11 + $0xb8] sm:$0xff]
        %v8679 = vld [vmem:[%s11 + $0xc0] sm:$0xff]
        %v8680 = vld [vmem:[%s11 + $0xc8] sm:$0xff]
        %v8681 = vld [vmem:[%s11 + $0xd0] sm:$0xff]
        %v8682 = vld [vmem:[%s11 + $0xd8] sm:$0xff]
        %v8683 = vld [vmem:[%s11 + $0xe0] sm:$0xff]
        %v8684 = vld [vmem:[%s11 + $0xe8] sm:$0xff]
        %v8685 = vld [vmem:[%s11 + $0xf0] sm:$0xff]
        %v8686 = vld [vmem:[%s11 + $0xf8] sm:$0xff]
        %v8703 = vunpack.c.l.b16 %v8671
        %v8704 = vunpack.c.h.b16 %v8671
        %v8705 = vunpack.c.l.b16 %v8672
        %v8706 = vunpack.c.h.b16 %v8672
        %v8707 = vunpack.c.l.b16 %v8673
        %v8708 = vunpack.c.h.b16 %v8673
        %v8709 = vunpack.c.l.b16 %v8674
        %v8710 = vunpack.c.h.b16 %v8674
        %v8711 = vunpack.c.l.b16 %v8675
        %v8712 = vunpack.c.h.b16 %v8675
        %v8713 = vunpack.c.l.b16 %v8676
        %v8714 = vunpack.c.h.b16 %v8676
        %v8715 = vunpack.c.l.b16 %v8677
        %v8716 = vunpack.c.h.b16 %v8677
        %v8717 = vunpack.c.l.b16 %v8678
        %v8718 = vunpack.c.h.b16 %v8678
        %v8719 = vunpack.c.l.b16 %v8679
        %v8720 = vunpack.c.h.b16 %v8679
        %v8721 = vunpack.c.l.b16 %v8680
        %v8722 = vunpack.c.h.b16 %v8680
        %v8723 = vunpack.c.l.b16 %v8681
        %v8724 = vunpack.c.h.b16 %v8681
        %v8725 = vunpack.c.l.b16 %v8682
        %v8726 = vunpack.c.h.b16 %v8682
        %v8727 = vunpack.c.l.b16 %v8683
        %v8728 = vunpack.c.h.b16 %v8683
        %v8729 = vunpack.c.l.b16 %v8684
        %v8730 = vunpack.c.h.b16 %v8684
        %v8731 = vunpack.c.l.b16 %v8685
        %v8732 = vunpack.c.h.b16 %v8685
        %v8733 = vunpack.c.l.b16 %v8686
        %v8734 = vunpack.c.h.b16 %v8686
        %v8735 = vpack.c.b16 %v8705, %v8703
        %v8736 = vpack.c.b16 %v8706, %v8704
        %v8737 = vpack.c.b16 %v8709, %v8707
        %v8738 = vpack.c.b16 %v8710, %v8708
        %v8739 = vpack.c.b16 %v8713, %v8711
        %v8740 = vpack.c.b16 %v8714, %v8712
        %v8741 = vpack.c.b16 %v8717, %v8715
        %v8742 = vpack.c.b16 %v8718, %v8716
        %v8743 = vpack.c.b16 %v8721, %v8719
        %v8744 = vpack.c.b16 %v8722, %v8720
        %v8745 = vpack.c.b16 %v8725, %v8723
        %v8746 = vpack.c.b16 %v8726, %v8724
        %v8747 = vpack.c.b16 %v8729, %v8727
        %v8748 = vpack.c.b16 %v8730, %v8728
        %v8749 = vpack.c.b16 %v8733, %v8731
        %v8750 = vpack.c.b16 %v8734, %v8732
        %8767 = vmatprep.subr.bf16.mxu0 %v8750
        %8768 = vmatpush1.bf16.msra.mxu0 %v8749
        %8769 = vmatprep.subr.bf16.mxu0 %v8748
        %8770 = vmatpush1.bf16.msra.mxu0 %v8747
        %8771 = vmatprep.subr.bf16.mxu0 %v8746
        %8772 = vmatpush1.bf16.msra.mxu0 %v8745
        %8773 = vmatprep.subr.bf16.mxu0 %v8744
        %8774 = vmatpush1.bf16.msra.mxu0 %v8743
        %8775 = vmatprep.subr.bf16.mxu0 %v8742
        %8776 = vmatpush1.bf16.msra.mxu0 %v8741
        %8777 = vmatprep.subr.bf16.mxu0 %v8740
        %8778 = vmatpush1.bf16.msra.mxu0 %v8739
        %8779 = vmatprep.subr.bf16.mxu0 %v8738
        %8780 = vmatpush1.bf16.msra.mxu0 %v8737
        %8781 = vmatprep.subr.bf16.mxu0 %v8736
        %8782 = vmatpush1.bf16.msra.mxu0 %v8735
        %8783 = vmatprep.subr.bf16.mxu0 0
        %8784 = vmatpush2.bf16.msra.mxu0 0
        %8785 = vmatprep.subr.bf16.mxu0 0
        %8786 = vmatpush2.bf16.msra.mxu0 0
        %8787 = vmatprep.subr.bf16.mxu0 0
        %8788 = vmatpush2.bf16.msra.mxu0 0
        %8789 = vmatprep.subr.bf16.mxu0 0
        %8790 = vmatpush2.bf16.msra.mxu0 0
        %8791 = vmatprep.subr.bf16.mxu0 0
        %8792 = vmatpush2.bf16.msra.mxu0 0
        %8793 = vmatprep.subr.bf16.mxu0 0
        %8794 = vmatpush2.bf16.msra.mxu0 0
        %8795 = vmatprep.subr.bf16.mxu0 0
        %8796 = vmatpush2.bf16.msra.mxu0 0
        %8797 = vmatprep.subr.bf16.mxu0 0
        %8798 = vmatpush2.bf16.msra.mxu0 0
        %8799 = vmatprep.mubr.bf16.mxu0 0
        %8800 = vmatmul.mubr.bf16.gmra.mxu0 %v8670
        %v8801 = vpop.f32.mrf.mxu0
        %v8802 = vadd.f32 0.0, %v8801
        %v8803 = vpop.f32.mrf.mxu0
        %v8804 = vadd.f32 0.0, %v8803
        %v8805 = vpop.f32.mrf.mxu0
        %v8806 = vadd.f32 0.0, %v8805
        %v8807 = vpop.f32.mrf.mxu0
        %v8808 = vadd.f32 0.0, %v8807
        %8809 = vdwg.mxu0
        %v8826 = vunpack.c.l.b16 %v8652
        %v8827 = vunpack.c.h.b16 %v8652
        %v8828 = vunpack.c.l.b16 %v8653
        %v8829 = vunpack.c.h.b16 %v8653
        %v8830 = vunpack.c.l.b16 %v8654
        %v8831 = vunpack.c.h.b16 %v8654
        %v8832 = vunpack.c.l.b16 %v8655
        %v8833 = vunpack.c.h.b16 %v8655
        %v8834 = vunpack.c.l.b16 %v8656
        %v8835 = vunpack.c.h.b16 %v8656
        %v8836 = vunpack.c.l.b16 %v8657
        %v8837 = vunpack.c.h.b16 %v8657
        %v8838 = vunpack.c.l.b16 %v8658
        %v8839 = vunpack.c.h.b16 %v8658
        %v8840 = vunpack.c.l.b16 %v8659
        %v8841 = vunpack.c.h.b16 %v8659
        %v8842 = vunpack.c.l.b16 %v8660
        %v8843 = vunpack.c.h.b16 %v8660
        %v8844 = vunpack.c.l.b16 %v8661
        %v8845 = vunpack.c.h.b16 %v8661
        %v8846 = vunpack.c.l.b16 %v8662
        %v8847 = vunpack.c.h.b16 %v8662
        %v8848 = vunpack.c.l.b16 %v8663
        %v8849 = vunpack.c.h.b16 %v8663
        %v8850 = vunpack.c.l.b16 %v8664
        %v8851 = vunpack.c.h.b16 %v8664
        %v8852 = vunpack.c.l.b16 %v8665
        %v8853 = vunpack.c.h.b16 %v8665
        %v8854 = vunpack.c.l.b16 %v8666
        %v8855 = vunpack.c.h.b16 %v8666
        %v8856 = vunpack.c.l.b16 %v8667
        %v8857 = vunpack.c.h.b16 %v8667
        %v8858 = vpack.c.b16 %v8828, %v8826
        %v8859 = vpack.c.b16 %v8829, %v8827
        %v8860 = vpack.c.b16 %v8832, %v8830
        %v8861 = vpack.c.b16 %v8833, %v8831
        %v8862 = vpack.c.b16 %v8836, %v8834
        %v8863 = vpack.c.b16 %v8837, %v8835
        %v8864 = vpack.c.b16 %v8840, %v8838
        %v8865 = vpack.c.b16 %v8841, %v8839
        %v8866 = vpack.c.b16 %v8844, %v8842
        %v8867 = vpack.c.b16 %v8845, %v8843
        %v8868 = vpack.c.b16 %v8848, %v8846
        %v8869 = vpack.c.b16 %v8849, %v8847
        %v8870 = vpack.c.b16 %v8852, %v8850
        %v8871 = vpack.c.b16 %v8853, %v8851
        %v8872 = vpack.c.b16 %v8856, %v8854
        %v8873 = vpack.c.b16 %v8857, %v8855
        %8890 = vmatprep.subr.bf16.mxu0 %v8873
        %8891 = vmatpush1.bf16.msra.mxu0 %v8872
        %8892 = vmatprep.subr.bf16.mxu0 %v8871
        %8893 = vmatpush1.bf16.msra.mxu0 %v8870
        %8894 = vmatprep.subr.bf16.mxu0 %v8869
        %8895 = vmatpush1.bf16.msra.mxu0 %v8868
        %8896 = vmatprep.subr.bf16.mxu0 %v8867
        %8897 = vmatpush1.bf16.msra.mxu0 %v8866
        %8898 = vmatprep.subr.bf16.mxu0 %v8865
        %8899 = vmatpush1.bf16.msra.mxu0 %v8864
        %8900 = vmatprep.subr.bf16.mxu0 %v8863
        %8901 = vmatpush1.bf16.msra.mxu0 %v8862
        %8902 = vmatprep.subr.bf16.mxu0 %v8861
        %8903 = vmatpush1.bf16.msra.mxu0 %v8860
        %8904 = vmatprep.subr.bf16.mxu0 %v8859
        %8905 = vmatpush1.bf16.msra.mxu0 %v8858
        %8906 = vmatprep.subr.bf16.mxu0 0
        %8907 = vmatpush2.bf16.msra.mxu0 0
        %8908 = vmatprep.subr.bf16.mxu0 0
        %8909 = vmatpush2.bf16.msra.mxu0 0
        %8910 = vmatprep.subr.bf16.mxu0 0
        %8911 = vmatpush2.bf16.msra.mxu0 0
        %8912 = vmatprep.subr.bf16.mxu0 0
        %8913 = vmatpush2.bf16.msra.mxu0 0
        %8914 = vmatprep.subr.bf16.mxu0 0
        %8915 = vmatpush2.bf16.msra.mxu0 0
        %8916 = vmatprep.subr.bf16.mxu0 0
        %8917 = vmatpush2.bf16.msra.mxu0 0
        %8918 = vmatprep.subr.bf16.mxu0 0
        %8919 = vmatpush2.bf16.msra.mxu0 0
        %8920 = vmatprep.subr.bf16.mxu0 0
        %8921 = vmatpush2.bf16.msra.mxu0 0
        %8922 = vmatprep.mubr.bf16.mxu0 0
        %8923 = vmatmul.mubr.bf16.gmra.mxu0 %v8651
        %v8924 = vpop.f32.mrf.mxu0
        %v8925 = vadd.f32 %v8802, %v8924
        %v8926 = vpop.f32.mrf.mxu0
        %v8927 = vadd.f32 %v8804, %v8926
        %v8928 = vpop.f32.mrf.mxu0
        %v8929 = vadd.f32 %v8806, %v8928
        %v8930 = vpop.f32.mrf.mxu0
        %v8931 = vadd.f32 %v8808, %v8930
        %8932 = vdwg.mxu0
        %v8933 = vld [vmem:[#allocation6 + $0x2] sm:$0xff]
        %v8934 = vld [vmem:[#allocation6 + $0xa] sm:$0xff]
        %v8935 = vpack.c.bf16 %v8934, %v8933
        %v8936 = vld [vmem:[%s11 + $0x100] sm:$0xff]
        %v8937 = vld [vmem:[%s11 + $0x108] sm:$0xff]
        %v8938 = vld [vmem:[%s11 + $0x110] sm:$0xff]
        %v8939 = vld [vmem:[%s11 + $0x118] sm:$0xff]
        %v8940 = vld [vmem:[%s11 + $0x120] sm:$0xff]
        %v8941 = vld [vmem:[%s11 + $0x128] sm:$0xff]
        %v8942 = vld [vmem:[%s11 + $0x130] sm:$0xff]
        %v8943 = vld [vmem:[%s11 + $0x138] sm:$0xff]
        %v8944 = vld [vmem:[%s11 + $0x140] sm:$0xff]
        %v8945 = vld [vmem:[%s11 + $0x148] sm:$0xff]
        %v8946 = vld [vmem:[%s11 + $0x150] sm:$0xff]
        %v8947 = vld [vmem:[%s11 + $0x158] sm:$0xff]
        %v8948 = vld [vmem:[%s11 + $0x160] sm:$0xff]
        %v8949 = vld [vmem:[%s11 + $0x168] sm:$0xff]
        %v8950 = vld [vmem:[%s11 + $0x170] sm:$0xff]
        %v8951 = vld [vmem:[%s11 + $0x178] sm:$0xff]
        %v8968 = vunpack.c.l.b16 %v8936
        %v8969 = vunpack.c.h.b16 %v8936
        %v8970 = vunpack.c.l.b16 %v8937
        %v8971 = vunpack.c.h.b16 %v8937
        %v8972 = vunpack.c.l.b16 %v8938
        %v8973 = vunpack.c.h.b16 %v8938
        %v8974 = vunpack.c.l.b16 %v8939
        %v8975 = vunpack.c.h.b16 %v8939
        %v8976 = vunpack.c.l.b16 %v8940
        %v8977 = vunpack.c.h.b16 %v8940
        %v8978 = vunpack.c.l.b16 %v8941
        %v8979 = vunpack.c.h.b16 %v8941
        %v8980 = vunpack.c.l.b16 %v8942
        %v8981 = vunpack.c.h.b16 %v8942
        %v8982 = vunpack.c.l.b16 %v8943
        %v8983 = vunpack.c.h.b16 %v8943
        %v8984 = vunpack.c.l.b16 %v8944
        %v8985 = vunpack.c.h.b16 %v8944
        %v8986 = vunpack.c.l.b16 %v8945
        %v8987 = vunpack.c.h.b16 %v8945
        %v8988 = vunpack.c.l.b16 %v8946
        %v8989 = vunpack.c.h.b16 %v8946
        %v8990 = vunpack.c.l.b16 %v8947
        %v8991 = vunpack.c.h.b16 %v8947
        %v8992 = vunpack.c.l.b16 %v8948
        %v8993 = vunpack.c.h.b16 %v8948
        %v8994 = vunpack.c.l.b16 %v8949
        %v8995 = vunpack.c.h.b16 %v8949
        %v8996 = vunpack.c.l.b16 %v8950
        %v8997 = vunpack.c.h.b16 %v8950
        %v8998 = vunpack.c.l.b16 %v8951
        %v8999 = vunpack.c.h.b16 %v8951
        %v9000 = vpack.c.b16 %v8970, %v8968
        %v9001 = vpack.c.b16 %v8971, %v8969
        %v9002 = vpack.c.b16 %v8974, %v8972
        %v9003 = vpack.c.b16 %v8975, %v8973
        %v9004 = vpack.c.b16 %v8978, %v8976
        %v9005 = vpack.c.b16 %v8979, %v8977
        %v9006 = vpack.c.b16 %v8982, %v8980
        %v9007 = vpack.c.b16 %v8983, %v8981
        %v9008 = vpack.c.b16 %v8986, %v8984
        %v9009 = vpack.c.b16 %v8987, %v8985
        %v9010 = vpack.c.b16 %v8990, %v8988
        %v9011 = vpack.c.b16 %v8991, %v8989
        %v9012 = vpack.c.b16 %v8994, %v8992
        %v9013 = vpack.c.b16 %v8995, %v8993
        %v9014 = vpack.c.b16 %v8998, %v8996
        %v9015 = vpack.c.b16 %v8999, %v8997
        %9032 = vmatprep.subr.bf16.mxu0 %v9015
        %9033 = vmatpush1.bf16.msra.mxu0 %v9014
        %9034 = vmatprep.subr.bf16.mxu0 %v9013
        %9035 = vmatpush1.bf16.msra.mxu0 %v9012
        %9036 = vmatprep.subr.bf16.mxu0 %v9011
        %9037 = vmatpush1.bf16.msra.mxu0 %v9010
        %9038 = vmatprep.subr.bf16.mxu0 %v9009
        %9039 = vmatpush1.bf16.msra.mxu0 %v9008
        %9040 = vmatprep.subr.bf16.mxu0 %v9007
        %9041 = vmatpush1.bf16.msra.mxu0 %v9006
        %9042 = vmatprep.subr.bf16.mxu0 %v9005
        %9043 = vmatpush1.bf16.msra.mxu0 %v9004
        %9044 = vmatprep.subr.bf16.mxu0 %v9003
        %9045 = vmatpush1.bf16.msra.mxu0 %v9002
        %9046 = vmatprep.subr.bf16.mxu0 %v9001
        %9047 = vmatpush1.bf16.msra.mxu0 %v9000
        %9048 = vmatprep.subr.bf16.mxu0 0
        %9049 = vmatpush2.bf16.msra.mxu0 0
        %9050 = vmatprep.subr.bf16.mxu0 0
        %9051 = vmatpush2.bf16.msra.mxu0 0
        %9052 = vmatprep.subr.bf16.mxu0 0
        %9053 = vmatpush2.bf16.msra.mxu0 0
        %9054 = vmatprep.subr.bf16.mxu0 0
        %9055 = vmatpush2.bf16.msra.mxu0 0
        %9056 = vmatprep.subr.bf16.mxu0 0
        %9057 = vmatpush2.bf16.msra.mxu0 0
        %9058 = vmatprep.subr.bf16.mxu0 0
        %9059 = vmatpush2.bf16.msra.mxu0 0
        %9060 = vmatprep.subr.bf16.mxu0 0
        %9061 = vmatpush2.bf16.msra.mxu0 0
        %9062 = vmatprep.subr.bf16.mxu0 0
        %9063 = vmatpush2.bf16.msra.mxu0 0
        %9064 = vmatprep.mubr.bf16.mxu0 0
        %9065 = vmatmul.mubr.bf16.gmra.mxu0 %v8935
        %v9066 = vpop.f32.mrf.mxu0
        %v9067 = vadd.f32 0.0, %v9066
        %v9068 = vpop.f32.mrf.mxu0
        %v9069 = vadd.f32 0.0, %v9068
        %v9070 = vpop.f32.mrf.mxu0
        %v9071 = vadd.f32 0.0, %v9070
        %v9072 = vpop.f32.mrf.mxu0
        %v9073 = vadd.f32 0.0, %v9072
        %9074 = vdwg.mxu0
        %v9075 = vadd.f32 %v8925, %v9067
        %v9076 = vadd.f32 %v8927, %v9069
        %v9077 = vadd.f32 %v8929, %v9071
        %v9078 = vadd.f32 %v8931, %v9073
        %v9079 = vld [vmem:[#allocation6 + $0x4] sm:$0xff]
        %v9080 = vld [vmem:[#allocation6 + $0xc] sm:$0xff]
        %v9081 = vpack.c.bf16 %v9080, %v9079
        %v9082 = vld [vmem:[%s11 + $0x180] sm:$0xff]
        %v9083 = vld [vmem:[%s11 + $0x188] sm:$0xff]
        %v9084 = vld [vmem:[%s11 + $0x190] sm:$0xff]
        %v9085 = vld [vmem:[%s11 + $0x198] sm:$0xff]
        %v9086 = vld [vmem:[%s11 + $0x1a0] sm:$0xff]
        %v9087 = vld [vmem:[%s11 + $0x1a8] sm:$0xff]
        %v9088 = vld [vmem:[%s11 + $0x1b0] sm:$0xff]
        %v9089 = vld [vmem:[%s11 + $0x1b8] sm:$0xff]
        %v9090 = vld [vmem:[%s11 + $0x1c0] sm:$0xff]
        %v9091 = vld [vmem:[%s11 + $0x1c8] sm:$0xff]
        %v9092 = vld [vmem:[%s11 + $0x1d0] sm:$0xff]
        %v9093 = vld [vmem:[%s11 + $0x1d8] sm:$0xff]
        %v9094 = vld [vmem:[%s11 + $0x1e0] sm:$0xff]
        %v9095 = vld [vmem:[%s11 + $0x1e8] sm:$0xff]
        %v9096 = vld [vmem:[%s11 + $0x1f0] sm:$0xff]
        %v9097 = vld [vmem:[%s11 + $0x1f8] sm:$0xff]
        %v9114 = vunpack.c.l.b16 %v9082
        %v9115 = vunpack.c.h.b16 %v9082
        %v9116 = vunpack.c.l.b16 %v9083
        %v9117 = vunpack.c.h.b16 %v9083
        %v9118 = vunpack.c.l.b16 %v9084
        %v9119 = vunpack.c.h.b16 %v9084
        %v9120 = vunpack.c.l.b16 %v9085
        %v9121 = vunpack.c.h.b16 %v9085
        %v9122 = vunpack.c.l.b16 %v9086
        %v9123 = vunpack.c.h.b16 %v9086
        %v9124 = vunpack.c.l.b16 %v9087
        %v9125 = vunpack.c.h.b16 %v9087
        %v9126 = vunpack.c.l.b16 %v9088
        %v9127 = vunpack.c.h.b16 %v9088
        %v9128 = vunpack.c.l.b16 %v9089
        %v9129 = vunpack.c.h.b16 %v9089
        %v9130 = vunpack.c.l.b16 %v9090
        %v9131 = vunpack.c.h.b16 %v9090
        %v9132 = vunpack.c.l.b16 %v9091
        %v9133 = vunpack.c.h.b16 %v9091
        %v9134 = vunpack.c.l.b16 %v9092
        %v9135 = vunpack.c.h.b16 %v9092
        %v9136 = vunpack.c.l.b16 %v9093
        %v9137 = vunpack.c.h.b16 %v9093
        %v9138 = vunpack.c.l.b16 %v9094
        %v9139 = vunpack.c.h.b16 %v9094
        %v9140 = vunpack.c.l.b16 %v9095
        %v9141 = vunpack.c.h.b16 %v9095
        %v9142 = vunpack.c.l.b16 %v9096
        %v9143 = vunpack.c.h.b16 %v9096
        %v9144 = vunpack.c.l.b16 %v9097
        %v9145 = vunpack.c.h.b16 %v9097
        %v9146 = vpack.c.b16 %v9116, %v9114
        %v9147 = vpack.c.b16 %v9117, %v9115
        %v9148 = vpack.c.b16 %v9120, %v9118
        %v9149 = vpack.c.b16 %v9121, %v9119
        %v9150 = vpack.c.b16 %v9124, %v9122
        %v9151 = vpack.c.b16 %v9125, %v9123
        %v9152 = vpack.c.b16 %v9128, %v9126
        %v9153 = vpack.c.b16 %v9129, %v9127
        %v9154 = vpack.c.b16 %v9132, %v9130
        %v9155 = vpack.c.b16 %v9133, %v9131
        %v9156 = vpack.c.b16 %v9136, %v9134
        %v9157 = vpack.c.b16 %v9137, %v9135
        %v9158 = vpack.c.b16 %v9140, %v9138
        %v9159 = vpack.c.b16 %v9141, %v9139
        %v9160 = vpack.c.b16 %v9144, %v9142
        %v9161 = vpack.c.b16 %v9145, %v9143
        %9178 = vmatprep.subr.bf16.mxu0 %v9161
        %9179 = vmatpush1.bf16.msra.mxu0 %v9160
        %9180 = vmatprep.subr.bf16.mxu0 %v9159
        %9181 = vmatpush1.bf16.msra.mxu0 %v9158
        %9182 = vmatprep.subr.bf16.mxu0 %v9157
        %9183 = vmatpush1.bf16.msra.mxu0 %v9156
        %9184 = vmatprep.subr.bf16.mxu0 %v9155
        %9185 = vmatpush1.bf16.msra.mxu0 %v9154
        %9186 = vmatprep.subr.bf16.mxu0 %v9153
        %9187 = vmatpush1.bf16.msra.mxu0 %v9152
        %9188 = vmatprep.subr.bf16.mxu0 %v9151
        %9189 = vmatpush1.bf16.msra.mxu0 %v9150
        %9190 = vmatprep.subr.bf16.mxu0 %v9149
        %9191 = vmatpush1.bf16.msra.mxu0 %v9148
        %9192 = vmatprep.subr.bf16.mxu0 %v9147
        %9193 = vmatpush1.bf16.msra.mxu0 %v9146
        %9194 = vmatprep.subr.bf16.mxu0 0
        %9195 = vmatpush2.bf16.msra.mxu0 0
        %9196 = vmatprep.subr.bf16.mxu0 0
        %9197 = vmatpush2.bf16.msra.mxu0 0
        %9198 = vmatprep.subr.bf16.mxu0 0
        %9199 = vmatpush2.bf16.msra.mxu0 0
        %9200 = vmatprep.subr.bf16.mxu0 0
        %9201 = vmatpush2.bf16.msra.mxu0 0
        %9202 = vmatprep.subr.bf16.mxu0 0
        %9203 = vmatpush2.bf16.msra.mxu0 0
        %9204 = vmatprep.subr.bf16.mxu0 0
        %9205 = vmatpush2.bf16.msra.mxu0 0
        %9206 = vmatprep.subr.bf16.mxu0 0
        %9207 = vmatpush2.bf16.msra.mxu0 0
        %9208 = vmatprep.subr.bf16.mxu0 0
        %9209 = vmatpush2.bf16.msra.mxu0 0
        %9210 = vmatprep.mubr.bf16.mxu0 0
        %9211 = vmatmul.mubr.bf16.gmra.mxu0 %v9081
        %v9212 = vpop.f32.mrf.mxu0
        %v9213 = vadd.f32 0.0, %v9212
        %v9214 = vpop.f32.mrf.mxu0
        %v9215 = vadd.f32 0.0, %v9214
        %v9216 = vpop.f32.mrf.mxu0
        %v9217 = vadd.f32 0.0, %v9216
        %v9218 = vpop.f32.mrf.mxu0
        %v9219 = vadd.f32 0.0, %v9218
        %9220 = vdwg.mxu0
        %v9221 = vadd.f32 %v9075, %v9213
        %v9222 = vadd.f32 %v9076, %v9215
        %v9223 = vadd.f32 %v9077, %v9217
        %v9224 = vadd.f32 %v9078, %v9219
        %v9225 = vld [vmem:[#allocation6 + $0x5] sm:$0xff]
        %v9226 = vld [vmem:[#allocation6 + $0xd] sm:$0xff]
        %v9227 = vpack.c.bf16 %v9226, %v9225
        %v9228 = vld [vmem:[%s11 + $0x200] sm:$0xff]
        %v9229 = vld [vmem:[%s11 + $0x208] sm:$0xff]
        %v9230 = vld [vmem:[%s11 + $0x210] sm:$0xff]
        %v9231 = vld [vmem:[%s11 + $0x218] sm:$0xff]
        %v9232 = vld [vmem:[%s11 + $0x220] sm:$0xff]
        %v9233 = vld [vmem:[%s11 + $0x228] sm:$0xff]
        %v9234 = vld [vmem:[%s11 + $0x230] sm:$0xff]
        %v9235 = vld [vmem:[%s11 + $0x238] sm:$0xff]
        %v9236 = vld [vmem:[%s11 + $0x240] sm:$0xff]
        %v9237 = vld [vmem:[%s11 + $0x248] sm:$0xff]
        %v9238 = vld [vmem:[%s11 + $0x250] sm:$0xff]
        %v9239 = vld [vmem:[%s11 + $0x258] sm:$0xff]
        %v9240 = vld [vmem:[%s11 + $0x260] sm:$0xff]
        %v9241 = vld [vmem:[%s11 + $0x268] sm:$0xff]
        %v9242 = vld [vmem:[%s11 + $0x270] sm:$0xff]
        %v9243 = vld [vmem:[%s11 + $0x278] sm:$0xff]
        %v9260 = vunpack.c.l.b16 %v9228
        %v9261 = vunpack.c.h.b16 %v9228
        %v9262 = vunpack.c.l.b16 %v9229
        %v9263 = vunpack.c.h.b16 %v9229
        %v9264 = vunpack.c.l.b16 %v9230
        %v9265 = vunpack.c.h.b16 %v9230
        %v9266 = vunpack.c.l.b16 %v9231
        %v9267 = vunpack.c.h.b16 %v9231
        %v9268 = vunpack.c.l.b16 %v9232
        %v9269 = vunpack.c.h.b16 %v9232
        %v9270 = vunpack.c.l.b16 %v9233
        %v9271 = vunpack.c.h.b16 %v9233
        %v9272 = vunpack.c.l.b16 %v9234
        %v9273 = vunpack.c.h.b16 %v9234
        %v9274 = vunpack.c.l.b16 %v9235
        %v9275 = vunpack.c.h.b16 %v9235
        %v9276 = vunpack.c.l.b16 %v9236
        %v9277 = vunpack.c.h.b16 %v9236
        %v9278 = vunpack.c.l.b16 %v9237
        %v9279 = vunpack.c.h.b16 %v9237
        %v9280 = vunpack.c.l.b16 %v9238
        %v9281 = vunpack.c.h.b16 %v9238
        %v9282 = vunpack.c.l.b16 %v9239
        %v9283 = vunpack.c.h.b16 %v9239
        %v9284 = vunpack.c.l.b16 %v9240
        %v9285 = vunpack.c.h.b16 %v9240
        %v9286 = vunpack.c.l.b16 %v9241
        %v9287 = vunpack.c.h.b16 %v9241
        %v9288 = vunpack.c.l.b16 %v9242
        %v9289 = vunpack.c.h.b16 %v9242
        %v9290 = vunpack.c.l.b16 %v9243
        %v9291 = vunpack.c.h.b16 %v9243
        %v9292 = vpack.c.b16 %v9262, %v9260
        %v9293 = vpack.c.b16 %v9263, %v9261
        %v9294 = vpack.c.b16 %v9266, %v9264
        %v9295 = vpack.c.b16 %v9267, %v9265
        %v9296 = vpack.c.b16 %v9270, %v9268
        %v9297 = vpack.c.b16 %v9271, %v9269
        %v9298 = vpack.c.b16 %v9274, %v9272
        %v9299 = vpack.c.b16 %v9275, %v9273
        %v9300 = vpack.c.b16 %v9278, %v9276
        %v9301 = vpack.c.b16 %v9279, %v9277
        %v9302 = vpack.c.b16 %v9282, %v9280
        %v9303 = vpack.c.b16 %v9283, %v9281
        %v9304 = vpack.c.b16 %v9286, %v9284
        %v9305 = vpack.c.b16 %v9287, %v9285
        %v9306 = vpack.c.b16 %v9290, %v9288
        %v9307 = vpack.c.b16 %v9291, %v9289
        %9324 = vmatprep.subr.bf16.mxu0 %v9307
        %9325 = vmatpush1.bf16.msra.mxu0 %v9306
        %9326 = vmatprep.subr.bf16.mxu0 %v9305
        %9327 = vmatpush1.bf16.msra.mxu0 %v9304
        %9328 = vmatprep.subr.bf16.mxu0 %v9303
        %9329 = vmatpush1.bf16.msra.mxu0 %v9302
        %9330 = vmatprep.subr.bf16.mxu0 %v9301
        %9331 = vmatpush1.bf16.msra.mxu0 %v9300
        %9332 = vmatprep.subr.bf16.mxu0 %v9299
        %9333 = vmatpush1.bf16.msra.mxu0 %v9298
        %9334 = vmatprep.subr.bf16.mxu0 %v9297
        %9335 = vmatpush1.bf16.msra.mxu0 %v9296
        %9336 = vmatprep.subr.bf16.mxu0 %v9295
        %9337 = vmatpush1.bf16.msra.mxu0 %v9294
        %9338 = vmatprep.subr.bf16.mxu0 %v9293
        %9339 = vmatpush1.bf16.msra.mxu0 %v9292
        %9340 = vmatprep.subr.bf16.mxu0 0
        %9341 = vmatpush2.bf16.msra.mxu0 0
        %9342 = vmatprep.subr.bf16.mxu0 0
        %9343 = vmatpush2.bf16.msra.mxu0 0
        %9344 = vmatprep.subr.bf16.mxu0 0
        %9345 = vmatpush2.bf16.msra.mxu0 0
        %9346 = vmatprep.subr.bf16.mxu0 0
        %9347 = vmatpush2.bf16.msra.mxu0 0
        %9348 = vmatprep.subr.bf16.mxu0 0
        %9349 = vmatpush2.bf16.msra.mxu0 0
        %9350 = vmatprep.subr.bf16.mxu0 0
        %9351 = vmatpush2.bf16.msra.mxu0 0
        %9352 = vmatprep.subr.bf16.mxu0 0
        %9353 = vmatpush2.bf16.msra.mxu0 0
        %9354 = vmatprep.subr.bf16.mxu0 0
        %9355 = vmatpush2.bf16.msra.mxu0 0
        %9356 = vmatprep.mubr.bf16.mxu0 0
        %9357 = vmatmul.mubr.bf16.gmra.mxu0 %v9227
        %v9358 = vpop.f32.mrf.mxu0
        %v9359 = vadd.f32 0.0, %v9358
        %v9360 = vpop.f32.mrf.mxu0
        %v9361 = vadd.f32 0.0, %v9360
        %v9362 = vpop.f32.mrf.mxu0
        %v9363 = vadd.f32 0.0, %v9362
        %v9364 = vpop.f32.mrf.mxu0
        %v9365 = vadd.f32 0.0, %v9364
        %9366 = vdwg.mxu0
        %v9367 = vadd.f32 %v9221, %v9359
        %v9368 = vadd.f32 %v9222, %v9361
        %v9369 = vadd.f32 %v9223, %v9363
        %v9370 = vadd.f32 %v9224, %v9365
        %v9371 = vld [vmem:[#allocation6 + $0x6] sm:$0xff]
        %v9372 = vld [vmem:[#allocation6 + $0xe] sm:$0xff]
        %v9373 = vpack.c.bf16 %v9372, %v9371
        %v9374 = vld [vmem:[%s11 + $0x280] sm:$0xff]
        %v9375 = vld [vmem:[%s11 + $0x288] sm:$0xff]
        %v9376 = vld [vmem:[%s11 + $0x290] sm:$0xff]
        %v9377 = vld [vmem:[%s11 + $0x298] sm:$0xff]
        %v9378 = vld [vmem:[%s11 + $0x2a0] sm:$0xff]
        %v9379 = vld [vmem:[%s11 + $0x2a8] sm:$0xff]
        %v9380 = vld [vmem:[%s11 + $0x2b0] sm:$0xff]
        %v9381 = vld [vmem:[%s11 + $0x2b8] sm:$0xff]
        %v9382 = vld [vmem:[%s11 + $0x2c0] sm:$0xff]
        %v9383 = vld [vmem:[%s11 + $0x2c8] sm:$0xff]
        %v9384 = vld [vmem:[%s11 + $0x2d0] sm:$0xff]
        %v9385 = vld [vmem:[%s11 + $0x2d8] sm:$0xff]
        %v9386 = vld [vmem:[%s11 + $0x2e0] sm:$0xff]
        %v9387 = vld [vmem:[%s11 + $0x2e8] sm:$0xff]
        %v9388 = vld [vmem:[%s11 + $0x2f0] sm:$0xff]
        %v9389 = vld [vmem:[%s11 + $0x2f8] sm:$0xff]
        %v9406 = vunpack.c.l.b16 %v9374
        %v9407 = vunpack.c.h.b16 %v9374
        %v9408 = vunpack.c.l.b16 %v9375
        %v9409 = vunpack.c.h.b16 %v9375
        %v9410 = vunpack.c.l.b16 %v9376
        %v9411 = vunpack.c.h.b16 %v9376
        %v9412 = vunpack.c.l.b16 %v9377
        %v9413 = vunpack.c.h.b16 %v9377
        %v9414 = vunpack.c.l.b16 %v9378
        %v9415 = vunpack.c.h.b16 %v9378
        %v9416 = vunpack.c.l.b16 %v9379
        %v9417 = vunpack.c.h.b16 %v9379
        %v9418 = vunpack.c.l.b16 %v9380
        %v9419 = vunpack.c.h.b16 %v9380
        %v9420 = vunpack.c.l.b16 %v9381
        %v9421 = vunpack.c.h.b16 %v9381
        %v9422 = vunpack.c.l.b16 %v9382
        %v9423 = vunpack.c.h.b16 %v9382
        %v9424 = vunpack.c.l.b16 %v9383
        %v9425 = vunpack.c.h.b16 %v9383
        %v9426 = vunpack.c.l.b16 %v9384
        %v9427 = vunpack.c.h.b16 %v9384
        %v9428 = vunpack.c.l.b16 %v9385
        %v9429 = vunpack.c.h.b16 %v9385
        %v9430 = vunpack.c.l.b16 %v9386
        %v9431 = vunpack.c.h.b16 %v9386
        %v9432 = vunpack.c.l.b16 %v9387
        %v9433 = vunpack.c.h.b16 %v9387
        %v9434 = vunpack.c.l.b16 %v9388
        %v9435 = vunpack.c.h.b16 %v9388
        %v9436 = vunpack.c.l.b16 %v9389
        %v9437 = vunpack.c.h.b16 %v9389
        %v9438 = vpack.c.b16 %v9408, %v9406
        %v9439 = vpack.c.b16 %v9409, %v9407
        %v9440 = vpack.c.b16 %v9412, %v9410
        %v9441 = vpack.c.b16 %v9413, %v9411
        %v9442 = vpack.c.b16 %v9416, %v9414
        %v9443 = vpack.c.b16 %v9417, %v9415
        %v9444 = vpack.c.b16 %v9420, %v9418
        %v9445 = vpack.c.b16 %v9421, %v9419
        %v9446 = vpack.c.b16 %v9424, %v9422
        %v9447 = vpack.c.b16 %v9425, %v9423
        %v9448 = vpack.c.b16 %v9428, %v9426
        %v9449 = vpack.c.b16 %v9429, %v9427
        %v9450 = vpack.c.b16 %v9432, %v9430
        %v9451 = vpack.c.b16 %v9433, %v9431
        %v9452 = vpack.c.b16 %v9436, %v9434
        %v9453 = vpack.c.b16 %v9437, %v9435
        %9470 = vmatprep.subr.bf16.mxu0 %v9453
        %9471 = vmatpush1.bf16.msra.mxu0 %v9452
        %9472 = vmatprep.subr.bf16.mxu0 %v9451
        %9473 = vmatpush1.bf16.msra.mxu0 %v9450
        %9474 = vmatprep.subr.bf16.mxu0 %v9449
        %9475 = vmatpush1.bf16.msra.mxu0 %v9448
        %9476 = vmatprep.subr.bf16.mxu0 %v9447
        %9477 = vmatpush1.bf16.msra.mxu0 %v9446
        %9478 = vmatprep.subr.bf16.mxu0 %v9445
        %9479 = vmatpush1.bf16.msra.mxu0 %v9444
        %9480 = vmatprep.subr.bf16.mxu0 %v9443
        %9481 = vmatpush1.bf16.msra.mxu0 %v9442
        %9482 = vmatprep.subr.bf16.mxu0 %v9441
        %9483 = vmatpush1.bf16.msra.mxu0 %v9440
        %9484 = vmatprep.subr.bf16.mxu0 %v9439
        %9485 = vmatpush1.bf16.msra.mxu0 %v9438
        %9486 = vmatprep.subr.bf16.mxu0 0
        %9487 = vmatpush2.bf16.msra.mxu0 0
        %9488 = vmatprep.subr.bf16.mxu0 0
        %9489 = vmatpush2.bf16.msra.mxu0 0
        %9490 = vmatprep.subr.bf16.mxu0 0
        %9491 = vmatpush2.bf16.msra.mxu0 0
        %9492 = vmatprep.subr.bf16.mxu0 0
        %9493 = vmatpush2.bf16.msra.mxu0 0
        %9494 = vmatprep.subr.bf16.mxu0 0
        %9495 = vmatpush2.bf16.msra.mxu0 0
        %9496 = vmatprep.subr.bf16.mxu0 0
        %9497 = vmatpush2.bf16.msra.mxu0 0
        %9498 = vmatprep.subr.bf16.mxu0 0
        %9499 = vmatpush2.bf16.msra.mxu0 0
        %9500 = vmatprep.subr.bf16.mxu0 0
        %9501 = vmatpush2.bf16.msra.mxu0 0
        %9502 = vmatprep.mubr.bf16.mxu0 0
        %9503 = vmatmul.mubr.bf16.gmra.mxu0 %v9373
        %v9504 = vpop.f32.mrf.mxu0
        %v9505 = vadd.f32 0.0, %v9504
        %v9506 = vpop.f32.mrf.mxu0
        %v9507 = vadd.f32 0.0, %v9506
        %v9508 = vpop.f32.mrf.mxu0
        %v9509 = vadd.f32 0.0, %v9508
        %v9510 = vpop.f32.mrf.mxu0
        %v9511 = vadd.f32 0.0, %v9510
        %9512 = vdwg.mxu0
        %v9513 = vadd.f32 %v9367, %v9505
        %v9514 = vadd.f32 %v9368, %v9507
        %v9515 = vadd.f32 %v9369, %v9509
        %v9516 = vadd.f32 %v9370, %v9511
        %v9517 = vld [vmem:[#allocation6 + $0x8] sm:$0xff]
        %v9518 = vld [vmem:[#allocation6 + $0x10] sm:$0xff]
        %v9519 = vpack.c.bf16 %v9518, %v9517
        %v9520 = vld [vmem:[%s11 + $0x300] sm:$0xff]
        %v9521 = vld [vmem:[%s11 + $0x308] sm:$0xff]
        %v9522 = vld [vmem:[%s11 + $0x310] sm:$0xff]
        %v9523 = vld [vmem:[%s11 + $0x318] sm:$0xff]
        %v9524 = vld [vmem:[%s11 + $0x320] sm:$0xff]
        %v9525 = vld [vmem:[%s11 + $0x328] sm:$0xff]
        %v9526 = vld [vmem:[%s11 + $0x330] sm:$0xff]
        %v9527 = vld [vmem:[%s11 + $0x338] sm:$0xff]
        %v9528 = vld [vmem:[%s11 + $0x340] sm:$0xff]
        %v9529 = vld [vmem:[%s11 + $0x348] sm:$0xff]
        %v9530 = vld [vmem:[%s11 + $0x350] sm:$0xff]
        %v9531 = vld [vmem:[%s11 + $0x358] sm:$0xff]
        %v9532 = vld [vmem:[%s11 + $0x360] sm:$0xff]
        %v9533 = vld [vmem:[%s11 + $0x368] sm:$0xff]
        %v9534 = vld [vmem:[%s11 + $0x370] sm:$0xff]
        %v9535 = vld [vmem:[%s11 + $0x378] sm:$0xff]
        %v9552 = vunpack.c.l.b16 %v9520
        %v9553 = vunpack.c.h.b16 %v9520
        %v9554 = vunpack.c.l.b16 %v9521
        %v9555 = vunpack.c.h.b16 %v9521
        %v9556 = vunpack.c.l.b16 %v9522
        %v9557 = vunpack.c.h.b16 %v9522
        %v9558 = vunpack.c.l.b16 %v9523
        %v9559 = vunpack.c.h.b16 %v9523
        %v9560 = vunpack.c.l.b16 %v9524
        %v9561 = vunpack.c.h.b16 %v9524
        %v9562 = vunpack.c.l.b16 %v9525
        %v9563 = vunpack.c.h.b16 %v9525
        %v9564 = vunpack.c.l.b16 %v9526
        %v9565 = vunpack.c.h.b16 %v9526
        %v9566 = vunpack.c.l.b16 %v9527
        %v9567 = vunpack.c.h.b16 %v9527
        %v9568 = vunpack.c.l.b16 %v9528
        %v9569 = vunpack.c.h.b16 %v9528
        %v9570 = vunpack.c.l.b16 %v9529
        %v9571 = vunpack.c.h.b16 %v9529
        %v9572 = vunpack.c.l.b16 %v9530
        %v9573 = vunpack.c.h.b16 %v9530
        %v9574 = vunpack.c.l.b16 %v9531
        %v9575 = vunpack.c.h.b16 %v9531
        %v9576 = vunpack.c.l.b16 %v9532
        %v9577 = vunpack.c.h.b16 %v9532
        %v9578 = vunpack.c.l.b16 %v9533
        %v9579 = vunpack.c.h.b16 %v9533
        %v9580 = vunpack.c.l.b16 %v9534
        %v9581 = vunpack.c.h.b16 %v9534
        %v9582 = vunpack.c.l.b16 %v9535
        %v9583 = vunpack.c.h.b16 %v9535
        %v9584 = vpack.c.b16 %v9554, %v9552
        %v9585 = vpack.c.b16 %v9555, %v9553
        %v9586 = vpack.c.b16 %v9558, %v9556
        %v9587 = vpack.c.b16 %v9559, %v9557
        %v9588 = vpack.c.b16 %v9562, %v9560
        %v9589 = vpack.c.b16 %v9563, %v9561
        %v9590 = vpack.c.b16 %v9566, %v9564
        %v9591 = vpack.c.b16 %v9567, %v9565
        %v9592 = vpack.c.b16 %v9570, %v9568
        %v9593 = vpack.c.b16 %v9571, %v9569
        %v9594 = vpack.c.b16 %v9574, %v9572
        %v9595 = vpack.c.b16 %v9575, %v9573
        %v9596 = vpack.c.b16 %v9578, %v9576
        %v9597 = vpack.c.b16 %v9579, %v9577
        %v9598 = vpack.c.b16 %v9582, %v9580
        %v9599 = vpack.c.b16 %v9583, %v9581
        %9616 = vmatprep.subr.bf16.mxu0 %v9599
        %9617 = vmatpush1.bf16.msra.mxu0 %v9598
        %9618 = vmatprep.subr.bf16.mxu0 %v9597
        %9619 = vmatpush1.bf16.msra.mxu0 %v9596
        %9620 = vmatprep.subr.bf16.mxu0 %v9595
        %9621 = vmatpush1.bf16.msra.mxu0 %v9594
        %9622 = vmatprep.subr.bf16.mxu0 %v9593
        %9623 = vmatpush1.bf16.msra.mxu0 %v9592
        %9624 = vmatprep.subr.bf16.mxu0 %v9591
        %9625 = vmatpush1.bf16.msra.mxu0 %v9590
        %9626 = vmatprep.subr.bf16.mxu0 %v9589
        %9627 = vmatpush1.bf16.msra.mxu0 %v9588
        %9628 = vmatprep.subr.bf16.mxu0 %v9587
        %9629 = vmatpush1.bf16.msra.mxu0 %v9586
        %9630 = vmatprep.subr.bf16.mxu0 %v9585
        %9631 = vmatpush1.bf16.msra.mxu0 %v9584
        %9632 = vmatprep.subr.bf16.mxu0 0
        %9633 = vmatpush2.bf16.msra.mxu0 0
        %9634 = vmatprep.subr.bf16.mxu0 0
        %9635 = vmatpush2.bf16.msra.mxu0 0
        %9636 = vmatprep.subr.bf16.mxu0 0
        %9637 = vmatpush2.bf16.msra.mxu0 0
        %9638 = vmatprep.subr.bf16.mxu0 0
        %9639 = vmatpush2.bf16.msra.mxu0 0
        %9640 = vmatprep.subr.bf16.mxu0 0
        %9641 = vmatpush2.bf16.msra.mxu0 0
        %9642 = vmatprep.subr.bf16.mxu0 0
        %9643 = vmatpush2.bf16.msra.mxu0 0
        %9644 = vmatprep.subr.bf16.mxu0 0
        %9645 = vmatpush2.bf16.msra.mxu0 0
        %9646 = vmatprep.subr.bf16.mxu0 0
        %9647 = vmatpush2.bf16.msra.mxu0 0
        %9648 = vmatprep.mubr.bf16.mxu0 0
        %9649 = vmatmul.mubr.bf16.gmra.mxu0 %v9519
        %v9650 = vpop.f32.mrf.mxu0
        %v9651 = vadd.f32 0.0, %v9650
        %v9652 = vpop.f32.mrf.mxu0
        %v9653 = vadd.f32 0.0, %v9652
        %v9654 = vpop.f32.mrf.mxu0
        %v9655 = vadd.f32 0.0, %v9654
        %v9656 = vpop.f32.mrf.mxu0
        %v9657 = vadd.f32 0.0, %v9656
        %9658 = vdwg.mxu0
        %v9659 = vadd.f32 %v9513, %v9651
        %v9660 = vadd.f32 %v9514, %v9653
        %v9661 = vadd.f32 %v9515, %v9655
        %v9662 = vadd.f32 %v9516, %v9657
        %v9663 = vld [vmem:[#allocation6 + $0x9] sm:$0xff]
        %v9664 = vld [vmem:[#allocation6 + $0x11] sm:$0xff]
        %v9665 = vpack.c.bf16 %v9664, %v9663
        %v9666 = vld [vmem:[%s11 + $0x380] sm:$0xff]
        %v9667 = vld [vmem:[%s11 + $0x388] sm:$0xff]
        %v9668 = vld [vmem:[%s11 + $0x390] sm:$0xff]
        %v9669 = vld [vmem:[%s11 + $0x398] sm:$0xff]
        %v9670 = vld [vmem:[%s11 + $0x3a0] sm:$0xff]
        %v9671 = vld [vmem:[%s11 + $0x3a8] sm:$0xff]
        %v9672 = vld [vmem:[%s11 + $0x3b0] sm:$0xff]
        %v9673 = vld [vmem:[%s11 + $0x3b8] sm:$0xff]
        %v9674 = vld [vmem:[%s11 + $0x3c0] sm:$0xff]
        %v9675 = vld [vmem:[%s11 + $0x3c8] sm:$0xff]
        %v9676 = vld [vmem:[%s11 + $0x3d0] sm:$0xff]
        %v9677 = vld [vmem:[%s11 + $0x3d8] sm:$0xff]
        %v9678 = vld [vmem:[%s11 + $0x3e0] sm:$0xff]
        %v9679 = vld [vmem:[%s11 + $0x3e8] sm:$0xff]
        %v9680 = vld [vmem:[%s11 + $0x3f0] sm:$0xff]
        %v9681 = vld [vmem:[%s11 + $0x3f8] sm:$0xff]
        %v9698 = vunpack.c.l.b16 %v9666
        %v9699 = vunpack.c.h.b16 %v9666
        %v9700 = vunpack.c.l.b16 %v9667
        %v9701 = vunpack.c.h.b16 %v9667
        %v9702 = vunpack.c.l.b16 %v9668
        %v9703 = vunpack.c.h.b16 %v9668
        %v9704 = vunpack.c.l.b16 %v9669
        %v9705 = vunpack.c.h.b16 %v9669
        %v9706 = vunpack.c.l.b16 %v9670
        %v9707 = vunpack.c.h.b16 %v9670
        %v9708 = vunpack.c.l.b16 %v9671
        %v9709 = vunpack.c.h.b16 %v9671
        %v9710 = vunpack.c.l.b16 %v9672
        %v9711 = vunpack.c.h.b16 %v9672
        %v9712 = vunpack.c.l.b16 %v9673
        %v9713 = vunpack.c.h.b16 %v9673
        %v9714 = vunpack.c.l.b16 %v9674
        %v9715 = vunpack.c.h.b16 %v9674
        %v9716 = vunpack.c.l.b16 %v9675
        %v9717 = vunpack.c.h.b16 %v9675
        %v9718 = vunpack.c.l.b16 %v9676
        %v9719 = vunpack.c.h.b16 %v9676
        %v9720 = vunpack.c.l.b16 %v9677
        %v9721 = vunpack.c.h.b16 %v9677
        %v9722 = vunpack.c.l.b16 %v9678
        %v9723 = vunpack.c.h.b16 %v9678
        %v9724 = vunpack.c.l.b16 %v9679
        %v9725 = vunpack.c.h.b16 %v9679
        %v9726 = vunpack.c.l.b16 %v9680
        %v9727 = vunpack.c.h.b16 %v9680
        %v9728 = vunpack.c.l.b16 %v9681
        %v9729 = vunpack.c.h.b16 %v9681
        %v9730 = vpack.c.b16 %v9700, %v9698
        %v9731 = vpack.c.b16 %v9701, %v9699
        %v9732 = vpack.c.b16 %v9704, %v9702
        %v9733 = vpack.c.b16 %v9705, %v9703
        %v9734 = vpack.c.b16 %v9708, %v9706
        %v9735 = vpack.c.b16 %v9709, %v9707
        %v9736 = vpack.c.b16 %v9712, %v9710
        %v9737 = vpack.c.b16 %v9713, %v9711
        %v9738 = vpack.c.b16 %v9716, %v9714
        %v9739 = vpack.c.b16 %v9717, %v9715
        %v9740 = vpack.c.b16 %v9720, %v9718
        %v9741 = vpack.c.b16 %v9721, %v9719
        %v9742 = vpack.c.b16 %v9724, %v9722
        %v9743 = vpack.c.b16 %v9725, %v9723
        %v9744 = vpack.c.b16 %v9728, %v9726
        %v9745 = vpack.c.b16 %v9729, %v9727
        %9762 = vmatprep.subr.bf16.mxu0 %v9745
        %9763 = vmatpush1.bf16.msra.mxu0 %v9744
        %9764 = vmatprep.subr.bf16.mxu0 %v9743
        %9765 = vmatpush1.bf16.msra.mxu0 %v9742
        %9766 = vmatprep.subr.bf16.mxu0 %v9741
        %9767 = vmatpush1.bf16.msra.mxu0 %v9740
        %9768 = vmatprep.subr.bf16.mxu0 %v9739
        %9769 = vmatpush1.bf16.msra.mxu0 %v9738
        %9770 = vmatprep.subr.bf16.mxu0 %v9737
        %9771 = vmatpush1.bf16.msra.mxu0 %v9736
        %9772 = vmatprep.subr.bf16.mxu0 %v9735
        %9773 = vmatpush1.bf16.msra.mxu0 %v9734
        %9774 = vmatprep.subr.bf16.mxu0 %v9733
        %9775 = vmatpush1.bf16.msra.mxu0 %v9732
        %9776 = vmatprep.subr.bf16.mxu0 %v9731
        %9777 = vmatpush1.bf16.msra.mxu0 %v9730
        %9778 = vmatprep.subr.bf16.mxu0 0
        %9779 = vmatpush2.bf16.msra.mxu0 0
        %9780 = vmatprep.subr.bf16.mxu0 0
        %9781 = vmatpush2.bf16.msra.mxu0 0
        %9782 = vmatprep.subr.bf16.mxu0 0
        %9783 = vmatpush2.bf16.msra.mxu0 0
        %9784 = vmatprep.subr.bf16.mxu0 0
        %9785 = vmatpush2.bf16.msra.mxu0 0
        %9786 = vmatprep.subr.bf16.mxu0 0
        %9787 = vmatpush2.bf16.msra.mxu0 0
        %9788 = vmatprep.subr.bf16.mxu0 0
        %9789 = vmatpush2.bf16.msra.mxu0 0
        %9790 = vmatprep.subr.bf16.mxu0 0
        %9791 = vmatpush2.bf16.msra.mxu0 0
        %9792 = vmatprep.subr.bf16.mxu0 0
        %9793 = vmatpush2.bf16.msra.mxu0 0
        %9794 = vmatprep.mubr.bf16.mxu0 0
        %9795 = vmatmul.mubr.bf16.gmra.mxu0 %v9665
        %v9796 = vpop.f32.mrf.mxu0
        %v9797 = vadd.f32 0.0, %v9796
        %v9798 = vpop.f32.mrf.mxu0
        %v9799 = vadd.f32 0.0, %v9798
        %v9800 = vpop.f32.mrf.mxu0
        %v9801 = vadd.f32 0.0, %v9800
        %v9802 = vpop.f32.mrf.mxu0
        %v9803 = vadd.f32 0.0, %v9802
        %9804 = vdwg.mxu0
        %v9805 = vadd.f32 %v9659, %v9797
        %v9806 = vadd.f32 %v9660, %v9799
        %v9807 = vadd.f32 %v9661, %v9801
        %v9808 = vadd.f32 %v9662, %v9803
        %v9809 = vld [vmem:[#allocation6 + $0xa] sm:$0xff]
        %v9810 = vld [vmem:[#allocation6 + $0x12] sm:$0xff]
        %v9811 = vpack.c.bf16 %v9810, %v9809
        %v9812 = vld [vmem:[%s11 + $0x400] sm:$0xff]
        %v9813 = vld [vmem:[%s11 + $0x408] sm:$0xff]
        %v9814 = vld [vmem:[%s11 + $0x410] sm:$0xff]
        %v9815 = vld [vmem:[%s11 + $0x418] sm:$0xff]
        %v9816 = vld [vmem:[%s11 + $0x420] sm:$0xff]
        %v9817 = vld [vmem:[%s11 + $0x428] sm:$0xff]
        %v9818 = vld [vmem:[%s11 + $0x430] sm:$0xff]
        %v9819 = vld [vmem:[%s11 + $0x438] sm:$0xff]
        %v9820 = vld [vmem:[%s11 + $0x440] sm:$0xff]
        %v9821 = vld [vmem:[%s11 + $0x448] sm:$0xff]
        %v9822 = vld [vmem:[%s11 + $0x450] sm:$0xff]
        %v9823 = vld [vmem:[%s11 + $0x458] sm:$0xff]
        %v9824 = vld [vmem:[%s11 + $0x460] sm:$0xff]
        %v9825 = vld [vmem:[%s11 + $0x468] sm:$0xff]
        %v9826 = vld [vmem:[%s11 + $0x470] sm:$0xff]
        %v9827 = vld [vmem:[%s11 + $0x478] sm:$0xff]
        %v9844 = vunpack.c.l.b16 %v9812
        %v9845 = vunpack.c.h.b16 %v9812
        %v9846 = vunpack.c.l.b16 %v9813
        %v9847 = vunpack.c.h.b16 %v9813
        %v9848 = vunpack.c.l.b16 %v9814
        %v9849 = vunpack.c.h.b16 %v9814
        %v9850 = vunpack.c.l.b16 %v9815
        %v9851 = vunpack.c.h.b16 %v9815
        %v9852 = vunpack.c.l.b16 %v9816
        %v9853 = vunpack.c.h.b16 %v9816
        %v9854 = vunpack.c.l.b16 %v9817
        %v9855 = vunpack.c.h.b16 %v9817
        %v9856 = vunpack.c.l.b16 %v9818
        %v9857 = vunpack.c.h.b16 %v9818
        %v9858 = vunpack.c.l.b16 %v9819
        %v9859 = vunpack.c.h.b16 %v9819
        %v9860 = vunpack.c.l.b16 %v9820
        %v9861 = vunpack.c.h.b16 %v9820
        %v9862 = vunpack.c.l.b16 %v9821
        %v9863 = vunpack.c.h.b16 %v9821
        %v9864 = vunpack.c.l.b16 %v9822
        %v9865 = vunpack.c.h.b16 %v9822
        %v9866 = vunpack.c.l.b16 %v9823
        %v9867 = vunpack.c.h.b16 %v9823
        %v9868 = vunpack.c.l.b16 %v9824
        %v9869 = vunpack.c.h.b16 %v9824
        %v9870 = vunpack.c.l.b16 %v9825
        %v9871 = vunpack.c.h.b16 %v9825
        %v9872 = vunpack.c.l.b16 %v9826
        %v9873 = vunpack.c.h.b16 %v9826
        %v9874 = vunpack.c.l.b16 %v9827
        %v9875 = vunpack.c.h.b16 %v9827
        %v9876 = vpack.c.b16 %v9846, %v9844
        %v9877 = vpack.c.b16 %v9847, %v9845
        %v9878 = vpack.c.b16 %v9850, %v9848
        %v9879 = vpack.c.b16 %v9851, %v9849
        %v9880 = vpack.c.b16 %v9854, %v9852
        %v9881 = vpack.c.b16 %v9855, %v9853
        %v9882 = vpack.c.b16 %v9858, %v9856
        %v9883 = vpack.c.b16 %v9859, %v9857
        %v9884 = vpack.c.b16 %v9862, %v9860
        %v9885 = vpack.c.b16 %v9863, %v9861
        %v9886 = vpack.c.b16 %v9866, %v9864
        %v9887 = vpack.c.b16 %v9867, %v9865
        %v9888 = vpack.c.b16 %v9870, %v9868
        %v9889 = vpack.c.b16 %v9871, %v9869
        %v9890 = vpack.c.b16 %v9874, %v9872
        %v9891 = vpack.c.b16 %v9875, %v9873
        %9908 = vmatprep.subr.bf16.mxu0 %v9891
        %9909 = vmatpush1.bf16.msra.mxu0 %v9890
        %9910 = vmatprep.subr.bf16.mxu0 %v9889
        %9911 = vmatpush1.bf16.msra.mxu0 %v9888
        %9912 = vmatprep.subr.bf16.mxu0 %v9887
        %9913 = vmatpush1.bf16.msra.mxu0 %v9886
        %9914 = vmatprep.subr.bf16.mxu0 %v9885
        %9915 = vmatpush1.bf16.msra.mxu0 %v9884
        %9916 = vmatprep.subr.bf16.mxu0 %v9883
        %9917 = vmatpush1.bf16.msra.mxu0 %v9882
        %9918 = vmatprep.subr.bf16.mxu0 %v9881
        %9919 = vmatpush1.bf16.msra.mxu0 %v9880
        %9920 = vmatprep.subr.bf16.mxu0 %v9879
        %9921 = vmatpush1.bf16.msra.mxu0 %v9878
        %9922 = vmatprep.subr.bf16.mxu0 %v9877
        %9923 = vmatpush1.bf16.msra.mxu0 %v9876
        %9924 = vmatprep.subr.bf16.mxu0 0
        %9925 = vmatpush2.bf16.msra.mxu0 0
        %9926 = vmatprep.subr.bf16.mxu0 0
        %9927 = vmatpush2.bf16.msra.mxu0 0
        %9928 = vmatprep.subr.bf16.mxu0 0
        %9929 = vmatpush2.bf16.msra.mxu0 0
        %9930 = vmatprep.subr.bf16.mxu0 0
        %9931 = vmatpush2.bf16.msra.mxu0 0
        %9932 = vmatprep.subr.bf16.mxu0 0
        %9933 = vmatpush2.bf16.msra.mxu0 0
        %9934 = vmatprep.subr.bf16.mxu0 0
        %9935 = vmatpush2.bf16.msra.mxu0 0
        %9936 = vmatprep.subr.bf16.mxu0 0
        %9937 = vmatpush2.bf16.msra.mxu0 0
        %9938 = vmatprep.subr.bf16.mxu0 0
        %9939 = vmatpush2.bf16.msra.mxu0 0
        %9940 = vmatprep.mubr.bf16.mxu0 0
        %9941 = vmatmul.mubr.bf16.gmra.mxu0 %v9811
        %v9942 = vpop.f32.mrf.mxu0
        %v9943 = vadd.f32 0.0, %v9942
        %v9944 = vpop.f32.mrf.mxu0
        %v9945 = vadd.f32 0.0, %v9944
        %v9946 = vpop.f32.mrf.mxu0
        %v9947 = vadd.f32 0.0, %v9946
        %v9948 = vpop.f32.mrf.mxu0
        %v9949 = vadd.f32 0.0, %v9948
        %9950 = vdwg.mxu0
        %v9951 = vadd.f32 %v9805, %v9943
        %v9952 = vadd.f32 %v9806, %v9945
        %v9953 = vadd.f32 %v9807, %v9947
        %v9954 = vadd.f32 %v9808, %v9949
        %v9955 = vld [vmem:[%s12] sm:$0x3]
        %v9957 = vlaneseq
        %v9958 = vshrl.u32 %v9957, 7
        %v9959 = vsub.s32 0, %v9958
        %v9960 = vrot.slane %v9955, %v9959
        %v9961 = vlaneseq
        %v9962 = vshrl.u32 %v9961, 7
        %v9963 = vsub.s32 1, %v9962
        %v9964 = vrot.slane %v9955, %v9963
        %v9967 = vadd.f32 %v9951, %v9960
        %v9968 = vadd.f32 %v9952, %v9964
        %v9969 = vadd.f32 %v9953, %v9960
        %v9970 = vadd.f32 %v9954, %v9964
        %v9971 = vtanh.pop %v9967
        %v9972 = vtanh.pop %v9968
        %v9973 = vtanh.pop %v9969
        %v9974 = vtanh.pop %v9970
        %v9977 = vcombine.high %v9971, %v9972
        %v9978 = vrot.slane %v9977, 5
        %v9979 = vrot.slane %v9978, 4
        %9981 = vst [vmem:[%s549] sm:$0x33] %v9979
        %v9984 = vcombine.low %v9973, %v9974
        %v9985 = vrot.slane %v9984, 7
        %9987 = vst [vmem:[%s549] sm:$0xcc] %v9985
        %s9988 = sand.u32 %s320, 1
        %s9989 = scalar_lea.sflag [#allocation8], %s9988
        %s9990 = sand.u32 %s320, 1
        %s9991 = smul.addr %s9990, 256
        %s9992 = scalar_lea.vmem [#allocation7], %s9991
        %s9993 = sand.u32 %s34, 1
        %s9994 = scalar_lea.sflag [#allocation10], %s9993
        %s9995 = sand.u32 %s346, 1
        %s9996 = smul.addr %s9995, 64
        %s9997 = scalar_lea.vmem [#allocation9], %s9996
        %s9998 = sand.u32 %s34, 1
        %s9999 = scalar_lea.sflag [#allocation10], %s9998
        %s10000 = sand.u32 %s372, 1
        %s10001 = smul.addr %s10000, 16
        %s10002 = scalar_lea.vmem [#allocation11], %s10001
        %p10003 = scmp.lt.s32.totalorder %s34, 1
        %s10004 = scalar_select %p10003, %s34, 1
        %s10005 = smul.addr %s10004, 2
        %s10006 = smul.addr %s10005, 4
        %s10007 = scalar_lea.vmem %s16, %s10006
        // Predicated region
        $region73: #{encoder_forward.1} parent=71 // pred_check
          %p10008 = pneg %p330
        $region74: #{encoder_forward.1} parent=71 // pred_check_branch
          %10010 = sbr.rel (%p10008) target = $region76
        $region75: #{encoder_forward.1} parent=71 // pred_region
          %s10012 = ssub.s32 4096, 4096
          %10013 = vsyncadd %s9989, %s10012
          %s10014 = smul.addr %s34, 32
          %s10015 = smul.addr %s10014, 128
          %s10016 = scalar_lea.hbm %s13, %s10015
          %s10017 = sshll.u32 %s9992, 4
          %s10018 = int_to_ptr.vmem [resolvable:$true] %s10017
          %10023 = dma.vmem_to_hbm [thread:$0]  %s10018, 4096, %s10016, %s9989, 128, 128, 8
        $region76: #{encoder_forward.1} parent=71 // pred_fallthru
          _
        // Predicated region
        $region77: #{encoder_forward.1} parent=71 // pred_check
          %p10024 = pneg %p356
        $region78: #{encoder_forward.1} parent=71 // pred_check_branch
          %10026 = sbr.rel (%p10024) target = $region80
        $region79: #{encoder_forward.1} parent=71 // pred_region
          %s10028 = ssub.s32 1024, 1024
          %10029 = vsyncadd %s9994, %s10028
          %s10030 = smul.addr %s34, 8
          %s10031 = smul.addr %s10030, 128
          %s10032 = scalar_lea.hbm %s14, %s10031
          %s10033 = sshll.u32 %s9997, 4
          %s10034 = int_to_ptr.vmem [resolvable:$true] %s10033
          %10039 = dma.vmem_to_hbm [thread:$0]  %s10034, 1024, %s10032, %s9994, 128, 128, 8
        $region80: #{encoder_forward.1} parent=71 // pred_fallthru
          _
        // Predicated region
        $region81: #{encoder_forward.1} parent=71 // pred_check
          %p10040 = pneg %p382
        $region82: #{encoder_forward.1} parent=71 // pred_check_branch
          %10042 = sbr.rel (%p10040) target = $region84
        $region83: #{encoder_forward.1} parent=71 // pred_region
          %s10044 = ssub.s32 256, 256
          %10045 = vsyncadd %s9999, %s10044
          %s10046 = smul.addr %s34, 2
          %s10047 = smul.addr %s10046, 128
          %s10048 = scalar_lea.hbm %s15, %s10047
          %s10049 = sshll.u32 %s10002, 4
          %s10050 = int_to_ptr.vmem [resolvable:$true] %s10049
          %10055 = dma.vmem_to_hbm [thread:$0]  %s10050, 256, %s10048, %s9999, 128, 128, 8
        $region84: #{encoder_forward.1} parent=71 // pred_fallthru
          _
        // Predicated region
        $region85: #{encoder_forward.1} parent=71 // pred_check
          %p10056 = pneg %p408
        $region86: #{encoder_forward.1} parent=71 // pred_check_branch
          %10058 = sbr.rel (%p10056) target = $region88
        $region87: #{encoder_forward.1} parent=71 // pred_region
          _
        $region88: #{encoder_forward.1} parent=71 // pred_fallthru
          _
      $region72: #{encoder_forward.1} parent=5 // pred_fallthru
        _
      %p10059 = scmp.le.s32.totalorder 2, %s29
      // Predicated region
      $region89: #{encoder_forward.1} parent=5 // pred_check
        %p10060 = pneg %p10059
      $region90: #{encoder_forward.1} parent=5 // pred_check_branch
        %10062 = sbr.rel (%p10060) target = $region92
      $region91: #{encoder_forward.1} parent=5 // pred_region
        %s10063 = ssub.s32 %s29, 2
        // Predicated region
        $region93: #{encoder_forward.1} parent=91 // pred_check
          %p10064 = pneg %p336
        $region94: #{encoder_forward.1} parent=91 // pred_check_branch
          %10066 = sbr.rel (%p10064) target = $region96
        $region95: #{encoder_forward.1} parent=91 // pred_region
          %s10067 = sand.u32 %s321, 1
          %s10068 = scalar_lea.sflag [#allocation8], %s10067
          %s10069 = sand.u32 %s321, 1
          %s10070 = smul.addr %s10069, 256
          %s10071 = scalar_lea.vmem [#allocation7], %s10070
          %10072 = dma.done %s10068, 4096
        $region96: #{encoder_forward.1} parent=91 // pred_fallthru
          _
        // Predicated region
        $region97: #{encoder_forward.1} parent=91 // pred_check
          %p10073 = pneg %p362
        $region98: #{encoder_forward.1} parent=91 // pred_check_branch
          %10075 = sbr.rel (%p10073) target = $region100
        $region99: #{encoder_forward.1} parent=91 // pred_region
          %s10076 = sand.u32 %s35, 1
          %s10077 = scalar_lea.sflag [#allocation10], %s10076
          %s10078 = sand.u32 %s347, 1
          %s10079 = smul.addr %s10078, 64
          %s10080 = scalar_lea.vmem [#allocation9], %s10079
          %10081 = dma.done %s10077, 1024
        $region100: #{encoder_forward.1} parent=91 // pred_fallthru
          _
        // Predicated region
        $region101: #{encoder_forward.1} parent=91 // pred_check
          %p10082 = pneg %p388
        $region102: #{encoder_forward.1} parent=91 // pred_check_branch
          %10084 = sbr.rel (%p10082) target = $region104
        $region103: #{encoder_forward.1} parent=91 // pred_region
          %s10085 = sand.u32 %s35, 1
          %s10086 = scalar_lea.sflag [#allocation10], %s10085
          %s10087 = sand.u32 %s373, 1
          %s10088 = smul.addr %s10087, 16
          %s10089 = scalar_lea.vmem [#allocation11], %s10088
          %10090 = dma.done %s10086, 256
        $region104: #{encoder_forward.1} parent=91 // pred_fallthru
          _
        // Predicated region
        $region105: #{encoder_forward.1} parent=91 // pred_check
          %p10091 = pneg %p414
        $region106: #{encoder_forward.1} parent=91 // pred_check_branch
          %10093 = sbr.rel (%p10091) target = $region108
        $region107: #{encoder_forward.1} parent=91 // pred_region
          %p10094 = scmp.lt.s32.totalorder %s35, 1
          %s10095 = scalar_select %p10094, %s35, 1
          %s10096 = smul.addr %s10095, 2
          %s10097 = smul.addr %s10096, 4
          %s10098 = scalar_lea.vmem %s16, %s10097
        $region108: #{encoder_forward.1} parent=91 // pred_fallthru
          _
      $region92: #{encoder_forward.1} parent=5 // pred_fallthru
        _
    $region6: #{encoder_forward.1} parent=1 // loop_footer
      %s33 = sadd.s32 1, %s29
    $region7: #{encoder_forward.1} parent=1 // loop_footer_branch
      %28 = sbr.rel target = $region3
    $region8: #{encoder_forward.1} parent=1 // loop_exit
      _
    %10099 = vsyncpa [#allocation8], 1
    %s10100 = scalar_lea.sflag [#allocation8], 1
    %10101 = vsyncpa %s10100, 1
    %10102 = vsyncpa [#allocation10], 1
    %s10103 = scalar_lea.sflag [#allocation10], 1
    %10104 = vsyncpa %s10103, 1

</llo_original>
